<compile_context>
chip_gen: v7x
topology: tpu7x:2x2x1
jax: 0.10.0
libtpu: 0.0.40
codegen_flags: <defaults>
</compile_context>

<pallas_src>
import functools

import jax
import jax.numpy as jnp
from jax.experimental import pallas as pl
from jax.experimental.pallas import tpu as pltpu


def _bayar_real_kernel(kernel_param, in_channels, out_channels, kernel_size):
    """Reproduce BayarConv2d.bayarConstraint() in plain JAX (parameter glue)."""
    # kernel_param: (in, out, K*K - 1); normalize each (in, out) slice to sum 1.
    k = kernel_param / jnp.sum(kernel_param, axis=2, keepdims=True)
    minus1 = -jnp.ones((in_channels, out_channels, 1), kernel_param.dtype)
    ctr = kernel_size ** 2 // 2
    real = jnp.concatenate([k[:, :, :ctr], minus1, k[:, :, ctr:]], axis=2)
    # PyTorch does a *flat* row-major reshape (in, out, K*K) -> (out, in, K, K);
    # jnp.reshape is row-major too, so semantics match exactly.
    real = real.reshape(out_channels, in_channels, kernel_size, kernel_size)
    return real


def _conv_kernel(w_ref, x_ref, o_ref, *, K, OH, OW, IC, OC, stride):
    # w_ref: SMEM (OC*IC*K*K,)  -- flattened OIHW constrained weights (scalars)
    # x_ref: VMEM (1, IC, Hp, Wp) -- one batch element, NCHW
    # o_ref: VMEM (1, OC, OH, OW)
    accs = [jnp.zeros((OH, OW), jnp.float32) for _ in range(OC)]
    for ic in range(IC):
        xi = x_ref[0, ic]  # (Hp, Wp)
        for kh in range(K):
            for kw in range(K):
                # Shared shifted window for all output channels of this tap.
                patch = jax.lax.slice(
                    xi,
                    (kh, kw),
                    (kh + (OH - 1) * stride + 1, kw + (OW - 1) * stride + 1),
                    (stride, stride),
                )  # (OH, OW)
                for oc in range(OC):
                    w = w_ref[((oc * IC + ic) * K + kh) * K + kw]  # SMEM scalar
                    accs[oc] = accs[oc] + w * patch
    for oc in range(OC):
        o_ref[0, oc, :, :] = accs[oc].astype(o_ref.dtype)


def bayar_conv2d(x_nchw, kernel_param, *, kernel_size=5, stride=1, padding=0):
    """Forward pass of BayarConv2d. x_nchw: (N, C_in, H, W) -> (N, C_out, OH, OW)."""
    N, IC, H, W = x_nchw.shape
    ICk, OC, _ = kernel_param.shape
    assert ICk == IC, "kernel param in_channels mismatch"

    real_w = _bayar_real_kernel(kernel_param, IC, OC, kernel_size)  # (OC, IC, K, K)
    w_flat = real_w.reshape(-1)  # row-major OIHW flatten -> SMEM scalar table

    if padding:
        x_nchw = jnp.pad(
            x_nchw, ((0, 0), (0, 0), (padding, padding), (padding, padding))
        )
    Hp, Wp = H + 2 * padding, W + 2 * padding
    OH = (Hp - kernel_size) // stride + 1
    OW = (Wp - kernel_size) // stride + 1

    kern = functools.partial(
        _conv_kernel, K=kernel_size, OH=OH, OW=OW, IC=IC, OC=OC, stride=stride
    )

    flops = 2 * N * OH * OW * kernel_size * kernel_size * IC * OC
    bytes_accessed = 4 * (N * IC * Hp * Wp + N * OC * OH * OW + w_flat.size)

    out = pl.pallas_call(
        kern,
        out_shape=jax.ShapeDtypeStruct((N, OC, OH, OW), x_nchw.dtype),
        grid_spec=pltpu.PrefetchScalarGridSpec(
            num_scalar_prefetch=0,
            grid=(N,),  # N=2 -> one batch element per TensorCore on v7x
            in_specs=[
                pl.BlockSpec(memory_space=pltpu.MemorySpace.SMEM),  # weights
                pl.BlockSpec((1, IC, Hp, Wp), lambda n: (n, 0, 0, 0)),
            ],
            out_specs=pl.BlockSpec((1, OC, OH, OW), lambda n: (n, 0, 0, 0)),
        ),
        compiler_params=pltpu.CompilerParams(dimension_semantics=("parallel",)),
        cost_estimate=pl.CostEstimate(
            flops=flops, transcendentals=0, bytes_accessed=bytes_accessed
        ),
    )(w_flat, x_nchw)
    return out


if __name__ == "__main__":
    # Module config: in_channels=4, out_channels=4, kernel_size=5, stride=1, padding=0
    in_channels, out_channels, kernel_size = 4, 4, 5
    N, H, W = 2, 16, 16

    key = jax.random.PRNGKey(0)
    kx, kw = jax.random.split(key)
    x = jax.random.normal(kx, (N, in_channels, H, W), dtype=jnp.float32)
    # nn.Parameter(torch.rand(in, out, K*K - 1)) -> uniform [0, 1)
    kernel_param = jax.random.uniform(
        kw, (in_channels, out_channels, kernel_size ** 2 - 1), dtype=jnp.float32
    )

    fwd = jax.jit(
        functools.partial(bayar_conv2d, kernel_size=kernel_size, stride=1, padding=0)
    )
    out = jax.block_until_ready(fwd(x, kernel_param))

    # Reference: same constrained weight fed to XLA's conv (NCHW / OIHW).
    real_w = _bayar_real_kernel(kernel_param, in_channels, out_channels, kernel_size)
    ref = jax.lax.conv_general_dilated(
        x, real_w, window_strides=(1, 1), padding="VALID",
        dimension_numbers=("NCHW", "OIHW", "NCHW"),
    )
    assert out.shape == (N, out_channels, H - kernel_size + 1, W - kernel_size + 1)
    assert jnp.allclose(out, ref, atol=1e-4, rtol=1e-4), "mismatch vs reference conv"

    print("KERNEL_OK")
</pallas_src>

<mosaic_0001>
module attributes {stable_mosaic.version = 11 : i64} {
  func.func @_conv_kernel(%arg0: i32, %arg1: memref<400xf32, #tpu.memory_space<smem>>, %arg2: memref<1x4x16x16xf32, #tpu.memory_space<vmem>>, %arg3: memref<1x4x12x12xf32, #tpu.memory_space<vmem>>) attributes {dimension_semantics = [#tpu.dimension_semantics<parallel>], iteration_bounds = array<i64: 2>, scalar_prefetch = 0 : i64, scratch_operands = 0 : i64, tpu.core_type = #tpu.core_type<tc>, window_params = [{transform_indices = @transform_0, window_bounds = array<i64: 400>}, {transform_indices = @transform_1, window_bounds = array<i64: 1, 4, 16, 16>}, {transform_indices = @transform_2, window_bounds = array<i64: 1, 4, 12, 12>}]} {
    %cst = arith.constant 0.000000e+00 : f32
    %0 = vector.broadcast %cst : f32 to vector<12x12xf32>
    %cst_0 = arith.constant 0.000000e+00 : f32
    %1 = vector.broadcast %cst_0 : f32 to vector<12x12xf32>
    %cst_1 = arith.constant 0.000000e+00 : f32
    %2 = vector.broadcast %cst_1 : f32 to vector<12x12xf32>
    %cst_2 = arith.constant 0.000000e+00 : f32
    %3 = vector.broadcast %cst_2 : f32 to vector<12x12xf32>
    %c0 = arith.constant 0 : index
    %c0_3 = arith.constant 0 : index
    %c0_4 = arith.constant 0 : index
    %c0_5 = arith.constant 0 : index
    %4 = vector.load %arg2[%c0, %c0_3, %c0_4, %c0_5] : memref<1x4x16x16xf32, #tpu.memory_space<vmem>>, vector<1x1x16x16xf32>
    %5 = vector.shape_cast %4 : vector<1x1x16x16xf32> to vector<16x16xf32>
    %6 = vector.extract_strided_slice %5 {offsets = [0, 0], sizes = [12, 12], strides = [1, 1]} : vector<16x16xf32> to vector<12x12xf32>
    %c0_6 = arith.constant 0 : index
    %7 = memref.load %arg1[%c0_6] : memref<400xf32, #tpu.memory_space<smem>>
    %8 = vector.broadcast %7 : f32 to vector<12x12xf32>
    %9 = arith.mulf %8, %6 : vector<12x12xf32>
    %10 = arith.addf %0, %9 : vector<12x12xf32>
    %c100 = arith.constant 100 : index
    %11 = memref.load %arg1[%c100] : memref<400xf32, #tpu.memory_space<smem>>
    %12 = vector.broadcast %11 : f32 to vector<12x12xf32>
    %13 = arith.mulf %12, %6 : vector<12x12xf32>
    %14 = arith.addf %1, %13 : vector<12x12xf32>
    %c200 = arith.constant 200 : index
    %15 = memref.load %arg1[%c200] : memref<400xf32, #tpu.memory_space<smem>>
    %16 = vector.broadcast %15 : f32 to vector<12x12xf32>
    %17 = arith.mulf %16, %6 : vector<12x12xf32>
    %18 = arith.addf %2, %17 : vector<12x12xf32>
    %c300 = arith.constant 300 : index
    %19 = memref.load %arg1[%c300] : memref<400xf32, #tpu.memory_space<smem>>
    %20 = vector.broadcast %19 : f32 to vector<12x12xf32>
    %21 = arith.mulf %20, %6 : vector<12x12xf32>
    %22 = arith.addf %3, %21 : vector<12x12xf32>
    %23 = vector.extract_strided_slice %5 {offsets = [0, 1], sizes = [12, 12], strides = [1, 1]} : vector<16x16xf32> to vector<12x12xf32>
    %c1 = arith.constant 1 : index
    %24 = memref.load %arg1[%c1] : memref<400xf32, #tpu.memory_space<smem>>
    %25 = vector.broadcast %24 : f32 to vector<12x12xf32>
    %26 = arith.mulf %25, %23 : vector<12x12xf32>
    %27 = arith.addf %10, %26 : vector<12x12xf32>
    %c101 = arith.constant 101 : index
    %28 = memref.load %arg1[%c101] : memref<400xf32, #tpu.memory_space<smem>>
    %29 = vector.broadcast %28 : f32 to vector<12x12xf32>
    %30 = arith.mulf %29, %23 : vector<12x12xf32>
    %31 = arith.addf %14, %30 : vector<12x12xf32>
    %c201 = arith.constant 201 : index
    %32 = memref.load %arg1[%c201] : memref<400xf32, #tpu.memory_space<smem>>
    %33 = vector.broadcast %32 : f32 to vector<12x12xf32>
    %34 = arith.mulf %33, %23 : vector<12x12xf32>
    %35 = arith.addf %18, %34 : vector<12x12xf32>
    %c301 = arith.constant 301 : index
    %36 = memref.load %arg1[%c301] : memref<400xf32, #tpu.memory_space<smem>>
    %37 = vector.broadcast %36 : f32 to vector<12x12xf32>
    %38 = arith.mulf %37, %23 : vector<12x12xf32>
    %39 = arith.addf %22, %38 : vector<12x12xf32>
    %40 = vector.extract_strided_slice %5 {offsets = [0, 2], sizes = [12, 12], strides = [1, 1]} : vector<16x16xf32> to vector<12x12xf32>
    %c2 = arith.constant 2 : index
    %41 = memref.load %arg1[%c2] : memref<400xf32, #tpu.memory_space<smem>>
    %42 = vector.broadcast %41 : f32 to vector<12x12xf32>
    %43 = arith.mulf %42, %40 : vector<12x12xf32>
    %44 = arith.addf %27, %43 : vector<12x12xf32>
    %c102 = arith.constant 102 : index
    %45 = memref.load %arg1[%c102] : memref<400xf32, #tpu.memory_space<smem>>
    %46 = vector.broadcast %45 : f32 to vector<12x12xf32>
    %47 = arith.mulf %46, %40 : vector<12x12xf32>
    %48 = arith.addf %31, %47 : vector<12x12xf32>
    %c202 = arith.constant 202 : index
    %49 = memref.load %arg1[%c202] : memref<400xf32, #tpu.memory_space<smem>>
    %50 = vector.broadcast %49 : f32 to vector<12x12xf32>
    %51 = arith.mulf %50, %40 : vector<12x12xf32>
    %52 = arith.addf %35, %51 : vector<12x12xf32>
    %c302 = arith.constant 302 : index
    %53 = memref.load %arg1[%c302] : memref<400xf32, #tpu.memory_space<smem>>
    %54 = vector.broadcast %53 : f32 to vector<12x12xf32>
    %55 = arith.mulf %54, %40 : vector<12x12xf32>
    %56 = arith.addf %39, %55 : vector<12x12xf32>
    %57 = vector.extract_strided_slice %5 {offsets = [0, 3], sizes = [12, 12], strides = [1, 1]} : vector<16x16xf32> to vector<12x12xf32>
    %c3 = arith.constant 3 : index
    %58 = memref.load %arg1[%c3] : memref<400xf32, #tpu.memory_space<smem>>
    %59 = vector.broadcast %58 : f32 to vector<12x12xf32>
    %60 = arith.mulf %59, %57 : vector<12x12xf32>
    %61 = arith.addf %44, %60 : vector<12x12xf32>
    %c103 = arith.constant 103 : index
    %62 = memref.load %arg1[%c103] : memref<400xf32, #tpu.memory_space<smem>>
    %63 = vector.broadcast %62 : f32 to vector<12x12xf32>
    %64 = arith.mulf %63, %57 : vector<12x12xf32>
    %65 = arith.addf %48, %64 : vector<12x12xf32>
    %c203 = arith.constant 203 : index
    %66 = memref.load %arg1[%c203] : memref<400xf32, #tpu.memory_space<smem>>
    %67 = vector.broadcast %66 : f32 to vector<12x12xf32>
    %68 = arith.mulf %67, %57 : vector<12x12xf32>
    %69 = arith.addf %52, %68 : vector<12x12xf32>
    %c303 = arith.constant 303 : index
    %70 = memref.load %arg1[%c303] : memref<400xf32, #tpu.memory_space<smem>>
    %71 = vector.broadcast %70 : f32 to vector<12x12xf32>
    %72 = arith.mulf %71, %57 : vector<12x12xf32>
    %73 = arith.addf %56, %72 : vector<12x12xf32>
    %74 = vector.extract_strided_slice %5 {offsets = [0, 4], sizes = [12, 12], strides = [1, 1]} : vector<16x16xf32> to vector<12x12xf32>
    %c4 = arith.constant 4 : index
    %75 = memref.load %arg1[%c4] : memref<400xf32, #tpu.memory_space<smem>>
    %76 = vector.broadcast %75 : f32 to vector<12x12xf32>
    %77 = arith.mulf %76, %74 : vector<12x12xf32>
    %78 = arith.addf %61, %77 : vector<12x12xf32>
    %c104 = arith.constant 104 : index
    %79 = memref.load %arg1[%c104] : memref<400xf32, #tpu.memory_space<smem>>
    %80 = vector.broadcast %79 : f32 to vector<12x12xf32>
    %81 = arith.mulf %80, %74 : vector<12x12xf32>
    %82 = arith.addf %65, %81 : vector<12x12xf32>
    %c204 = arith.constant 204 : index
    %83 = memref.load %arg1[%c204] : memref<400xf32, #tpu.memory_space<smem>>
    %84 = vector.broadcast %83 : f32 to vector<12x12xf32>
    %85 = arith.mulf %84, %74 : vector<12x12xf32>
    %86 = arith.addf %69, %85 : vector<12x12xf32>
    %c304 = arith.constant 304 : index
    %87 = memref.load %arg1[%c304] : memref<400xf32, #tpu.memory_space<smem>>
    %88 = vector.broadcast %87 : f32 to vector<12x12xf32>
    %89 = arith.mulf %88, %74 : vector<12x12xf32>
    %90 = arith.addf %73, %89 : vector<12x12xf32>
    %91 = vector.extract_strided_slice %5 {offsets = [1, 0], sizes = [12, 12], strides = [1, 1]} : vector<16x16xf32> to vector<12x12xf32>
    %c5 = arith.constant 5 : index
    %92 = memref.load %arg1[%c5] : memref<400xf32, #tpu.memory_space<smem>>
    %93 = vector.broadcast %92 : f32 to vector<12x12xf32>
    %94 = arith.mulf %93, %91 : vector<12x12xf32>
    %95 = arith.addf %78, %94 : vector<12x12xf32>
    %c105 = arith.constant 105 : index
    %96 = memref.load %arg1[%c105] : memref<400xf32, #tpu.memory_space<smem>>
    %97 = vector.broadcast %96 : f32 to vector<12x12xf32>
    %98 = arith.mulf %97, %91 : vector<12x12xf32>
    %99 = arith.addf %82, %98 : vector<12x12xf32>
    %c205 = arith.constant 205 : index
    %100 = memref.load %arg1[%c205] : memref<400xf32, #tpu.memory_space<smem>>
    %101 = vector.broadcast %100 : f32 to vector<12x12xf32>
    %102 = arith.mulf %101, %91 : vector<12x12xf32>
    %103 = arith.addf %86, %102 : vector<12x12xf32>
    %c305 = arith.constant 305 : index
    %104 = memref.load %arg1[%c305] : memref<400xf32, #tpu.memory_space<smem>>
    %105 = vector.broadcast %104 : f32 to vector<12x12xf32>
    %106 = arith.mulf %105, %91 : vector<12x12xf32>
    %107 = arith.addf %90, %106 : vector<12x12xf32>
    %108 = vector.extract_strided_slice %5 {offsets = [1, 1], sizes = [12, 12], strides = [1, 1]} : vector<16x16xf32> to vector<12x12xf32>
    %c6 = arith.constant 6 : index
    %109 = memref.load %arg1[%c6] : memref<400xf32, #tpu.memory_space<smem>>
    %110 = vector.broadcast %109 : f32 to vector<12x12xf32>
    %111 = arith.mulf %110, %108 : vector<12x12xf32>
    %112 = arith.addf %95, %111 : vector<12x12xf32>
    %c106 = arith.constant 106 : index
    %113 = memref.load %arg1[%c106] : memref<400xf32, #tpu.memory_space<smem>>
    %114 = vector.broadcast %113 : f32 to vector<12x12xf32>
    %115 = arith.mulf %114, %108 : vector<12x12xf32>
    %116 = arith.addf %99, %115 : vector<12x12xf32>
    %c206 = arith.constant 206 : index
    %117 = memref.load %arg1[%c206] : memref<400xf32, #tpu.memory_space<smem>>
    %118 = vector.broadcast %117 : f32 to vector<12x12xf32>
    %119 = arith.mulf %118, %108 : vector<12x12xf32>
    %120 = arith.addf %103, %119 : vector<12x12xf32>
    %c306 = arith.constant 306 : index
    %121 = memref.load %arg1[%c306] : memref<400xf32, #tpu.memory_space<smem>>
    %122 = vector.broadcast %121 : f32 to vector<12x12xf32>
    %123 = arith.mulf %122, %108 : vector<12x12xf32>
    %124 = arith.addf %107, %123 : vector<12x12xf32>
    %125 = vector.extract_strided_slice %5 {offsets = [1, 2], sizes = [12, 12], strides = [1, 1]} : vector<16x16xf32> to vector<12x12xf32>
    %c7 = arith.constant 7 : index
    %126 = memref.load %arg1[%c7] : memref<400xf32, #tpu.memory_space<smem>>
    %127 = vector.broadcast %126 : f32 to vector<12x12xf32>
    %128 = arith.mulf %127, %125 : vector<12x12xf32>
    %129 = arith.addf %112, %128 : vector<12x12xf32>
    %c107 = arith.constant 107 : index
    %130 = memref.load %arg1[%c107] : memref<400xf32, #tpu.memory_space<smem>>
    %131 = vector.broadcast %130 : f32 to vector<12x12xf32>
    %132 = arith.mulf %131, %125 : vector<12x12xf32>
    %133 = arith.addf %116, %132 : vector<12x12xf32>
    %c207 = arith.constant 207 : index
    %134 = memref.load %arg1[%c207] : memref<400xf32, #tpu.memory_space<smem>>
    %135 = vector.broadcast %134 : f32 to vector<12x12xf32>
    %136 = arith.mulf %135, %125 : vector<12x12xf32>
    %137 = arith.addf %120, %136 : vector<12x12xf32>
    %c307 = arith.constant 307 : index
    %138 = memref.load %arg1[%c307] : memref<400xf32, #tpu.memory_space<smem>>
    %139 = vector.broadcast %138 : f32 to vector<12x12xf32>
    %140 = arith.mulf %139, %125 : vector<12x12xf32>
    %141 = arith.addf %124, %140 : vector<12x12xf32>
    %142 = vector.extract_strided_slice %5 {offsets = [1, 3], sizes = [12, 12], strides = [1, 1]} : vector<16x16xf32> to vector<12x12xf32>
    %c8 = arith.constant 8 : index
    %143 = memref.load %arg1[%c8] : memref<400xf32, #tpu.memory_space<smem>>
    %144 = vector.broadcast %143 : f32 to vector<12x12xf32>
    %145 = arith.mulf %144, %142 : vector<12x12xf32>
    %146 = arith.addf %129, %145 : vector<12x12xf32>
    %c108 = arith.constant 108 : index
    %147 = memref.load %arg1[%c108] : memref<400xf32, #tpu.memory_space<smem>>
    %148 = vector.broadcast %147 : f32 to vector<12x12xf32>
    %149 = arith.mulf %148, %142 : vector<12x12xf32>
    %150 = arith.addf %133, %149 : vector<12x12xf32>
    %c208 = arith.constant 208 : index
    %151 = memref.load %arg1[%c208] : memref<400xf32, #tpu.memory_space<smem>>
    %152 = vector.broadcast %151 : f32 to vector<12x12xf32>
    %153 = arith.mulf %152, %142 : vector<12x12xf32>
    %154 = arith.addf %137, %153 : vector<12x12xf32>
    %c308 = arith.constant 308 : index
    %155 = memref.load %arg1[%c308] : memref<400xf32, #tpu.memory_space<smem>>
    %156 = vector.broadcast %155 : f32 to vector<12x12xf32>
    %157 = arith.mulf %156, %142 : vector<12x12xf32>
    %158 = arith.addf %141, %157 : vector<12x12xf32>
    %159 = vector.extract_strided_slice %5 {offsets = [1, 4], sizes = [12, 12], strides = [1, 1]} : vector<16x16xf32> to vector<12x12xf32>
    %c9 = arith.constant 9 : index
    %160 = memref.load %arg1[%c9] : memref<400xf32, #tpu.memory_space<smem>>
    %161 = vector.broadcast %160 : f32 to vector<12x12xf32>
    %162 = arith.mulf %161, %159 : vector<12x12xf32>
    %163 = arith.addf %146, %162 : vector<12x12xf32>
    %c109 = arith.constant 109 : index
    %164 = memref.load %arg1[%c109] : memref<400xf32, #tpu.memory_space<smem>>
    %165 = vector.broadcast %164 : f32 to vector<12x12xf32>
    %166 = arith.mulf %165, %159 : vector<12x12xf32>
    %167 = arith.addf %150, %166 : vector<12x12xf32>
    %c209 = arith.constant 209 : index
    %168 = memref.load %arg1[%c209] : memref<400xf32, #tpu.memory_space<smem>>
    %169 = vector.broadcast %168 : f32 to vector<12x12xf32>
    %170 = arith.mulf %169, %159 : vector<12x12xf32>
    %171 = arith.addf %154, %170 : vector<12x12xf32>
    %c309 = arith.constant 309 : index
    %172 = memref.load %arg1[%c309] : memref<400xf32, #tpu.memory_space<smem>>
    %173 = vector.broadcast %172 : f32 to vector<12x12xf32>
    %174 = arith.mulf %173, %159 : vector<12x12xf32>
    %175 = arith.addf %158, %174 : vector<12x12xf32>
    %176 = vector.extract_strided_slice %5 {offsets = [2, 0], sizes = [12, 12], strides = [1, 1]} : vector<16x16xf32> to vector<12x12xf32>
    %c10 = arith.constant 10 : index
    %177 = memref.load %arg1[%c10] : memref<400xf32, #tpu.memory_space<smem>>
    %178 = vector.broadcast %177 : f32 to vector<12x12xf32>
    %179 = arith.mulf %178, %176 : vector<12x12xf32>
    %180 = arith.addf %163, %179 : vector<12x12xf32>
    %c110 = arith.constant 110 : index
    %181 = memref.load %arg1[%c110] : memref<400xf32, #tpu.memory_space<smem>>
    %182 = vector.broadcast %181 : f32 to vector<12x12xf32>
    %183 = arith.mulf %182, %176 : vector<12x12xf32>
    %184 = arith.addf %167, %183 : vector<12x12xf32>
    %c210 = arith.constant 210 : index
    %185 = memref.load %arg1[%c210] : memref<400xf32, #tpu.memory_space<smem>>
    %186 = vector.broadcast %185 : f32 to vector<12x12xf32>
    %187 = arith.mulf %186, %176 : vector<12x12xf32>
    %188 = arith.addf %171, %187 : vector<12x12xf32>
    %c310 = arith.constant 310 : index
    %189 = memref.load %arg1[%c310] : memref<400xf32, #tpu.memory_space<smem>>
    %190 = vector.broadcast %189 : f32 to vector<12x12xf32>
    %191 = arith.mulf %190, %176 : vector<12x12xf32>
    %192 = arith.addf %175, %191 : vector<12x12xf32>
    %193 = vector.extract_strided_slice %5 {offsets = [2, 1], sizes = [12, 12], strides = [1, 1]} : vector<16x16xf32> to vector<12x12xf32>
    %c11 = arith.constant 11 : index
    %194 = memref.load %arg1[%c11] : memref<400xf32, #tpu.memory_space<smem>>
    %195 = vector.broadcast %194 : f32 to vector<12x12xf32>
    %196 = arith.mulf %195, %193 : vector<12x12xf32>
    %197 = arith.addf %180, %196 : vector<12x12xf32>
    %c111 = arith.constant 111 : index
    %198 = memref.load %arg1[%c111] : memref<400xf32, #tpu.memory_space<smem>>
    %199 = vector.broadcast %198 : f32 to vector<12x12xf32>
    %200 = arith.mulf %199, %193 : vector<12x12xf32>
    %201 = arith.addf %184, %200 : vector<12x12xf32>
    %c211 = arith.constant 211 : index
    %202 = memref.load %arg1[%c211] : memref<400xf32, #tpu.memory_space<smem>>
    %203 = vector.broadcast %202 : f32 to vector<12x12xf32>
    %204 = arith.mulf %203, %193 : vector<12x12xf32>
    %205 = arith.addf %188, %204 : vector<12x12xf32>
    %c311 = arith.constant 311 : index
    %206 = memref.load %arg1[%c311] : memref<400xf32, #tpu.memory_space<smem>>
    %207 = vector.broadcast %206 : f32 to vector<12x12xf32>
    %208 = arith.mulf %207, %193 : vector<12x12xf32>
    %209 = arith.addf %192, %208 : vector<12x12xf32>
    %210 = vector.extract_strided_slice %5 {offsets = [2, 2], sizes = [12, 12], strides = [1, 1]} : vector<16x16xf32> to vector<12x12xf32>
    %c12 = arith.constant 12 : index
    %211 = memref.load %arg1[%c12] : memref<400xf32, #tpu.memory_space<smem>>
    %212 = vector.broadcast %211 : f32 to vector<12x12xf32>
    %213 = arith.mulf %212, %210 : vector<12x12xf32>
    %214 = arith.addf %197, %213 : vector<12x12xf32>
    %c112 = arith.constant 112 : index
    %215 = memref.load %arg1[%c112] : memref<400xf32, #tpu.memory_space<smem>>
    %216 = vector.broadcast %215 : f32 to vector<12x12xf32>
    %217 = arith.mulf %216, %210 : vector<12x12xf32>
    %218 = arith.addf %201, %217 : vector<12x12xf32>
    %c212 = arith.constant 212 : index
    %219 = memref.load %arg1[%c212] : memref<400xf32, #tpu.memory_space<smem>>
    %220 = vector.broadcast %219 : f32 to vector<12x12xf32>
    %221 = arith.mulf %220, %210 : vector<12x12xf32>
    %222 = arith.addf %205, %221 : vector<12x12xf32>
    %c312 = arith.constant 312 : index
    %223 = memref.load %arg1[%c312] : memref<400xf32, #tpu.memory_space<smem>>
    %224 = vector.broadcast %223 : f32 to vector<12x12xf32>
    %225 = arith.mulf %224, %210 : vector<12x12xf32>
    %226 = arith.addf %209, %225 : vector<12x12xf32>
    %227 = vector.extract_strided_slice %5 {offsets = [2, 3], sizes = [12, 12], strides = [1, 1]} : vector<16x16xf32> to vector<12x12xf32>
    %c13 = arith.constant 13 : index
    %228 = memref.load %arg1[%c13] : memref<400xf32, #tpu.memory_space<smem>>
    %229 = vector.broadcast %228 : f32 to vector<12x12xf32>
    %230 = arith.mulf %229, %227 : vector<12x12xf32>
    %231 = arith.addf %214, %230 : vector<12x12xf32>
    %c113 = arith.constant 113 : index
    %232 = memref.load %arg1[%c113] : memref<400xf32, #tpu.memory_space<smem>>
    %233 = vector.broadcast %232 : f32 to vector<12x12xf32>
    %234 = arith.mulf %233, %227 : vector<12x12xf32>
    %235 = arith.addf %218, %234 : vector<12x12xf32>
    %c213 = arith.constant 213 : index
    %236 = memref.load %arg1[%c213] : memref<400xf32, #tpu.memory_space<smem>>
    %237 = vector.broadcast %236 : f32 to vector<12x12xf32>
    %238 = arith.mulf %237, %227 : vector<12x12xf32>
    %239 = arith.addf %222, %238 : vector<12x12xf32>
    %c313 = arith.constant 313 : index
    %240 = memref.load %arg1[%c313] : memref<400xf32, #tpu.memory_space<smem>>
    %241 = vector.broadcast %240 : f32 to vector<12x12xf32>
    %242 = arith.mulf %241, %227 : vector<12x12xf32>
    %243 = arith.addf %226, %242 : vector<12x12xf32>
    %244 = vector.extract_strided_slice %5 {offsets = [2, 4], sizes = [12, 12], strides = [1, 1]} : vector<16x16xf32> to vector<12x12xf32>
    %c14 = arith.constant 14 : index
    %245 = memref.load %arg1[%c14] : memref<400xf32, #tpu.memory_space<smem>>
    %246 = vector.broadcast %245 : f32 to vector<12x12xf32>
    %247 = arith.mulf %246, %244 : vector<12x12xf32>
    %248 = arith.addf %231, %247 : vector<12x12xf32>
    %c114 = arith.constant 114 : index
    %249 = memref.load %arg1[%c114] : memref<400xf32, #tpu.memory_space<smem>>
    %250 = vector.broadcast %249 : f32 to vector<12x12xf32>
    %251 = arith.mulf %250, %244 : vector<12x12xf32>
    %252 = arith.addf %235, %251 : vector<12x12xf32>
    %c214 = arith.constant 214 : index
    %253 = memref.load %arg1[%c214] : memref<400xf32, #tpu.memory_space<smem>>
    %254 = vector.broadcast %253 : f32 to vector<12x12xf32>
    %255 = arith.mulf %254, %244 : vector<12x12xf32>
    %256 = arith.addf %239, %255 : vector<12x12xf32>
    %c314 = arith.constant 314 : index
    %257 = memref.load %arg1[%c314] : memref<400xf32, #tpu.memory_space<smem>>
    %258 = vector.broadcast %257 : f32 to vector<12x12xf32>
    %259 = arith.mulf %258, %244 : vector<12x12xf32>
    %260 = arith.addf %243, %259 : vector<12x12xf32>
    %261 = vector.extract_strided_slice %5 {offsets = [3, 0], sizes = [12, 12], strides = [1, 1]} : vector<16x16xf32> to vector<12x12xf32>
    %c15 = arith.constant 15 : index
    %262 = memref.load %arg1[%c15] : memref<400xf32, #tpu.memory_space<smem>>
    %263 = vector.broadcast %262 : f32 to vector<12x12xf32>
    %264 = arith.mulf %263, %261 : vector<12x12xf32>
    %265 = arith.addf %248, %264 : vector<12x12xf32>
    %c115 = arith.constant 115 : index
    %266 = memref.load %arg1[%c115] : memref<400xf32, #tpu.memory_space<smem>>
    %267 = vector.broadcast %266 : f32 to vector<12x12xf32>
    %268 = arith.mulf %267, %261 : vector<12x12xf32>
    %269 = arith.addf %252, %268 : vector<12x12xf32>
    %c215 = arith.constant 215 : index
    %270 = memref.load %arg1[%c215] : memref<400xf32, #tpu.memory_space<smem>>
    %271 = vector.broadcast %270 : f32 to vector<12x12xf32>
    %272 = arith.mulf %271, %261 : vector<12x12xf32>
    %273 = arith.addf %256, %272 : vector<12x12xf32>
    %c315 = arith.constant 315 : index
    %274 = memref.load %arg1[%c315] : memref<400xf32, #tpu.memory_space<smem>>
    %275 = vector.broadcast %274 : f32 to vector<12x12xf32>
    %276 = arith.mulf %275, %261 : vector<12x12xf32>
    %277 = arith.addf %260, %276 : vector<12x12xf32>
    %278 = vector.extract_strided_slice %5 {offsets = [3, 1], sizes = [12, 12], strides = [1, 1]} : vector<16x16xf32> to vector<12x12xf32>
    %c16 = arith.constant 16 : index
    %279 = memref.load %arg1[%c16] : memref<400xf32, #tpu.memory_space<smem>>
    %280 = vector.broadcast %279 : f32 to vector<12x12xf32>
    %281 = arith.mulf %280, %278 : vector<12x12xf32>
    %282 = arith.addf %265, %281 : vector<12x12xf32>
    %c116 = arith.constant 116 : index
    %283 = memref.load %arg1[%c116] : memref<400xf32, #tpu.memory_space<smem>>
    %284 = vector.broadcast %283 : f32 to vector<12x12xf32>
    %285 = arith.mulf %284, %278 : vector<12x12xf32>
    %286 = arith.addf %269, %285 : vector<12x12xf32>
    %c216 = arith.constant 216 : index
    %287 = memref.load %arg1[%c216] : memref<400xf32, #tpu.memory_space<smem>>
    %288 = vector.broadcast %287 : f32 to vector<12x12xf32>
    %289 = arith.mulf %288, %278 : vector<12x12xf32>
    %290 = arith.addf %273, %289 : vector<12x12xf32>
    %c316 = arith.constant 316 : index
    %291 = memref.load %arg1[%c316] : memref<400xf32, #tpu.memory_space<smem>>
    %292 = vector.broadcast %291 : f32 to vector<12x12xf32>
    %293 = arith.mulf %292, %278 : vector<12x12xf32>
    %294 = arith.addf %277, %293 : vector<12x12xf32>
    %295 = vector.extract_strided_slice %5 {offsets = [3, 2], sizes = [12, 12], strides = [1, 1]} : vector<16x16xf32> to vector<12x12xf32>
    %c17 = arith.constant 17 : index
    %296 = memref.load %arg1[%c17] : memref<400xf32, #tpu.memory_space<smem>>
    %297 = vector.broadcast %296 : f32 to vector<12x12xf32>
    %298 = arith.mulf %297, %295 : vector<12x12xf32>
    %299 = arith.addf %282, %298 : vector<12x12xf32>
    %c117 = arith.constant 117 : index
    %300 = memref.load %arg1[%c117] : memref<400xf32, #tpu.memory_space<smem>>
    %301 = vector.broadcast %300 : f32 to vector<12x12xf32>
    %302 = arith.mulf %301, %295 : vector<12x12xf32>
    %303 = arith.addf %286, %302 : vector<12x12xf32>
    %c217 = arith.constant 217 : index
    %304 = memref.load %arg1[%c217] : memref<400xf32, #tpu.memory_space<smem>>
    %305 = vector.broadcast %304 : f32 to vector<12x12xf32>
    %306 = arith.mulf %305, %295 : vector<12x12xf32>
    %307 = arith.addf %290, %306 : vector<12x12xf32>
    %c317 = arith.constant 317 : index
    %308 = memref.load %arg1[%c317] : memref<400xf32, #tpu.memory_space<smem>>
    %309 = vector.broadcast %308 : f32 to vector<12x12xf32>
    %310 = arith.mulf %309, %295 : vector<12x12xf32>
    %311 = arith.addf %294, %310 : vector<12x12xf32>
    %312 = vector.extract_strided_slice %5 {offsets = [3, 3], sizes = [12, 12], strides = [1, 1]} : vector<16x16xf32> to vector<12x12xf32>
    %c18 = arith.constant 18 : index
    %313 = memref.load %arg1[%c18] : memref<400xf32, #tpu.memory_space<smem>>
    %314 = vector.broadcast %313 : f32 to vector<12x12xf32>
    %315 = arith.mulf %314, %312 : vector<12x12xf32>
    %316 = arith.addf %299, %315 : vector<12x12xf32>
    %c118 = arith.constant 118 : index
    %317 = memref.load %arg1[%c118] : memref<400xf32, #tpu.memory_space<smem>>
    %318 = vector.broadcast %317 : f32 to vector<12x12xf32>
    %319 = arith.mulf %318, %312 : vector<12x12xf32>
    %320 = arith.addf %303, %319 : vector<12x12xf32>
    %c218 = arith.constant 218 : index
    %321 = memref.load %arg1[%c218] : memref<400xf32, #tpu.memory_space<smem>>
    %322 = vector.broadcast %321 : f32 to vector<12x12xf32>
    %323 = arith.mulf %322, %312 : vector<12x12xf32>
    %324 = arith.addf %307, %323 : vector<12x12xf32>
    %c318 = arith.constant 318 : index
    %325 = memref.load %arg1[%c318] : memref<400xf32, #tpu.memory_space<smem>>
    %326 = vector.broadcast %325 : f32 to vector<12x12xf32>
    %327 = arith.mulf %326, %312 : vector<12x12xf32>
    %328 = arith.addf %311, %327 : vector<12x12xf32>
    %329 = vector.extract_strided_slice %5 {offsets = [3, 4], sizes = [12, 12], strides = [1, 1]} : vector<16x16xf32> to vector<12x12xf32>
    %c19 = arith.constant 19 : index
    %330 = memref.load %arg1[%c19] : memref<400xf32, #tpu.memory_space<smem>>
    %331 = vector.broadcast %330 : f32 to vector<12x12xf32>
    %332 = arith.mulf %331, %329 : vector<12x12xf32>
    %333 = arith.addf %316, %332 : vector<12x12xf32>
    %c119 = arith.constant 119 : index
    %334 = memref.load %arg1[%c119] : memref<400xf32, #tpu.memory_space<smem>>
    %335 = vector.broadcast %334 : f32 to vector<12x12xf32>
    %336 = arith.mulf %335, %329 : vector<12x12xf32>
    %337 = arith.addf %320, %336 : vector<12x12xf32>
    %c219 = arith.constant 219 : index
    %338 = memref.load %arg1[%c219] : memref<400xf32, #tpu.memory_space<smem>>
    %339 = vector.broadcast %338 : f32 to vector<12x12xf32>
    %340 = arith.mulf %339, %329 : vector<12x12xf32>
    %341 = arith.addf %324, %340 : vector<12x12xf32>
    %c319 = arith.constant 319 : index
    %342 = memref.load %arg1[%c319] : memref<400xf32, #tpu.memory_space<smem>>
    %343 = vector.broadcast %342 : f32 to vector<12x12xf32>
    %344 = arith.mulf %343, %329 : vector<12x12xf32>
    %345 = arith.addf %328, %344 : vector<12x12xf32>
    %346 = vector.extract_strided_slice %5 {offsets = [4, 0], sizes = [12, 12], strides = [1, 1]} : vector<16x16xf32> to vector<12x12xf32>
    %c20 = arith.constant 20 : index
    %347 = memref.load %arg1[%c20] : memref<400xf32, #tpu.memory_space<smem>>
    %348 = vector.broadcast %347 : f32 to vector<12x12xf32>
    %349 = arith.mulf %348, %346 : vector<12x12xf32>
    %350 = arith.addf %333, %349 : vector<12x12xf32>
    %c120 = arith.constant 120 : index
    %351 = memref.load %arg1[%c120] : memref<400xf32, #tpu.memory_space<smem>>
    %352 = vector.broadcast %351 : f32 to vector<12x12xf32>
    %353 = arith.mulf %352, %346 : vector<12x12xf32>
    %354 = arith.addf %337, %353 : vector<12x12xf32>
    %c220 = arith.constant 220 : index
    %355 = memref.load %arg1[%c220] : memref<400xf32, #tpu.memory_space<smem>>
    %356 = vector.broadcast %355 : f32 to vector<12x12xf32>
    %357 = arith.mulf %356, %346 : vector<12x12xf32>
    %358 = arith.addf %341, %357 : vector<12x12xf32>
    %c320 = arith.constant 320 : index
    %359 = memref.load %arg1[%c320] : memref<400xf32, #tpu.memory_space<smem>>
    %360 = vector.broadcast %359 : f32 to vector<12x12xf32>
    %361 = arith.mulf %360, %346 : vector<12x12xf32>
    %362 = arith.addf %345, %361 : vector<12x12xf32>
    %363 = vector.extract_strided_slice %5 {offsets = [4, 1], sizes = [12, 12], strides = [1, 1]} : vector<16x16xf32> to vector<12x12xf32>
    %c21 = arith.constant 21 : index
    %364 = memref.load %arg1[%c21] : memref<400xf32, #tpu.memory_space<smem>>
    %365 = vector.broadcast %364 : f32 to vector<12x12xf32>
    %366 = arith.mulf %365, %363 : vector<12x12xf32>
    %367 = arith.addf %350, %366 : vector<12x12xf32>
    %c121 = arith.constant 121 : index
    %368 = memref.load %arg1[%c121] : memref<400xf32, #tpu.memory_space<smem>>
    %369 = vector.broadcast %368 : f32 to vector<12x12xf32>
    %370 = arith.mulf %369, %363 : vector<12x12xf32>
    %371 = arith.addf %354, %370 : vector<12x12xf32>
    %c221 = arith.constant 221 : index
    %372 = memref.load %arg1[%c221] : memref<400xf32, #tpu.memory_space<smem>>
    %373 = vector.broadcast %372 : f32 to vector<12x12xf32>
    %374 = arith.mulf %373, %363 : vector<12x12xf32>
    %375 = arith.addf %358, %374 : vector<12x12xf32>
    %c321 = arith.constant 321 : index
    %376 = memref.load %arg1[%c321] : memref<400xf32, #tpu.memory_space<smem>>
    %377 = vector.broadcast %376 : f32 to vector<12x12xf32>
    %378 = arith.mulf %377, %363 : vector<12x12xf32>
    %379 = arith.addf %362, %378 : vector<12x12xf32>
    %380 = vector.extract_strided_slice %5 {offsets = [4, 2], sizes = [12, 12], strides = [1, 1]} : vector<16x16xf32> to vector<12x12xf32>
    %c22 = arith.constant 22 : index
    %381 = memref.load %arg1[%c22] : memref<400xf32, #tpu.memory_space<smem>>
    %382 = vector.broadcast %381 : f32 to vector<12x12xf32>
    %383 = arith.mulf %382, %380 : vector<12x12xf32>
    %384 = arith.addf %367, %383 : vector<12x12xf32>
    %c122 = arith.constant 122 : index
    %385 = memref.load %arg1[%c122] : memref<400xf32, #tpu.memory_space<smem>>
    %386 = vector.broadcast %385 : f32 to vector<12x12xf32>
    %387 = arith.mulf %386, %380 : vector<12x12xf32>
    %388 = arith.addf %371, %387 : vector<12x12xf32>
    %c222 = arith.constant 222 : index
    %389 = memref.load %arg1[%c222] : memref<400xf32, #tpu.memory_space<smem>>
    %390 = vector.broadcast %389 : f32 to vector<12x12xf32>
    %391 = arith.mulf %390, %380 : vector<12x12xf32>
    %392 = arith.addf %375, %391 : vector<12x12xf32>
    %c322 = arith.constant 322 : index
    %393 = memref.load %arg1[%c322] : memref<400xf32, #tpu.memory_space<smem>>
    %394 = vector.broadcast %393 : f32 to vector<12x12xf32>
    %395 = arith.mulf %394, %380 : vector<12x12xf32>
    %396 = arith.addf %379, %395 : vector<12x12xf32>
    %397 = vector.extract_strided_slice %5 {offsets = [4, 3], sizes = [12, 12], strides = [1, 1]} : vector<16x16xf32> to vector<12x12xf32>
    %c23 = arith.constant 23 : index
    %398 = memref.load %arg1[%c23] : memref<400xf32, #tpu.memory_space<smem>>
    %399 = vector.broadcast %398 : f32 to vector<12x12xf32>
    %400 = arith.mulf %399, %397 : vector<12x12xf32>
    %401 = arith.addf %384, %400 : vector<12x12xf32>
    %c123 = arith.constant 123 : index
    %402 = memref.load %arg1[%c123] : memref<400xf32, #tpu.memory_space<smem>>
    %403 = vector.broadcast %402 : f32 to vector<12x12xf32>
    %404 = arith.mulf %403, %397 : vector<12x12xf32>
    %405 = arith.addf %388, %404 : vector<12x12xf32>
    %c223 = arith.constant 223 : index
    %406 = memref.load %arg1[%c223] : memref<400xf32, #tpu.memory_space<smem>>
    %407 = vector.broadcast %406 : f32 to vector<12x12xf32>
    %408 = arith.mulf %407, %397 : vector<12x12xf32>
    %409 = arith.addf %392, %408 : vector<12x12xf32>
    %c323 = arith.constant 323 : index
    %410 = memref.load %arg1[%c323] : memref<400xf32, #tpu.memory_space<smem>>
    %411 = vector.broadcast %410 : f32 to vector<12x12xf32>
    %412 = arith.mulf %411, %397 : vector<12x12xf32>
    %413 = arith.addf %396, %412 : vector<12x12xf32>
    %414 = vector.extract_strided_slice %5 {offsets = [4, 4], sizes = [12, 12], strides = [1, 1]} : vector<16x16xf32> to vector<12x12xf32>
    %c24 = arith.constant 24 : index
    %415 = memref.load %arg1[%c24] : memref<400xf32, #tpu.memory_space<smem>>
    %416 = vector.broadcast %415 : f32 to vector<12x12xf32>
    %417 = arith.mulf %416, %414 : vector<12x12xf32>
    %418 = arith.addf %401, %417 : vector<12x12xf32>
    %c124 = arith.constant 124 : index
    %419 = memref.load %arg1[%c124] : memref<400xf32, #tpu.memory_space<smem>>
    %420 = vector.broadcast %419 : f32 to vector<12x12xf32>
    %421 = arith.mulf %420, %414 : vector<12x12xf32>
    %422 = arith.addf %405, %421 : vector<12x12xf32>
    %c224 = arith.constant 224 : index
    %423 = memref.load %arg1[%c224] : memref<400xf32, #tpu.memory_space<smem>>
    %424 = vector.broadcast %423 : f32 to vector<12x12xf32>
    %425 = arith.mulf %424, %414 : vector<12x12xf32>
    %426 = arith.addf %409, %425 : vector<12x12xf32>
    %c324 = arith.constant 324 : index
    %427 = memref.load %arg1[%c324] : memref<400xf32, #tpu.memory_space<smem>>
    %428 = vector.broadcast %427 : f32 to vector<12x12xf32>
    %429 = arith.mulf %428, %414 : vector<12x12xf32>
    %430 = arith.addf %413, %429 : vector<12x12xf32>
    %c0_7 = arith.constant 0 : index
    %c1_8 = arith.constant 1 : index
    %c0_9 = arith.constant 0 : index
    %c0_10 = arith.constant 0 : index
    %431 = vector.load %arg2[%c0_7, %c1_8, %c0_9, %c0_10] : memref<1x4x16x16xf32, #tpu.memory_space<vmem>>, vector<1x1x16x16xf32>
    %432 = vector.shape_cast %431 : vector<1x1x16x16xf32> to vector<16x16xf32>
    %433 = vector.extract_strided_slice %432 {offsets = [0, 0], sizes = [12, 12], strides = [1, 1]} : vector<16x16xf32> to vector<12x12xf32>
    %c25 = arith.constant 25 : index
    %434 = memref.load %arg1[%c25] : memref<400xf32, #tpu.memory_space<smem>>
    %435 = vector.broadcast %434 : f32 to vector<12x12xf32>
    %436 = arith.mulf %435, %433 : vector<12x12xf32>
    %437 = arith.addf %418, %436 : vector<12x12xf32>
    %c125 = arith.constant 125 : index
    %438 = memref.load %arg1[%c125] : memref<400xf32, #tpu.memory_space<smem>>
    %439 = vector.broadcast %438 : f32 to vector<12x12xf32>
    %440 = arith.mulf %439, %433 : vector<12x12xf32>
    %441 = arith.addf %422, %440 : vector<12x12xf32>
    %c225 = arith.constant 225 : index
    %442 = memref.load %arg1[%c225] : memref<400xf32, #tpu.memory_space<smem>>
    %443 = vector.broadcast %442 : f32 to vector<12x12xf32>
    %444 = arith.mulf %443, %433 : vector<12x12xf32>
    %445 = arith.addf %426, %444 : vector<12x12xf32>
    %c325 = arith.constant 325 : index
    %446 = memref.load %arg1[%c325] : memref<400xf32, #tpu.memory_space<smem>>
    %447 = vector.broadcast %446 : f32 to vector<12x12xf32>
    %448 = arith.mulf %447, %433 : vector<12x12xf32>
    %449 = arith.addf %430, %448 : vector<12x12xf32>
    %450 = vector.extract_strided_slice %432 {offsets = [0, 1], sizes = [12, 12], strides = [1, 1]} : vector<16x16xf32> to vector<12x12xf32>
    %c26 = arith.constant 26 : index
    %451 = memref.load %arg1[%c26] : memref<400xf32, #tpu.memory_space<smem>>
    %452 = vector.broadcast %451 : f32 to vector<12x12xf32>
    %453 = arith.mulf %452, %450 : vector<12x12xf32>
    %454 = arith.addf %437, %453 : vector<12x12xf32>
    %c126 = arith.constant 126 : index
    %455 = memref.load %arg1[%c126] : memref<400xf32, #tpu.memory_space<smem>>
    %456 = vector.broadcast %455 : f32 to vector<12x12xf32>
    %457 = arith.mulf %456, %450 : vector<12x12xf32>
    %458 = arith.addf %441, %457 : vector<12x12xf32>
    %c226 = arith.constant 226 : index
    %459 = memref.load %arg1[%c226] : memref<400xf32, #tpu.memory_space<smem>>
    %460 = vector.broadcast %459 : f32 to vector<12x12xf32>
    %461 = arith.mulf %460, %450 : vector<12x12xf32>
    %462 = arith.addf %445, %461 : vector<12x12xf32>
    %c326 = arith.constant 326 : index
    %463 = memref.load %arg1[%c326] : memref<400xf32, #tpu.memory_space<smem>>
    %464 = vector.broadcast %463 : f32 to vector<12x12xf32>
    %465 = arith.mulf %464, %450 : vector<12x12xf32>
    %466 = arith.addf %449, %465 : vector<12x12xf32>
    %467 = vector.extract_strided_slice %432 {offsets = [0, 2], sizes = [12, 12], strides = [1, 1]} : vector<16x16xf32> to vector<12x12xf32>
    %c27 = arith.constant 27 : index
    %468 = memref.load %arg1[%c27] : memref<400xf32, #tpu.memory_space<smem>>
    %469 = vector.broadcast %468 : f32 to vector<12x12xf32>
    %470 = arith.mulf %469, %467 : vector<12x12xf32>
    %471 = arith.addf %454, %470 : vector<12x12xf32>
    %c127 = arith.constant 127 : index
    %472 = memref.load %arg1[%c127] : memref<400xf32, #tpu.memory_space<smem>>
    %473 = vector.broadcast %472 : f32 to vector<12x12xf32>
    %474 = arith.mulf %473, %467 : vector<12x12xf32>
    %475 = arith.addf %458, %474 : vector<12x12xf32>
    %c227 = arith.constant 227 : index
    %476 = memref.load %arg1[%c227] : memref<400xf32, #tpu.memory_space<smem>>
    %477 = vector.broadcast %476 : f32 to vector<12x12xf32>
    %478 = arith.mulf %477, %467 : vector<12x12xf32>
    %479 = arith.addf %462, %478 : vector<12x12xf32>
    %c327 = arith.constant 327 : index
    %480 = memref.load %arg1[%c327] : memref<400xf32, #tpu.memory_space<smem>>
    %481 = vector.broadcast %480 : f32 to vector<12x12xf32>
    %482 = arith.mulf %481, %467 : vector<12x12xf32>
    %483 = arith.addf %466, %482 : vector<12x12xf32>
    %484 = vector.extract_strided_slice %432 {offsets = [0, 3], sizes = [12, 12], strides = [1, 1]} : vector<16x16xf32> to vector<12x12xf32>
    %c28 = arith.constant 28 : index
    %485 = memref.load %arg1[%c28] : memref<400xf32, #tpu.memory_space<smem>>
    %486 = vector.broadcast %485 : f32 to vector<12x12xf32>
    %487 = arith.mulf %486, %484 : vector<12x12xf32>
    %488 = arith.addf %471, %487 : vector<12x12xf32>
    %c128 = arith.constant 128 : index
    %489 = memref.load %arg1[%c128] : memref<400xf32, #tpu.memory_space<smem>>
    %490 = vector.broadcast %489 : f32 to vector<12x12xf32>
    %491 = arith.mulf %490, %484 : vector<12x12xf32>
    %492 = arith.addf %475, %491 : vector<12x12xf32>
    %c228 = arith.constant 228 : index
    %493 = memref.load %arg1[%c228] : memref<400xf32, #tpu.memory_space<smem>>
    %494 = vector.broadcast %493 : f32 to vector<12x12xf32>
    %495 = arith.mulf %494, %484 : vector<12x12xf32>
    %496 = arith.addf %479, %495 : vector<12x12xf32>
    %c328 = arith.constant 328 : index
    %497 = memref.load %arg1[%c328] : memref<400xf32, #tpu.memory_space<smem>>
    %498 = vector.broadcast %497 : f32 to vector<12x12xf32>
    %499 = arith.mulf %498, %484 : vector<12x12xf32>
    %500 = arith.addf %483, %499 : vector<12x12xf32>
    %501 = vector.extract_strided_slice %432 {offsets = [0, 4], sizes = [12, 12], strides = [1, 1]} : vector<16x16xf32> to vector<12x12xf32>
    %c29 = arith.constant 29 : index
    %502 = memref.load %arg1[%c29] : memref<400xf32, #tpu.memory_space<smem>>
    %503 = vector.broadcast %502 : f32 to vector<12x12xf32>
    %504 = arith.mulf %503, %501 : vector<12x12xf32>
    %505 = arith.addf %488, %504 : vector<12x12xf32>
    %c129 = arith.constant 129 : index
    %506 = memref.load %arg1[%c129] : memref<400xf32, #tpu.memory_space<smem>>
    %507 = vector.broadcast %506 : f32 to vector<12x12xf32>
    %508 = arith.mulf %507, %501 : vector<12x12xf32>
    %509 = arith.addf %492, %508 : vector<12x12xf32>
    %c229 = arith.constant 229 : index
    %510 = memref.load %arg1[%c229] : memref<400xf32, #tpu.memory_space<smem>>
    %511 = vector.broadcast %510 : f32 to vector<12x12xf32>
    %512 = arith.mulf %511, %501 : vector<12x12xf32>
    %513 = arith.addf %496, %512 : vector<12x12xf32>
    %c329 = arith.constant 329 : index
    %514 = memref.load %arg1[%c329] : memref<400xf32, #tpu.memory_space<smem>>
    %515 = vector.broadcast %514 : f32 to vector<12x12xf32>
    %516 = arith.mulf %515, %501 : vector<12x12xf32>
    %517 = arith.addf %500, %516 : vector<12x12xf32>
    %518 = vector.extract_strided_slice %432 {offsets = [1, 0], sizes = [12, 12], strides = [1, 1]} : vector<16x16xf32> to vector<12x12xf32>
    %c30 = arith.constant 30 : index
    %519 = memref.load %arg1[%c30] : memref<400xf32, #tpu.memory_space<smem>>
    %520 = vector.broadcast %519 : f32 to vector<12x12xf32>
    %521 = arith.mulf %520, %518 : vector<12x12xf32>
    %522 = arith.addf %505, %521 : vector<12x12xf32>
    %c130 = arith.constant 130 : index
    %523 = memref.load %arg1[%c130] : memref<400xf32, #tpu.memory_space<smem>>
    %524 = vector.broadcast %523 : f32 to vector<12x12xf32>
    %525 = arith.mulf %524, %518 : vector<12x12xf32>
    %526 = arith.addf %509, %525 : vector<12x12xf32>
    %c230 = arith.constant 230 : index
    %527 = memref.load %arg1[%c230] : memref<400xf32, #tpu.memory_space<smem>>
    %528 = vector.broadcast %527 : f32 to vector<12x12xf32>
    %529 = arith.mulf %528, %518 : vector<12x12xf32>
    %530 = arith.addf %513, %529 : vector<12x12xf32>
    %c330 = arith.constant 330 : index
    %531 = memref.load %arg1[%c330] : memref<400xf32, #tpu.memory_space<smem>>
    %532 = vector.broadcast %531 : f32 to vector<12x12xf32>
    %533 = arith.mulf %532, %518 : vector<12x12xf32>
    %534 = arith.addf %517, %533 : vector<12x12xf32>
    %535 = vector.extract_strided_slice %432 {offsets = [1, 1], sizes = [12, 12], strides = [1, 1]} : vector<16x16xf32> to vector<12x12xf32>
    %c31 = arith.constant 31 : index
    %536 = memref.load %arg1[%c31] : memref<400xf32, #tpu.memory_space<smem>>
    %537 = vector.broadcast %536 : f32 to vector<12x12xf32>
    %538 = arith.mulf %537, %535 : vector<12x12xf32>
    %539 = arith.addf %522, %538 : vector<12x12xf32>
    %c131 = arith.constant 131 : index
    %540 = memref.load %arg1[%c131] : memref<400xf32, #tpu.memory_space<smem>>
    %541 = vector.broadcast %540 : f32 to vector<12x12xf32>
    %542 = arith.mulf %541, %535 : vector<12x12xf32>
    %543 = arith.addf %526, %542 : vector<12x12xf32>
    %c231 = arith.constant 231 : index
    %544 = memref.load %arg1[%c231] : memref<400xf32, #tpu.memory_space<smem>>
    %545 = vector.broadcast %544 : f32 to vector<12x12xf32>
    %546 = arith.mulf %545, %535 : vector<12x12xf32>
    %547 = arith.addf %530, %546 : vector<12x12xf32>
    %c331 = arith.constant 331 : index
    %548 = memref.load %arg1[%c331] : memref<400xf32, #tpu.memory_space<smem>>
    %549 = vector.broadcast %548 : f32 to vector<12x12xf32>
    %550 = arith.mulf %549, %535 : vector<12x12xf32>
    %551 = arith.addf %534, %550 : vector<12x12xf32>
    %552 = vector.extract_strided_slice %432 {offsets = [1, 2], sizes = [12, 12], strides = [1, 1]} : vector<16x16xf32> to vector<12x12xf32>
    %c32 = arith.constant 32 : index
    %553 = memref.load %arg1[%c32] : memref<400xf32, #tpu.memory_space<smem>>
    %554 = vector.broadcast %553 : f32 to vector<12x12xf32>
    %555 = arith.mulf %554, %552 : vector<12x12xf32>
    %556 = arith.addf %539, %555 : vector<12x12xf32>
    %c132 = arith.constant 132 : index
    %557 = memref.load %arg1[%c132] : memref<400xf32, #tpu.memory_space<smem>>
    %558 = vector.broadcast %557 : f32 to vector<12x12xf32>
    %559 = arith.mulf %558, %552 : vector<12x12xf32>
    %560 = arith.addf %543, %559 : vector<12x12xf32>
    %c232 = arith.constant 232 : index
    %561 = memref.load %arg1[%c232] : memref<400xf32, #tpu.memory_space<smem>>
    %562 = vector.broadcast %561 : f32 to vector<12x12xf32>
    %563 = arith.mulf %562, %552 : vector<12x12xf32>
    %564 = arith.addf %547, %563 : vector<12x12xf32>
    %c332 = arith.constant 332 : index
    %565 = memref.load %arg1[%c332] : memref<400xf32, #tpu.memory_space<smem>>
    %566 = vector.broadcast %565 : f32 to vector<12x12xf32>
    %567 = arith.mulf %566, %552 : vector<12x12xf32>
    %568 = arith.addf %551, %567 : vector<12x12xf32>
    %569 = vector.extract_strided_slice %432 {offsets = [1, 3], sizes = [12, 12], strides = [1, 1]} : vector<16x16xf32> to vector<12x12xf32>
    %c33 = arith.constant 33 : index
    %570 = memref.load %arg1[%c33] : memref<400xf32, #tpu.memory_space<smem>>
    %571 = vector.broadcast %570 : f32 to vector<12x12xf32>
    %572 = arith.mulf %571, %569 : vector<12x12xf32>
    %573 = arith.addf %556, %572 : vector<12x12xf32>
    %c133 = arith.constant 133 : index
    %574 = memref.load %arg1[%c133] : memref<400xf32, #tpu.memory_space<smem>>
    %575 = vector.broadcast %574 : f32 to vector<12x12xf32>
    %576 = arith.mulf %575, %569 : vector<12x12xf32>
    %577 = arith.addf %560, %576 : vector<12x12xf32>
    %c233 = arith.constant 233 : index
    %578 = memref.load %arg1[%c233] : memref<400xf32, #tpu.memory_space<smem>>
    %579 = vector.broadcast %578 : f32 to vector<12x12xf32>
    %580 = arith.mulf %579, %569 : vector<12x12xf32>
    %581 = arith.addf %564, %580 : vector<12x12xf32>
    %c333 = arith.constant 333 : index
    %582 = memref.load %arg1[%c333] : memref<400xf32, #tpu.memory_space<smem>>
    %583 = vector.broadcast %582 : f32 to vector<12x12xf32>
    %584 = arith.mulf %583, %569 : vector<12x12xf32>
    %585 = arith.addf %568, %584 : vector<12x12xf32>
    %586 = vector.extract_strided_slice %432 {offsets = [1, 4], sizes = [12, 12], strides = [1, 1]} : vector<16x16xf32> to vector<12x12xf32>
    %c34 = arith.constant 34 : index
    %587 = memref.load %arg1[%c34] : memref<400xf32, #tpu.memory_space<smem>>
    %588 = vector.broadcast %587 : f32 to vector<12x12xf32>
    %589 = arith.mulf %588, %586 : vector<12x12xf32>
    %590 = arith.addf %573, %589 : vector<12x12xf32>
    %c134 = arith.constant 134 : index
    %591 = memref.load %arg1[%c134] : memref<400xf32, #tpu.memory_space<smem>>
    %592 = vector.broadcast %591 : f32 to vector<12x12xf32>
    %593 = arith.mulf %592, %586 : vector<12x12xf32>
    %594 = arith.addf %577, %593 : vector<12x12xf32>
    %c234 = arith.constant 234 : index
    %595 = memref.load %arg1[%c234] : memref<400xf32, #tpu.memory_space<smem>>
    %596 = vector.broadcast %595 : f32 to vector<12x12xf32>
    %597 = arith.mulf %596, %586 : vector<12x12xf32>
    %598 = arith.addf %581, %597 : vector<12x12xf32>
    %c334 = arith.constant 334 : index
    %599 = memref.load %arg1[%c334] : memref<400xf32, #tpu.memory_space<smem>>
    %600 = vector.broadcast %599 : f32 to vector<12x12xf32>
    %601 = arith.mulf %600, %586 : vector<12x12xf32>
    %602 = arith.addf %585, %601 : vector<12x12xf32>
    %603 = vector.extract_strided_slice %432 {offsets = [2, 0], sizes = [12, 12], strides = [1, 1]} : vector<16x16xf32> to vector<12x12xf32>
    %c35 = arith.constant 35 : index
    %604 = memref.load %arg1[%c35] : memref<400xf32, #tpu.memory_space<smem>>
    %605 = vector.broadcast %604 : f32 to vector<12x12xf32>
    %606 = arith.mulf %605, %603 : vector<12x12xf32>
    %607 = arith.addf %590, %606 : vector<12x12xf32>
    %c135 = arith.constant 135 : index
    %608 = memref.load %arg1[%c135] : memref<400xf32, #tpu.memory_space<smem>>
    %609 = vector.broadcast %608 : f32 to vector<12x12xf32>
    %610 = arith.mulf %609, %603 : vector<12x12xf32>
    %611 = arith.addf %594, %610 : vector<12x12xf32>
    %c235 = arith.constant 235 : index
    %612 = memref.load %arg1[%c235] : memref<400xf32, #tpu.memory_space<smem>>
    %613 = vector.broadcast %612 : f32 to vector<12x12xf32>
    %614 = arith.mulf %613, %603 : vector<12x12xf32>
    %615 = arith.addf %598, %614 : vector<12x12xf32>
    %c335 = arith.constant 335 : index
    %616 = memref.load %arg1[%c335] : memref<400xf32, #tpu.memory_space<smem>>
    %617 = vector.broadcast %616 : f32 to vector<12x12xf32>
    %618 = arith.mulf %617, %603 : vector<12x12xf32>
    %619 = arith.addf %602, %618 : vector<12x12xf32>
    %620 = vector.extract_strided_slice %432 {offsets = [2, 1], sizes = [12, 12], strides = [1, 1]} : vector<16x16xf32> to vector<12x12xf32>
    %c36 = arith.constant 36 : index
    %621 = memref.load %arg1[%c36] : memref<400xf32, #tpu.memory_space<smem>>
    %622 = vector.broadcast %621 : f32 to vector<12x12xf32>
    %623 = arith.mulf %622, %620 : vector<12x12xf32>
    %624 = arith.addf %607, %623 : vector<12x12xf32>
    %c136 = arith.constant 136 : index
    %625 = memref.load %arg1[%c136] : memref<400xf32, #tpu.memory_space<smem>>
    %626 = vector.broadcast %625 : f32 to vector<12x12xf32>
    %627 = arith.mulf %626, %620 : vector<12x12xf32>
    %628 = arith.addf %611, %627 : vector<12x12xf32>
    %c236 = arith.constant 236 : index
    %629 = memref.load %arg1[%c236] : memref<400xf32, #tpu.memory_space<smem>>
    %630 = vector.broadcast %629 : f32 to vector<12x12xf32>
    %631 = arith.mulf %630, %620 : vector<12x12xf32>
    %632 = arith.addf %615, %631 : vector<12x12xf32>
    %c336 = arith.constant 336 : index
    %633 = memref.load %arg1[%c336] : memref<400xf32, #tpu.memory_space<smem>>
    %634 = vector.broadcast %633 : f32 to vector<12x12xf32>
    %635 = arith.mulf %634, %620 : vector<12x12xf32>
    %636 = arith.addf %619, %635 : vector<12x12xf32>
    %637 = vector.extract_strided_slice %432 {offsets = [2, 2], sizes = [12, 12], strides = [1, 1]} : vector<16x16xf32> to vector<12x12xf32>
    %c37 = arith.constant 37 : index
    %638 = memref.load %arg1[%c37] : memref<400xf32, #tpu.memory_space<smem>>
    %639 = vector.broadcast %638 : f32 to vector<12x12xf32>
    %640 = arith.mulf %639, %637 : vector<12x12xf32>
    %641 = arith.addf %624, %640 : vector<12x12xf32>
    %c137 = arith.constant 137 : index
    %642 = memref.load %arg1[%c137] : memref<400xf32, #tpu.memory_space<smem>>
    %643 = vector.broadcast %642 : f32 to vector<12x12xf32>
    %644 = arith.mulf %643, %637 : vector<12x12xf32>
    %645 = arith.addf %628, %644 : vector<12x12xf32>
    %c237 = arith.constant 237 : index
    %646 = memref.load %arg1[%c237] : memref<400xf32, #tpu.memory_space<smem>>
    %647 = vector.broadcast %646 : f32 to vector<12x12xf32>
    %648 = arith.mulf %647, %637 : vector<12x12xf32>
    %649 = arith.addf %632, %648 : vector<12x12xf32>
    %c337 = arith.constant 337 : index
    %650 = memref.load %arg1[%c337] : memref<400xf32, #tpu.memory_space<smem>>
    %651 = vector.broadcast %650 : f32 to vector<12x12xf32>
    %652 = arith.mulf %651, %637 : vector<12x12xf32>
    %653 = arith.addf %636, %652 : vector<12x12xf32>
    %654 = vector.extract_strided_slice %432 {offsets = [2, 3], sizes = [12, 12], strides = [1, 1]} : vector<16x16xf32> to vector<12x12xf32>
    %c38 = arith.constant 38 : index
    %655 = memref.load %arg1[%c38] : memref<400xf32, #tpu.memory_space<smem>>
    %656 = vector.broadcast %655 : f32 to vector<12x12xf32>
    %657 = arith.mulf %656, %654 : vector<12x12xf32>
    %658 = arith.addf %641, %657 : vector<12x12xf32>
    %c138 = arith.constant 138 : index
    %659 = memref.load %arg1[%c138] : memref<400xf32, #tpu.memory_space<smem>>
    %660 = vector.broadcast %659 : f32 to vector<12x12xf32>
    %661 = arith.mulf %660, %654 : vector<12x12xf32>
    %662 = arith.addf %645, %661 : vector<12x12xf32>
    %c238 = arith.constant 238 : index
    %663 = memref.load %arg1[%c238] : memref<400xf32, #tpu.memory_space<smem>>
    %664 = vector.broadcast %663 : f32 to vector<12x12xf32>
    %665 = arith.mulf %664, %654 : vector<12x12xf32>
    %666 = arith.addf %649, %665 : vector<12x12xf32>
    %c338 = arith.constant 338 : index
    %667 = memref.load %arg1[%c338] : memref<400xf32, #tpu.memory_space<smem>>
    %668 = vector.broadcast %667 : f32 to vector<12x12xf32>
    %669 = arith.mulf %668, %654 : vector<12x12xf32>
    %670 = arith.addf %653, %669 : vector<12x12xf32>
    %671 = vector.extract_strided_slice %432 {offsets = [2, 4], sizes = [12, 12], strides = [1, 1]} : vector<16x16xf32> to vector<12x12xf32>
    %c39 = arith.constant 39 : index
    %672 = memref.load %arg1[%c39] : memref<400xf32, #tpu.memory_space<smem>>
    %673 = vector.broadcast %672 : f32 to vector<12x12xf32>
    %674 = arith.mulf %673, %671 : vector<12x12xf32>
    %675 = arith.addf %658, %674 : vector<12x12xf32>
    %c139 = arith.constant 139 : index
    %676 = memref.load %arg1[%c139] : memref<400xf32, #tpu.memory_space<smem>>
    %677 = vector.broadcast %676 : f32 to vector<12x12xf32>
    %678 = arith.mulf %677, %671 : vector<12x12xf32>
    %679 = arith.addf %662, %678 : vector<12x12xf32>
    %c239 = arith.constant 239 : index
    %680 = memref.load %arg1[%c239] : memref<400xf32, #tpu.memory_space<smem>>
    %681 = vector.broadcast %680 : f32 to vector<12x12xf32>
    %682 = arith.mulf %681, %671 : vector<12x12xf32>
    %683 = arith.addf %666, %682 : vector<12x12xf32>
    %c339 = arith.constant 339 : index
    %684 = memref.load %arg1[%c339] : memref<400xf32, #tpu.memory_space<smem>>
    %685 = vector.broadcast %684 : f32 to vector<12x12xf32>
    %686 = arith.mulf %685, %671 : vector<12x12xf32>
    %687 = arith.addf %670, %686 : vector<12x12xf32>
    %688 = vector.extract_strided_slice %432 {offsets = [3, 0], sizes = [12, 12], strides = [1, 1]} : vector<16x16xf32> to vector<12x12xf32>
    %c40 = arith.constant 40 : index
    %689 = memref.load %arg1[%c40] : memref<400xf32, #tpu.memory_space<smem>>
    %690 = vector.broadcast %689 : f32 to vector<12x12xf32>
    %691 = arith.mulf %690, %688 : vector<12x12xf32>
    %692 = arith.addf %675, %691 : vector<12x12xf32>
    %c140 = arith.constant 140 : index
    %693 = memref.load %arg1[%c140] : memref<400xf32, #tpu.memory_space<smem>>
    %694 = vector.broadcast %693 : f32 to vector<12x12xf32>
    %695 = arith.mulf %694, %688 : vector<12x12xf32>
    %696 = arith.addf %679, %695 : vector<12x12xf32>
    %c240 = arith.constant 240 : index
    %697 = memref.load %arg1[%c240] : memref<400xf32, #tpu.memory_space<smem>>
    %698 = vector.broadcast %697 : f32 to vector<12x12xf32>
    %699 = arith.mulf %698, %688 : vector<12x12xf32>
    %700 = arith.addf %683, %699 : vector<12x12xf32>
    %c340 = arith.constant 340 : index
    %701 = memref.load %arg1[%c340] : memref<400xf32, #tpu.memory_space<smem>>
    %702 = vector.broadcast %701 : f32 to vector<12x12xf32>
    %703 = arith.mulf %702, %688 : vector<12x12xf32>
    %704 = arith.addf %687, %703 : vector<12x12xf32>
    %705 = vector.extract_strided_slice %432 {offsets = [3, 1], sizes = [12, 12], strides = [1, 1]} : vector<16x16xf32> to vector<12x12xf32>
    %c41 = arith.constant 41 : index
    %706 = memref.load %arg1[%c41] : memref<400xf32, #tpu.memory_space<smem>>
    %707 = vector.broadcast %706 : f32 to vector<12x12xf32>
    %708 = arith.mulf %707, %705 : vector<12x12xf32>
    %709 = arith.addf %692, %708 : vector<12x12xf32>
    %c141 = arith.constant 141 : index
    %710 = memref.load %arg1[%c141] : memref<400xf32, #tpu.memory_space<smem>>
    %711 = vector.broadcast %710 : f32 to vector<12x12xf32>
    %712 = arith.mulf %711, %705 : vector<12x12xf32>
    %713 = arith.addf %696, %712 : vector<12x12xf32>
    %c241 = arith.constant 241 : index
    %714 = memref.load %arg1[%c241] : memref<400xf32, #tpu.memory_space<smem>>
    %715 = vector.broadcast %714 : f32 to vector<12x12xf32>
    %716 = arith.mulf %715, %705 : vector<12x12xf32>
    %717 = arith.addf %700, %716 : vector<12x12xf32>
    %c341 = arith.constant 341 : index
    %718 = memref.load %arg1[%c341] : memref<400xf32, #tpu.memory_space<smem>>
    %719 = vector.broadcast %718 : f32 to vector<12x12xf32>
    %720 = arith.mulf %719, %705 : vector<12x12xf32>
    %721 = arith.addf %704, %720 : vector<12x12xf32>
    %722 = vector.extract_strided_slice %432 {offsets = [3, 2], sizes = [12, 12], strides = [1, 1]} : vector<16x16xf32> to vector<12x12xf32>
    %c42 = arith.constant 42 : index
    %723 = memref.load %arg1[%c42] : memref<400xf32, #tpu.memory_space<smem>>
    %724 = vector.broadcast %723 : f32 to vector<12x12xf32>
    %725 = arith.mulf %724, %722 : vector<12x12xf32>
    %726 = arith.addf %709, %725 : vector<12x12xf32>
    %c142 = arith.constant 142 : index
    %727 = memref.load %arg1[%c142] : memref<400xf32, #tpu.memory_space<smem>>
    %728 = vector.broadcast %727 : f32 to vector<12x12xf32>
    %729 = arith.mulf %728, %722 : vector<12x12xf32>
    %730 = arith.addf %713, %729 : vector<12x12xf32>
    %c242 = arith.constant 242 : index
    %731 = memref.load %arg1[%c242] : memref<400xf32, #tpu.memory_space<smem>>
    %732 = vector.broadcast %731 : f32 to vector<12x12xf32>
    %733 = arith.mulf %732, %722 : vector<12x12xf32>
    %734 = arith.addf %717, %733 : vector<12x12xf32>
    %c342 = arith.constant 342 : index
    %735 = memref.load %arg1[%c342] : memref<400xf32, #tpu.memory_space<smem>>
    %736 = vector.broadcast %735 : f32 to vector<12x12xf32>
    %737 = arith.mulf %736, %722 : vector<12x12xf32>
    %738 = arith.addf %721, %737 : vector<12x12xf32>
    %739 = vector.extract_strided_slice %432 {offsets = [3, 3], sizes = [12, 12], strides = [1, 1]} : vector<16x16xf32> to vector<12x12xf32>
    %c43 = arith.constant 43 : index
    %740 = memref.load %arg1[%c43] : memref<400xf32, #tpu.memory_space<smem>>
    %741 = vector.broadcast %740 : f32 to vector<12x12xf32>
    %742 = arith.mulf %741, %739 : vector<12x12xf32>
    %743 = arith.addf %726, %742 : vector<12x12xf32>
    %c143 = arith.constant 143 : index
    %744 = memref.load %arg1[%c143] : memref<400xf32, #tpu.memory_space<smem>>
    %745 = vector.broadcast %744 : f32 to vector<12x12xf32>
    %746 = arith.mulf %745, %739 : vector<12x12xf32>
    %747 = arith.addf %730, %746 : vector<12x12xf32>
    %c243 = arith.constant 243 : index
    %748 = memref.load %arg1[%c243] : memref<400xf32, #tpu.memory_space<smem>>
    %749 = vector.broadcast %748 : f32 to vector<12x12xf32>
    %750 = arith.mulf %749, %739 : vector<12x12xf32>
    %751 = arith.addf %734, %750 : vector<12x12xf32>
    %c343 = arith.constant 343 : index
    %752 = memref.load %arg1[%c343] : memref<400xf32, #tpu.memory_space<smem>>
    %753 = vector.broadcast %752 : f32 to vector<12x12xf32>
    %754 = arith.mulf %753, %739 : vector<12x12xf32>
    %755 = arith.addf %738, %754 : vector<12x12xf32>
    %756 = vector.extract_strided_slice %432 {offsets = [3, 4], sizes = [12, 12], strides = [1, 1]} : vector<16x16xf32> to vector<12x12xf32>
    %c44 = arith.constant 44 : index
    %757 = memref.load %arg1[%c44] : memref<400xf32, #tpu.memory_space<smem>>
    %758 = vector.broadcast %757 : f32 to vector<12x12xf32>
    %759 = arith.mulf %758, %756 : vector<12x12xf32>
    %760 = arith.addf %743, %759 : vector<12x12xf32>
    %c144 = arith.constant 144 : index
    %761 = memref.load %arg1[%c144] : memref<400xf32, #tpu.memory_space<smem>>
    %762 = vector.broadcast %761 : f32 to vector<12x12xf32>
    %763 = arith.mulf %762, %756 : vector<12x12xf32>
    %764 = arith.addf %747, %763 : vector<12x12xf32>
    %c244 = arith.constant 244 : index
    %765 = memref.load %arg1[%c244] : memref<400xf32, #tpu.memory_space<smem>>
    %766 = vector.broadcast %765 : f32 to vector<12x12xf32>
    %767 = arith.mulf %766, %756 : vector<12x12xf32>
    %768 = arith.addf %751, %767 : vector<12x12xf32>
    %c344 = arith.constant 344 : index
    %769 = memref.load %arg1[%c344] : memref<400xf32, #tpu.memory_space<smem>>
    %770 = vector.broadcast %769 : f32 to vector<12x12xf32>
    %771 = arith.mulf %770, %756 : vector<12x12xf32>
    %772 = arith.addf %755, %771 : vector<12x12xf32>
    %773 = vector.extract_strided_slice %432 {offsets = [4, 0], sizes = [12, 12], strides = [1, 1]} : vector<16x16xf32> to vector<12x12xf32>
    %c45 = arith.constant 45 : index
    %774 = memref.load %arg1[%c45] : memref<400xf32, #tpu.memory_space<smem>>
    %775 = vector.broadcast %774 : f32 to vector<12x12xf32>
    %776 = arith.mulf %775, %773 : vector<12x12xf32>
    %777 = arith.addf %760, %776 : vector<12x12xf32>
    %c145 = arith.constant 145 : index
    %778 = memref.load %arg1[%c145] : memref<400xf32, #tpu.memory_space<smem>>
    %779 = vector.broadcast %778 : f32 to vector<12x12xf32>
    %780 = arith.mulf %779, %773 : vector<12x12xf32>
    %781 = arith.addf %764, %780 : vector<12x12xf32>
    %c245 = arith.constant 245 : index
    %782 = memref.load %arg1[%c245] : memref<400xf32, #tpu.memory_space<smem>>
    %783 = vector.broadcast %782 : f32 to vector<12x12xf32>
    %784 = arith.mulf %783, %773 : vector<12x12xf32>
    %785 = arith.addf %768, %784 : vector<12x12xf32>
    %c345 = arith.constant 345 : index
    %786 = memref.load %arg1[%c345] : memref<400xf32, #tpu.memory_space<smem>>
    %787 = vector.broadcast %786 : f32 to vector<12x12xf32>
    %788 = arith.mulf %787, %773 : vector<12x12xf32>
    %789 = arith.addf %772, %788 : vector<12x12xf32>
    %790 = vector.extract_strided_slice %432 {offsets = [4, 1], sizes = [12, 12], strides = [1, 1]} : vector<16x16xf32> to vector<12x12xf32>
    %c46 = arith.constant 46 : index
    %791 = memref.load %arg1[%c46] : memref<400xf32, #tpu.memory_space<smem>>
    %792 = vector.broadcast %791 : f32 to vector<12x12xf32>
    %793 = arith.mulf %792, %790 : vector<12x12xf32>
    %794 = arith.addf %777, %793 : vector<12x12xf32>
    %c146 = arith.constant 146 : index
    %795 = memref.load %arg1[%c146] : memref<400xf32, #tpu.memory_space<smem>>
    %796 = vector.broadcast %795 : f32 to vector<12x12xf32>
    %797 = arith.mulf %796, %790 : vector<12x12xf32>
    %798 = arith.addf %781, %797 : vector<12x12xf32>
    %c246 = arith.constant 246 : index
    %799 = memref.load %arg1[%c246] : memref<400xf32, #tpu.memory_space<smem>>
    %800 = vector.broadcast %799 : f32 to vector<12x12xf32>
    %801 = arith.mulf %800, %790 : vector<12x12xf32>
    %802 = arith.addf %785, %801 : vector<12x12xf32>
    %c346 = arith.constant 346 : index
    %803 = memref.load %arg1[%c346] : memref<400xf32, #tpu.memory_space<smem>>
    %804 = vector.broadcast %803 : f32 to vector<12x12xf32>
    %805 = arith.mulf %804, %790 : vector<12x12xf32>
    %806 = arith.addf %789, %805 : vector<12x12xf32>
    %807 = vector.extract_strided_slice %432 {offsets = [4, 2], sizes = [12, 12], strides = [1, 1]} : vector<16x16xf32> to vector<12x12xf32>
    %c47 = arith.constant 47 : index
    %808 = memref.load %arg1[%c47] : memref<400xf32, #tpu.memory_space<smem>>
    %809 = vector.broadcast %808 : f32 to vector<12x12xf32>
    %810 = arith.mulf %809, %807 : vector<12x12xf32>
    %811 = arith.addf %794, %810 : vector<12x12xf32>
    %c147 = arith.constant 147 : index
    %812 = memref.load %arg1[%c147] : memref<400xf32, #tpu.memory_space<smem>>
    %813 = vector.broadcast %812 : f32 to vector<12x12xf32>
    %814 = arith.mulf %813, %807 : vector<12x12xf32>
    %815 = arith.addf %798, %814 : vector<12x12xf32>
    %c247 = arith.constant 247 : index
    %816 = memref.load %arg1[%c247] : memref<400xf32, #tpu.memory_space<smem>>
    %817 = vector.broadcast %816 : f32 to vector<12x12xf32>
    %818 = arith.mulf %817, %807 : vector<12x12xf32>
    %819 = arith.addf %802, %818 : vector<12x12xf32>
    %c347 = arith.constant 347 : index
    %820 = memref.load %arg1[%c347] : memref<400xf32, #tpu.memory_space<smem>>
    %821 = vector.broadcast %820 : f32 to vector<12x12xf32>
    %822 = arith.mulf %821, %807 : vector<12x12xf32>
    %823 = arith.addf %806, %822 : vector<12x12xf32>
    %824 = vector.extract_strided_slice %432 {offsets = [4, 3], sizes = [12, 12], strides = [1, 1]} : vector<16x16xf32> to vector<12x12xf32>
    %c48 = arith.constant 48 : index
    %825 = memref.load %arg1[%c48] : memref<400xf32, #tpu.memory_space<smem>>
    %826 = vector.broadcast %825 : f32 to vector<12x12xf32>
    %827 = arith.mulf %826, %824 : vector<12x12xf32>
    %828 = arith.addf %811, %827 : vector<12x12xf32>
    %c148 = arith.constant 148 : index
    %829 = memref.load %arg1[%c148] : memref<400xf32, #tpu.memory_space<smem>>
    %830 = vector.broadcast %829 : f32 to vector<12x12xf32>
    %831 = arith.mulf %830, %824 : vector<12x12xf32>
    %832 = arith.addf %815, %831 : vector<12x12xf32>
    %c248 = arith.constant 248 : index
    %833 = memref.load %arg1[%c248] : memref<400xf32, #tpu.memory_space<smem>>
    %834 = vector.broadcast %833 : f32 to vector<12x12xf32>
    %835 = arith.mulf %834, %824 : vector<12x12xf32>
    %836 = arith.addf %819, %835 : vector<12x12xf32>
    %c348 = arith.constant 348 : index
    %837 = memref.load %arg1[%c348] : memref<400xf32, #tpu.memory_space<smem>>
    %838 = vector.broadcast %837 : f32 to vector<12x12xf32>
    %839 = arith.mulf %838, %824 : vector<12x12xf32>
    %840 = arith.addf %823, %839 : vector<12x12xf32>
    %841 = vector.extract_strided_slice %432 {offsets = [4, 4], sizes = [12, 12], strides = [1, 1]} : vector<16x16xf32> to vector<12x12xf32>
    %c49 = arith.constant 49 : index
    %842 = memref.load %arg1[%c49] : memref<400xf32, #tpu.memory_space<smem>>
    %843 = vector.broadcast %842 : f32 to vector<12x12xf32>
    %844 = arith.mulf %843, %841 : vector<12x12xf32>
    %845 = arith.addf %828, %844 : vector<12x12xf32>
    %c149 = arith.constant 149 : index
    %846 = memref.load %arg1[%c149] : memref<400xf32, #tpu.memory_space<smem>>
    %847 = vector.broadcast %846 : f32 to vector<12x12xf32>
    %848 = arith.mulf %847, %841 : vector<12x12xf32>
    %849 = arith.addf %832, %848 : vector<12x12xf32>
    %c249 = arith.constant 249 : index
    %850 = memref.load %arg1[%c249] : memref<400xf32, #tpu.memory_space<smem>>
    %851 = vector.broadcast %850 : f32 to vector<12x12xf32>
    %852 = arith.mulf %851, %841 : vector<12x12xf32>
    %853 = arith.addf %836, %852 : vector<12x12xf32>
    %c349 = arith.constant 349 : index
    %854 = memref.load %arg1[%c349] : memref<400xf32, #tpu.memory_space<smem>>
    %855 = vector.broadcast %854 : f32 to vector<12x12xf32>
    %856 = arith.mulf %855, %841 : vector<12x12xf32>
    %857 = arith.addf %840, %856 : vector<12x12xf32>
    %c0_11 = arith.constant 0 : index
    %c2_12 = arith.constant 2 : index
    %c0_13 = arith.constant 0 : index
    %c0_14 = arith.constant 0 : index
    %858 = vector.load %arg2[%c0_11, %c2_12, %c0_13, %c0_14] : memref<1x4x16x16xf32, #tpu.memory_space<vmem>>, vector<1x1x16x16xf32>
    %859 = vector.shape_cast %858 : vector<1x1x16x16xf32> to vector<16x16xf32>
    %860 = vector.extract_strided_slice %859 {offsets = [0, 0], sizes = [12, 12], strides = [1, 1]} : vector<16x16xf32> to vector<12x12xf32>
    %c50 = arith.constant 50 : index
    %861 = memref.load %arg1[%c50] : memref<400xf32, #tpu.memory_space<smem>>
    %862 = vector.broadcast %861 : f32 to vector<12x12xf32>
    %863 = arith.mulf %862, %860 : vector<12x12xf32>
    %864 = arith.addf %845, %863 : vector<12x12xf32>
    %c150 = arith.constant 150 : index
    %865 = memref.load %arg1[%c150] : memref<400xf32, #tpu.memory_space<smem>>
    %866 = vector.broadcast %865 : f32 to vector<12x12xf32>
    %867 = arith.mulf %866, %860 : vector<12x12xf32>
    %868 = arith.addf %849, %867 : vector<12x12xf32>
    %c250 = arith.constant 250 : index
    %869 = memref.load %arg1[%c250] : memref<400xf32, #tpu.memory_space<smem>>
    %870 = vector.broadcast %869 : f32 to vector<12x12xf32>
    %871 = arith.mulf %870, %860 : vector<12x12xf32>
    %872 = arith.addf %853, %871 : vector<12x12xf32>
    %c350 = arith.constant 350 : index
    %873 = memref.load %arg1[%c350] : memref<400xf32, #tpu.memory_space<smem>>
    %874 = vector.broadcast %873 : f32 to vector<12x12xf32>
    %875 = arith.mulf %874, %860 : vector<12x12xf32>
    %876 = arith.addf %857, %875 : vector<12x12xf32>
    %877 = vector.extract_strided_slice %859 {offsets = [0, 1], sizes = [12, 12], strides = [1, 1]} : vector<16x16xf32> to vector<12x12xf32>
    %c51 = arith.constant 51 : index
    %878 = memref.load %arg1[%c51] : memref<400xf32, #tpu.memory_space<smem>>
    %879 = vector.broadcast %878 : f32 to vector<12x12xf32>
    %880 = arith.mulf %879, %877 : vector<12x12xf32>
    %881 = arith.addf %864, %880 : vector<12x12xf32>
    %c151 = arith.constant 151 : index
    %882 = memref.load %arg1[%c151] : memref<400xf32, #tpu.memory_space<smem>>
    %883 = vector.broadcast %882 : f32 to vector<12x12xf32>
    %884 = arith.mulf %883, %877 : vector<12x12xf32>
    %885 = arith.addf %868, %884 : vector<12x12xf32>
    %c251 = arith.constant 251 : index
    %886 = memref.load %arg1[%c251] : memref<400xf32, #tpu.memory_space<smem>>
    %887 = vector.broadcast %886 : f32 to vector<12x12xf32>
    %888 = arith.mulf %887, %877 : vector<12x12xf32>
    %889 = arith.addf %872, %888 : vector<12x12xf32>
    %c351 = arith.constant 351 : index
    %890 = memref.load %arg1[%c351] : memref<400xf32, #tpu.memory_space<smem>>
    %891 = vector.broadcast %890 : f32 to vector<12x12xf32>
    %892 = arith.mulf %891, %877 : vector<12x12xf32>
    %893 = arith.addf %876, %892 : vector<12x12xf32>
    %894 = vector.extract_strided_slice %859 {offsets = [0, 2], sizes = [12, 12], strides = [1, 1]} : vector<16x16xf32> to vector<12x12xf32>
    %c52 = arith.constant 52 : index
    %895 = memref.load %arg1[%c52] : memref<400xf32, #tpu.memory_space<smem>>
    %896 = vector.broadcast %895 : f32 to vector<12x12xf32>
    %897 = arith.mulf %896, %894 : vector<12x12xf32>
    %898 = arith.addf %881, %897 : vector<12x12xf32>
    %c152 = arith.constant 152 : index
    %899 = memref.load %arg1[%c152] : memref<400xf32, #tpu.memory_space<smem>>
    %900 = vector.broadcast %899 : f32 to vector<12x12xf32>
    %901 = arith.mulf %900, %894 : vector<12x12xf32>
    %902 = arith.addf %885, %901 : vector<12x12xf32>
    %c252 = arith.constant 252 : index
    %903 = memref.load %arg1[%c252] : memref<400xf32, #tpu.memory_space<smem>>
    %904 = vector.broadcast %903 : f32 to vector<12x12xf32>
    %905 = arith.mulf %904, %894 : vector<12x12xf32>
    %906 = arith.addf %889, %905 : vector<12x12xf32>
    %c352 = arith.constant 352 : index
    %907 = memref.load %arg1[%c352] : memref<400xf32, #tpu.memory_space<smem>>
    %908 = vector.broadcast %907 : f32 to vector<12x12xf32>
    %909 = arith.mulf %908, %894 : vector<12x12xf32>
    %910 = arith.addf %893, %909 : vector<12x12xf32>
    %911 = vector.extract_strided_slice %859 {offsets = [0, 3], sizes = [12, 12], strides = [1, 1]} : vector<16x16xf32> to vector<12x12xf32>
    %c53 = arith.constant 53 : index
    %912 = memref.load %arg1[%c53] : memref<400xf32, #tpu.memory_space<smem>>
    %913 = vector.broadcast %912 : f32 to vector<12x12xf32>
    %914 = arith.mulf %913, %911 : vector<12x12xf32>
    %915 = arith.addf %898, %914 : vector<12x12xf32>
    %c153 = arith.constant 153 : index
    %916 = memref.load %arg1[%c153] : memref<400xf32, #tpu.memory_space<smem>>
    %917 = vector.broadcast %916 : f32 to vector<12x12xf32>
    %918 = arith.mulf %917, %911 : vector<12x12xf32>
    %919 = arith.addf %902, %918 : vector<12x12xf32>
    %c253 = arith.constant 253 : index
    %920 = memref.load %arg1[%c253] : memref<400xf32, #tpu.memory_space<smem>>
    %921 = vector.broadcast %920 : f32 to vector<12x12xf32>
    %922 = arith.mulf %921, %911 : vector<12x12xf32>
    %923 = arith.addf %906, %922 : vector<12x12xf32>
    %c353 = arith.constant 353 : index
    %924 = memref.load %arg1[%c353] : memref<400xf32, #tpu.memory_space<smem>>
    %925 = vector.broadcast %924 : f32 to vector<12x12xf32>
    %926 = arith.mulf %925, %911 : vector<12x12xf32>
    %927 = arith.addf %910, %926 : vector<12x12xf32>
    %928 = vector.extract_strided_slice %859 {offsets = [0, 4], sizes = [12, 12], strides = [1, 1]} : vector<16x16xf32> to vector<12x12xf32>
    %c54 = arith.constant 54 : index
    %929 = memref.load %arg1[%c54] : memref<400xf32, #tpu.memory_space<smem>>
    %930 = vector.broadcast %929 : f32 to vector<12x12xf32>
    %931 = arith.mulf %930, %928 : vector<12x12xf32>
    %932 = arith.addf %915, %931 : vector<12x12xf32>
    %c154 = arith.constant 154 : index
    %933 = memref.load %arg1[%c154] : memref<400xf32, #tpu.memory_space<smem>>
    %934 = vector.broadcast %933 : f32 to vector<12x12xf32>
    %935 = arith.mulf %934, %928 : vector<12x12xf32>
    %936 = arith.addf %919, %935 : vector<12x12xf32>
    %c254 = arith.constant 254 : index
    %937 = memref.load %arg1[%c254] : memref<400xf32, #tpu.memory_space<smem>>
    %938 = vector.broadcast %937 : f32 to vector<12x12xf32>
    %939 = arith.mulf %938, %928 : vector<12x12xf32>
    %940 = arith.addf %923, %939 : vector<12x12xf32>
    %c354 = arith.constant 354 : index
    %941 = memref.load %arg1[%c354] : memref<400xf32, #tpu.memory_space<smem>>
    %942 = vector.broadcast %941 : f32 to vector<12x12xf32>
    %943 = arith.mulf %942, %928 : vector<12x12xf32>
    %944 = arith.addf %927, %943 : vector<12x12xf32>
    %945 = vector.extract_strided_slice %859 {offsets = [1, 0], sizes = [12, 12], strides = [1, 1]} : vector<16x16xf32> to vector<12x12xf32>
    %c55 = arith.constant 55 : index
    %946 = memref.load %arg1[%c55] : memref<400xf32, #tpu.memory_space<smem>>
    %947 = vector.broadcast %946 : f32 to vector<12x12xf32>
    %948 = arith.mulf %947, %945 : vector<12x12xf32>
    %949 = arith.addf %932, %948 : vector<12x12xf32>
    %c155 = arith.constant 155 : index
    %950 = memref.load %arg1[%c155] : memref<400xf32, #tpu.memory_space<smem>>
    %951 = vector.broadcast %950 : f32 to vector<12x12xf32>
    %952 = arith.mulf %951, %945 : vector<12x12xf32>
    %953 = arith.addf %936, %952 : vector<12x12xf32>
    %c255 = arith.constant 255 : index
    %954 = memref.load %arg1[%c255] : memref<400xf32, #tpu.memory_space<smem>>
    %955 = vector.broadcast %954 : f32 to vector<12x12xf32>
    %956 = arith.mulf %955, %945 : vector<12x12xf32>
    %957 = arith.addf %940, %956 : vector<12x12xf32>
    %c355 = arith.constant 355 : index
    %958 = memref.load %arg1[%c355] : memref<400xf32, #tpu.memory_space<smem>>
    %959 = vector.broadcast %958 : f32 to vector<12x12xf32>
    %960 = arith.mulf %959, %945 : vector<12x12xf32>
    %961 = arith.addf %944, %960 : vector<12x12xf32>
    %962 = vector.extract_strided_slice %859 {offsets = [1, 1], sizes = [12, 12], strides = [1, 1]} : vector<16x16xf32> to vector<12x12xf32>
    %c56 = arith.constant 56 : index
    %963 = memref.load %arg1[%c56] : memref<400xf32, #tpu.memory_space<smem>>
    %964 = vector.broadcast %963 : f32 to vector<12x12xf32>
    %965 = arith.mulf %964, %962 : vector<12x12xf32>
    %966 = arith.addf %949, %965 : vector<12x12xf32>
    %c156 = arith.constant 156 : index
    %967 = memref.load %arg1[%c156] : memref<400xf32, #tpu.memory_space<smem>>
    %968 = vector.broadcast %967 : f32 to vector<12x12xf32>
    %969 = arith.mulf %968, %962 : vector<12x12xf32>
    %970 = arith.addf %953, %969 : vector<12x12xf32>
    %c256 = arith.constant 256 : index
    %971 = memref.load %arg1[%c256] : memref<400xf32, #tpu.memory_space<smem>>
    %972 = vector.broadcast %971 : f32 to vector<12x12xf32>
    %973 = arith.mulf %972, %962 : vector<12x12xf32>
    %974 = arith.addf %957, %973 : vector<12x12xf32>
    %c356 = arith.constant 356 : index
    %975 = memref.load %arg1[%c356] : memref<400xf32, #tpu.memory_space<smem>>
    %976 = vector.broadcast %975 : f32 to vector<12x12xf32>
    %977 = arith.mulf %976, %962 : vector<12x12xf32>
    %978 = arith.addf %961, %977 : vector<12x12xf32>
    %979 = vector.extract_strided_slice %859 {offsets = [1, 2], sizes = [12, 12], strides = [1, 1]} : vector<16x16xf32> to vector<12x12xf32>
    %c57 = arith.constant 57 : index
    %980 = memref.load %arg1[%c57] : memref<400xf32, #tpu.memory_space<smem>>
    %981 = vector.broadcast %980 : f32 to vector<12x12xf32>
    %982 = arith.mulf %981, %979 : vector<12x12xf32>
    %983 = arith.addf %966, %982 : vector<12x12xf32>
    %c157 = arith.constant 157 : index
    %984 = memref.load %arg1[%c157] : memref<400xf32, #tpu.memory_space<smem>>
    %985 = vector.broadcast %984 : f32 to vector<12x12xf32>
    %986 = arith.mulf %985, %979 : vector<12x12xf32>
    %987 = arith.addf %970, %986 : vector<12x12xf32>
    %c257 = arith.constant 257 : index
    %988 = memref.load %arg1[%c257] : memref<400xf32, #tpu.memory_space<smem>>
    %989 = vector.broadcast %988 : f32 to vector<12x12xf32>
    %990 = arith.mulf %989, %979 : vector<12x12xf32>
    %991 = arith.addf %974, %990 : vector<12x12xf32>
    %c357 = arith.constant 357 : index
    %992 = memref.load %arg1[%c357] : memref<400xf32, #tpu.memory_space<smem>>
    %993 = vector.broadcast %992 : f32 to vector<12x12xf32>
    %994 = arith.mulf %993, %979 : vector<12x12xf32>
    %995 = arith.addf %978, %994 : vector<12x12xf32>
    %996 = vector.extract_strided_slice %859 {offsets = [1, 3], sizes = [12, 12], strides = [1, 1]} : vector<16x16xf32> to vector<12x12xf32>
    %c58 = arith.constant 58 : index
    %997 = memref.load %arg1[%c58] : memref<400xf32, #tpu.memory_space<smem>>
    %998 = vector.broadcast %997 : f32 to vector<12x12xf32>
    %999 = arith.mulf %998, %996 : vector<12x12xf32>
    %1000 = arith.addf %983, %999 : vector<12x12xf32>
    %c158 = arith.constant 158 : index
    %1001 = memref.load %arg1[%c158] : memref<400xf32, #tpu.memory_space<smem>>
    %1002 = vector.broadcast %1001 : f32 to vector<12x12xf32>
    %1003 = arith.mulf %1002, %996 : vector<12x12xf32>
    %1004 = arith.addf %987, %1003 : vector<12x12xf32>
    %c258 = arith.constant 258 : index
    %1005 = memref.load %arg1[%c258] : memref<400xf32, #tpu.memory_space<smem>>
    %1006 = vector.broadcast %1005 : f32 to vector<12x12xf32>
    %1007 = arith.mulf %1006, %996 : vector<12x12xf32>
    %1008 = arith.addf %991, %1007 : vector<12x12xf32>
    %c358 = arith.constant 358 : index
    %1009 = memref.load %arg1[%c358] : memref<400xf32, #tpu.memory_space<smem>>
    %1010 = vector.broadcast %1009 : f32 to vector<12x12xf32>
    %1011 = arith.mulf %1010, %996 : vector<12x12xf32>
    %1012 = arith.addf %995, %1011 : vector<12x12xf32>
    %1013 = vector.extract_strided_slice %859 {offsets = [1, 4], sizes = [12, 12], strides = [1, 1]} : vector<16x16xf32> to vector<12x12xf32>
    %c59 = arith.constant 59 : index
    %1014 = memref.load %arg1[%c59] : memref<400xf32, #tpu.memory_space<smem>>
    %1015 = vector.broadcast %1014 : f32 to vector<12x12xf32>
    %1016 = arith.mulf %1015, %1013 : vector<12x12xf32>
    %1017 = arith.addf %1000, %1016 : vector<12x12xf32>
    %c159 = arith.constant 159 : index
    %1018 = memref.load %arg1[%c159] : memref<400xf32, #tpu.memory_space<smem>>
    %1019 = vector.broadcast %1018 : f32 to vector<12x12xf32>
    %1020 = arith.mulf %1019, %1013 : vector<12x12xf32>
    %1021 = arith.addf %1004, %1020 : vector<12x12xf32>
    %c259 = arith.constant 259 : index
    %1022 = memref.load %arg1[%c259] : memref<400xf32, #tpu.memory_space<smem>>
    %1023 = vector.broadcast %1022 : f32 to vector<12x12xf32>
    %1024 = arith.mulf %1023, %1013 : vector<12x12xf32>
    %1025 = arith.addf %1008, %1024 : vector<12x12xf32>
    %c359 = arith.constant 359 : index
    %1026 = memref.load %arg1[%c359] : memref<400xf32, #tpu.memory_space<smem>>
    %1027 = vector.broadcast %1026 : f32 to vector<12x12xf32>
    %1028 = arith.mulf %1027, %1013 : vector<12x12xf32>
    %1029 = arith.addf %1012, %1028 : vector<12x12xf32>
    %1030 = vector.extract_strided_slice %859 {offsets = [2, 0], sizes = [12, 12], strides = [1, 1]} : vector<16x16xf32> to vector<12x12xf32>
    %c60 = arith.constant 60 : index
    %1031 = memref.load %arg1[%c60] : memref<400xf32, #tpu.memory_space<smem>>
    %1032 = vector.broadcast %1031 : f32 to vector<12x12xf32>
    %1033 = arith.mulf %1032, %1030 : vector<12x12xf32>
    %1034 = arith.addf %1017, %1033 : vector<12x12xf32>
    %c160 = arith.constant 160 : index
    %1035 = memref.load %arg1[%c160] : memref<400xf32, #tpu.memory_space<smem>>
    %1036 = vector.broadcast %1035 : f32 to vector<12x12xf32>
    %1037 = arith.mulf %1036, %1030 : vector<12x12xf32>
    %1038 = arith.addf %1021, %1037 : vector<12x12xf32>
    %c260 = arith.constant 260 : index
    %1039 = memref.load %arg1[%c260] : memref<400xf32, #tpu.memory_space<smem>>
    %1040 = vector.broadcast %1039 : f32 to vector<12x12xf32>
    %1041 = arith.mulf %1040, %1030 : vector<12x12xf32>
    %1042 = arith.addf %1025, %1041 : vector<12x12xf32>
    %c360 = arith.constant 360 : index
    %1043 = memref.load %arg1[%c360] : memref<400xf32, #tpu.memory_space<smem>>
    %1044 = vector.broadcast %1043 : f32 to vector<12x12xf32>
    %1045 = arith.mulf %1044, %1030 : vector<12x12xf32>
    %1046 = arith.addf %1029, %1045 : vector<12x12xf32>
    %1047 = vector.extract_strided_slice %859 {offsets = [2, 1], sizes = [12, 12], strides = [1, 1]} : vector<16x16xf32> to vector<12x12xf32>
    %c61 = arith.constant 61 : index
    %1048 = memref.load %arg1[%c61] : memref<400xf32, #tpu.memory_space<smem>>
    %1049 = vector.broadcast %1048 : f32 to vector<12x12xf32>
    %1050 = arith.mulf %1049, %1047 : vector<12x12xf32>
    %1051 = arith.addf %1034, %1050 : vector<12x12xf32>
    %c161 = arith.constant 161 : index
    %1052 = memref.load %arg1[%c161] : memref<400xf32, #tpu.memory_space<smem>>
    %1053 = vector.broadcast %1052 : f32 to vector<12x12xf32>
    %1054 = arith.mulf %1053, %1047 : vector<12x12xf32>
    %1055 = arith.addf %1038, %1054 : vector<12x12xf32>
    %c261 = arith.constant 261 : index
    %1056 = memref.load %arg1[%c261] : memref<400xf32, #tpu.memory_space<smem>>
    %1057 = vector.broadcast %1056 : f32 to vector<12x12xf32>
    %1058 = arith.mulf %1057, %1047 : vector<12x12xf32>
    %1059 = arith.addf %1042, %1058 : vector<12x12xf32>
    %c361 = arith.constant 361 : index
    %1060 = memref.load %arg1[%c361] : memref<400xf32, #tpu.memory_space<smem>>
    %1061 = vector.broadcast %1060 : f32 to vector<12x12xf32>
    %1062 = arith.mulf %1061, %1047 : vector<12x12xf32>
    %1063 = arith.addf %1046, %1062 : vector<12x12xf32>
    %1064 = vector.extract_strided_slice %859 {offsets = [2, 2], sizes = [12, 12], strides = [1, 1]} : vector<16x16xf32> to vector<12x12xf32>
    %c62 = arith.constant 62 : index
    %1065 = memref.load %arg1[%c62] : memref<400xf32, #tpu.memory_space<smem>>
    %1066 = vector.broadcast %1065 : f32 to vector<12x12xf32>
    %1067 = arith.mulf %1066, %1064 : vector<12x12xf32>
    %1068 = arith.addf %1051, %1067 : vector<12x12xf32>
    %c162 = arith.constant 162 : index
    %1069 = memref.load %arg1[%c162] : memref<400xf32, #tpu.memory_space<smem>>
    %1070 = vector.broadcast %1069 : f32 to vector<12x12xf32>
    %1071 = arith.mulf %1070, %1064 : vector<12x12xf32>
    %1072 = arith.addf %1055, %1071 : vector<12x12xf32>
    %c262 = arith.constant 262 : index
    %1073 = memref.load %arg1[%c262] : memref<400xf32, #tpu.memory_space<smem>>
    %1074 = vector.broadcast %1073 : f32 to vector<12x12xf32>
    %1075 = arith.mulf %1074, %1064 : vector<12x12xf32>
    %1076 = arith.addf %1059, %1075 : vector<12x12xf32>
    %c362 = arith.constant 362 : index
    %1077 = memref.load %arg1[%c362] : memref<400xf32, #tpu.memory_space<smem>>
    %1078 = vector.broadcast %1077 : f32 to vector<12x12xf32>
    %1079 = arith.mulf %1078, %1064 : vector<12x12xf32>
    %1080 = arith.addf %1063, %1079 : vector<12x12xf32>
    %1081 = vector.extract_strided_slice %859 {offsets = [2, 3], sizes = [12, 12], strides = [1, 1]} : vector<16x16xf32> to vector<12x12xf32>
    %c63 = arith.constant 63 : index
    %1082 = memref.load %arg1[%c63] : memref<400xf32, #tpu.memory_space<smem>>
    %1083 = vector.broadcast %1082 : f32 to vector<12x12xf32>
    %1084 = arith.mulf %1083, %1081 : vector<12x12xf32>
    %1085 = arith.addf %1068, %1084 : vector<12x12xf32>
    %c163 = arith.constant 163 : index
    %1086 = memref.load %arg1[%c163] : memref<400xf32, #tpu.memory_space<smem>>
    %1087 = vector.broadcast %1086 : f32 to vector<12x12xf32>
    %1088 = arith.mulf %1087, %1081 : vector<12x12xf32>
    %1089 = arith.addf %1072, %1088 : vector<12x12xf32>
    %c263 = arith.constant 263 : index
    %1090 = memref.load %arg1[%c263] : memref<400xf32, #tpu.memory_space<smem>>
    %1091 = vector.broadcast %1090 : f32 to vector<12x12xf32>
    %1092 = arith.mulf %1091, %1081 : vector<12x12xf32>
    %1093 = arith.addf %1076, %1092 : vector<12x12xf32>
    %c363 = arith.constant 363 : index
    %1094 = memref.load %arg1[%c363] : memref<400xf32, #tpu.memory_space<smem>>
    %1095 = vector.broadcast %1094 : f32 to vector<12x12xf32>
    %1096 = arith.mulf %1095, %1081 : vector<12x12xf32>
    %1097 = arith.addf %1080, %1096 : vector<12x12xf32>
    %1098 = vector.extract_strided_slice %859 {offsets = [2, 4], sizes = [12, 12], strides = [1, 1]} : vector<16x16xf32> to vector<12x12xf32>
    %c64 = arith.constant 64 : index
    %1099 = memref.load %arg1[%c64] : memref<400xf32, #tpu.memory_space<smem>>
    %1100 = vector.broadcast %1099 : f32 to vector<12x12xf32>
    %1101 = arith.mulf %1100, %1098 : vector<12x12xf32>
    %1102 = arith.addf %1085, %1101 : vector<12x12xf32>
    %c164 = arith.constant 164 : index
    %1103 = memref.load %arg1[%c164] : memref<400xf32, #tpu.memory_space<smem>>
    %1104 = vector.broadcast %1103 : f32 to vector<12x12xf32>
    %1105 = arith.mulf %1104, %1098 : vector<12x12xf32>
    %1106 = arith.addf %1089, %1105 : vector<12x12xf32>
    %c264 = arith.constant 264 : index
    %1107 = memref.load %arg1[%c264] : memref<400xf32, #tpu.memory_space<smem>>
    %1108 = vector.broadcast %1107 : f32 to vector<12x12xf32>
    %1109 = arith.mulf %1108, %1098 : vector<12x12xf32>
    %1110 = arith.addf %1093, %1109 : vector<12x12xf32>
    %c364 = arith.constant 364 : index
    %1111 = memref.load %arg1[%c364] : memref<400xf32, #tpu.memory_space<smem>>
    %1112 = vector.broadcast %1111 : f32 to vector<12x12xf32>
    %1113 = arith.mulf %1112, %1098 : vector<12x12xf32>
    %1114 = arith.addf %1097, %1113 : vector<12x12xf32>
    %1115 = vector.extract_strided_slice %859 {offsets = [3, 0], sizes = [12, 12], strides = [1, 1]} : vector<16x16xf32> to vector<12x12xf32>
    %c65 = arith.constant 65 : index
    %1116 = memref.load %arg1[%c65] : memref<400xf32, #tpu.memory_space<smem>>
    %1117 = vector.broadcast %1116 : f32 to vector<12x12xf32>
    %1118 = arith.mulf %1117, %1115 : vector<12x12xf32>
    %1119 = arith.addf %1102, %1118 : vector<12x12xf32>
    %c165 = arith.constant 165 : index
    %1120 = memref.load %arg1[%c165] : memref<400xf32, #tpu.memory_space<smem>>
    %1121 = vector.broadcast %1120 : f32 to vector<12x12xf32>
    %1122 = arith.mulf %1121, %1115 : vector<12x12xf32>
    %1123 = arith.addf %1106, %1122 : vector<12x12xf32>
    %c265 = arith.constant 265 : index
    %1124 = memref.load %arg1[%c265] : memref<400xf32, #tpu.memory_space<smem>>
    %1125 = vector.broadcast %1124 : f32 to vector<12x12xf32>
    %1126 = arith.mulf %1125, %1115 : vector<12x12xf32>
    %1127 = arith.addf %1110, %1126 : vector<12x12xf32>
    %c365 = arith.constant 365 : index
    %1128 = memref.load %arg1[%c365] : memref<400xf32, #tpu.memory_space<smem>>
    %1129 = vector.broadcast %1128 : f32 to vector<12x12xf32>
    %1130 = arith.mulf %1129, %1115 : vector<12x12xf32>
    %1131 = arith.addf %1114, %1130 : vector<12x12xf32>
    %1132 = vector.extract_strided_slice %859 {offsets = [3, 1], sizes = [12, 12], strides = [1, 1]} : vector<16x16xf32> to vector<12x12xf32>
    %c66 = arith.constant 66 : index
    %1133 = memref.load %arg1[%c66] : memref<400xf32, #tpu.memory_space<smem>>
    %1134 = vector.broadcast %1133 : f32 to vector<12x12xf32>
    %1135 = arith.mulf %1134, %1132 : vector<12x12xf32>
    %1136 = arith.addf %1119, %1135 : vector<12x12xf32>
    %c166 = arith.constant 166 : index
    %1137 = memref.load %arg1[%c166] : memref<400xf32, #tpu.memory_space<smem>>
    %1138 = vector.broadcast %1137 : f32 to vector<12x12xf32>
    %1139 = arith.mulf %1138, %1132 : vector<12x12xf32>
    %1140 = arith.addf %1123, %1139 : vector<12x12xf32>
    %c266 = arith.constant 266 : index
    %1141 = memref.load %arg1[%c266] : memref<400xf32, #tpu.memory_space<smem>>
    %1142 = vector.broadcast %1141 : f32 to vector<12x12xf32>
    %1143 = arith.mulf %1142, %1132 : vector<12x12xf32>
    %1144 = arith.addf %1127, %1143 : vector<12x12xf32>
    %c366 = arith.constant 366 : index
    %1145 = memref.load %arg1[%c366] : memref<400xf32, #tpu.memory_space<smem>>
    %1146 = vector.broadcast %1145 : f32 to vector<12x12xf32>
    %1147 = arith.mulf %1146, %1132 : vector<12x12xf32>
    %1148 = arith.addf %1131, %1147 : vector<12x12xf32>
    %1149 = vector.extract_strided_slice %859 {offsets = [3, 2], sizes = [12, 12], strides = [1, 1]} : vector<16x16xf32> to vector<12x12xf32>
    %c67 = arith.constant 67 : index
    %1150 = memref.load %arg1[%c67] : memref<400xf32, #tpu.memory_space<smem>>
    %1151 = vector.broadcast %1150 : f32 to vector<12x12xf32>
    %1152 = arith.mulf %1151, %1149 : vector<12x12xf32>
    %1153 = arith.addf %1136, %1152 : vector<12x12xf32>
    %c167 = arith.constant 167 : index
    %1154 = memref.load %arg1[%c167] : memref<400xf32, #tpu.memory_space<smem>>
    %1155 = vector.broadcast %1154 : f32 to vector<12x12xf32>
    %1156 = arith.mulf %1155, %1149 : vector<12x12xf32>
    %1157 = arith.addf %1140, %1156 : vector<12x12xf32>
    %c267 = arith.constant 267 : index
    %1158 = memref.load %arg1[%c267] : memref<400xf32, #tpu.memory_space<smem>>
    %1159 = vector.broadcast %1158 : f32 to vector<12x12xf32>
    %1160 = arith.mulf %1159, %1149 : vector<12x12xf32>
    %1161 = arith.addf %1144, %1160 : vector<12x12xf32>
    %c367 = arith.constant 367 : index
    %1162 = memref.load %arg1[%c367] : memref<400xf32, #tpu.memory_space<smem>>
    %1163 = vector.broadcast %1162 : f32 to vector<12x12xf32>
    %1164 = arith.mulf %1163, %1149 : vector<12x12xf32>
    %1165 = arith.addf %1148, %1164 : vector<12x12xf32>
    %1166 = vector.extract_strided_slice %859 {offsets = [3, 3], sizes = [12, 12], strides = [1, 1]} : vector<16x16xf32> to vector<12x12xf32>
    %c68 = arith.constant 68 : index
    %1167 = memref.load %arg1[%c68] : memref<400xf32, #tpu.memory_space<smem>>
    %1168 = vector.broadcast %1167 : f32 to vector<12x12xf32>
    %1169 = arith.mulf %1168, %1166 : vector<12x12xf32>
    %1170 = arith.addf %1153, %1169 : vector<12x12xf32>
    %c168 = arith.constant 168 : index
    %1171 = memref.load %arg1[%c168] : memref<400xf32, #tpu.memory_space<smem>>
    %1172 = vector.broadcast %1171 : f32 to vector<12x12xf32>
    %1173 = arith.mulf %1172, %1166 : vector<12x12xf32>
    %1174 = arith.addf %1157, %1173 : vector<12x12xf32>
    %c268 = arith.constant 268 : index
    %1175 = memref.load %arg1[%c268] : memref<400xf32, #tpu.memory_space<smem>>
    %1176 = vector.broadcast %1175 : f32 to vector<12x12xf32>
    %1177 = arith.mulf %1176, %1166 : vector<12x12xf32>
    %1178 = arith.addf %1161, %1177 : vector<12x12xf32>
    %c368 = arith.constant 368 : index
    %1179 = memref.load %arg1[%c368] : memref<400xf32, #tpu.memory_space<smem>>
    %1180 = vector.broadcast %1179 : f32 to vector<12x12xf32>
    %1181 = arith.mulf %1180, %1166 : vector<12x12xf32>
    %1182 = arith.addf %1165, %1181 : vector<12x12xf32>
    %1183 = vector.extract_strided_slice %859 {offsets = [3, 4], sizes = [12, 12], strides = [1, 1]} : vector<16x16xf32> to vector<12x12xf32>
    %c69 = arith.constant 69 : index
    %1184 = memref.load %arg1[%c69] : memref<400xf32, #tpu.memory_space<smem>>
    %1185 = vector.broadcast %1184 : f32 to vector<12x12xf32>
    %1186 = arith.mulf %1185, %1183 : vector<12x12xf32>
    %1187 = arith.addf %1170, %1186 : vector<12x12xf32>
    %c169 = arith.constant 169 : index
    %1188 = memref.load %arg1[%c169] : memref<400xf32, #tpu.memory_space<smem>>
    %1189 = vector.broadcast %1188 : f32 to vector<12x12xf32>
    %1190 = arith.mulf %1189, %1183 : vector<12x12xf32>
    %1191 = arith.addf %1174, %1190 : vector<12x12xf32>
    %c269 = arith.constant 269 : index
    %1192 = memref.load %arg1[%c269] : memref<400xf32, #tpu.memory_space<smem>>
    %1193 = vector.broadcast %1192 : f32 to vector<12x12xf32>
    %1194 = arith.mulf %1193, %1183 : vector<12x12xf32>
    %1195 = arith.addf %1178, %1194 : vector<12x12xf32>
    %c369 = arith.constant 369 : index
    %1196 = memref.load %arg1[%c369] : memref<400xf32, #tpu.memory_space<smem>>
    %1197 = vector.broadcast %1196 : f32 to vector<12x12xf32>
    %1198 = arith.mulf %1197, %1183 : vector<12x12xf32>
    %1199 = arith.addf %1182, %1198 : vector<12x12xf32>
    %1200 = vector.extract_strided_slice %859 {offsets = [4, 0], sizes = [12, 12], strides = [1, 1]} : vector<16x16xf32> to vector<12x12xf32>
    %c70 = arith.constant 70 : index
    %1201 = memref.load %arg1[%c70] : memref<400xf32, #tpu.memory_space<smem>>
    %1202 = vector.broadcast %1201 : f32 to vector<12x12xf32>
    %1203 = arith.mulf %1202, %1200 : vector<12x12xf32>
    %1204 = arith.addf %1187, %1203 : vector<12x12xf32>
    %c170 = arith.constant 170 : index
    %1205 = memref.load %arg1[%c170] : memref<400xf32, #tpu.memory_space<smem>>
    %1206 = vector.broadcast %1205 : f32 to vector<12x12xf32>
    %1207 = arith.mulf %1206, %1200 : vector<12x12xf32>
    %1208 = arith.addf %1191, %1207 : vector<12x12xf32>
    %c270 = arith.constant 270 : index
    %1209 = memref.load %arg1[%c270] : memref<400xf32, #tpu.memory_space<smem>>
    %1210 = vector.broadcast %1209 : f32 to vector<12x12xf32>
    %1211 = arith.mulf %1210, %1200 : vector<12x12xf32>
    %1212 = arith.addf %1195, %1211 : vector<12x12xf32>
    %c370 = arith.constant 370 : index
    %1213 = memref.load %arg1[%c370] : memref<400xf32, #tpu.memory_space<smem>>
    %1214 = vector.broadcast %1213 : f32 to vector<12x12xf32>
    %1215 = arith.mulf %1214, %1200 : vector<12x12xf32>
    %1216 = arith.addf %1199, %1215 : vector<12x12xf32>
    %1217 = vector.extract_strided_slice %859 {offsets = [4, 1], sizes = [12, 12], strides = [1, 1]} : vector<16x16xf32> to vector<12x12xf32>
    %c71 = arith.constant 71 : index
    %1218 = memref.load %arg1[%c71] : memref<400xf32, #tpu.memory_space<smem>>
    %1219 = vector.broadcast %1218 : f32 to vector<12x12xf32>
    %1220 = arith.mulf %1219, %1217 : vector<12x12xf32>
    %1221 = arith.addf %1204, %1220 : vector<12x12xf32>
    %c171 = arith.constant 171 : index
    %1222 = memref.load %arg1[%c171] : memref<400xf32, #tpu.memory_space<smem>>
    %1223 = vector.broadcast %1222 : f32 to vector<12x12xf32>
    %1224 = arith.mulf %1223, %1217 : vector<12x12xf32>
    %1225 = arith.addf %1208, %1224 : vector<12x12xf32>
    %c271 = arith.constant 271 : index
    %1226 = memref.load %arg1[%c271] : memref<400xf32, #tpu.memory_space<smem>>
    %1227 = vector.broadcast %1226 : f32 to vector<12x12xf32>
    %1228 = arith.mulf %1227, %1217 : vector<12x12xf32>
    %1229 = arith.addf %1212, %1228 : vector<12x12xf32>
    %c371 = arith.constant 371 : index
    %1230 = memref.load %arg1[%c371] : memref<400xf32, #tpu.memory_space<smem>>
    %1231 = vector.broadcast %1230 : f32 to vector<12x12xf32>
    %1232 = arith.mulf %1231, %1217 : vector<12x12xf32>
    %1233 = arith.addf %1216, %1232 : vector<12x12xf32>
    %1234 = vector.extract_strided_slice %859 {offsets = [4, 2], sizes = [12, 12], strides = [1, 1]} : vector<16x16xf32> to vector<12x12xf32>
    %c72 = arith.constant 72 : index
    %1235 = memref.load %arg1[%c72] : memref<400xf32, #tpu.memory_space<smem>>
    %1236 = vector.broadcast %1235 : f32 to vector<12x12xf32>
    %1237 = arith.mulf %1236, %1234 : vector<12x12xf32>
    %1238 = arith.addf %1221, %1237 : vector<12x12xf32>
    %c172 = arith.constant 172 : index
    %1239 = memref.load %arg1[%c172] : memref<400xf32, #tpu.memory_space<smem>>
    %1240 = vector.broadcast %1239 : f32 to vector<12x12xf32>
    %1241 = arith.mulf %1240, %1234 : vector<12x12xf32>
    %1242 = arith.addf %1225, %1241 : vector<12x12xf32>
    %c272 = arith.constant 272 : index
    %1243 = memref.load %arg1[%c272] : memref<400xf32, #tpu.memory_space<smem>>
    %1244 = vector.broadcast %1243 : f32 to vector<12x12xf32>
    %1245 = arith.mulf %1244, %1234 : vector<12x12xf32>
    %1246 = arith.addf %1229, %1245 : vector<12x12xf32>
    %c372 = arith.constant 372 : index
    %1247 = memref.load %arg1[%c372] : memref<400xf32, #tpu.memory_space<smem>>
    %1248 = vector.broadcast %1247 : f32 to vector<12x12xf32>
    %1249 = arith.mulf %1248, %1234 : vector<12x12xf32>
    %1250 = arith.addf %1233, %1249 : vector<12x12xf32>
    %1251 = vector.extract_strided_slice %859 {offsets = [4, 3], sizes = [12, 12], strides = [1, 1]} : vector<16x16xf32> to vector<12x12xf32>
    %c73 = arith.constant 73 : index
    %1252 = memref.load %arg1[%c73] : memref<400xf32, #tpu.memory_space<smem>>
    %1253 = vector.broadcast %1252 : f32 to vector<12x12xf32>
    %1254 = arith.mulf %1253, %1251 : vector<12x12xf32>
    %1255 = arith.addf %1238, %1254 : vector<12x12xf32>
    %c173 = arith.constant 173 : index
    %1256 = memref.load %arg1[%c173] : memref<400xf32, #tpu.memory_space<smem>>
    %1257 = vector.broadcast %1256 : f32 to vector<12x12xf32>
    %1258 = arith.mulf %1257, %1251 : vector<12x12xf32>
    %1259 = arith.addf %1242, %1258 : vector<12x12xf32>
    %c273 = arith.constant 273 : index
    %1260 = memref.load %arg1[%c273] : memref<400xf32, #tpu.memory_space<smem>>
    %1261 = vector.broadcast %1260 : f32 to vector<12x12xf32>
    %1262 = arith.mulf %1261, %1251 : vector<12x12xf32>
    %1263 = arith.addf %1246, %1262 : vector<12x12xf32>
    %c373 = arith.constant 373 : index
    %1264 = memref.load %arg1[%c373] : memref<400xf32, #tpu.memory_space<smem>>
    %1265 = vector.broadcast %1264 : f32 to vector<12x12xf32>
    %1266 = arith.mulf %1265, %1251 : vector<12x12xf32>
    %1267 = arith.addf %1250, %1266 : vector<12x12xf32>
    %1268 = vector.extract_strided_slice %859 {offsets = [4, 4], sizes = [12, 12], strides = [1, 1]} : vector<16x16xf32> to vector<12x12xf32>
    %c74 = arith.constant 74 : index
    %1269 = memref.load %arg1[%c74] : memref<400xf32, #tpu.memory_space<smem>>
    %1270 = vector.broadcast %1269 : f32 to vector<12x12xf32>
    %1271 = arith.mulf %1270, %1268 : vector<12x12xf32>
    %1272 = arith.addf %1255, %1271 : vector<12x12xf32>
    %c174 = arith.constant 174 : index
    %1273 = memref.load %arg1[%c174] : memref<400xf32, #tpu.memory_space<smem>>
    %1274 = vector.broadcast %1273 : f32 to vector<12x12xf32>
    %1275 = arith.mulf %1274, %1268 : vector<12x12xf32>
    %1276 = arith.addf %1259, %1275 : vector<12x12xf32>
    %c274 = arith.constant 274 : index
    %1277 = memref.load %arg1[%c274] : memref<400xf32, #tpu.memory_space<smem>>
    %1278 = vector.broadcast %1277 : f32 to vector<12x12xf32>
    %1279 = arith.mulf %1278, %1268 : vector<12x12xf32>
    %1280 = arith.addf %1263, %1279 : vector<12x12xf32>
    %c374 = arith.constant 374 : index
    %1281 = memref.load %arg1[%c374] : memref<400xf32, #tpu.memory_space<smem>>
    %1282 = vector.broadcast %1281 : f32 to vector<12x12xf32>
    %1283 = arith.mulf %1282, %1268 : vector<12x12xf32>
    %1284 = arith.addf %1267, %1283 : vector<12x12xf32>
    %c0_15 = arith.constant 0 : index
    %c3_16 = arith.constant 3 : index
    %c0_17 = arith.constant 0 : index
    %c0_18 = arith.constant 0 : index
    %1285 = vector.load %arg2[%c0_15, %c3_16, %c0_17, %c0_18] : memref<1x4x16x16xf32, #tpu.memory_space<vmem>>, vector<1x1x16x16xf32>
    %1286 = vector.shape_cast %1285 : vector<1x1x16x16xf32> to vector<16x16xf32>
    %1287 = vector.extract_strided_slice %1286 {offsets = [0, 0], sizes = [12, 12], strides = [1, 1]} : vector<16x16xf32> to vector<12x12xf32>
    %c75 = arith.constant 75 : index
    %1288 = memref.load %arg1[%c75] : memref<400xf32, #tpu.memory_space<smem>>
    %1289 = vector.broadcast %1288 : f32 to vector<12x12xf32>
    %1290 = arith.mulf %1289, %1287 : vector<12x12xf32>
    %1291 = arith.addf %1272, %1290 : vector<12x12xf32>
    %c175 = arith.constant 175 : index
    %1292 = memref.load %arg1[%c175] : memref<400xf32, #tpu.memory_space<smem>>
    %1293 = vector.broadcast %1292 : f32 to vector<12x12xf32>
    %1294 = arith.mulf %1293, %1287 : vector<12x12xf32>
    %1295 = arith.addf %1276, %1294 : vector<12x12xf32>
    %c275 = arith.constant 275 : index
    %1296 = memref.load %arg1[%c275] : memref<400xf32, #tpu.memory_space<smem>>
    %1297 = vector.broadcast %1296 : f32 to vector<12x12xf32>
    %1298 = arith.mulf %1297, %1287 : vector<12x12xf32>
    %1299 = arith.addf %1280, %1298 : vector<12x12xf32>
    %c375 = arith.constant 375 : index
    %1300 = memref.load %arg1[%c375] : memref<400xf32, #tpu.memory_space<smem>>
    %1301 = vector.broadcast %1300 : f32 to vector<12x12xf32>
    %1302 = arith.mulf %1301, %1287 : vector<12x12xf32>
    %1303 = arith.addf %1284, %1302 : vector<12x12xf32>
    %1304 = vector.extract_strided_slice %1286 {offsets = [0, 1], sizes = [12, 12], strides = [1, 1]} : vector<16x16xf32> to vector<12x12xf32>
    %c76 = arith.constant 76 : index
    %1305 = memref.load %arg1[%c76] : memref<400xf32, #tpu.memory_space<smem>>
    %1306 = vector.broadcast %1305 : f32 to vector<12x12xf32>
    %1307 = arith.mulf %1306, %1304 : vector<12x12xf32>
    %1308 = arith.addf %1291, %1307 : vector<12x12xf32>
    %c176 = arith.constant 176 : index
    %1309 = memref.load %arg1[%c176] : memref<400xf32, #tpu.memory_space<smem>>
    %1310 = vector.broadcast %1309 : f32 to vector<12x12xf32>
    %1311 = arith.mulf %1310, %1304 : vector<12x12xf32>
    %1312 = arith.addf %1295, %1311 : vector<12x12xf32>
    %c276 = arith.constant 276 : index
    %1313 = memref.load %arg1[%c276] : memref<400xf32, #tpu.memory_space<smem>>
    %1314 = vector.broadcast %1313 : f32 to vector<12x12xf32>
    %1315 = arith.mulf %1314, %1304 : vector<12x12xf32>
    %1316 = arith.addf %1299, %1315 : vector<12x12xf32>
    %c376 = arith.constant 376 : index
    %1317 = memref.load %arg1[%c376] : memref<400xf32, #tpu.memory_space<smem>>
    %1318 = vector.broadcast %1317 : f32 to vector<12x12xf32>
    %1319 = arith.mulf %1318, %1304 : vector<12x12xf32>
    %1320 = arith.addf %1303, %1319 : vector<12x12xf32>
    %1321 = vector.extract_strided_slice %1286 {offsets = [0, 2], sizes = [12, 12], strides = [1, 1]} : vector<16x16xf32> to vector<12x12xf32>
    %c77 = arith.constant 77 : index
    %1322 = memref.load %arg1[%c77] : memref<400xf32, #tpu.memory_space<smem>>
    %1323 = vector.broadcast %1322 : f32 to vector<12x12xf32>
    %1324 = arith.mulf %1323, %1321 : vector<12x12xf32>
    %1325 = arith.addf %1308, %1324 : vector<12x12xf32>
    %c177 = arith.constant 177 : index
    %1326 = memref.load %arg1[%c177] : memref<400xf32, #tpu.memory_space<smem>>
    %1327 = vector.broadcast %1326 : f32 to vector<12x12xf32>
    %1328 = arith.mulf %1327, %1321 : vector<12x12xf32>
    %1329 = arith.addf %1312, %1328 : vector<12x12xf32>
    %c277 = arith.constant 277 : index
    %1330 = memref.load %arg1[%c277] : memref<400xf32, #tpu.memory_space<smem>>
    %1331 = vector.broadcast %1330 : f32 to vector<12x12xf32>
    %1332 = arith.mulf %1331, %1321 : vector<12x12xf32>
    %1333 = arith.addf %1316, %1332 : vector<12x12xf32>
    %c377 = arith.constant 377 : index
    %1334 = memref.load %arg1[%c377] : memref<400xf32, #tpu.memory_space<smem>>
    %1335 = vector.broadcast %1334 : f32 to vector<12x12xf32>
    %1336 = arith.mulf %1335, %1321 : vector<12x12xf32>
    %1337 = arith.addf %1320, %1336 : vector<12x12xf32>
    %1338 = vector.extract_strided_slice %1286 {offsets = [0, 3], sizes = [12, 12], strides = [1, 1]} : vector<16x16xf32> to vector<12x12xf32>
    %c78 = arith.constant 78 : index
    %1339 = memref.load %arg1[%c78] : memref<400xf32, #tpu.memory_space<smem>>
    %1340 = vector.broadcast %1339 : f32 to vector<12x12xf32>
    %1341 = arith.mulf %1340, %1338 : vector<12x12xf32>
    %1342 = arith.addf %1325, %1341 : vector<12x12xf32>
    %c178 = arith.constant 178 : index
    %1343 = memref.load %arg1[%c178] : memref<400xf32, #tpu.memory_space<smem>>
    %1344 = vector.broadcast %1343 : f32 to vector<12x12xf32>
    %1345 = arith.mulf %1344, %1338 : vector<12x12xf32>
    %1346 = arith.addf %1329, %1345 : vector<12x12xf32>
    %c278 = arith.constant 278 : index
    %1347 = memref.load %arg1[%c278] : memref<400xf32, #tpu.memory_space<smem>>
    %1348 = vector.broadcast %1347 : f32 to vector<12x12xf32>
    %1349 = arith.mulf %1348, %1338 : vector<12x12xf32>
    %1350 = arith.addf %1333, %1349 : vector<12x12xf32>
    %c378 = arith.constant 378 : index
    %1351 = memref.load %arg1[%c378] : memref<400xf32, #tpu.memory_space<smem>>
    %1352 = vector.broadcast %1351 : f32 to vector<12x12xf32>
    %1353 = arith.mulf %1352, %1338 : vector<12x12xf32>
    %1354 = arith.addf %1337, %1353 : vector<12x12xf32>
    %1355 = vector.extract_strided_slice %1286 {offsets = [0, 4], sizes = [12, 12], strides = [1, 1]} : vector<16x16xf32> to vector<12x12xf32>
    %c79 = arith.constant 79 : index
    %1356 = memref.load %arg1[%c79] : memref<400xf32, #tpu.memory_space<smem>>
    %1357 = vector.broadcast %1356 : f32 to vector<12x12xf32>
    %1358 = arith.mulf %1357, %1355 : vector<12x12xf32>
    %1359 = arith.addf %1342, %1358 : vector<12x12xf32>
    %c179 = arith.constant 179 : index
    %1360 = memref.load %arg1[%c179] : memref<400xf32, #tpu.memory_space<smem>>
    %1361 = vector.broadcast %1360 : f32 to vector<12x12xf32>
    %1362 = arith.mulf %1361, %1355 : vector<12x12xf32>
    %1363 = arith.addf %1346, %1362 : vector<12x12xf32>
    %c279 = arith.constant 279 : index
    %1364 = memref.load %arg1[%c279] : memref<400xf32, #tpu.memory_space<smem>>
    %1365 = vector.broadcast %1364 : f32 to vector<12x12xf32>
    %1366 = arith.mulf %1365, %1355 : vector<12x12xf32>
    %1367 = arith.addf %1350, %1366 : vector<12x12xf32>
    %c379 = arith.constant 379 : index
    %1368 = memref.load %arg1[%c379] : memref<400xf32, #tpu.memory_space<smem>>
    %1369 = vector.broadcast %1368 : f32 to vector<12x12xf32>
    %1370 = arith.mulf %1369, %1355 : vector<12x12xf32>
    %1371 = arith.addf %1354, %1370 : vector<12x12xf32>
    %1372 = vector.extract_strided_slice %1286 {offsets = [1, 0], sizes = [12, 12], strides = [1, 1]} : vector<16x16xf32> to vector<12x12xf32>
    %c80 = arith.constant 80 : index
    %1373 = memref.load %arg1[%c80] : memref<400xf32, #tpu.memory_space<smem>>
    %1374 = vector.broadcast %1373 : f32 to vector<12x12xf32>
    %1375 = arith.mulf %1374, %1372 : vector<12x12xf32>
    %1376 = arith.addf %1359, %1375 : vector<12x12xf32>
    %c180 = arith.constant 180 : index
    %1377 = memref.load %arg1[%c180] : memref<400xf32, #tpu.memory_space<smem>>
    %1378 = vector.broadcast %1377 : f32 to vector<12x12xf32>
    %1379 = arith.mulf %1378, %1372 : vector<12x12xf32>
    %1380 = arith.addf %1363, %1379 : vector<12x12xf32>
    %c280 = arith.constant 280 : index
    %1381 = memref.load %arg1[%c280] : memref<400xf32, #tpu.memory_space<smem>>
    %1382 = vector.broadcast %1381 : f32 to vector<12x12xf32>
    %1383 = arith.mulf %1382, %1372 : vector<12x12xf32>
    %1384 = arith.addf %1367, %1383 : vector<12x12xf32>
    %c380 = arith.constant 380 : index
    %1385 = memref.load %arg1[%c380] : memref<400xf32, #tpu.memory_space<smem>>
    %1386 = vector.broadcast %1385 : f32 to vector<12x12xf32>
    %1387 = arith.mulf %1386, %1372 : vector<12x12xf32>
    %1388 = arith.addf %1371, %1387 : vector<12x12xf32>
    %1389 = vector.extract_strided_slice %1286 {offsets = [1, 1], sizes = [12, 12], strides = [1, 1]} : vector<16x16xf32> to vector<12x12xf32>
    %c81 = arith.constant 81 : index
    %1390 = memref.load %arg1[%c81] : memref<400xf32, #tpu.memory_space<smem>>
    %1391 = vector.broadcast %1390 : f32 to vector<12x12xf32>
    %1392 = arith.mulf %1391, %1389 : vector<12x12xf32>
    %1393 = arith.addf %1376, %1392 : vector<12x12xf32>
    %c181 = arith.constant 181 : index
    %1394 = memref.load %arg1[%c181] : memref<400xf32, #tpu.memory_space<smem>>
    %1395 = vector.broadcast %1394 : f32 to vector<12x12xf32>
    %1396 = arith.mulf %1395, %1389 : vector<12x12xf32>
    %1397 = arith.addf %1380, %1396 : vector<12x12xf32>
    %c281 = arith.constant 281 : index
    %1398 = memref.load %arg1[%c281] : memref<400xf32, #tpu.memory_space<smem>>
    %1399 = vector.broadcast %1398 : f32 to vector<12x12xf32>
    %1400 = arith.mulf %1399, %1389 : vector<12x12xf32>
    %1401 = arith.addf %1384, %1400 : vector<12x12xf32>
    %c381 = arith.constant 381 : index
    %1402 = memref.load %arg1[%c381] : memref<400xf32, #tpu.memory_space<smem>>
    %1403 = vector.broadcast %1402 : f32 to vector<12x12xf32>
    %1404 = arith.mulf %1403, %1389 : vector<12x12xf32>
    %1405 = arith.addf %1388, %1404 : vector<12x12xf32>
    %1406 = vector.extract_strided_slice %1286 {offsets = [1, 2], sizes = [12, 12], strides = [1, 1]} : vector<16x16xf32> to vector<12x12xf32>
    %c82 = arith.constant 82 : index
    %1407 = memref.load %arg1[%c82] : memref<400xf32, #tpu.memory_space<smem>>
    %1408 = vector.broadcast %1407 : f32 to vector<12x12xf32>
    %1409 = arith.mulf %1408, %1406 : vector<12x12xf32>
    %1410 = arith.addf %1393, %1409 : vector<12x12xf32>
    %c182 = arith.constant 182 : index
    %1411 = memref.load %arg1[%c182] : memref<400xf32, #tpu.memory_space<smem>>
    %1412 = vector.broadcast %1411 : f32 to vector<12x12xf32>
    %1413 = arith.mulf %1412, %1406 : vector<12x12xf32>
    %1414 = arith.addf %1397, %1413 : vector<12x12xf32>
    %c282 = arith.constant 282 : index
    %1415 = memref.load %arg1[%c282] : memref<400xf32, #tpu.memory_space<smem>>
    %1416 = vector.broadcast %1415 : f32 to vector<12x12xf32>
    %1417 = arith.mulf %1416, %1406 : vector<12x12xf32>
    %1418 = arith.addf %1401, %1417 : vector<12x12xf32>
    %c382 = arith.constant 382 : index
    %1419 = memref.load %arg1[%c382] : memref<400xf32, #tpu.memory_space<smem>>
    %1420 = vector.broadcast %1419 : f32 to vector<12x12xf32>
    %1421 = arith.mulf %1420, %1406 : vector<12x12xf32>
    %1422 = arith.addf %1405, %1421 : vector<12x12xf32>
    %1423 = vector.extract_strided_slice %1286 {offsets = [1, 3], sizes = [12, 12], strides = [1, 1]} : vector<16x16xf32> to vector<12x12xf32>
    %c83 = arith.constant 83 : index
    %1424 = memref.load %arg1[%c83] : memref<400xf32, #tpu.memory_space<smem>>
    %1425 = vector.broadcast %1424 : f32 to vector<12x12xf32>
    %1426 = arith.mulf %1425, %1423 : vector<12x12xf32>
    %1427 = arith.addf %1410, %1426 : vector<12x12xf32>
    %c183 = arith.constant 183 : index
    %1428 = memref.load %arg1[%c183] : memref<400xf32, #tpu.memory_space<smem>>
    %1429 = vector.broadcast %1428 : f32 to vector<12x12xf32>
    %1430 = arith.mulf %1429, %1423 : vector<12x12xf32>
    %1431 = arith.addf %1414, %1430 : vector<12x12xf32>
    %c283 = arith.constant 283 : index
    %1432 = memref.load %arg1[%c283] : memref<400xf32, #tpu.memory_space<smem>>
    %1433 = vector.broadcast %1432 : f32 to vector<12x12xf32>
    %1434 = arith.mulf %1433, %1423 : vector<12x12xf32>
    %1435 = arith.addf %1418, %1434 : vector<12x12xf32>
    %c383 = arith.constant 383 : index
    %1436 = memref.load %arg1[%c383] : memref<400xf32, #tpu.memory_space<smem>>
    %1437 = vector.broadcast %1436 : f32 to vector<12x12xf32>
    %1438 = arith.mulf %1437, %1423 : vector<12x12xf32>
    %1439 = arith.addf %1422, %1438 : vector<12x12xf32>
    %1440 = vector.extract_strided_slice %1286 {offsets = [1, 4], sizes = [12, 12], strides = [1, 1]} : vector<16x16xf32> to vector<12x12xf32>
    %c84 = arith.constant 84 : index
    %1441 = memref.load %arg1[%c84] : memref<400xf32, #tpu.memory_space<smem>>
    %1442 = vector.broadcast %1441 : f32 to vector<12x12xf32>
    %1443 = arith.mulf %1442, %1440 : vector<12x12xf32>
    %1444 = arith.addf %1427, %1443 : vector<12x12xf32>
    %c184 = arith.constant 184 : index
    %1445 = memref.load %arg1[%c184] : memref<400xf32, #tpu.memory_space<smem>>
    %1446 = vector.broadcast %1445 : f32 to vector<12x12xf32>
    %1447 = arith.mulf %1446, %1440 : vector<12x12xf32>
    %1448 = arith.addf %1431, %1447 : vector<12x12xf32>
    %c284 = arith.constant 284 : index
    %1449 = memref.load %arg1[%c284] : memref<400xf32, #tpu.memory_space<smem>>
    %1450 = vector.broadcast %1449 : f32 to vector<12x12xf32>
    %1451 = arith.mulf %1450, %1440 : vector<12x12xf32>
    %1452 = arith.addf %1435, %1451 : vector<12x12xf32>
    %c384 = arith.constant 384 : index
    %1453 = memref.load %arg1[%c384] : memref<400xf32, #tpu.memory_space<smem>>
    %1454 = vector.broadcast %1453 : f32 to vector<12x12xf32>
    %1455 = arith.mulf %1454, %1440 : vector<12x12xf32>
    %1456 = arith.addf %1439, %1455 : vector<12x12xf32>
    %1457 = vector.extract_strided_slice %1286 {offsets = [2, 0], sizes = [12, 12], strides = [1, 1]} : vector<16x16xf32> to vector<12x12xf32>
    %c85 = arith.constant 85 : index
    %1458 = memref.load %arg1[%c85] : memref<400xf32, #tpu.memory_space<smem>>
    %1459 = vector.broadcast %1458 : f32 to vector<12x12xf32>
    %1460 = arith.mulf %1459, %1457 : vector<12x12xf32>
    %1461 = arith.addf %1444, %1460 : vector<12x12xf32>
    %c185 = arith.constant 185 : index
    %1462 = memref.load %arg1[%c185] : memref<400xf32, #tpu.memory_space<smem>>
    %1463 = vector.broadcast %1462 : f32 to vector<12x12xf32>
    %1464 = arith.mulf %1463, %1457 : vector<12x12xf32>
    %1465 = arith.addf %1448, %1464 : vector<12x12xf32>
    %c285 = arith.constant 285 : index
    %1466 = memref.load %arg1[%c285] : memref<400xf32, #tpu.memory_space<smem>>
    %1467 = vector.broadcast %1466 : f32 to vector<12x12xf32>
    %1468 = arith.mulf %1467, %1457 : vector<12x12xf32>
    %1469 = arith.addf %1452, %1468 : vector<12x12xf32>
    %c385 = arith.constant 385 : index
    %1470 = memref.load %arg1[%c385] : memref<400xf32, #tpu.memory_space<smem>>
    %1471 = vector.broadcast %1470 : f32 to vector<12x12xf32>
    %1472 = arith.mulf %1471, %1457 : vector<12x12xf32>
    %1473 = arith.addf %1456, %1472 : vector<12x12xf32>
    %1474 = vector.extract_strided_slice %1286 {offsets = [2, 1], sizes = [12, 12], strides = [1, 1]} : vector<16x16xf32> to vector<12x12xf32>
    %c86 = arith.constant 86 : index
    %1475 = memref.load %arg1[%c86] : memref<400xf32, #tpu.memory_space<smem>>
    %1476 = vector.broadcast %1475 : f32 to vector<12x12xf32>
    %1477 = arith.mulf %1476, %1474 : vector<12x12xf32>
    %1478 = arith.addf %1461, %1477 : vector<12x12xf32>
    %c186 = arith.constant 186 : index
    %1479 = memref.load %arg1[%c186] : memref<400xf32, #tpu.memory_space<smem>>
    %1480 = vector.broadcast %1479 : f32 to vector<12x12xf32>
    %1481 = arith.mulf %1480, %1474 : vector<12x12xf32>
    %1482 = arith.addf %1465, %1481 : vector<12x12xf32>
    %c286 = arith.constant 286 : index
    %1483 = memref.load %arg1[%c286] : memref<400xf32, #tpu.memory_space<smem>>
    %1484 = vector.broadcast %1483 : f32 to vector<12x12xf32>
    %1485 = arith.mulf %1484, %1474 : vector<12x12xf32>
    %1486 = arith.addf %1469, %1485 : vector<12x12xf32>
    %c386 = arith.constant 386 : index
    %1487 = memref.load %arg1[%c386] : memref<400xf32, #tpu.memory_space<smem>>
    %1488 = vector.broadcast %1487 : f32 to vector<12x12xf32>
    %1489 = arith.mulf %1488, %1474 : vector<12x12xf32>
    %1490 = arith.addf %1473, %1489 : vector<12x12xf32>
    %1491 = vector.extract_strided_slice %1286 {offsets = [2, 2], sizes = [12, 12], strides = [1, 1]} : vector<16x16xf32> to vector<12x12xf32>
    %c87 = arith.constant 87 : index
    %1492 = memref.load %arg1[%c87] : memref<400xf32, #tpu.memory_space<smem>>
    %1493 = vector.broadcast %1492 : f32 to vector<12x12xf32>
    %1494 = arith.mulf %1493, %1491 : vector<12x12xf32>
    %1495 = arith.addf %1478, %1494 : vector<12x12xf32>
    %c187 = arith.constant 187 : index
    %1496 = memref.load %arg1[%c187] : memref<400xf32, #tpu.memory_space<smem>>
    %1497 = vector.broadcast %1496 : f32 to vector<12x12xf32>
    %1498 = arith.mulf %1497, %1491 : vector<12x12xf32>
    %1499 = arith.addf %1482, %1498 : vector<12x12xf32>
    %c287 = arith.constant 287 : index
    %1500 = memref.load %arg1[%c287] : memref<400xf32, #tpu.memory_space<smem>>
    %1501 = vector.broadcast %1500 : f32 to vector<12x12xf32>
    %1502 = arith.mulf %1501, %1491 : vector<12x12xf32>
    %1503 = arith.addf %1486, %1502 : vector<12x12xf32>
    %c387 = arith.constant 387 : index
    %1504 = memref.load %arg1[%c387] : memref<400xf32, #tpu.memory_space<smem>>
    %1505 = vector.broadcast %1504 : f32 to vector<12x12xf32>
    %1506 = arith.mulf %1505, %1491 : vector<12x12xf32>
    %1507 = arith.addf %1490, %1506 : vector<12x12xf32>
    %1508 = vector.extract_strided_slice %1286 {offsets = [2, 3], sizes = [12, 12], strides = [1, 1]} : vector<16x16xf32> to vector<12x12xf32>
    %c88 = arith.constant 88 : index
    %1509 = memref.load %arg1[%c88] : memref<400xf32, #tpu.memory_space<smem>>
    %1510 = vector.broadcast %1509 : f32 to vector<12x12xf32>
    %1511 = arith.mulf %1510, %1508 : vector<12x12xf32>
    %1512 = arith.addf %1495, %1511 : vector<12x12xf32>
    %c188 = arith.constant 188 : index
    %1513 = memref.load %arg1[%c188] : memref<400xf32, #tpu.memory_space<smem>>
    %1514 = vector.broadcast %1513 : f32 to vector<12x12xf32>
    %1515 = arith.mulf %1514, %1508 : vector<12x12xf32>
    %1516 = arith.addf %1499, %1515 : vector<12x12xf32>
    %c288 = arith.constant 288 : index
    %1517 = memref.load %arg1[%c288] : memref<400xf32, #tpu.memory_space<smem>>
    %1518 = vector.broadcast %1517 : f32 to vector<12x12xf32>
    %1519 = arith.mulf %1518, %1508 : vector<12x12xf32>
    %1520 = arith.addf %1503, %1519 : vector<12x12xf32>
    %c388 = arith.constant 388 : index
    %1521 = memref.load %arg1[%c388] : memref<400xf32, #tpu.memory_space<smem>>
    %1522 = vector.broadcast %1521 : f32 to vector<12x12xf32>
    %1523 = arith.mulf %1522, %1508 : vector<12x12xf32>
    %1524 = arith.addf %1507, %1523 : vector<12x12xf32>
    %1525 = vector.extract_strided_slice %1286 {offsets = [2, 4], sizes = [12, 12], strides = [1, 1]} : vector<16x16xf32> to vector<12x12xf32>
    %c89 = arith.constant 89 : index
    %1526 = memref.load %arg1[%c89] : memref<400xf32, #tpu.memory_space<smem>>
    %1527 = vector.broadcast %1526 : f32 to vector<12x12xf32>
    %1528 = arith.mulf %1527, %1525 : vector<12x12xf32>
    %1529 = arith.addf %1512, %1528 : vector<12x12xf32>
    %c189 = arith.constant 189 : index
    %1530 = memref.load %arg1[%c189] : memref<400xf32, #tpu.memory_space<smem>>
    %1531 = vector.broadcast %1530 : f32 to vector<12x12xf32>
    %1532 = arith.mulf %1531, %1525 : vector<12x12xf32>
    %1533 = arith.addf %1516, %1532 : vector<12x12xf32>
    %c289 = arith.constant 289 : index
    %1534 = memref.load %arg1[%c289] : memref<400xf32, #tpu.memory_space<smem>>
    %1535 = vector.broadcast %1534 : f32 to vector<12x12xf32>
    %1536 = arith.mulf %1535, %1525 : vector<12x12xf32>
    %1537 = arith.addf %1520, %1536 : vector<12x12xf32>
    %c389 = arith.constant 389 : index
    %1538 = memref.load %arg1[%c389] : memref<400xf32, #tpu.memory_space<smem>>
    %1539 = vector.broadcast %1538 : f32 to vector<12x12xf32>
    %1540 = arith.mulf %1539, %1525 : vector<12x12xf32>
    %1541 = arith.addf %1524, %1540 : vector<12x12xf32>
    %1542 = vector.extract_strided_slice %1286 {offsets = [3, 0], sizes = [12, 12], strides = [1, 1]} : vector<16x16xf32> to vector<12x12xf32>
    %c90 = arith.constant 90 : index
    %1543 = memref.load %arg1[%c90] : memref<400xf32, #tpu.memory_space<smem>>
    %1544 = vector.broadcast %1543 : f32 to vector<12x12xf32>
    %1545 = arith.mulf %1544, %1542 : vector<12x12xf32>
    %1546 = arith.addf %1529, %1545 : vector<12x12xf32>
    %c190 = arith.constant 190 : index
    %1547 = memref.load %arg1[%c190] : memref<400xf32, #tpu.memory_space<smem>>
    %1548 = vector.broadcast %1547 : f32 to vector<12x12xf32>
    %1549 = arith.mulf %1548, %1542 : vector<12x12xf32>
    %1550 = arith.addf %1533, %1549 : vector<12x12xf32>
    %c290 = arith.constant 290 : index
    %1551 = memref.load %arg1[%c290] : memref<400xf32, #tpu.memory_space<smem>>
    %1552 = vector.broadcast %1551 : f32 to vector<12x12xf32>
    %1553 = arith.mulf %1552, %1542 : vector<12x12xf32>
    %1554 = arith.addf %1537, %1553 : vector<12x12xf32>
    %c390 = arith.constant 390 : index
    %1555 = memref.load %arg1[%c390] : memref<400xf32, #tpu.memory_space<smem>>
    %1556 = vector.broadcast %1555 : f32 to vector<12x12xf32>
    %1557 = arith.mulf %1556, %1542 : vector<12x12xf32>
    %1558 = arith.addf %1541, %1557 : vector<12x12xf32>
    %1559 = vector.extract_strided_slice %1286 {offsets = [3, 1], sizes = [12, 12], strides = [1, 1]} : vector<16x16xf32> to vector<12x12xf32>
    %c91 = arith.constant 91 : index
    %1560 = memref.load %arg1[%c91] : memref<400xf32, #tpu.memory_space<smem>>
    %1561 = vector.broadcast %1560 : f32 to vector<12x12xf32>
    %1562 = arith.mulf %1561, %1559 : vector<12x12xf32>
    %1563 = arith.addf %1546, %1562 : vector<12x12xf32>
    %c191 = arith.constant 191 : index
    %1564 = memref.load %arg1[%c191] : memref<400xf32, #tpu.memory_space<smem>>
    %1565 = vector.broadcast %1564 : f32 to vector<12x12xf32>
    %1566 = arith.mulf %1565, %1559 : vector<12x12xf32>
    %1567 = arith.addf %1550, %1566 : vector<12x12xf32>
    %c291 = arith.constant 291 : index
    %1568 = memref.load %arg1[%c291] : memref<400xf32, #tpu.memory_space<smem>>
    %1569 = vector.broadcast %1568 : f32 to vector<12x12xf32>
    %1570 = arith.mulf %1569, %1559 : vector<12x12xf32>
    %1571 = arith.addf %1554, %1570 : vector<12x12xf32>
    %c391 = arith.constant 391 : index
    %1572 = memref.load %arg1[%c391] : memref<400xf32, #tpu.memory_space<smem>>
    %1573 = vector.broadcast %1572 : f32 to vector<12x12xf32>
    %1574 = arith.mulf %1573, %1559 : vector<12x12xf32>
    %1575 = arith.addf %1558, %1574 : vector<12x12xf32>
    %1576 = vector.extract_strided_slice %1286 {offsets = [3, 2], sizes = [12, 12], strides = [1, 1]} : vector<16x16xf32> to vector<12x12xf32>
    %c92 = arith.constant 92 : index
    %1577 = memref.load %arg1[%c92] : memref<400xf32, #tpu.memory_space<smem>>
    %1578 = vector.broadcast %1577 : f32 to vector<12x12xf32>
    %1579 = arith.mulf %1578, %1576 : vector<12x12xf32>
    %1580 = arith.addf %1563, %1579 : vector<12x12xf32>
    %c192 = arith.constant 192 : index
    %1581 = memref.load %arg1[%c192] : memref<400xf32, #tpu.memory_space<smem>>
    %1582 = vector.broadcast %1581 : f32 to vector<12x12xf32>
    %1583 = arith.mulf %1582, %1576 : vector<12x12xf32>
    %1584 = arith.addf %1567, %1583 : vector<12x12xf32>
    %c292 = arith.constant 292 : index
    %1585 = memref.load %arg1[%c292] : memref<400xf32, #tpu.memory_space<smem>>
    %1586 = vector.broadcast %1585 : f32 to vector<12x12xf32>
    %1587 = arith.mulf %1586, %1576 : vector<12x12xf32>
    %1588 = arith.addf %1571, %1587 : vector<12x12xf32>
    %c392 = arith.constant 392 : index
    %1589 = memref.load %arg1[%c392] : memref<400xf32, #tpu.memory_space<smem>>
    %1590 = vector.broadcast %1589 : f32 to vector<12x12xf32>
    %1591 = arith.mulf %1590, %1576 : vector<12x12xf32>
    %1592 = arith.addf %1575, %1591 : vector<12x12xf32>
    %1593 = vector.extract_strided_slice %1286 {offsets = [3, 3], sizes = [12, 12], strides = [1, 1]} : vector<16x16xf32> to vector<12x12xf32>
    %c93 = arith.constant 93 : index
    %1594 = memref.load %arg1[%c93] : memref<400xf32, #tpu.memory_space<smem>>
    %1595 = vector.broadcast %1594 : f32 to vector<12x12xf32>
    %1596 = arith.mulf %1595, %1593 : vector<12x12xf32>
    %1597 = arith.addf %1580, %1596 : vector<12x12xf32>
    %c193 = arith.constant 193 : index
    %1598 = memref.load %arg1[%c193] : memref<400xf32, #tpu.memory_space<smem>>
    %1599 = vector.broadcast %1598 : f32 to vector<12x12xf32>
    %1600 = arith.mulf %1599, %1593 : vector<12x12xf32>
    %1601 = arith.addf %1584, %1600 : vector<12x12xf32>
    %c293 = arith.constant 293 : index
    %1602 = memref.load %arg1[%c293] : memref<400xf32, #tpu.memory_space<smem>>
    %1603 = vector.broadcast %1602 : f32 to vector<12x12xf32>
    %1604 = arith.mulf %1603, %1593 : vector<12x12xf32>
    %1605 = arith.addf %1588, %1604 : vector<12x12xf32>
    %c393 = arith.constant 393 : index
    %1606 = memref.load %arg1[%c393] : memref<400xf32, #tpu.memory_space<smem>>
    %1607 = vector.broadcast %1606 : f32 to vector<12x12xf32>
    %1608 = arith.mulf %1607, %1593 : vector<12x12xf32>
    %1609 = arith.addf %1592, %1608 : vector<12x12xf32>
    %1610 = vector.extract_strided_slice %1286 {offsets = [3, 4], sizes = [12, 12], strides = [1, 1]} : vector<16x16xf32> to vector<12x12xf32>
    %c94 = arith.constant 94 : index
    %1611 = memref.load %arg1[%c94] : memref<400xf32, #tpu.memory_space<smem>>
    %1612 = vector.broadcast %1611 : f32 to vector<12x12xf32>
    %1613 = arith.mulf %1612, %1610 : vector<12x12xf32>
    %1614 = arith.addf %1597, %1613 : vector<12x12xf32>
    %c194 = arith.constant 194 : index
    %1615 = memref.load %arg1[%c194] : memref<400xf32, #tpu.memory_space<smem>>
    %1616 = vector.broadcast %1615 : f32 to vector<12x12xf32>
    %1617 = arith.mulf %1616, %1610 : vector<12x12xf32>
    %1618 = arith.addf %1601, %1617 : vector<12x12xf32>
    %c294 = arith.constant 294 : index
    %1619 = memref.load %arg1[%c294] : memref<400xf32, #tpu.memory_space<smem>>
    %1620 = vector.broadcast %1619 : f32 to vector<12x12xf32>
    %1621 = arith.mulf %1620, %1610 : vector<12x12xf32>
    %1622 = arith.addf %1605, %1621 : vector<12x12xf32>
    %c394 = arith.constant 394 : index
    %1623 = memref.load %arg1[%c394] : memref<400xf32, #tpu.memory_space<smem>>
    %1624 = vector.broadcast %1623 : f32 to vector<12x12xf32>
    %1625 = arith.mulf %1624, %1610 : vector<12x12xf32>
    %1626 = arith.addf %1609, %1625 : vector<12x12xf32>
    %1627 = vector.extract_strided_slice %1286 {offsets = [4, 0], sizes = [12, 12], strides = [1, 1]} : vector<16x16xf32> to vector<12x12xf32>
    %c95 = arith.constant 95 : index
    %1628 = memref.load %arg1[%c95] : memref<400xf32, #tpu.memory_space<smem>>
    %1629 = vector.broadcast %1628 : f32 to vector<12x12xf32>
    %1630 = arith.mulf %1629, %1627 : vector<12x12xf32>
    %1631 = arith.addf %1614, %1630 : vector<12x12xf32>
    %c195 = arith.constant 195 : index
    %1632 = memref.load %arg1[%c195] : memref<400xf32, #tpu.memory_space<smem>>
    %1633 = vector.broadcast %1632 : f32 to vector<12x12xf32>
    %1634 = arith.mulf %1633, %1627 : vector<12x12xf32>
    %1635 = arith.addf %1618, %1634 : vector<12x12xf32>
    %c295 = arith.constant 295 : index
    %1636 = memref.load %arg1[%c295] : memref<400xf32, #tpu.memory_space<smem>>
    %1637 = vector.broadcast %1636 : f32 to vector<12x12xf32>
    %1638 = arith.mulf %1637, %1627 : vector<12x12xf32>
    %1639 = arith.addf %1622, %1638 : vector<12x12xf32>
    %c395 = arith.constant 395 : index
    %1640 = memref.load %arg1[%c395] : memref<400xf32, #tpu.memory_space<smem>>
    %1641 = vector.broadcast %1640 : f32 to vector<12x12xf32>
    %1642 = arith.mulf %1641, %1627 : vector<12x12xf32>
    %1643 = arith.addf %1626, %1642 : vector<12x12xf32>
    %1644 = vector.extract_strided_slice %1286 {offsets = [4, 1], sizes = [12, 12], strides = [1, 1]} : vector<16x16xf32> to vector<12x12xf32>
    %c96 = arith.constant 96 : index
    %1645 = memref.load %arg1[%c96] : memref<400xf32, #tpu.memory_space<smem>>
    %1646 = vector.broadcast %1645 : f32 to vector<12x12xf32>
    %1647 = arith.mulf %1646, %1644 : vector<12x12xf32>
    %1648 = arith.addf %1631, %1647 : vector<12x12xf32>
    %c196 = arith.constant 196 : index
    %1649 = memref.load %arg1[%c196] : memref<400xf32, #tpu.memory_space<smem>>
    %1650 = vector.broadcast %1649 : f32 to vector<12x12xf32>
    %1651 = arith.mulf %1650, %1644 : vector<12x12xf32>
    %1652 = arith.addf %1635, %1651 : vector<12x12xf32>
    %c296 = arith.constant 296 : index
    %1653 = memref.load %arg1[%c296] : memref<400xf32, #tpu.memory_space<smem>>
    %1654 = vector.broadcast %1653 : f32 to vector<12x12xf32>
    %1655 = arith.mulf %1654, %1644 : vector<12x12xf32>
    %1656 = arith.addf %1639, %1655 : vector<12x12xf32>
    %c396 = arith.constant 396 : index
    %1657 = memref.load %arg1[%c396] : memref<400xf32, #tpu.memory_space<smem>>
    %1658 = vector.broadcast %1657 : f32 to vector<12x12xf32>
    %1659 = arith.mulf %1658, %1644 : vector<12x12xf32>
    %1660 = arith.addf %1643, %1659 : vector<12x12xf32>
    %1661 = vector.extract_strided_slice %1286 {offsets = [4, 2], sizes = [12, 12], strides = [1, 1]} : vector<16x16xf32> to vector<12x12xf32>
    %c97 = arith.constant 97 : index
    %1662 = memref.load %arg1[%c97] : memref<400xf32, #tpu.memory_space<smem>>
    %1663 = vector.broadcast %1662 : f32 to vector<12x12xf32>
    %1664 = arith.mulf %1663, %1661 : vector<12x12xf32>
    %1665 = arith.addf %1648, %1664 : vector<12x12xf32>
    %c197 = arith.constant 197 : index
    %1666 = memref.load %arg1[%c197] : memref<400xf32, #tpu.memory_space<smem>>
    %1667 = vector.broadcast %1666 : f32 to vector<12x12xf32>
    %1668 = arith.mulf %1667, %1661 : vector<12x12xf32>
    %1669 = arith.addf %1652, %1668 : vector<12x12xf32>
    %c297 = arith.constant 297 : index
    %1670 = memref.load %arg1[%c297] : memref<400xf32, #tpu.memory_space<smem>>
    %1671 = vector.broadcast %1670 : f32 to vector<12x12xf32>
    %1672 = arith.mulf %1671, %1661 : vector<12x12xf32>
    %1673 = arith.addf %1656, %1672 : vector<12x12xf32>
    %c397 = arith.constant 397 : index
    %1674 = memref.load %arg1[%c397] : memref<400xf32, #tpu.memory_space<smem>>
    %1675 = vector.broadcast %1674 : f32 to vector<12x12xf32>
    %1676 = arith.mulf %1675, %1661 : vector<12x12xf32>
    %1677 = arith.addf %1660, %1676 : vector<12x12xf32>
    %1678 = vector.extract_strided_slice %1286 {offsets = [4, 3], sizes = [12, 12], strides = [1, 1]} : vector<16x16xf32> to vector<12x12xf32>
    %c98 = arith.constant 98 : index
    %1679 = memref.load %arg1[%c98] : memref<400xf32, #tpu.memory_space<smem>>
    %1680 = vector.broadcast %1679 : f32 to vector<12x12xf32>
    %1681 = arith.mulf %1680, %1678 : vector<12x12xf32>
    %1682 = arith.addf %1665, %1681 : vector<12x12xf32>
    %c198 = arith.constant 198 : index
    %1683 = memref.load %arg1[%c198] : memref<400xf32, #tpu.memory_space<smem>>
    %1684 = vector.broadcast %1683 : f32 to vector<12x12xf32>
    %1685 = arith.mulf %1684, %1678 : vector<12x12xf32>
    %1686 = arith.addf %1669, %1685 : vector<12x12xf32>
    %c298 = arith.constant 298 : index
    %1687 = memref.load %arg1[%c298] : memref<400xf32, #tpu.memory_space<smem>>
    %1688 = vector.broadcast %1687 : f32 to vector<12x12xf32>
    %1689 = arith.mulf %1688, %1678 : vector<12x12xf32>
    %1690 = arith.addf %1673, %1689 : vector<12x12xf32>
    %c398 = arith.constant 398 : index
    %1691 = memref.load %arg1[%c398] : memref<400xf32, #tpu.memory_space<smem>>
    %1692 = vector.broadcast %1691 : f32 to vector<12x12xf32>
    %1693 = arith.mulf %1692, %1678 : vector<12x12xf32>
    %1694 = arith.addf %1677, %1693 : vector<12x12xf32>
    %1695 = vector.extract_strided_slice %1286 {offsets = [4, 4], sizes = [12, 12], strides = [1, 1]} : vector<16x16xf32> to vector<12x12xf32>
    %c99 = arith.constant 99 : index
    %1696 = memref.load %arg1[%c99] : memref<400xf32, #tpu.memory_space<smem>>
    %1697 = vector.broadcast %1696 : f32 to vector<12x12xf32>
    %1698 = arith.mulf %1697, %1695 : vector<12x12xf32>
    %1699 = arith.addf %1682, %1698 : vector<12x12xf32>
    %c199 = arith.constant 199 : index
    %1700 = memref.load %arg1[%c199] : memref<400xf32, #tpu.memory_space<smem>>
    %1701 = vector.broadcast %1700 : f32 to vector<12x12xf32>
    %1702 = arith.mulf %1701, %1695 : vector<12x12xf32>
    %1703 = arith.addf %1686, %1702 : vector<12x12xf32>
    %c299 = arith.constant 299 : index
    %1704 = memref.load %arg1[%c299] : memref<400xf32, #tpu.memory_space<smem>>
    %1705 = vector.broadcast %1704 : f32 to vector<12x12xf32>
    %1706 = arith.mulf %1705, %1695 : vector<12x12xf32>
    %1707 = arith.addf %1690, %1706 : vector<12x12xf32>
    %c399 = arith.constant 399 : index
    %1708 = memref.load %arg1[%c399] : memref<400xf32, #tpu.memory_space<smem>>
    %1709 = vector.broadcast %1708 : f32 to vector<12x12xf32>
    %1710 = arith.mulf %1709, %1695 : vector<12x12xf32>
    %1711 = arith.addf %1694, %1710 : vector<12x12xf32>
    %c0_19 = arith.constant 0 : index
    %c0_20 = arith.constant 0 : index
    %c0_21 = arith.constant 0 : index
    %c0_22 = arith.constant 0 : index
    %1712 = vector.load %arg3[%c0_19, %c0_20, %c0_21, %c0_22] : memref<1x4x12x12xf32, #tpu.memory_space<vmem>>, vector<1x1x12x12xf32>
    %1713 = vector.shape_cast %1712 : vector<1x1x12x12xf32> to vector<12x12xf32>
    %1714 = vector.shape_cast %1699 : vector<12x12xf32> to vector<1x1x12x12xf32>
    tpu.vector_store %arg3[%c0_19, %c0_20, %c0_21, %c0_22], %1714 {strides = array<i32>} : memref<1x4x12x12xf32, #tpu.memory_space<vmem>>, vector<1x1x12x12xf32>,
    %c0_23 = arith.constant 0 : index
    %c1_24 = arith.constant 1 : index
    %c0_25 = arith.constant 0 : index
    %c0_26 = arith.constant 0 : index
    %1715 = vector.load %arg3[%c0_23, %c1_24, %c0_25, %c0_26] : memref<1x4x12x12xf32, #tpu.memory_space<vmem>>, vector<1x1x12x12xf32>
    %1716 = vector.shape_cast %1715 : vector<1x1x12x12xf32> to vector<12x12xf32>
    %1717 = vector.shape_cast %1703 : vector<12x12xf32> to vector<1x1x12x12xf32>
    tpu.vector_store %arg3[%c0_23, %c1_24, %c0_25, %c0_26], %1717 {strides = array<i32>} : memref<1x4x12x12xf32, #tpu.memory_space<vmem>>, vector<1x1x12x12xf32>,
    %c0_27 = arith.constant 0 : index
    %c2_28 = arith.constant 2 : index
    %c0_29 = arith.constant 0 : index
    %c0_30 = arith.constant 0 : index
    %1718 = vector.load %arg3[%c0_27, %c2_28, %c0_29, %c0_30] : memref<1x4x12x12xf32, #tpu.memory_space<vmem>>, vector<1x1x12x12xf32>
    %1719 = vector.shape_cast %1718 : vector<1x1x12x12xf32> to vector<12x12xf32>
    %1720 = vector.shape_cast %1707 : vector<12x12xf32> to vector<1x1x12x12xf32>
    tpu.vector_store %arg3[%c0_27, %c2_28, %c0_29, %c0_30], %1720 {strides = array<i32>} : memref<1x4x12x12xf32, #tpu.memory_space<vmem>>, vector<1x1x12x12xf32>,
    %c0_31 = arith.constant 0 : index
    %c3_32 = arith.constant 3 : index
    %c0_33 = arith.constant 0 : index
    %c0_34 = arith.constant 0 : index
    %1721 = vector.load %arg3[%c0_31, %c3_32, %c0_33, %c0_34] : memref<1x4x12x12xf32, #tpu.memory_space<vmem>>, vector<1x1x12x12xf32>
    %1722 = vector.shape_cast %1721 : vector<1x1x12x12xf32> to vector<12x12xf32>
    %1723 = vector.shape_cast %1711 : vector<12x12xf32> to vector<1x1x12x12xf32>
    tpu.vector_store %arg3[%c0_31, %c3_32, %c0_33, %c0_34], %1723 {strides = array<i32>} : memref<1x4x12x12xf32, #tpu.memory_space<vmem>>, vector<1x1x12x12xf32>,
    return
  }
  func.func @transform_0(%arg0: i32) -> i32 {
    %c0_i32 = arith.constant 0 : i32
    %c0_i32_0 = arith.constant 0 : i32
    return %c0_i32 : i32
  }
  func.func @transform_1(%arg0: i32) -> (i32, i32, i32, i32) {
    %c0_i32 = arith.constant 0 : i32
    %c0_i32_0 = arith.constant 0 : i32
    %c0_i32_1 = arith.constant 0 : i32
    %c0_i32_2 = arith.constant 0 : i32
    return %arg0, %c0_i32, %c0_i32_0, %c0_i32_1 : i32, i32, i32, i32
  }
  func.func @transform_2(%arg0: i32) -> (i32, i32, i32, i32) {
    %c0_i32 = arith.constant 0 : i32
    %c0_i32_0 = arith.constant 0 : i32
    %c0_i32_1 = arith.constant 0 : i32
    %c0_i32_2 = arith.constant 0 : i32
    return %arg0, %c0_i32, %c0_i32_0, %c0_i32_1 : i32, i32, i32, i32
  }
}

</mosaic_0001>

<llo_original>
// kernel: bayar_conv2d.1
$region0: #{bayar_conv2d.1}
  #allocation0 [shape = 'u32[]', space=smem, size = 0x4, offset = 0x4, fixed_abs, tag = 'smem constant byte address 0x4 - core index']
  #allocation1 [shape = 'u32[144,128]{1,0:T(1,128)}', space=vmem, size = 0x12000, scoped, tag = 'internal scratch']
  %s0 = inlined_call_operand.vmem [shape: f32[400], index: 0, kind: input, shape index: {}]
  %s1 = inlined_call_operand.vmem [shape: f32[2,4,16,16], index: 1, kind: input, shape index: {}]
  %s2 = inlined_call_operand.vmem [shape: f32[2,4,12,12], index: 2, kind: output, shape index: {}]
  %s3 = sld [smem:[#allocation0]]
  $region45: #{bayar_conv2d.1} parent=0
    _
  %s5 = ssub.s32 1, %s3
  %s6 = scalar_select 0, %s5, %s3
  $region1: #{bayar_conv2d.1} parent=0
    #allocation2 [shape = 'u8[2048]{0}', space=smem, size = 0x800, scoped, tag = 'input window, operand 0, single buffered']
    #allocation3 [shape = 's32[2]{0}', space=sflag, size = 0x8, scoped, tag = 'scoped memory for bayar_conv2d.1']
    %7 = vsyncpa [#allocation3], 0
    loop: start=0, step=1, limit=4
    $region2: #{bayar_conv2d.1} parent=1 // loop_pre_header
      _
    $region3: #{bayar_conv2d.1} parent=1 // loop_header
      %s9 = sphi 0, %s13
      %p10 = scmp.ge.s32.totalorder %s9, 4
      %s17 = sphi 0, %s17
      %s19 = sphi 0, %s17
      %s20 = sphi 0, %s19
      %s34 = sphi 0, %s20
      %s40 = sphi 0, %s42
      %s43 = sphi 0, %s40
      %s44 = sphi 0, %s43
      %s60 = sphi 0, %s44
      %s66 = sphi 0, %s68
      %s69 = sphi 0, %s66
      %s70 = sphi 0, %s69
      %s86 = sphi 0, %s70
    $region4: #{bayar_conv2d.1} parent=1 // loop_header_branch
      %12 = sbr.rel (%p10) target = $region8
    $region5: #{bayar_conv2d.1} parent=1 // loop_body
      %s14 = ssub.s32 %s9, 1
      %s15 = ssub.s32 %s9, 2
      %s16 = sadd.s32 %s9, 1
      %s18 = sadd.s32 %s17, 1
      %p21 = scmp.eq.s32.totalorder %s9, 1
      %p22 = scmp.ne.s32.totalorder %s17, %s19
      %p23 = scmp.eq.s32.totalorder %s9, 0
      %p24 = por %p22, %p23
      %p25 = scmp.ne.s32.totalorder %s17, %s19
      %p26 = scmp.eq.s32.totalorder %s14, 1
      %p27 = por %p25, %p26
      %p28 = scmp.ne.s32.totalorder %s19, %s20
      %p29 = scmp.eq.s32.totalorder %s14, 0
      %p30 = por %p28, %p29
      %p31 = scmp.ne.s32.totalorder %s19, %s20
      %p32 = scmp.eq.s32.totalorder %s15, 1
      %p33 = por %p31, %p32
      %p35 = scmp.ne.s32.totalorder %s20, %s34
      %p36 = scmp.eq.s32.totalorder %s15, 0
      %p37 = por %p35, %p36
      %s38 = ssub.s32 %s9, %s16
      %p39 = scmp.eq.s32.totalorder %s38, 0
      %s41 = sadd.s32 %s40, 1
      %s42 = scalar_select %p39, %s40, %s41
      %p45 = pneg %p39
      %p46 = scmp.eq.s32.totalorder %s9, 1
      %p47 = por %p45, %p46
      %p48 = scmp.ne.s32.totalorder %s40, %s43
      %p49 = scmp.eq.s32.totalorder %s9, 0
      %p50 = por %p48, %p49
      %p51 = scmp.ne.s32.totalorder %s40, %s43
      %p52 = scmp.eq.s32.totalorder %s14, 1
      %p53 = por %p51, %p52
      %p54 = scmp.ne.s32.totalorder %s43, %s44
      %p55 = scmp.eq.s32.totalorder %s14, 0
      %p56 = por %p54, %p55
      %p57 = scmp.ne.s32.totalorder %s43, %s44
      %p58 = scmp.eq.s32.totalorder %s15, 1
      %p59 = por %p57, %p58
      %p61 = scmp.ne.s32.totalorder %s44, %s60
      %p62 = scmp.eq.s32.totalorder %s15, 0
      %p63 = por %p61, %p62
      %s64 = ssub.s32 %s9, %s16
      %p65 = scmp.eq.s32.totalorder %s64, 0
      %s67 = sadd.s32 %s66, 1
      %s68 = scalar_select %p65, %s66, %s67
      %p71 = pneg %p65
      %p72 = scmp.eq.s32.totalorder %s9, 1
      %p73 = por %p71, %p72
      %p74 = scmp.ne.s32.totalorder %s66, %s69
      %p75 = scmp.eq.s32.totalorder %s9, 0
      %p76 = por %p74, %p75
      %p77 = scmp.ne.s32.totalorder %s66, %s69
      %p78 = scmp.eq.s32.totalorder %s14, 1
      %p79 = por %p77, %p78
      %p80 = scmp.ne.s32.totalorder %s69, %s70
      %p81 = scmp.eq.s32.totalorder %s14, 0
      %p82 = por %p80, %p81
      %p83 = scmp.ne.s32.totalorder %s69, %s70
      %p84 = scmp.eq.s32.totalorder %s15, 1
      %p85 = por %p83, %p84
      %p87 = scmp.ne.s32.totalorder %s70, %s86
      %p88 = scmp.eq.s32.totalorder %s15, 0
      %p89 = por %p87, %p88
      %p90 = scmp.le.s32.totalorder 1, %s9
      %p91 = scmp.lt.s32.totalorder %s9, 3
      %p92 = pnand %p90, %p91
      %p93 = pneg %p92
      // Predicated region
      $region9: #{bayar_conv2d.1} parent=5 // pred_check
        _
      $region10: #{bayar_conv2d.1} parent=5 // pred_check_branch
        %95 = sbr.rel (%p92) target = $region12
      $region11: #{bayar_conv2d.1} parent=5 // pred_region
        %s96 = ssub.s32 %s9, 1
        // Predicated region
        $region13: #{bayar_conv2d.1} parent=11 // pred_check
          %p97 = pneg %p30
        $region14: #{bayar_conv2d.1} parent=11 // pred_check_branch
          %99 = sbr.rel (%p97) target = $region16
        $region15: #{bayar_conv2d.1} parent=11 // pred_region
          %s101 = ssub.s32 64, 64
          %102 = vsyncadd [#allocation3], %s101
          %s104 = sshll.u32 %s0, 4
          %s105 = int_to_ptr.vmem [resolvable:$true] %s104
          %107 = dma.vmem_to_smem %s105, 64, [#allocation2], [#allocation3]
        $region16: #{bayar_conv2d.1} parent=11 // pred_fallthru
          _
      $region12: #{bayar_conv2d.1} parent=5 // pred_fallthru
        _
      %p108 = scmp.lt.s32.totalorder %s9, 2
      // Predicated region
      $region17: #{bayar_conv2d.1} parent=5 // pred_check
        %p109 = pneg %p108
      $region18: #{bayar_conv2d.1} parent=5 // pred_check_branch
        %111 = sbr.rel (%p109) target = $region20
      $region19: #{bayar_conv2d.1} parent=5 // pred_region
        // Predicated region
        $region21: #{bayar_conv2d.1} parent=19 // pred_check
          %p112 = pneg %p50
        $region22: #{bayar_conv2d.1} parent=19 // pred_check_branch
          %114 = sbr.rel (%p112) target = $region24
        $region23: #{bayar_conv2d.1} parent=19 // pred_region
          %p115 = scmp.lt.s32.totalorder %s9, 1
          %s116 = scalar_select %p115, %s9, 1
          %s117 = smul.addr %s116, 8
          %s118 = smul.addr %s117, 8
          %s119 = scalar_lea.vmem %s1, %s118
        $region24: #{bayar_conv2d.1} parent=19 // pred_fallthru
          _
      $region20: #{bayar_conv2d.1} parent=5 // pred_fallthru
        _
      %p120 = scmp.le.s32.totalorder 1, %s9
      %p121 = scmp.lt.s32.totalorder %s9, 3
      %p122 = pnand %p120, %p121
      %p123 = pneg %p122
      // Predicated region
      $region25: #{bayar_conv2d.1} parent=5 // pred_check
        _
      $region26: #{bayar_conv2d.1} parent=5 // pred_check_branch
        %125 = sbr.rel (%p122) target = $region28
      $region27: #{bayar_conv2d.1} parent=5 // pred_region
        %s126 = ssub.s32 %s9, 1
        // Predicated region
        $region29: #{bayar_conv2d.1} parent=27 // pred_check
          %p127 = pneg %p30
        $region30: #{bayar_conv2d.1} parent=27 // pred_check_branch
          %129 = sbr.rel (%p127) target = $region32
        $region31: #{bayar_conv2d.1} parent=27 // pred_region
          %130 = dma.done [#allocation3], 64
        $region32: #{bayar_conv2d.1} parent=27 // pred_fallthru
          _
        %131 = sfence
        %p132 = pneg %p30
        %p133 = pneg %p27
        %p134 = scmp.lt.s32.totalorder %s14, 1
        %s135 = scalar_select %p134, %s14, 1
        %s136 = smul.addr %s135, 8
        %s137 = smul.addr %s136, 8
        %s138 = scalar_lea.vmem %s1, %s137
        %p139 = pneg %p56
        %p140 = pneg %p53
        %p141 = pneg %p82
        %p142 = pneg %p79
        %p143 = scmp.lt.s32.totalorder %s14, 1
        %s144 = scalar_select %p143, %s14, 1
        %s145 = smul.addr %s144, 8
        %s146 = smul.addr %s145, 8
        %s147 = scalar_lea.vmem %s2, %s146
        %p148 = scmp.lt.s32.totalorder %s14, 1
        %s149 = scalar_select %p148, %s14, 1
        %s150 = smul.addr %s149, 8
        %s151 = smul.addr %s150, 8
        %s152 = scalar_lea.vmem %s1, %s151
        %p153 = scmp.lt.s32.totalorder %s14, 1
        %s154 = scalar_select %p153, %s14, 1
        %s155 = smul.addr %s154, 8
        %s156 = smul.addr %s155, 8
        %s157 = scalar_lea.vmem %s2, %s156
        %v158 = vld [vmem:[%s152] sm:$0xff]
        %v159 = vld [vmem:[%s152 + $0x8] sm:$0xff]
        %s160 = sld [smem:[#allocation2]]
        %v161 = vstv %s160
        %v162 = vmul.f32 %v161, %v158
        %v163 = vmul.f32 %v161, %v159
        %v164 = vadd.f32 %v162, 0.0
        %v165 = vadd.f32 %v163, 0.0
        %s166 = sld [smem:[#allocation2 + $0x64]]
        %v167 = vstv %s166
        %v168 = vmul.f32 %v167, %v158
        %v169 = vmul.f32 %v167, %v159
        %v170 = vadd.f32 %v168, 0.0
        %v171 = vadd.f32 %v169, 0.0
        %s172 = sld [smem:[#allocation2 + $0xc8]]
        %v173 = vstv %s172
        %v174 = vmul.f32 %v173, %v158
        %v175 = vmul.f32 %v173, %v159
        %v176 = vadd.f32 %v174, 0.0
        %v177 = vadd.f32 %v175, 0.0
        %s178 = sld [smem:[#allocation2 + $0x12c]]
        %v179 = vstv %s178
        %v180 = vmul.f32 %v179, %v158
        %v181 = vmul.f32 %v179, %v159
        %v182 = vadd.f32 %v180, 0.0
        %v183 = vadd.f32 %v181, 0.0
        %s184 = sld [smem:[#allocation2 + $0x1]]
        %v185 = vstv %s184
        %v186 = vmul.f32 %v185, %v158
        %v187 = vmul.f32 %v185, %v159
        %190 = vrot.lane.b32.xlu0 %v186, 127
        %v191 = vpop.permute.xlu0 %190
        %192 = vrot.lane.b32.xlu0 %v187, 127
        %v193 = vpop.permute.xlu0 %192
        %v196 = vadd.f32 %v164, %v191
        %v197 = vadd.f32 %v165, %v193
        %s198 = sld [smem:[#allocation2 + $0x65]]
        %v199 = vstv %s198
        %v200 = vmul.f32 %v199, %v158
        %v201 = vmul.f32 %v199, %v159
        %204 = vrot.lane.b32.xlu0 %v200, 127
        %v205 = vpop.permute.xlu0 %204
        %206 = vrot.lane.b32.xlu0 %v201, 127
        %v207 = vpop.permute.xlu0 %206
        %v210 = vadd.f32 %v170, %v205
        %v211 = vadd.f32 %v171, %v207
        %s212 = sld [smem:[#allocation2 + $0xc9]]
        %v213 = vstv %s212
        %v214 = vmul.f32 %v213, %v158
        %v215 = vmul.f32 %v213, %v159
        %218 = vrot.lane.b32.xlu0 %v214, 127
        %v219 = vpop.permute.xlu0 %218
        %220 = vrot.lane.b32.xlu0 %v215, 127
        %v221 = vpop.permute.xlu0 %220
        %v224 = vadd.f32 %v176, %v219
        %v225 = vadd.f32 %v177, %v221
        %s226 = sld [smem:[#allocation2 + $0x12d]]
        %v227 = vstv %s226
        %v228 = vmul.f32 %v227, %v158
        %v229 = vmul.f32 %v227, %v159
        %232 = vrot.lane.b32.xlu0 %v228, 127
        %v233 = vpop.permute.xlu0 %232
        %234 = vrot.lane.b32.xlu0 %v229, 127
        %v235 = vpop.permute.xlu0 %234
        %v238 = vadd.f32 %v182, %v233
        %v239 = vadd.f32 %v183, %v235
        %s240 = sld [smem:[#allocation2 + $0x2]]
        %v241 = vstv %s240
        %v242 = vmul.f32 %v241, %v158
        %v243 = vmul.f32 %v241, %v159
        %246 = vrot.lane.b32.xlu0 %v242, 126
        %v247 = vpop.permute.xlu0 %246
        %248 = vrot.lane.b32.xlu0 %v243, 126
        %v249 = vpop.permute.xlu0 %248
        %v252 = vadd.f32 %v196, %v247
        %v253 = vadd.f32 %v197, %v249
        %s254 = sld [smem:[#allocation2 + $0x66]]
        %v255 = vstv %s254
        %v256 = vmul.f32 %v255, %v158
        %v257 = vmul.f32 %v255, %v159
        %260 = vrot.lane.b32.xlu0 %v256, 126
        %v261 = vpop.permute.xlu0 %260
        %262 = vrot.lane.b32.xlu0 %v257, 126
        %v263 = vpop.permute.xlu0 %262
        %v266 = vadd.f32 %v210, %v261
        %v267 = vadd.f32 %v211, %v263
        %s268 = sld [smem:[#allocation2 + $0xca]]
        %v269 = vstv %s268
        %v270 = vmul.f32 %v269, %v158
        %v271 = vmul.f32 %v269, %v159
        %274 = vrot.lane.b32.xlu0 %v270, 126
        %v275 = vpop.permute.xlu0 %274
        %276 = vrot.lane.b32.xlu0 %v271, 126
        %v277 = vpop.permute.xlu0 %276
        %v280 = vadd.f32 %v224, %v275
        %v281 = vadd.f32 %v225, %v277
        %s282 = sld [smem:[#allocation2 + $0x12e]]
        %v283 = vstv %s282
        %v284 = vmul.f32 %v283, %v158
        %v285 = vmul.f32 %v283, %v159
        %288 = vrot.lane.b32.xlu0 %v284, 126
        %v289 = vpop.permute.xlu0 %288
        %290 = vrot.lane.b32.xlu0 %v285, 126
        %v291 = vpop.permute.xlu0 %290
        %v294 = vadd.f32 %v238, %v289
        %v295 = vadd.f32 %v239, %v291
        %s296 = sld [smem:[#allocation2 + $0x3]]
        %v297 = vstv %s296
        %v298 = vmul.f32 %v297, %v158
        %v299 = vmul.f32 %v297, %v159
        %302 = vrot.lane.b32.xlu0 %v298, 125
        %v303 = vpop.permute.xlu0 %302
        %304 = vrot.lane.b32.xlu0 %v299, 125
        %v305 = vpop.permute.xlu0 %304
        %v308 = vadd.f32 %v252, %v303
        %v309 = vadd.f32 %v253, %v305
        %s310 = sld [smem:[#allocation2 + $0x67]]
        %v311 = vstv %s310
        %v312 = vmul.f32 %v311, %v158
        %v313 = vmul.f32 %v311, %v159
        %316 = vrot.lane.b32.xlu0 %v312, 125
        %v317 = vpop.permute.xlu0 %316
        %318 = vrot.lane.b32.xlu0 %v313, 125
        %v319 = vpop.permute.xlu0 %318
        %v322 = vadd.f32 %v266, %v317
        %v323 = vadd.f32 %v267, %v319
        %s324 = sld [smem:[#allocation2 + $0xcb]]
        %v325 = vstv %s324
        %v326 = vmul.f32 %v325, %v158
        %v327 = vmul.f32 %v325, %v159
        %330 = vrot.lane.b32.xlu0 %v326, 125
        %v331 = vpop.permute.xlu0 %330
        %332 = vrot.lane.b32.xlu0 %v327, 125
        %v333 = vpop.permute.xlu0 %332
        %v336 = vadd.f32 %v280, %v331
        %v337 = vadd.f32 %v281, %v333
        %s338 = sld [smem:[#allocation2 + $0x12f]]
        %v339 = vstv %s338
        %v340 = vmul.f32 %v339, %v158
        %v341 = vmul.f32 %v339, %v159
        %344 = vrot.lane.b32.xlu0 %v340, 125
        %v345 = vpop.permute.xlu0 %344
        %346 = vrot.lane.b32.xlu0 %v341, 125
        %v347 = vpop.permute.xlu0 %346
        %v350 = vadd.f32 %v294, %v345
        %v351 = vadd.f32 %v295, %v347
        %s352 = sld [smem:[#allocation2 + $0x4]]
        %v353 = vstv %s352
        %v354 = vmul.f32 %v353, %v158
        %v355 = vmul.f32 %v353, %v159
        %358 = vrot.lane.b32.xlu0 %v354, 124
        %v359 = vpop.permute.xlu0 %358
        %360 = vrot.lane.b32.xlu0 %v355, 124
        %v361 = vpop.permute.xlu0 %360
        %v364 = vadd.f32 %v308, %v359
        %v365 = vadd.f32 %v309, %v361
        %s366 = sld [smem:[#allocation2 + $0x68]]
        %v367 = vstv %s366
        %v368 = vmul.f32 %v367, %v158
        %v369 = vmul.f32 %v367, %v159
        %372 = vrot.lane.b32.xlu0 %v368, 124
        %v373 = vpop.permute.xlu0 %372
        %374 = vrot.lane.b32.xlu0 %v369, 124
        %v375 = vpop.permute.xlu0 %374
        %v378 = vadd.f32 %v322, %v373
        %v379 = vadd.f32 %v323, %v375
        %s380 = sld [smem:[#allocation2 + $0xcc]]
        %v381 = vstv %s380
        %v382 = vmul.f32 %v381, %v158
        %v383 = vmul.f32 %v381, %v159
        %386 = vrot.lane.b32.xlu0 %v382, 124
        %v387 = vpop.permute.xlu0 %386
        %388 = vrot.lane.b32.xlu0 %v383, 124
        %v389 = vpop.permute.xlu0 %388
        %v392 = vadd.f32 %v336, %v387
        %v393 = vadd.f32 %v337, %v389
        %s394 = sld [smem:[#allocation2 + $0x130]]
        %v395 = vstv %s394
        %v396 = vmul.f32 %v395, %v158
        %v397 = vmul.f32 %v395, %v159
        %400 = vrot.lane.b32.xlu0 %v396, 124
        %v401 = vpop.permute.xlu0 %400
        %402 = vrot.lane.b32.xlu0 %v397, 124
        %v403 = vpop.permute.xlu0 %402
        %v406 = vadd.f32 %v350, %v401
        %v407 = vadd.f32 %v351, %v403
        %s408 = sld [smem:[#allocation2 + $0x5]]
        %v409 = vstv %s408
        %v410 = vmul.f32 %v409, %v158
        %v411 = vmul.f32 %v409, %v159
        %vm414 = vcmask 1046528
        %v415 = vrot.slane %v410, 1
        %v416 = vrot.slane %v411, 1
        %v417 = vsel %vm414, %v415, %v416
        %v420 = vadd.f32 %v364, %v417
        %v421 = vadd.f32 %v365, %v416
        %s422 = sld [smem:[#allocation2 + $0x69]]
        %v423 = vstv %s422
        %v424 = vmul.f32 %v423, %v158
        %v425 = vmul.f32 %v423, %v159
        %v428 = vrot.slane %v424, 1
        %v429 = vrot.slane %v425, 1
        %v430 = vsel %vm414, %v428, %v429
        %v433 = vadd.f32 %v378, %v430
        %v434 = vadd.f32 %v379, %v429
        %s435 = sld [smem:[#allocation2 + $0xcd]]
        %v436 = vstv %s435
        %v437 = vmul.f32 %v436, %v158
        %v438 = vmul.f32 %v436, %v159
        %v441 = vrot.slane %v437, 1
        %v442 = vrot.slane %v438, 1
        %v443 = vsel %vm414, %v441, %v442
        %v446 = vadd.f32 %v392, %v443
        %v447 = vadd.f32 %v393, %v442
        %s448 = sld [smem:[#allocation2 + $0x131]]
        %v449 = vstv %s448
        %v450 = vmul.f32 %v449, %v158
        %v451 = vmul.f32 %v449, %v159
        %v454 = vrot.slane %v450, 1
        %v455 = vrot.slane %v451, 1
        %v456 = vsel %vm414, %v454, %v455
        %v459 = vadd.f32 %v406, %v456
        %v460 = vadd.f32 %v407, %v455
        %s461 = sld [smem:[#allocation2 + $0x6]]
        %v462 = vstv %s461
        %v463 = vmul.f32 %v462, %v158
        %v464 = vmul.f32 %v462, %v159
        %v467 = vrot.slane %v463, 1
        %v468 = vrot.slane %v464, 1
        %v469 = vsel %vm414, %v467, %v468
        %470 = vrot.lane.b32.xlu0 %v469, 127
        %v471 = vpop.permute.xlu0 %470
        %472 = vrot.lane.b32.xlu0 %v468, 127
        %v473 = vpop.permute.xlu0 %472
        %v476 = vadd.f32 %v420, %v471
        %v477 = vadd.f32 %v421, %v473
        %s478 = sld [smem:[#allocation2 + $0x6a]]
        %v479 = vstv %s478
        %v480 = vmul.f32 %v479, %v158
        %v481 = vmul.f32 %v479, %v159
        %v484 = vrot.slane %v480, 1
        %v485 = vrot.slane %v481, 1
        %v486 = vsel %vm414, %v484, %v485
        %487 = vrot.lane.b32.xlu0 %v486, 127
        %v488 = vpop.permute.xlu0 %487
        %489 = vrot.lane.b32.xlu0 %v485, 127
        %v490 = vpop.permute.xlu0 %489
        %v493 = vadd.f32 %v433, %v488
        %v494 = vadd.f32 %v434, %v490
        %s495 = sld [smem:[#allocation2 + $0xce]]
        %v496 = vstv %s495
        %v497 = vmul.f32 %v496, %v158
        %v498 = vmul.f32 %v496, %v159
        %v501 = vrot.slane %v497, 1
        %v502 = vrot.slane %v498, 1
        %v503 = vsel %vm414, %v501, %v502
        %504 = vrot.lane.b32.xlu0 %v503, 127
        %v505 = vpop.permute.xlu0 %504
        %506 = vrot.lane.b32.xlu0 %v502, 127
        %v507 = vpop.permute.xlu0 %506
        %v510 = vadd.f32 %v446, %v505
        %v511 = vadd.f32 %v447, %v507
        %s512 = sld [smem:[#allocation2 + $0x132]]
        %v513 = vstv %s512
        %v514 = vmul.f32 %v513, %v158
        %v515 = vmul.f32 %v513, %v159
        %v518 = vrot.slane %v514, 1
        %v519 = vrot.slane %v515, 1
        %v520 = vsel %vm414, %v518, %v519
        %521 = vrot.lane.b32.xlu0 %v520, 127
        %v522 = vpop.permute.xlu0 %521
        %523 = vrot.lane.b32.xlu0 %v519, 127
        %v524 = vpop.permute.xlu0 %523
        %v527 = vadd.f32 %v459, %v522
        %v528 = vadd.f32 %v460, %v524
        %s529 = sld [smem:[#allocation2 + $0x7]]
        %v530 = vstv %s529
        %v531 = vmul.f32 %v530, %v158
        %v532 = vmul.f32 %v530, %v159
        %v535 = vrot.slane %v531, 1
        %v536 = vrot.slane %v532, 1
        %v537 = vsel %vm414, %v535, %v536
        %538 = vrot.lane.b32.xlu0 %v537, 126
        %v539 = vpop.permute.xlu0 %538
        %540 = vrot.lane.b32.xlu0 %v536, 126
        %v541 = vpop.permute.xlu0 %540
        %v544 = vadd.f32 %v476, %v539
        %v545 = vadd.f32 %v477, %v541
        %s546 = sld [smem:[#allocation2 + $0x6b]]
        %v547 = vstv %s546
        %v548 = vmul.f32 %v547, %v158
        %v549 = vmul.f32 %v547, %v159
        %v552 = vrot.slane %v548, 1
        %v553 = vrot.slane %v549, 1
        %v554 = vsel %vm414, %v552, %v553
        %555 = vrot.lane.b32.xlu0 %v554, 126
        %v556 = vpop.permute.xlu0 %555
        %557 = vrot.lane.b32.xlu0 %v553, 126
        %v558 = vpop.permute.xlu0 %557
        %v561 = vadd.f32 %v493, %v556
        %v562 = vadd.f32 %v494, %v558
        %s563 = sld [smem:[#allocation2 + $0xcf]]
        %v564 = vstv %s563
        %v565 = vmul.f32 %v564, %v158
        %v566 = vmul.f32 %v564, %v159
        %v569 = vrot.slane %v565, 1
        %v570 = vrot.slane %v566, 1
        %v571 = vsel %vm414, %v569, %v570
        %572 = vrot.lane.b32.xlu0 %v571, 126
        %v573 = vpop.permute.xlu0 %572
        %574 = vrot.lane.b32.xlu0 %v570, 126
        %v575 = vpop.permute.xlu0 %574
        %v578 = vadd.f32 %v510, %v573
        %v579 = vadd.f32 %v511, %v575
        %s580 = sld [smem:[#allocation2 + $0x133]]
        %v581 = vstv %s580
        %v582 = vmul.f32 %v581, %v158
        %v583 = vmul.f32 %v581, %v159
        %v586 = vrot.slane %v582, 1
        %v587 = vrot.slane %v583, 1
        %v588 = vsel %vm414, %v586, %v587
        %589 = vrot.lane.b32.xlu0 %v588, 126
        %v590 = vpop.permute.xlu0 %589
        %591 = vrot.lane.b32.xlu0 %v587, 126
        %v592 = vpop.permute.xlu0 %591
        %v595 = vadd.f32 %v527, %v590
        %v596 = vadd.f32 %v528, %v592
        %s597 = sld [smem:[#allocation2 + $0x8]]
        %v598 = vstv %s597
        %v599 = vmul.f32 %v598, %v158
        %v600 = vmul.f32 %v598, %v159
        %v603 = vrot.slane %v599, 1
        %v604 = vrot.slane %v600, 1
        %v605 = vsel %vm414, %v603, %v604
        %606 = vrot.lane.b32.xlu0 %v605, 125
        %v607 = vpop.permute.xlu0 %606
        %608 = vrot.lane.b32.xlu0 %v604, 125
        %v609 = vpop.permute.xlu0 %608
        %v612 = vadd.f32 %v544, %v607
        %v613 = vadd.f32 %v545, %v609
        %s614 = sld [smem:[#allocation2 + $0x6c]]
        %v615 = vstv %s614
        %v616 = vmul.f32 %v615, %v158
        %v617 = vmul.f32 %v615, %v159
        %v620 = vrot.slane %v616, 1
        %v621 = vrot.slane %v617, 1
        %v622 = vsel %vm414, %v620, %v621
        %623 = vrot.lane.b32.xlu0 %v622, 125
        %v624 = vpop.permute.xlu0 %623
        %625 = vrot.lane.b32.xlu0 %v621, 125
        %v626 = vpop.permute.xlu0 %625
        %v629 = vadd.f32 %v561, %v624
        %v630 = vadd.f32 %v562, %v626
        %s631 = sld [smem:[#allocation2 + $0xd0]]
        %v632 = vstv %s631
        %v633 = vmul.f32 %v632, %v158
        %v634 = vmul.f32 %v632, %v159
        %v637 = vrot.slane %v633, 1
        %v638 = vrot.slane %v634, 1
        %v639 = vsel %vm414, %v637, %v638
        %640 = vrot.lane.b32.xlu0 %v639, 125
        %v641 = vpop.permute.xlu0 %640
        %642 = vrot.lane.b32.xlu0 %v638, 125
        %v643 = vpop.permute.xlu0 %642
        %v646 = vadd.f32 %v578, %v641
        %v647 = vadd.f32 %v579, %v643
        %s648 = sld [smem:[#allocation2 + $0x134]]
        %v649 = vstv %s648
        %v650 = vmul.f32 %v649, %v158
        %v651 = vmul.f32 %v649, %v159
        %v654 = vrot.slane %v650, 1
        %v655 = vrot.slane %v651, 1
        %v656 = vsel %vm414, %v654, %v655
        %657 = vrot.lane.b32.xlu0 %v656, 125
        %v658 = vpop.permute.xlu0 %657
        %659 = vrot.lane.b32.xlu0 %v655, 125
        %v660 = vpop.permute.xlu0 %659
        %v663 = vadd.f32 %v595, %v658
        %v664 = vadd.f32 %v596, %v660
        %s665 = sld [smem:[#allocation2 + $0x9]]
        %v666 = vstv %s665
        %v667 = vmul.f32 %v666, %v158
        %v668 = vmul.f32 %v666, %v159
        %v671 = vrot.slane %v667, 1
        %v672 = vrot.slane %v668, 1
        %v673 = vsel %vm414, %v671, %v672
        %674 = vrot.lane.b32.xlu0 %v673, 124
        %v675 = vpop.permute.xlu0 %674
        %676 = vrot.lane.b32.xlu0 %v672, 124
        %v677 = vpop.permute.xlu0 %676
        %v680 = vadd.f32 %v612, %v675
        %v681 = vadd.f32 %v613, %v677
        %s682 = sld [smem:[#allocation2 + $0x6d]]
        %v683 = vstv %s682
        %v684 = vmul.f32 %v683, %v158
        %v685 = vmul.f32 %v683, %v159
        %v688 = vrot.slane %v684, 1
        %v689 = vrot.slane %v685, 1
        %v690 = vsel %vm414, %v688, %v689
        %691 = vrot.lane.b32.xlu0 %v690, 124
        %v692 = vpop.permute.xlu0 %691
        %693 = vrot.lane.b32.xlu0 %v689, 124
        %v694 = vpop.permute.xlu0 %693
        %v697 = vadd.f32 %v629, %v692
        %v698 = vadd.f32 %v630, %v694
        %s699 = sld [smem:[#allocation2 + $0xd1]]
        %v700 = vstv %s699
        %v701 = vmul.f32 %v700, %v158
        %v702 = vmul.f32 %v700, %v159
        %v705 = vrot.slane %v701, 1
        %v706 = vrot.slane %v702, 1
        %v707 = vsel %vm414, %v705, %v706
        %708 = vrot.lane.b32.xlu0 %v707, 124
        %v709 = vpop.permute.xlu0 %708
        %710 = vrot.lane.b32.xlu0 %v706, 124
        %v711 = vpop.permute.xlu0 %710
        %v714 = vadd.f32 %v646, %v709
        %v715 = vadd.f32 %v647, %v711
        %s716 = sld [smem:[#allocation2 + $0x135]]
        %v717 = vstv %s716
        %v718 = vmul.f32 %v717, %v158
        %v719 = vmul.f32 %v717, %v159
        %v722 = vrot.slane %v718, 1
        %v723 = vrot.slane %v719, 1
        %v724 = vsel %vm414, %v722, %v723
        %725 = vrot.lane.b32.xlu0 %v724, 124
        %v726 = vpop.permute.xlu0 %725
        %727 = vrot.lane.b32.xlu0 %v723, 124
        %v728 = vpop.permute.xlu0 %727
        %v731 = vadd.f32 %v663, %v726
        %v732 = vadd.f32 %v664, %v728
        %s733 = sld [smem:[#allocation2 + $0xa]]
        %v734 = vstv %s733
        %v735 = vmul.f32 %v734, %v158
        %v736 = vmul.f32 %v734, %v159
        %vm739 = vcmask 1045504
        %v740 = vrot.slane %v735, 2
        %v741 = vrot.slane %v736, 2
        %v742 = vsel %vm739, %v740, %v741
        %v745 = vadd.f32 %v680, %v742
        %v746 = vadd.f32 %v681, %v741
        %s747 = sld [smem:[#allocation2 + $0x6e]]
        %v748 = vstv %s747
        %v749 = vmul.f32 %v748, %v158
        %v750 = vmul.f32 %v748, %v159
        %v753 = vrot.slane %v749, 2
        %v754 = vrot.slane %v750, 2
        %v755 = vsel %vm739, %v753, %v754
        %v758 = vadd.f32 %v697, %v755
        %v759 = vadd.f32 %v698, %v754
        %s760 = sld [smem:[#allocation2 + $0xd2]]
        %v761 = vstv %s760
        %v762 = vmul.f32 %v761, %v158
        %v763 = vmul.f32 %v761, %v159
        %v766 = vrot.slane %v762, 2
        %v767 = vrot.slane %v763, 2
        %v768 = vsel %vm739, %v766, %v767
        %v771 = vadd.f32 %v714, %v768
        %v772 = vadd.f32 %v715, %v767
        %s773 = sld [smem:[#allocation2 + $0x136]]
        %v774 = vstv %s773
        %v775 = vmul.f32 %v774, %v158
        %v776 = vmul.f32 %v774, %v159
        %v779 = vrot.slane %v775, 2
        %v780 = vrot.slane %v776, 2
        %v781 = vsel %vm739, %v779, %v780
        %v784 = vadd.f32 %v731, %v781
        %v785 = vadd.f32 %v732, %v780
        %s786 = sld [smem:[#allocation2 + $0xb]]
        %v787 = vstv %s786
        %v788 = vmul.f32 %v787, %v158
        %v789 = vmul.f32 %v787, %v159
        %v792 = vrot.slane %v788, 2
        %v793 = vrot.slane %v789, 2
        %v794 = vsel %vm739, %v792, %v793
        %795 = vrot.lane.b32.xlu0 %v794, 127
        %v796 = vpop.permute.xlu0 %795
        %797 = vrot.lane.b32.xlu0 %v793, 127
        %v798 = vpop.permute.xlu0 %797
        %v801 = vadd.f32 %v745, %v796
        %v802 = vadd.f32 %v746, %v798
        %s803 = sld [smem:[#allocation2 + $0x6f]]
        %v804 = vstv %s803
        %v805 = vmul.f32 %v804, %v158
        %v806 = vmul.f32 %v804, %v159
        %v809 = vrot.slane %v805, 2
        %v810 = vrot.slane %v806, 2
        %v811 = vsel %vm739, %v809, %v810
        %812 = vrot.lane.b32.xlu0 %v811, 127
        %v813 = vpop.permute.xlu0 %812
        %814 = vrot.lane.b32.xlu0 %v810, 127
        %v815 = vpop.permute.xlu0 %814
        %v818 = vadd.f32 %v758, %v813
        %v819 = vadd.f32 %v759, %v815
        %s820 = sld [smem:[#allocation2 + $0xd3]]
        %v821 = vstv %s820
        %v822 = vmul.f32 %v821, %v158
        %v823 = vmul.f32 %v821, %v159
        %v826 = vrot.slane %v822, 2
        %v827 = vrot.slane %v823, 2
        %v828 = vsel %vm739, %v826, %v827
        %829 = vrot.lane.b32.xlu0 %v828, 127
        %v830 = vpop.permute.xlu0 %829
        %831 = vrot.lane.b32.xlu0 %v827, 127
        %v832 = vpop.permute.xlu0 %831
        %v835 = vadd.f32 %v771, %v830
        %v836 = vadd.f32 %v772, %v832
        %s837 = sld [smem:[#allocation2 + $0x137]]
        %v838 = vstv %s837
        %v839 = vmul.f32 %v838, %v158
        %v840 = vmul.f32 %v838, %v159
        %v843 = vrot.slane %v839, 2
        %v844 = vrot.slane %v840, 2
        %v845 = vsel %vm739, %v843, %v844
        %846 = vrot.lane.b32.xlu0 %v845, 127
        %v847 = vpop.permute.xlu0 %846
        %848 = vrot.lane.b32.xlu0 %v844, 127
        %v849 = vpop.permute.xlu0 %848
        %v852 = vadd.f32 %v784, %v847
        %v853 = vadd.f32 %v785, %v849
        %s854 = sld [smem:[#allocation2 + $0xc]]
        %v855 = vstv %s854
        %v856 = vmul.f32 %v855, %v158
        %v857 = vmul.f32 %v855, %v159
        %v860 = vrot.slane %v856, 2
        %v861 = vrot.slane %v857, 2
        %v862 = vsel %vm739, %v860, %v861
        %863 = vrot.lane.b32.xlu0 %v862, 126
        %v864 = vpop.permute.xlu0 %863
        %865 = vrot.lane.b32.xlu0 %v861, 126
        %v866 = vpop.permute.xlu0 %865
        %v869 = vadd.f32 %v801, %v864
        %v870 = vadd.f32 %v802, %v866
        %s871 = sld [smem:[#allocation2 + $0x70]]
        %v872 = vstv %s871
        %v873 = vmul.f32 %v872, %v158
        %v874 = vmul.f32 %v872, %v159
        %v877 = vrot.slane %v873, 2
        %v878 = vrot.slane %v874, 2
        %v879 = vsel %vm739, %v877, %v878
        %880 = vrot.lane.b32.xlu0 %v879, 126
        %v881 = vpop.permute.xlu0 %880
        %882 = vrot.lane.b32.xlu0 %v878, 126
        %v883 = vpop.permute.xlu0 %882
        %v886 = vadd.f32 %v818, %v881
        %v887 = vadd.f32 %v819, %v883
        %s888 = sld [smem:[#allocation2 + $0xd4]]
        %v889 = vstv %s888
        %v890 = vmul.f32 %v889, %v158
        %v891 = vmul.f32 %v889, %v159
        %v894 = vrot.slane %v890, 2
        %v895 = vrot.slane %v891, 2
        %v896 = vsel %vm739, %v894, %v895
        %897 = vrot.lane.b32.xlu0 %v896, 126
        %v898 = vpop.permute.xlu0 %897
        %899 = vrot.lane.b32.xlu0 %v895, 126
        %v900 = vpop.permute.xlu0 %899
        %v903 = vadd.f32 %v835, %v898
        %v904 = vadd.f32 %v836, %v900
        %s905 = sld [smem:[#allocation2 + $0x138]]
        %v906 = vstv %s905
        %v907 = vmul.f32 %v906, %v158
        %v908 = vmul.f32 %v906, %v159
        %v911 = vrot.slane %v907, 2
        %v912 = vrot.slane %v908, 2
        %v913 = vsel %vm739, %v911, %v912
        %914 = vrot.lane.b32.xlu0 %v913, 126
        %v915 = vpop.permute.xlu0 %914
        %916 = vrot.lane.b32.xlu0 %v912, 126
        %v917 = vpop.permute.xlu0 %916
        %v920 = vadd.f32 %v852, %v915
        %v921 = vadd.f32 %v853, %v917
        %s922 = sld [smem:[#allocation2 + $0xd]]
        %v923 = vstv %s922
        %v924 = vmul.f32 %v923, %v158
        %v925 = vmul.f32 %v923, %v159
        %v928 = vrot.slane %v924, 2
        %v929 = vrot.slane %v925, 2
        %v930 = vsel %vm739, %v928, %v929
        %931 = vrot.lane.b32.xlu0 %v930, 125
        %v932 = vpop.permute.xlu0 %931
        %933 = vrot.lane.b32.xlu0 %v929, 125
        %v934 = vpop.permute.xlu0 %933
        %v937 = vadd.f32 %v869, %v932
        %v938 = vadd.f32 %v870, %v934
        %s939 = sld [smem:[#allocation2 + $0x71]]
        %v940 = vstv %s939
        %v941 = vmul.f32 %v940, %v158
        %v942 = vmul.f32 %v940, %v159
        %v945 = vrot.slane %v941, 2
        %v946 = vrot.slane %v942, 2
        %v947 = vsel %vm739, %v945, %v946
        %948 = vrot.lane.b32.xlu0 %v947, 125
        %v949 = vpop.permute.xlu0 %948
        %950 = vrot.lane.b32.xlu0 %v946, 125
        %v951 = vpop.permute.xlu0 %950
        %v954 = vadd.f32 %v886, %v949
        %v955 = vadd.f32 %v887, %v951
        %s956 = sld [smem:[#allocation2 + $0xd5]]
        %v957 = vstv %s956
        %v958 = vmul.f32 %v957, %v158
        %v959 = vmul.f32 %v957, %v159
        %v962 = vrot.slane %v958, 2
        %v963 = vrot.slane %v959, 2
        %v964 = vsel %vm739, %v962, %v963
        %965 = vrot.lane.b32.xlu0 %v964, 125
        %v966 = vpop.permute.xlu0 %965
        %967 = vrot.lane.b32.xlu0 %v963, 125
        %v968 = vpop.permute.xlu0 %967
        %v971 = vadd.f32 %v903, %v966
        %v972 = vadd.f32 %v904, %v968
        %s973 = sld [smem:[#allocation2 + $0x139]]
        %v974 = vstv %s973
        %v975 = vmul.f32 %v974, %v158
        %v976 = vmul.f32 %v974, %v159
        %v979 = vrot.slane %v975, 2
        %v980 = vrot.slane %v976, 2
        %v981 = vsel %vm739, %v979, %v980
        %982 = vrot.lane.b32.xlu0 %v981, 125
        %v983 = vpop.permute.xlu0 %982
        %984 = vrot.lane.b32.xlu0 %v980, 125
        %v985 = vpop.permute.xlu0 %984
        %v988 = vadd.f32 %v920, %v983
        %v989 = vadd.f32 %v921, %v985
        %s990 = sld [smem:[#allocation2 + $0xe]]
        %v991 = vstv %s990
        %v992 = vmul.f32 %v991, %v158
        %v993 = vmul.f32 %v991, %v159
        %v996 = vrot.slane %v992, 2
        %v997 = vrot.slane %v993, 2
        %v998 = vsel %vm739, %v996, %v997
        %999 = vrot.lane.b32.xlu0 %v998, 124
        %v1000 = vpop.permute.xlu0 %999
        %1001 = vrot.lane.b32.xlu0 %v997, 124
        %v1002 = vpop.permute.xlu0 %1001
        %v1005 = vadd.f32 %v937, %v1000
        %v1006 = vadd.f32 %v938, %v1002
        %s1007 = sld [smem:[#allocation2 + $0x72]]
        %v1008 = vstv %s1007
        %v1009 = vmul.f32 %v1008, %v158
        %v1010 = vmul.f32 %v1008, %v159
        %v1013 = vrot.slane %v1009, 2
        %v1014 = vrot.slane %v1010, 2
        %v1015 = vsel %vm739, %v1013, %v1014
        %1016 = vrot.lane.b32.xlu0 %v1015, 124
        %v1017 = vpop.permute.xlu0 %1016
        %1018 = vrot.lane.b32.xlu0 %v1014, 124
        %v1019 = vpop.permute.xlu0 %1018
        %v1022 = vadd.f32 %v954, %v1017
        %v1023 = vadd.f32 %v955, %v1019
        %s1024 = sld [smem:[#allocation2 + $0xd6]]
        %v1025 = vstv %s1024
        %v1026 = vmul.f32 %v1025, %v158
        %v1027 = vmul.f32 %v1025, %v159
        %v1030 = vrot.slane %v1026, 2
        %v1031 = vrot.slane %v1027, 2
        %v1032 = vsel %vm739, %v1030, %v1031
        %1033 = vrot.lane.b32.xlu0 %v1032, 124
        %v1034 = vpop.permute.xlu0 %1033
        %1035 = vrot.lane.b32.xlu0 %v1031, 124
        %v1036 = vpop.permute.xlu0 %1035
        %v1039 = vadd.f32 %v971, %v1034
        %v1040 = vadd.f32 %v972, %v1036
        %s1041 = sld [smem:[#allocation2 + $0x13a]]
        %v1042 = vstv %s1041
        %v1043 = vmul.f32 %v1042, %v158
        %v1044 = vmul.f32 %v1042, %v159
        %v1047 = vrot.slane %v1043, 2
        %v1048 = vrot.slane %v1044, 2
        %v1049 = vsel %vm739, %v1047, %v1048
        %1050 = vrot.lane.b32.xlu0 %v1049, 124
        %v1051 = vpop.permute.xlu0 %1050
        %1052 = vrot.lane.b32.xlu0 %v1048, 124
        %v1053 = vpop.permute.xlu0 %1052
        %v1056 = vadd.f32 %v988, %v1051
        %v1057 = vadd.f32 %v989, %v1053
        %s1058 = sld [smem:[#allocation2 + $0xf]]
        %v1059 = vstv %s1058
        %v1060 = vmul.f32 %v1059, %v158
        %v1061 = vmul.f32 %v1059, %v159
        %vm1064 = vcmask 1044480
        %v1065 = vrot.slane %v1060, 3
        %v1066 = vrot.slane %v1061, 3
        %v1067 = vsel %vm1064, %v1065, %v1066
        %v1070 = vadd.f32 %v1005, %v1067
        %v1071 = vadd.f32 %v1006, %v1066
        %s1072 = sld [smem:[#allocation2 + $0x73]]
        %v1073 = vstv %s1072
        %v1074 = vmul.f32 %v1073, %v158
        %v1075 = vmul.f32 %v1073, %v159
        %v1078 = vrot.slane %v1074, 3
        %v1079 = vrot.slane %v1075, 3
        %v1080 = vsel %vm1064, %v1078, %v1079
        %v1083 = vadd.f32 %v1022, %v1080
        %v1084 = vadd.f32 %v1023, %v1079
        %s1085 = sld [smem:[#allocation2 + $0xd7]]
        %v1086 = vstv %s1085
        %v1087 = vmul.f32 %v1086, %v158
        %v1088 = vmul.f32 %v1086, %v159
        %v1091 = vrot.slane %v1087, 3
        %v1092 = vrot.slane %v1088, 3
        %v1093 = vsel %vm1064, %v1091, %v1092
        %v1096 = vadd.f32 %v1039, %v1093
        %v1097 = vadd.f32 %v1040, %v1092
        %s1098 = sld [smem:[#allocation2 + $0x13b]]
        %v1099 = vstv %s1098
        %v1100 = vmul.f32 %v1099, %v158
        %v1101 = vmul.f32 %v1099, %v159
        %v1104 = vrot.slane %v1100, 3
        %v1105 = vrot.slane %v1101, 3
        %v1106 = vsel %vm1064, %v1104, %v1105
        %v1109 = vadd.f32 %v1056, %v1106
        %v1110 = vadd.f32 %v1057, %v1105
        %s1111 = sld [smem:[#allocation2 + $0x10]]
        %v1112 = vstv %s1111
        %v1113 = vmul.f32 %v1112, %v158
        %v1114 = vmul.f32 %v1112, %v159
        %v1117 = vrot.slane %v1113, 3
        %v1118 = vrot.slane %v1114, 3
        %v1119 = vsel %vm1064, %v1117, %v1118
        %1120 = vrot.lane.b32.xlu0 %v1119, 127
        %v1121 = vpop.permute.xlu0 %1120
        %1122 = vrot.lane.b32.xlu0 %v1118, 127
        %v1123 = vpop.permute.xlu0 %1122
        %v1126 = vadd.f32 %v1070, %v1121
        %v1127 = vadd.f32 %v1071, %v1123
        %s1128 = sld [smem:[#allocation2 + $0x74]]
        %v1129 = vstv %s1128
        %v1130 = vmul.f32 %v1129, %v158
        %v1131 = vmul.f32 %v1129, %v159
        %v1134 = vrot.slane %v1130, 3
        %v1135 = vrot.slane %v1131, 3
        %v1136 = vsel %vm1064, %v1134, %v1135
        %1137 = vrot.lane.b32.xlu0 %v1136, 127
        %v1138 = vpop.permute.xlu0 %1137
        %1139 = vrot.lane.b32.xlu0 %v1135, 127
        %v1140 = vpop.permute.xlu0 %1139
        %v1143 = vadd.f32 %v1083, %v1138
        %v1144 = vadd.f32 %v1084, %v1140
        %s1145 = sld [smem:[#allocation2 + $0xd8]]
        %v1146 = vstv %s1145
        %v1147 = vmul.f32 %v1146, %v158
        %v1148 = vmul.f32 %v1146, %v159
        %v1151 = vrot.slane %v1147, 3
        %v1152 = vrot.slane %v1148, 3
        %v1153 = vsel %vm1064, %v1151, %v1152
        %1154 = vrot.lane.b32.xlu0 %v1153, 127
        %v1155 = vpop.permute.xlu0 %1154
        %1156 = vrot.lane.b32.xlu0 %v1152, 127
        %v1157 = vpop.permute.xlu0 %1156
        %v1160 = vadd.f32 %v1096, %v1155
        %v1161 = vadd.f32 %v1097, %v1157
        %s1162 = sld [smem:[#allocation2 + $0x13c]]
        %v1163 = vstv %s1162
        %v1164 = vmul.f32 %v1163, %v158
        %v1165 = vmul.f32 %v1163, %v159
        %v1168 = vrot.slane %v1164, 3
        %v1169 = vrot.slane %v1165, 3
        %v1170 = vsel %vm1064, %v1168, %v1169
        %1171 = vrot.lane.b32.xlu0 %v1170, 127
        %v1172 = vpop.permute.xlu0 %1171
        %1173 = vrot.lane.b32.xlu0 %v1169, 127
        %v1174 = vpop.permute.xlu0 %1173
        %v1177 = vadd.f32 %v1109, %v1172
        %v1178 = vadd.f32 %v1110, %v1174
        %s1179 = sld [smem:[#allocation2 + $0x11]]
        %v1180 = vstv %s1179
        %v1181 = vmul.f32 %v1180, %v158
        %v1182 = vmul.f32 %v1180, %v159
        %v1185 = vrot.slane %v1181, 3
        %v1186 = vrot.slane %v1182, 3
        %v1187 = vsel %vm1064, %v1185, %v1186
        %1188 = vrot.lane.b32.xlu0 %v1187, 126
        %v1189 = vpop.permute.xlu0 %1188
        %1190 = vrot.lane.b32.xlu0 %v1186, 126
        %v1191 = vpop.permute.xlu0 %1190
        %v1194 = vadd.f32 %v1126, %v1189
        %v1195 = vadd.f32 %v1127, %v1191
        %s1196 = sld [smem:[#allocation2 + $0x75]]
        %v1197 = vstv %s1196
        %v1198 = vmul.f32 %v1197, %v158
        %v1199 = vmul.f32 %v1197, %v159
        %v1202 = vrot.slane %v1198, 3
        %v1203 = vrot.slane %v1199, 3
        %v1204 = vsel %vm1064, %v1202, %v1203
        %1205 = vrot.lane.b32.xlu0 %v1204, 126
        %v1206 = vpop.permute.xlu0 %1205
        %1207 = vrot.lane.b32.xlu0 %v1203, 126
        %v1208 = vpop.permute.xlu0 %1207
        %v1211 = vadd.f32 %v1143, %v1206
        %v1212 = vadd.f32 %v1144, %v1208
        %s1213 = sld [smem:[#allocation2 + $0xd9]]
        %v1214 = vstv %s1213
        %v1215 = vmul.f32 %v1214, %v158
        %v1216 = vmul.f32 %v1214, %v159
        %v1219 = vrot.slane %v1215, 3
        %v1220 = vrot.slane %v1216, 3
        %v1221 = vsel %vm1064, %v1219, %v1220
        %1222 = vrot.lane.b32.xlu0 %v1221, 126
        %v1223 = vpop.permute.xlu0 %1222
        %1224 = vrot.lane.b32.xlu0 %v1220, 126
        %v1225 = vpop.permute.xlu0 %1224
        %v1228 = vadd.f32 %v1160, %v1223
        %v1229 = vadd.f32 %v1161, %v1225
        %s1230 = sld [smem:[#allocation2 + $0x13d]]
        %v1231 = vstv %s1230
        %v1232 = vmul.f32 %v1231, %v158
        %v1233 = vmul.f32 %v1231, %v159
        %v1236 = vrot.slane %v1232, 3
        %v1237 = vrot.slane %v1233, 3
        %v1238 = vsel %vm1064, %v1236, %v1237
        %1239 = vrot.lane.b32.xlu0 %v1238, 126
        %v1240 = vpop.permute.xlu0 %1239
        %1241 = vrot.lane.b32.xlu0 %v1237, 126
        %v1242 = vpop.permute.xlu0 %1241
        %v1245 = vadd.f32 %v1177, %v1240
        %v1246 = vadd.f32 %v1178, %v1242
        %s1247 = sld [smem:[#allocation2 + $0x12]]
        %v1248 = vstv %s1247
        %v1249 = vmul.f32 %v1248, %v158
        %v1250 = vmul.f32 %v1248, %v159
        %v1253 = vrot.slane %v1249, 3
        %v1254 = vrot.slane %v1250, 3
        %v1255 = vsel %vm1064, %v1253, %v1254
        %1256 = vrot.lane.b32.xlu0 %v1255, 125
        %v1257 = vpop.permute.xlu0 %1256
        %1258 = vrot.lane.b32.xlu0 %v1254, 125
        %v1259 = vpop.permute.xlu0 %1258
        %v1262 = vadd.f32 %v1194, %v1257
        %v1263 = vadd.f32 %v1195, %v1259
        %s1264 = sld [smem:[#allocation2 + $0x76]]
        %v1265 = vstv %s1264
        %v1266 = vmul.f32 %v1265, %v158
        %v1267 = vmul.f32 %v1265, %v159
        %v1270 = vrot.slane %v1266, 3
        %v1271 = vrot.slane %v1267, 3
        %v1272 = vsel %vm1064, %v1270, %v1271
        %1273 = vrot.lane.b32.xlu0 %v1272, 125
        %v1274 = vpop.permute.xlu0 %1273
        %1275 = vrot.lane.b32.xlu0 %v1271, 125
        %v1276 = vpop.permute.xlu0 %1275
        %v1279 = vadd.f32 %v1211, %v1274
        %v1280 = vadd.f32 %v1212, %v1276
        %s1281 = sld [smem:[#allocation2 + $0xda]]
        %v1282 = vstv %s1281
        %v1283 = vmul.f32 %v1282, %v158
        %v1284 = vmul.f32 %v1282, %v159
        %v1287 = vrot.slane %v1283, 3
        %v1288 = vrot.slane %v1284, 3
        %v1289 = vsel %vm1064, %v1287, %v1288
        %1290 = vrot.lane.b32.xlu0 %v1289, 125
        %v1291 = vpop.permute.xlu0 %1290
        %1292 = vrot.lane.b32.xlu0 %v1288, 125
        %v1293 = vpop.permute.xlu0 %1292
        %v1296 = vadd.f32 %v1228, %v1291
        %v1297 = vadd.f32 %v1229, %v1293
        %s1298 = sld [smem:[#allocation2 + $0x13e]]
        %v1299 = vstv %s1298
        %v1300 = vmul.f32 %v1299, %v158
        %v1301 = vmul.f32 %v1299, %v159
        %v1304 = vrot.slane %v1300, 3
        %v1305 = vrot.slane %v1301, 3
        %v1306 = vsel %vm1064, %v1304, %v1305
        %1307 = vrot.lane.b32.xlu0 %v1306, 125
        %v1308 = vpop.permute.xlu0 %1307
        %1309 = vrot.lane.b32.xlu0 %v1305, 125
        %v1310 = vpop.permute.xlu0 %1309
        %v1313 = vadd.f32 %v1245, %v1308
        %v1314 = vadd.f32 %v1246, %v1310
        %s1315 = sld [smem:[#allocation2 + $0x13]]
        %v1316 = vstv %s1315
        %v1317 = vmul.f32 %v1316, %v158
        %v1318 = vmul.f32 %v1316, %v159
        %v1321 = vrot.slane %v1317, 3
        %v1322 = vrot.slane %v1318, 3
        %v1323 = vsel %vm1064, %v1321, %v1322
        %1324 = vrot.lane.b32.xlu0 %v1323, 124
        %v1325 = vpop.permute.xlu0 %1324
        %1326 = vrot.lane.b32.xlu0 %v1322, 124
        %v1327 = vpop.permute.xlu0 %1326
        %v1330 = vadd.f32 %v1262, %v1325
        %v1331 = vadd.f32 %v1263, %v1327
        %s1332 = sld [smem:[#allocation2 + $0x77]]
        %v1333 = vstv %s1332
        %v1334 = vmul.f32 %v1333, %v158
        %v1335 = vmul.f32 %v1333, %v159
        %v1338 = vrot.slane %v1334, 3
        %v1339 = vrot.slane %v1335, 3
        %v1340 = vsel %vm1064, %v1338, %v1339
        %1341 = vrot.lane.b32.xlu0 %v1340, 124
        %v1342 = vpop.permute.xlu0 %1341
        %1343 = vrot.lane.b32.xlu0 %v1339, 124
        %v1344 = vpop.permute.xlu0 %1343
        %v1347 = vadd.f32 %v1279, %v1342
        %v1348 = vadd.f32 %v1280, %v1344
        %s1349 = sld [smem:[#allocation2 + $0xdb]]
        %v1350 = vstv %s1349
        %v1351 = vmul.f32 %v1350, %v158
        %v1352 = vmul.f32 %v1350, %v159
        %v1355 = vrot.slane %v1351, 3
        %v1356 = vrot.slane %v1352, 3
        %v1357 = vsel %vm1064, %v1355, %v1356
        %1358 = vrot.lane.b32.xlu0 %v1357, 124
        %v1359 = vpop.permute.xlu0 %1358
        %1360 = vrot.lane.b32.xlu0 %v1356, 124
        %v1361 = vpop.permute.xlu0 %1360
        %v1364 = vadd.f32 %v1296, %v1359
        %v1365 = vadd.f32 %v1297, %v1361
        %s1366 = sld [smem:[#allocation2 + $0x13f]]
        %v1367 = vstv %s1366
        %v1368 = vmul.f32 %v1367, %v158
        %v1369 = vmul.f32 %v1367, %v159
        %v1372 = vrot.slane %v1368, 3
        %v1373 = vrot.slane %v1369, 3
        %v1374 = vsel %vm1064, %v1372, %v1373
        %1375 = vrot.lane.b32.xlu0 %v1374, 124
        %v1376 = vpop.permute.xlu0 %1375
        %1377 = vrot.lane.b32.xlu0 %v1373, 124
        %v1378 = vpop.permute.xlu0 %1377
        %v1381 = vadd.f32 %v1313, %v1376
        %v1382 = vadd.f32 %v1314, %v1378
        %s1383 = sld [smem:[#allocation2 + $0x14]]
        %v1384 = vstv %s1383
        %v1385 = vmul.f32 %v1384, %v158
        %v1386 = vmul.f32 %v1384, %v159
        %vm1389 = vcmask 1043456
        %v1390 = vrot.slane %v1385, 4
        %v1391 = vrot.slane %v1386, 4
        %v1392 = vsel %vm1389, %v1390, %v1391
        %v1395 = vadd.f32 %v1330, %v1392
        %v1396 = vadd.f32 %v1331, %v1391
        %s1397 = sld [smem:[#allocation2 + $0x78]]
        %v1398 = vstv %s1397
        %v1399 = vmul.f32 %v1398, %v158
        %v1400 = vmul.f32 %v1398, %v159
        %v1403 = vrot.slane %v1399, 4
        %v1404 = vrot.slane %v1400, 4
        %v1405 = vsel %vm1389, %v1403, %v1404
        %v1408 = vadd.f32 %v1347, %v1405
        %v1409 = vadd.f32 %v1348, %v1404
        %s1410 = sld [smem:[#allocation2 + $0xdc]]
        %v1411 = vstv %s1410
        %v1412 = vmul.f32 %v1411, %v158
        %v1413 = vmul.f32 %v1411, %v159
        %v1416 = vrot.slane %v1412, 4
        %v1417 = vrot.slane %v1413, 4
        %v1418 = vsel %vm1389, %v1416, %v1417
        %v1421 = vadd.f32 %v1364, %v1418
        %v1422 = vadd.f32 %v1365, %v1417
        %s1423 = sld [smem:[#allocation2 + $0x140]]
        %v1424 = vstv %s1423
        %v1425 = vmul.f32 %v1424, %v158
        %v1426 = vmul.f32 %v1424, %v159
        %v1429 = vrot.slane %v1425, 4
        %v1430 = vrot.slane %v1426, 4
        %v1431 = vsel %vm1389, %v1429, %v1430
        %v1434 = vadd.f32 %v1381, %v1431
        %v1435 = vadd.f32 %v1382, %v1430
        %s1436 = sld [smem:[#allocation2 + $0x15]]
        %v1437 = vstv %s1436
        %v1438 = vmul.f32 %v1437, %v158
        %v1439 = vmul.f32 %v1437, %v159
        %v1442 = vrot.slane %v1438, 4
        %v1443 = vrot.slane %v1439, 4
        %v1444 = vsel %vm1389, %v1442, %v1443
        %1445 = vrot.lane.b32.xlu0 %v1444, 127
        %v1446 = vpop.permute.xlu0 %1445
        %1447 = vrot.lane.b32.xlu0 %v1443, 127
        %v1448 = vpop.permute.xlu0 %1447
        %v1451 = vadd.f32 %v1395, %v1446
        %v1452 = vadd.f32 %v1396, %v1448
        %s1453 = sld [smem:[#allocation2 + $0x79]]
        %v1454 = vstv %s1453
        %v1455 = vmul.f32 %v1454, %v158
        %v1456 = vmul.f32 %v1454, %v159
        %v1459 = vrot.slane %v1455, 4
        %v1460 = vrot.slane %v1456, 4
        %v1461 = vsel %vm1389, %v1459, %v1460
        %1462 = vrot.lane.b32.xlu0 %v1461, 127
        %v1463 = vpop.permute.xlu0 %1462
        %1464 = vrot.lane.b32.xlu0 %v1460, 127
        %v1465 = vpop.permute.xlu0 %1464
        %v1468 = vadd.f32 %v1408, %v1463
        %v1469 = vadd.f32 %v1409, %v1465
        %s1470 = sld [smem:[#allocation2 + $0xdd]]
        %v1471 = vstv %s1470
        %v1472 = vmul.f32 %v1471, %v158
        %v1473 = vmul.f32 %v1471, %v159
        %v1476 = vrot.slane %v1472, 4
        %v1477 = vrot.slane %v1473, 4
        %v1478 = vsel %vm1389, %v1476, %v1477
        %1479 = vrot.lane.b32.xlu0 %v1478, 127
        %v1480 = vpop.permute.xlu0 %1479
        %1481 = vrot.lane.b32.xlu0 %v1477, 127
        %v1482 = vpop.permute.xlu0 %1481
        %v1485 = vadd.f32 %v1421, %v1480
        %v1486 = vadd.f32 %v1422, %v1482
        %s1487 = sld [smem:[#allocation2 + $0x141]]
        %v1488 = vstv %s1487
        %v1489 = vmul.f32 %v1488, %v158
        %v1490 = vmul.f32 %v1488, %v159
        %v1493 = vrot.slane %v1489, 4
        %v1494 = vrot.slane %v1490, 4
        %v1495 = vsel %vm1389, %v1493, %v1494
        %1496 = vrot.lane.b32.xlu0 %v1495, 127
        %v1497 = vpop.permute.xlu0 %1496
        %1498 = vrot.lane.b32.xlu0 %v1494, 127
        %v1499 = vpop.permute.xlu0 %1498
        %v1502 = vadd.f32 %v1434, %v1497
        %v1503 = vadd.f32 %v1435, %v1499
        %s1504 = sld [smem:[#allocation2 + $0x16]]
        %v1505 = vstv %s1504
        %v1506 = vmul.f32 %v1505, %v158
        %v1507 = vmul.f32 %v1505, %v159
        %v1510 = vrot.slane %v1506, 4
        %v1511 = vrot.slane %v1507, 4
        %v1512 = vsel %vm1389, %v1510, %v1511
        %1513 = vrot.lane.b32.xlu0 %v1512, 126
        %v1514 = vpop.permute.xlu0 %1513
        %1515 = vrot.lane.b32.xlu0 %v1511, 126
        %v1516 = vpop.permute.xlu0 %1515
        %v1519 = vadd.f32 %v1451, %v1514
        %v1520 = vadd.f32 %v1452, %v1516
        %s1521 = sld [smem:[#allocation2 + $0x7a]]
        %v1522 = vstv %s1521
        %v1523 = vmul.f32 %v1522, %v158
        %v1524 = vmul.f32 %v1522, %v159
        %v1527 = vrot.slane %v1523, 4
        %v1528 = vrot.slane %v1524, 4
        %v1529 = vsel %vm1389, %v1527, %v1528
        %1530 = vrot.lane.b32.xlu0 %v1529, 126
        %v1531 = vpop.permute.xlu0 %1530
        %1532 = vrot.lane.b32.xlu0 %v1528, 126
        %v1533 = vpop.permute.xlu0 %1532
        %v1536 = vadd.f32 %v1468, %v1531
        %v1537 = vadd.f32 %v1469, %v1533
        %s1538 = sld [smem:[#allocation2 + $0xde]]
        %v1539 = vstv %s1538
        %v1540 = vmul.f32 %v1539, %v158
        %v1541 = vmul.f32 %v1539, %v159
        %v1544 = vrot.slane %v1540, 4
        %v1545 = vrot.slane %v1541, 4
        %v1546 = vsel %vm1389, %v1544, %v1545
        %1547 = vrot.lane.b32.xlu0 %v1546, 126
        %v1548 = vpop.permute.xlu0 %1547
        %1549 = vrot.lane.b32.xlu0 %v1545, 126
        %v1550 = vpop.permute.xlu0 %1549
        %v1553 = vadd.f32 %v1485, %v1548
        %v1554 = vadd.f32 %v1486, %v1550
        %s1555 = sld [smem:[#allocation2 + $0x142]]
        %v1556 = vstv %s1555
        %v1557 = vmul.f32 %v1556, %v158
        %v1558 = vmul.f32 %v1556, %v159
        %v1561 = vrot.slane %v1557, 4
        %v1562 = vrot.slane %v1558, 4
        %v1563 = vsel %vm1389, %v1561, %v1562
        %1564 = vrot.lane.b32.xlu0 %v1563, 126
        %v1565 = vpop.permute.xlu0 %1564
        %1566 = vrot.lane.b32.xlu0 %v1562, 126
        %v1567 = vpop.permute.xlu0 %1566
        %v1570 = vadd.f32 %v1502, %v1565
        %v1571 = vadd.f32 %v1503, %v1567
        %s1572 = sld [smem:[#allocation2 + $0x17]]
        %v1573 = vstv %s1572
        %v1574 = vmul.f32 %v1573, %v158
        %v1575 = vmul.f32 %v1573, %v159
        %v1578 = vrot.slane %v1574, 4
        %v1579 = vrot.slane %v1575, 4
        %v1580 = vsel %vm1389, %v1578, %v1579
        %1581 = vrot.lane.b32.xlu0 %v1580, 125
        %v1582 = vpop.permute.xlu0 %1581
        %1583 = vrot.lane.b32.xlu0 %v1579, 125
        %v1584 = vpop.permute.xlu0 %1583
        %v1587 = vadd.f32 %v1519, %v1582
        %v1588 = vadd.f32 %v1520, %v1584
        %s1589 = sld [smem:[#allocation2 + $0x7b]]
        %v1590 = vstv %s1589
        %v1591 = vmul.f32 %v1590, %v158
        %v1592 = vmul.f32 %v1590, %v159
        %v1595 = vrot.slane %v1591, 4
        %v1596 = vrot.slane %v1592, 4
        %v1597 = vsel %vm1389, %v1595, %v1596
        %1598 = vrot.lane.b32.xlu0 %v1597, 125
        %v1599 = vpop.permute.xlu0 %1598
        %1600 = vrot.lane.b32.xlu0 %v1596, 125
        %v1601 = vpop.permute.xlu0 %1600
        %v1604 = vadd.f32 %v1536, %v1599
        %v1605 = vadd.f32 %v1537, %v1601
        %s1606 = sld [smem:[#allocation2 + $0xdf]]
        %v1607 = vstv %s1606
        %v1608 = vmul.f32 %v1607, %v158
        %v1609 = vmul.f32 %v1607, %v159
        %v1612 = vrot.slane %v1608, 4
        %v1613 = vrot.slane %v1609, 4
        %v1614 = vsel %vm1389, %v1612, %v1613
        %1615 = vrot.lane.b32.xlu0 %v1614, 125
        %v1616 = vpop.permute.xlu0 %1615
        %1617 = vrot.lane.b32.xlu0 %v1613, 125
        %v1618 = vpop.permute.xlu0 %1617
        %v1621 = vadd.f32 %v1553, %v1616
        %v1622 = vadd.f32 %v1554, %v1618
        %s1623 = sld [smem:[#allocation2 + $0x143]]
        %v1624 = vstv %s1623
        %v1625 = vmul.f32 %v1624, %v158
        %v1626 = vmul.f32 %v1624, %v159
        %v1629 = vrot.slane %v1625, 4
        %v1630 = vrot.slane %v1626, 4
        %v1631 = vsel %vm1389, %v1629, %v1630
        %1632 = vrot.lane.b32.xlu0 %v1631, 125
        %v1633 = vpop.permute.xlu0 %1632
        %1634 = vrot.lane.b32.xlu0 %v1630, 125
        %v1635 = vpop.permute.xlu0 %1634
        %v1638 = vadd.f32 %v1570, %v1633
        %v1639 = vadd.f32 %v1571, %v1635
        %s1640 = sld [smem:[#allocation2 + $0x18]]
        %v1641 = vstv %s1640
        %v1642 = vmul.f32 %v1641, %v158
        %v1643 = vmul.f32 %v1641, %v159
        %v1646 = vrot.slane %v1642, 4
        %v1647 = vrot.slane %v1643, 4
        %v1648 = vsel %vm1389, %v1646, %v1647
        %1649 = vrot.lane.b32.xlu0 %v1648, 124
        %v1650 = vpop.permute.xlu0 %1649
        %1651 = vrot.lane.b32.xlu0 %v1647, 124
        %v1652 = vpop.permute.xlu0 %1651
        %v1655 = vadd.f32 %v1587, %v1650
        %v1656 = vadd.f32 %v1588, %v1652
        %s1657 = sld [smem:[#allocation2 + $0x7c]]
        %v1658 = vstv %s1657
        %v1659 = vmul.f32 %v1658, %v158
        %v1660 = vmul.f32 %v1658, %v159
        %v1663 = vrot.slane %v1659, 4
        %v1664 = vrot.slane %v1660, 4
        %v1665 = vsel %vm1389, %v1663, %v1664
        %1666 = vrot.lane.b32.xlu0 %v1665, 124
        %v1667 = vpop.permute.xlu0 %1666
        %1668 = vrot.lane.b32.xlu0 %v1664, 124
        %v1669 = vpop.permute.xlu0 %1668
        %v1672 = vadd.f32 %v1604, %v1667
        %v1673 = vadd.f32 %v1605, %v1669
        %s1674 = sld [smem:[#allocation2 + $0xe0]]
        %v1675 = vstv %s1674
        %v1676 = vmul.f32 %v1675, %v158
        %v1677 = vmul.f32 %v1675, %v159
        %v1680 = vrot.slane %v1676, 4
        %v1681 = vrot.slane %v1677, 4
        %v1682 = vsel %vm1389, %v1680, %v1681
        %1683 = vrot.lane.b32.xlu0 %v1682, 124
        %v1684 = vpop.permute.xlu0 %1683
        %1685 = vrot.lane.b32.xlu0 %v1681, 124
        %v1686 = vpop.permute.xlu0 %1685
        %v1689 = vadd.f32 %v1621, %v1684
        %v1690 = vadd.f32 %v1622, %v1686
        %s1691 = sld [smem:[#allocation2 + $0x144]]
        %v1692 = vstv %s1691
        %v1693 = vmul.f32 %v1692, %v158
        %v1694 = vmul.f32 %v1692, %v159
        %v1697 = vrot.slane %v1693, 4
        %v1698 = vrot.slane %v1694, 4
        %v1699 = vsel %vm1389, %v1697, %v1698
        %1700 = vrot.lane.b32.xlu0 %v1699, 124
        %v1701 = vpop.permute.xlu0 %1700
        %1702 = vrot.lane.b32.xlu0 %v1698, 124
        %v1703 = vpop.permute.xlu0 %1702
        %v1706 = vadd.f32 %v1638, %v1701
        %v1707 = vadd.f32 %v1639, %v1703
        %s1708 = scalar_lea.vmem %s152, 16
        %v1709 = vld [vmem:[%s1708] sm:$0xff]
        %v1710 = vld [vmem:[%s1708 + $0x8] sm:$0xff]
        %s1711 = sld [smem:[#allocation2 + $0x19]]
        %v1712 = vstv %s1711
        %v1713 = vmul.f32 %v1712, %v1709
        %v1714 = vmul.f32 %v1712, %v1710
        %v1715 = vadd.f32 %v1655, %v1713
        %v1716 = vadd.f32 %v1656, %v1714
        %s1717 = sld [smem:[#allocation2 + $0x7d]]
        %v1718 = vstv %s1717
        %v1719 = vmul.f32 %v1718, %v1709
        %v1720 = vmul.f32 %v1718, %v1710
        %v1721 = vadd.f32 %v1672, %v1719
        %v1722 = vadd.f32 %v1673, %v1720
        %s1723 = sld [smem:[#allocation2 + $0xe1]]
        %v1724 = vstv %s1723
        %v1725 = vmul.f32 %v1724, %v1709
        %v1726 = vmul.f32 %v1724, %v1710
        %v1727 = vadd.f32 %v1689, %v1725
        %v1728 = vadd.f32 %v1690, %v1726
        %s1729 = sld [smem:[#allocation2 + $0x145]]
        %v1730 = vstv %s1729
        %v1731 = vmul.f32 %v1730, %v1709
        %v1732 = vmul.f32 %v1730, %v1710
        %v1733 = vadd.f32 %v1706, %v1731
        %v1734 = vadd.f32 %v1707, %v1732
        %s1735 = sld [smem:[#allocation2 + $0x1a]]
        %v1736 = vstv %s1735
        %v1737 = vmul.f32 %v1736, %v1709
        %v1738 = vmul.f32 %v1736, %v1710
        %1741 = vrot.lane.b32.xlu0 %v1737, 127
        %v1742 = vpop.permute.xlu0 %1741
        %1743 = vrot.lane.b32.xlu0 %v1738, 127
        %v1744 = vpop.permute.xlu0 %1743
        %v1747 = vadd.f32 %v1715, %v1742
        %v1748 = vadd.f32 %v1716, %v1744
        %s1749 = sld [smem:[#allocation2 + $0x7e]]
        %v1750 = vstv %s1749
        %v1751 = vmul.f32 %v1750, %v1709
        %v1752 = vmul.f32 %v1750, %v1710
        %1755 = vrot.lane.b32.xlu0 %v1751, 127
        %v1756 = vpop.permute.xlu0 %1755
        %1757 = vrot.lane.b32.xlu0 %v1752, 127
        %v1758 = vpop.permute.xlu0 %1757
        %v1761 = vadd.f32 %v1721, %v1756
        %v1762 = vadd.f32 %v1722, %v1758
        %s1763 = sld [smem:[#allocation2 + $0xe2]]
        %v1764 = vstv %s1763
        %v1765 = vmul.f32 %v1764, %v1709
        %v1766 = vmul.f32 %v1764, %v1710
        %1769 = vrot.lane.b32.xlu0 %v1765, 127
        %v1770 = vpop.permute.xlu0 %1769
        %1771 = vrot.lane.b32.xlu0 %v1766, 127
        %v1772 = vpop.permute.xlu0 %1771
        %v1775 = vadd.f32 %v1727, %v1770
        %v1776 = vadd.f32 %v1728, %v1772
        %s1777 = sld [smem:[#allocation2 + $0x146]]
        %v1778 = vstv %s1777
        %v1779 = vmul.f32 %v1778, %v1709
        %v1780 = vmul.f32 %v1778, %v1710
        %1783 = vrot.lane.b32.xlu0 %v1779, 127
        %v1784 = vpop.permute.xlu0 %1783
        %1785 = vrot.lane.b32.xlu0 %v1780, 127
        %v1786 = vpop.permute.xlu0 %1785
        %v1789 = vadd.f32 %v1733, %v1784
        %v1790 = vadd.f32 %v1734, %v1786
        %s1791 = sld [smem:[#allocation2 + $0x1b]]
        %v1792 = vstv %s1791
        %v1793 = vmul.f32 %v1792, %v1709
        %v1794 = vmul.f32 %v1792, %v1710
        %1797 = vrot.lane.b32.xlu0 %v1793, 126
        %v1798 = vpop.permute.xlu0 %1797
        %1799 = vrot.lane.b32.xlu0 %v1794, 126
        %v1800 = vpop.permute.xlu0 %1799
        %v1803 = vadd.f32 %v1747, %v1798
        %v1804 = vadd.f32 %v1748, %v1800
        %s1805 = sld [smem:[#allocation2 + $0x7f]]
        %v1806 = vstv %s1805
        %v1807 = vmul.f32 %v1806, %v1709
        %v1808 = vmul.f32 %v1806, %v1710
        %1811 = vrot.lane.b32.xlu0 %v1807, 126
        %v1812 = vpop.permute.xlu0 %1811
        %1813 = vrot.lane.b32.xlu0 %v1808, 126
        %v1814 = vpop.permute.xlu0 %1813
        %v1817 = vadd.f32 %v1761, %v1812
        %v1818 = vadd.f32 %v1762, %v1814
        %s1819 = sld [smem:[#allocation2 + $0xe3]]
        %v1820 = vstv %s1819
        %v1821 = vmul.f32 %v1820, %v1709
        %v1822 = vmul.f32 %v1820, %v1710
        %1825 = vrot.lane.b32.xlu0 %v1821, 126
        %v1826 = vpop.permute.xlu0 %1825
        %1827 = vrot.lane.b32.xlu0 %v1822, 126
        %v1828 = vpop.permute.xlu0 %1827
        %v1831 = vadd.f32 %v1775, %v1826
        %v1832 = vadd.f32 %v1776, %v1828
        %s1833 = sld [smem:[#allocation2 + $0x147]]
        %v1834 = vstv %s1833
        %v1835 = vmul.f32 %v1834, %v1709
        %v1836 = vmul.f32 %v1834, %v1710
        %1839 = vrot.lane.b32.xlu0 %v1835, 126
        %v1840 = vpop.permute.xlu0 %1839
        %1841 = vrot.lane.b32.xlu0 %v1836, 126
        %v1842 = vpop.permute.xlu0 %1841
        %v1845 = vadd.f32 %v1789, %v1840
        %v1846 = vadd.f32 %v1790, %v1842
        %s1847 = sld [smem:[#allocation2 + $0x1c]]
        %v1848 = vstv %s1847
        %v1849 = vmul.f32 %v1848, %v1709
        %v1850 = vmul.f32 %v1848, %v1710
        %1853 = vrot.lane.b32.xlu0 %v1849, 125
        %v1854 = vpop.permute.xlu0 %1853
        %1855 = vrot.lane.b32.xlu0 %v1850, 125
        %v1856 = vpop.permute.xlu0 %1855
        %v1859 = vadd.f32 %v1803, %v1854
        %v1860 = vadd.f32 %v1804, %v1856
        %s1861 = sld [smem:[#allocation2 + $0x80]]
        %v1862 = vstv %s1861
        %v1863 = vmul.f32 %v1862, %v1709
        %v1864 = vmul.f32 %v1862, %v1710
        %1867 = vrot.lane.b32.xlu0 %v1863, 125
        %v1868 = vpop.permute.xlu0 %1867
        %1869 = vrot.lane.b32.xlu0 %v1864, 125
        %v1870 = vpop.permute.xlu0 %1869
        %v1873 = vadd.f32 %v1817, %v1868
        %v1874 = vadd.f32 %v1818, %v1870
        %s1875 = sld [smem:[#allocation2 + $0xe4]]
        %v1876 = vstv %s1875
        %v1877 = vmul.f32 %v1876, %v1709
        %v1878 = vmul.f32 %v1876, %v1710
        %1881 = vrot.lane.b32.xlu0 %v1877, 125
        %v1882 = vpop.permute.xlu0 %1881
        %1883 = vrot.lane.b32.xlu0 %v1878, 125
        %v1884 = vpop.permute.xlu0 %1883
        %v1887 = vadd.f32 %v1831, %v1882
        %v1888 = vadd.f32 %v1832, %v1884
        %s1889 = sld [smem:[#allocation2 + $0x148]]
        %v1890 = vstv %s1889
        %v1891 = vmul.f32 %v1890, %v1709
        %v1892 = vmul.f32 %v1890, %v1710
        %1895 = vrot.lane.b32.xlu0 %v1891, 125
        %v1896 = vpop.permute.xlu0 %1895
        %1897 = vrot.lane.b32.xlu0 %v1892, 125
        %v1898 = vpop.permute.xlu0 %1897
        %v1901 = vadd.f32 %v1845, %v1896
        %v1902 = vadd.f32 %v1846, %v1898
        %s1903 = sld [smem:[#allocation2 + $0x1d]]
        %v1904 = vstv %s1903
        %v1905 = vmul.f32 %v1904, %v1709
        %v1906 = vmul.f32 %v1904, %v1710
        %1909 = vrot.lane.b32.xlu0 %v1905, 124
        %v1910 = vpop.permute.xlu0 %1909
        %1911 = vrot.lane.b32.xlu0 %v1906, 124
        %v1912 = vpop.permute.xlu0 %1911
        %v1915 = vadd.f32 %v1859, %v1910
        %v1916 = vadd.f32 %v1860, %v1912
        %s1917 = sld [smem:[#allocation2 + $0x81]]
        %v1918 = vstv %s1917
        %v1919 = vmul.f32 %v1918, %v1709
        %v1920 = vmul.f32 %v1918, %v1710
        %1923 = vrot.lane.b32.xlu0 %v1919, 124
        %v1924 = vpop.permute.xlu0 %1923
        %1925 = vrot.lane.b32.xlu0 %v1920, 124
        %v1926 = vpop.permute.xlu0 %1925
        %v1929 = vadd.f32 %v1873, %v1924
        %v1930 = vadd.f32 %v1874, %v1926
        %s1931 = sld [smem:[#allocation2 + $0xe5]]
        %v1932 = vstv %s1931
        %v1933 = vmul.f32 %v1932, %v1709
        %v1934 = vmul.f32 %v1932, %v1710
        %1937 = vrot.lane.b32.xlu0 %v1933, 124
        %v1938 = vpop.permute.xlu0 %1937
        %1939 = vrot.lane.b32.xlu0 %v1934, 124
        %v1940 = vpop.permute.xlu0 %1939
        %v1943 = vadd.f32 %v1887, %v1938
        %v1944 = vadd.f32 %v1888, %v1940
        %s1945 = sld [smem:[#allocation2 + $0x149]]
        %v1946 = vstv %s1945
        %v1947 = vmul.f32 %v1946, %v1709
        %v1948 = vmul.f32 %v1946, %v1710
        %1951 = vrot.lane.b32.xlu0 %v1947, 124
        %v1952 = vpop.permute.xlu0 %1951
        %1953 = vrot.lane.b32.xlu0 %v1948, 124
        %v1954 = vpop.permute.xlu0 %1953
        %v1957 = vadd.f32 %v1901, %v1952
        %v1958 = vadd.f32 %v1902, %v1954
        %s1959 = sld [smem:[#allocation2 + $0x1e]]
        %v1960 = vstv %s1959
        %v1961 = vmul.f32 %v1960, %v1709
        %v1962 = vmul.f32 %v1960, %v1710
        %v1965 = vrot.slane %v1961, 1
        %v1966 = vrot.slane %v1962, 1
        %v1967 = vsel %vm414, %v1965, %v1966
        %v1970 = vadd.f32 %v1915, %v1967
        %v1971 = vadd.f32 %v1916, %v1966
        %s1972 = sld [smem:[#allocation2 + $0x82]]
        %v1973 = vstv %s1972
        %v1974 = vmul.f32 %v1973, %v1709
        %v1975 = vmul.f32 %v1973, %v1710
        %v1978 = vrot.slane %v1974, 1
        %v1979 = vrot.slane %v1975, 1
        %v1980 = vsel %vm414, %v1978, %v1979
        %v1983 = vadd.f32 %v1929, %v1980
        %v1984 = vadd.f32 %v1930, %v1979
        %s1985 = sld [smem:[#allocation2 + $0xe6]]
        %v1986 = vstv %s1985
        %v1987 = vmul.f32 %v1986, %v1709
        %v1988 = vmul.f32 %v1986, %v1710
        %v1991 = vrot.slane %v1987, 1
        %v1992 = vrot.slane %v1988, 1
        %v1993 = vsel %vm414, %v1991, %v1992
        %v1996 = vadd.f32 %v1943, %v1993
        %v1997 = vadd.f32 %v1944, %v1992
        %s1998 = sld [smem:[#allocation2 + $0x14a]]
        %v1999 = vstv %s1998
        %v2000 = vmul.f32 %v1999, %v1709
        %v2001 = vmul.f32 %v1999, %v1710
        %v2004 = vrot.slane %v2000, 1
        %v2005 = vrot.slane %v2001, 1
        %v2006 = vsel %vm414, %v2004, %v2005
        %v2009 = vadd.f32 %v1957, %v2006
        %v2010 = vadd.f32 %v1958, %v2005
        %s2011 = sld [smem:[#allocation2 + $0x1f]]
        %v2012 = vstv %s2011
        %v2013 = vmul.f32 %v2012, %v1709
        %v2014 = vmul.f32 %v2012, %v1710
        %v2017 = vrot.slane %v2013, 1
        %v2018 = vrot.slane %v2014, 1
        %v2019 = vsel %vm414, %v2017, %v2018
        %2020 = vrot.lane.b32.xlu0 %v2019, 127
        %v2021 = vpop.permute.xlu0 %2020
        %2022 = vrot.lane.b32.xlu0 %v2018, 127
        %v2023 = vpop.permute.xlu0 %2022
        %v2026 = vadd.f32 %v1970, %v2021
        %v2027 = vadd.f32 %v1971, %v2023
        %s2028 = sld [smem:[#allocation2 + $0x83]]
        %v2029 = vstv %s2028
        %v2030 = vmul.f32 %v2029, %v1709
        %v2031 = vmul.f32 %v2029, %v1710
        %v2034 = vrot.slane %v2030, 1
        %v2035 = vrot.slane %v2031, 1
        %v2036 = vsel %vm414, %v2034, %v2035
        %2037 = vrot.lane.b32.xlu0 %v2036, 127
        %v2038 = vpop.permute.xlu0 %2037
        %2039 = vrot.lane.b32.xlu0 %v2035, 127
        %v2040 = vpop.permute.xlu0 %2039
        %v2043 = vadd.f32 %v1983, %v2038
        %v2044 = vadd.f32 %v1984, %v2040
        %s2045 = sld [smem:[#allocation2 + $0xe7]]
        %v2046 = vstv %s2045
        %v2047 = vmul.f32 %v2046, %v1709
        %v2048 = vmul.f32 %v2046, %v1710
        %v2051 = vrot.slane %v2047, 1
        %v2052 = vrot.slane %v2048, 1
        %v2053 = vsel %vm414, %v2051, %v2052
        %2054 = vrot.lane.b32.xlu0 %v2053, 127
        %v2055 = vpop.permute.xlu0 %2054
        %2056 = vrot.lane.b32.xlu0 %v2052, 127
        %v2057 = vpop.permute.xlu0 %2056
        %v2060 = vadd.f32 %v1996, %v2055
        %v2061 = vadd.f32 %v1997, %v2057
        %s2062 = sld [smem:[#allocation2 + $0x14b]]
        %v2063 = vstv %s2062
        %v2064 = vmul.f32 %v2063, %v1709
        %v2065 = vmul.f32 %v2063, %v1710
        %v2068 = vrot.slane %v2064, 1
        %v2069 = vrot.slane %v2065, 1
        %v2070 = vsel %vm414, %v2068, %v2069
        %2071 = vrot.lane.b32.xlu0 %v2070, 127
        %v2072 = vpop.permute.xlu0 %2071
        %2073 = vrot.lane.b32.xlu0 %v2069, 127
        %v2074 = vpop.permute.xlu0 %2073
        %v2077 = vadd.f32 %v2009, %v2072
        %v2078 = vadd.f32 %v2010, %v2074
        %s2079 = sld [smem:[#allocation2 + $0x20]]
        %v2080 = vstv %s2079
        %v2081 = vmul.f32 %v2080, %v1709
        %v2082 = vmul.f32 %v2080, %v1710
        %v2085 = vrot.slane %v2081, 1
        %v2086 = vrot.slane %v2082, 1
        %v2087 = vsel %vm414, %v2085, %v2086
        %2088 = vrot.lane.b32.xlu0 %v2087, 126
        %v2089 = vpop.permute.xlu0 %2088
        %2090 = vrot.lane.b32.xlu0 %v2086, 126
        %v2091 = vpop.permute.xlu0 %2090
        %v2094 = vadd.f32 %v2026, %v2089
        %v2095 = vadd.f32 %v2027, %v2091
        %s2096 = sld [smem:[#allocation2 + $0x84]]
        %v2097 = vstv %s2096
        %v2098 = vmul.f32 %v2097, %v1709
        %v2099 = vmul.f32 %v2097, %v1710
        %v2102 = vrot.slane %v2098, 1
        %v2103 = vrot.slane %v2099, 1
        %v2104 = vsel %vm414, %v2102, %v2103
        %2105 = vrot.lane.b32.xlu0 %v2104, 126
        %v2106 = vpop.permute.xlu0 %2105
        %2107 = vrot.lane.b32.xlu0 %v2103, 126
        %v2108 = vpop.permute.xlu0 %2107
        %v2111 = vadd.f32 %v2043, %v2106
        %v2112 = vadd.f32 %v2044, %v2108
        %s2113 = sld [smem:[#allocation2 + $0xe8]]
        %v2114 = vstv %s2113
        %v2115 = vmul.f32 %v2114, %v1709
        %v2116 = vmul.f32 %v2114, %v1710
        %v2119 = vrot.slane %v2115, 1
        %v2120 = vrot.slane %v2116, 1
        %v2121 = vsel %vm414, %v2119, %v2120
        %2122 = vrot.lane.b32.xlu0 %v2121, 126
        %v2123 = vpop.permute.xlu0 %2122
        %2124 = vrot.lane.b32.xlu0 %v2120, 126
        %v2125 = vpop.permute.xlu0 %2124
        %v2128 = vadd.f32 %v2060, %v2123
        %v2129 = vadd.f32 %v2061, %v2125
        %s2130 = sld [smem:[#allocation2 + $0x14c]]
        %v2131 = vstv %s2130
        %v2132 = vmul.f32 %v2131, %v1709
        %v2133 = vmul.f32 %v2131, %v1710
        %v2136 = vrot.slane %v2132, 1
        %v2137 = vrot.slane %v2133, 1
        %v2138 = vsel %vm414, %v2136, %v2137
        %2139 = vrot.lane.b32.xlu0 %v2138, 126
        %v2140 = vpop.permute.xlu0 %2139
        %2141 = vrot.lane.b32.xlu0 %v2137, 126
        %v2142 = vpop.permute.xlu0 %2141
        %v2145 = vadd.f32 %v2077, %v2140
        %v2146 = vadd.f32 %v2078, %v2142
        %s2147 = sld [smem:[#allocation2 + $0x21]]
        %v2148 = vstv %s2147
        %v2149 = vmul.f32 %v2148, %v1709
        %v2150 = vmul.f32 %v2148, %v1710
        %v2153 = vrot.slane %v2149, 1
        %v2154 = vrot.slane %v2150, 1
        %v2155 = vsel %vm414, %v2153, %v2154
        %2156 = vrot.lane.b32.xlu0 %v2155, 125
        %v2157 = vpop.permute.xlu0 %2156
        %2158 = vrot.lane.b32.xlu0 %v2154, 125
        %v2159 = vpop.permute.xlu0 %2158
        %v2162 = vadd.f32 %v2094, %v2157
        %v2163 = vadd.f32 %v2095, %v2159
        %s2164 = sld [smem:[#allocation2 + $0x85]]
        %v2165 = vstv %s2164
        %v2166 = vmul.f32 %v2165, %v1709
        %v2167 = vmul.f32 %v2165, %v1710
        %v2170 = vrot.slane %v2166, 1
        %v2171 = vrot.slane %v2167, 1
        %v2172 = vsel %vm414, %v2170, %v2171
        %2173 = vrot.lane.b32.xlu0 %v2172, 125
        %v2174 = vpop.permute.xlu0 %2173
        %2175 = vrot.lane.b32.xlu0 %v2171, 125
        %v2176 = vpop.permute.xlu0 %2175
        %v2179 = vadd.f32 %v2111, %v2174
        %v2180 = vadd.f32 %v2112, %v2176
        %s2181 = sld [smem:[#allocation2 + $0xe9]]
        %v2182 = vstv %s2181
        %v2183 = vmul.f32 %v2182, %v1709
        %v2184 = vmul.f32 %v2182, %v1710
        %v2187 = vrot.slane %v2183, 1
        %v2188 = vrot.slane %v2184, 1
        %v2189 = vsel %vm414, %v2187, %v2188
        %2190 = vrot.lane.b32.xlu0 %v2189, 125
        %v2191 = vpop.permute.xlu0 %2190
        %2192 = vrot.lane.b32.xlu0 %v2188, 125
        %v2193 = vpop.permute.xlu0 %2192
        %v2196 = vadd.f32 %v2128, %v2191
        %v2197 = vadd.f32 %v2129, %v2193
        %s2198 = sld [smem:[#allocation2 + $0x14d]]
        %v2199 = vstv %s2198
        %v2200 = vmul.f32 %v2199, %v1709
        %v2201 = vmul.f32 %v2199, %v1710
        %v2204 = vrot.slane %v2200, 1
        %v2205 = vrot.slane %v2201, 1
        %v2206 = vsel %vm414, %v2204, %v2205
        %2207 = vrot.lane.b32.xlu0 %v2206, 125
        %v2208 = vpop.permute.xlu0 %2207
        %2209 = vrot.lane.b32.xlu0 %v2205, 125
        %v2210 = vpop.permute.xlu0 %2209
        %v2213 = vadd.f32 %v2145, %v2208
        %v2214 = vadd.f32 %v2146, %v2210
        %s2215 = sld [smem:[#allocation2 + $0x22]]
        %v2216 = vstv %s2215
        %v2217 = vmul.f32 %v2216, %v1709
        %v2218 = vmul.f32 %v2216, %v1710
        %v2221 = vrot.slane %v2217, 1
        %v2222 = vrot.slane %v2218, 1
        %v2223 = vsel %vm414, %v2221, %v2222
        %2224 = vrot.lane.b32.xlu0 %v2223, 124
        %v2225 = vpop.permute.xlu0 %2224
        %2226 = vrot.lane.b32.xlu0 %v2222, 124
        %v2227 = vpop.permute.xlu0 %2226
        %v2230 = vadd.f32 %v2162, %v2225
        %v2231 = vadd.f32 %v2163, %v2227
        %s2232 = sld [smem:[#allocation2 + $0x86]]
        %v2233 = vstv %s2232
        %v2234 = vmul.f32 %v2233, %v1709
        %v2235 = vmul.f32 %v2233, %v1710
        %v2238 = vrot.slane %v2234, 1
        %v2239 = vrot.slane %v2235, 1
        %v2240 = vsel %vm414, %v2238, %v2239
        %2241 = vrot.lane.b32.xlu0 %v2240, 124
        %v2242 = vpop.permute.xlu0 %2241
        %2243 = vrot.lane.b32.xlu0 %v2239, 124
        %v2244 = vpop.permute.xlu0 %2243
        %v2247 = vadd.f32 %v2179, %v2242
        %v2248 = vadd.f32 %v2180, %v2244
        %s2249 = sld [smem:[#allocation2 + $0xea]]
        %v2250 = vstv %s2249
        %v2251 = vmul.f32 %v2250, %v1709
        %v2252 = vmul.f32 %v2250, %v1710
        %v2255 = vrot.slane %v2251, 1
        %v2256 = vrot.slane %v2252, 1
        %v2257 = vsel %vm414, %v2255, %v2256
        %2258 = vrot.lane.b32.xlu0 %v2257, 124
        %v2259 = vpop.permute.xlu0 %2258
        %2260 = vrot.lane.b32.xlu0 %v2256, 124
        %v2261 = vpop.permute.xlu0 %2260
        %v2264 = vadd.f32 %v2196, %v2259
        %v2265 = vadd.f32 %v2197, %v2261
        %s2266 = sld [smem:[#allocation2 + $0x14e]]
        %v2267 = vstv %s2266
        %v2268 = vmul.f32 %v2267, %v1709
        %v2269 = vmul.f32 %v2267, %v1710
        %v2272 = vrot.slane %v2268, 1
        %v2273 = vrot.slane %v2269, 1
        %v2274 = vsel %vm414, %v2272, %v2273
        %2275 = vrot.lane.b32.xlu0 %v2274, 124
        %v2276 = vpop.permute.xlu0 %2275
        %2277 = vrot.lane.b32.xlu0 %v2273, 124
        %v2278 = vpop.permute.xlu0 %2277
        %v2281 = vadd.f32 %v2213, %v2276
        %v2282 = vadd.f32 %v2214, %v2278
        %s2283 = sld [smem:[#allocation2 + $0x23]]
        %v2284 = vstv %s2283
        %v2285 = vmul.f32 %v2284, %v1709
        %v2286 = vmul.f32 %v2284, %v1710
        %v2289 = vrot.slane %v2285, 2
        %v2290 = vrot.slane %v2286, 2
        %v2291 = vsel %vm739, %v2289, %v2290
        %v2294 = vadd.f32 %v2230, %v2291
        %v2295 = vadd.f32 %v2231, %v2290
        %s2296 = sld [smem:[#allocation2 + $0x87]]
        %v2297 = vstv %s2296
        %v2298 = vmul.f32 %v2297, %v1709
        %v2299 = vmul.f32 %v2297, %v1710
        %v2302 = vrot.slane %v2298, 2
        %v2303 = vrot.slane %v2299, 2
        %v2304 = vsel %vm739, %v2302, %v2303
        %v2307 = vadd.f32 %v2247, %v2304
        %v2308 = vadd.f32 %v2248, %v2303
        %s2309 = sld [smem:[#allocation2 + $0xeb]]
        %v2310 = vstv %s2309
        %v2311 = vmul.f32 %v2310, %v1709
        %v2312 = vmul.f32 %v2310, %v1710
        %v2315 = vrot.slane %v2311, 2
        %v2316 = vrot.slane %v2312, 2
        %v2317 = vsel %vm739, %v2315, %v2316
        %v2320 = vadd.f32 %v2264, %v2317
        %v2321 = vadd.f32 %v2265, %v2316
        %s2322 = sld [smem:[#allocation2 + $0x14f]]
        %v2323 = vstv %s2322
        %v2324 = vmul.f32 %v2323, %v1709
        %v2325 = vmul.f32 %v2323, %v1710
        %v2328 = vrot.slane %v2324, 2
        %v2329 = vrot.slane %v2325, 2
        %v2330 = vsel %vm739, %v2328, %v2329
        %v2333 = vadd.f32 %v2281, %v2330
        %v2334 = vadd.f32 %v2282, %v2329
        %s2335 = sld [smem:[#allocation2 + $0x24]]
        %v2336 = vstv %s2335
        %v2337 = vmul.f32 %v2336, %v1709
        %v2338 = vmul.f32 %v2336, %v1710
        %v2341 = vrot.slane %v2337, 2
        %v2342 = vrot.slane %v2338, 2
        %v2343 = vsel %vm739, %v2341, %v2342
        %2344 = vrot.lane.b32.xlu0 %v2343, 127
        %v2345 = vpop.permute.xlu0 %2344
        %2346 = vrot.lane.b32.xlu0 %v2342, 127
        %v2347 = vpop.permute.xlu0 %2346
        %v2350 = vadd.f32 %v2294, %v2345
        %v2351 = vadd.f32 %v2295, %v2347
        %s2352 = sld [smem:[#allocation2 + $0x88]]
        %v2353 = vstv %s2352
        %v2354 = vmul.f32 %v2353, %v1709
        %v2355 = vmul.f32 %v2353, %v1710
        %v2358 = vrot.slane %v2354, 2
        %v2359 = vrot.slane %v2355, 2
        %v2360 = vsel %vm739, %v2358, %v2359
        %2361 = vrot.lane.b32.xlu0 %v2360, 127
        %v2362 = vpop.permute.xlu0 %2361
        %2363 = vrot.lane.b32.xlu0 %v2359, 127
        %v2364 = vpop.permute.xlu0 %2363
        %v2367 = vadd.f32 %v2307, %v2362
        %v2368 = vadd.f32 %v2308, %v2364
        %s2369 = sld [smem:[#allocation2 + $0xec]]
        %v2370 = vstv %s2369
        %v2371 = vmul.f32 %v2370, %v1709
        %v2372 = vmul.f32 %v2370, %v1710
        %v2375 = vrot.slane %v2371, 2
        %v2376 = vrot.slane %v2372, 2
        %v2377 = vsel %vm739, %v2375, %v2376
        %2378 = vrot.lane.b32.xlu0 %v2377, 127
        %v2379 = vpop.permute.xlu0 %2378
        %2380 = vrot.lane.b32.xlu0 %v2376, 127
        %v2381 = vpop.permute.xlu0 %2380
        %v2384 = vadd.f32 %v2320, %v2379
        %v2385 = vadd.f32 %v2321, %v2381
        %s2386 = sld [smem:[#allocation2 + $0x150]]
        %v2387 = vstv %s2386
        %v2388 = vmul.f32 %v2387, %v1709
        %v2389 = vmul.f32 %v2387, %v1710
        %v2392 = vrot.slane %v2388, 2
        %v2393 = vrot.slane %v2389, 2
        %v2394 = vsel %vm739, %v2392, %v2393
        %2395 = vrot.lane.b32.xlu0 %v2394, 127
        %v2396 = vpop.permute.xlu0 %2395
        %2397 = vrot.lane.b32.xlu0 %v2393, 127
        %v2398 = vpop.permute.xlu0 %2397
        %v2401 = vadd.f32 %v2333, %v2396
        %v2402 = vadd.f32 %v2334, %v2398
        %s2403 = sld [smem:[#allocation2 + $0x25]]
        %v2404 = vstv %s2403
        %v2405 = vmul.f32 %v2404, %v1709
        %v2406 = vmul.f32 %v2404, %v1710
        %v2409 = vrot.slane %v2405, 2
        %v2410 = vrot.slane %v2406, 2
        %v2411 = vsel %vm739, %v2409, %v2410
        %2412 = vrot.lane.b32.xlu0 %v2411, 126
        %v2413 = vpop.permute.xlu0 %2412
        %2414 = vrot.lane.b32.xlu0 %v2410, 126
        %v2415 = vpop.permute.xlu0 %2414
        %v2418 = vadd.f32 %v2350, %v2413
        %v2419 = vadd.f32 %v2351, %v2415
        %s2420 = sld [smem:[#allocation2 + $0x89]]
        %v2421 = vstv %s2420
        %v2422 = vmul.f32 %v2421, %v1709
        %v2423 = vmul.f32 %v2421, %v1710
        %v2426 = vrot.slane %v2422, 2
        %v2427 = vrot.slane %v2423, 2
        %v2428 = vsel %vm739, %v2426, %v2427
        %2429 = vrot.lane.b32.xlu0 %v2428, 126
        %v2430 = vpop.permute.xlu0 %2429
        %2431 = vrot.lane.b32.xlu0 %v2427, 126
        %v2432 = vpop.permute.xlu0 %2431
        %v2435 = vadd.f32 %v2367, %v2430
        %v2436 = vadd.f32 %v2368, %v2432
        %s2437 = sld [smem:[#allocation2 + $0xed]]
        %v2438 = vstv %s2437
        %v2439 = vmul.f32 %v2438, %v1709
        %v2440 = vmul.f32 %v2438, %v1710
        %v2443 = vrot.slane %v2439, 2
        %v2444 = vrot.slane %v2440, 2
        %v2445 = vsel %vm739, %v2443, %v2444
        %2446 = vrot.lane.b32.xlu0 %v2445, 126
        %v2447 = vpop.permute.xlu0 %2446
        %2448 = vrot.lane.b32.xlu0 %v2444, 126
        %v2449 = vpop.permute.xlu0 %2448
        %v2452 = vadd.f32 %v2384, %v2447
        %v2453 = vadd.f32 %v2385, %v2449
        %s2454 = sld [smem:[#allocation2 + $0x151]]
        %v2455 = vstv %s2454
        %v2456 = vmul.f32 %v2455, %v1709
        %v2457 = vmul.f32 %v2455, %v1710
        %v2460 = vrot.slane %v2456, 2
        %v2461 = vrot.slane %v2457, 2
        %v2462 = vsel %vm739, %v2460, %v2461
        %2463 = vrot.lane.b32.xlu0 %v2462, 126
        %v2464 = vpop.permute.xlu0 %2463
        %2465 = vrot.lane.b32.xlu0 %v2461, 126
        %v2466 = vpop.permute.xlu0 %2465
        %v2469 = vadd.f32 %v2401, %v2464
        %v2470 = vadd.f32 %v2402, %v2466
        %s2471 = sld [smem:[#allocation2 + $0x26]]
        %v2472 = vstv %s2471
        %v2473 = vmul.f32 %v2472, %v1709
        %v2474 = vmul.f32 %v2472, %v1710
        %v2477 = vrot.slane %v2473, 2
        %v2478 = vrot.slane %v2474, 2
        %v2479 = vsel %vm739, %v2477, %v2478
        %2480 = vrot.lane.b32.xlu0 %v2479, 125
        %v2481 = vpop.permute.xlu0 %2480
        %2482 = vrot.lane.b32.xlu0 %v2478, 125
        %v2483 = vpop.permute.xlu0 %2482
        %v2486 = vadd.f32 %v2418, %v2481
        %v2487 = vadd.f32 %v2419, %v2483
        %s2488 = sld [smem:[#allocation2 + $0x8a]]
        %v2489 = vstv %s2488
        %v2490 = vmul.f32 %v2489, %v1709
        %v2491 = vmul.f32 %v2489, %v1710
        %v2494 = vrot.slane %v2490, 2
        %v2495 = vrot.slane %v2491, 2
        %v2496 = vsel %vm739, %v2494, %v2495
        %2497 = vrot.lane.b32.xlu0 %v2496, 125
        %v2498 = vpop.permute.xlu0 %2497
        %2499 = vrot.lane.b32.xlu0 %v2495, 125
        %v2500 = vpop.permute.xlu0 %2499
        %v2503 = vadd.f32 %v2435, %v2498
        %v2504 = vadd.f32 %v2436, %v2500
        %s2505 = sld [smem:[#allocation2 + $0xee]]
        %v2506 = vstv %s2505
        %v2507 = vmul.f32 %v2506, %v1709
        %v2508 = vmul.f32 %v2506, %v1710
        %v2511 = vrot.slane %v2507, 2
        %v2512 = vrot.slane %v2508, 2
        %v2513 = vsel %vm739, %v2511, %v2512
        %2514 = vrot.lane.b32.xlu0 %v2513, 125
        %v2515 = vpop.permute.xlu0 %2514
        %2516 = vrot.lane.b32.xlu0 %v2512, 125
        %v2517 = vpop.permute.xlu0 %2516
        %v2520 = vadd.f32 %v2452, %v2515
        %v2521 = vadd.f32 %v2453, %v2517
        %s2522 = sld [smem:[#allocation2 + $0x152]]
        %v2523 = vstv %s2522
        %v2524 = vmul.f32 %v2523, %v1709
        %v2525 = vmul.f32 %v2523, %v1710
        %v2528 = vrot.slane %v2524, 2
        %v2529 = vrot.slane %v2525, 2
        %v2530 = vsel %vm739, %v2528, %v2529
        %2531 = vrot.lane.b32.xlu0 %v2530, 125
        %v2532 = vpop.permute.xlu0 %2531
        %2533 = vrot.lane.b32.xlu0 %v2529, 125
        %v2534 = vpop.permute.xlu0 %2533
        %v2537 = vadd.f32 %v2469, %v2532
        %v2538 = vadd.f32 %v2470, %v2534
        %s2539 = sld [smem:[#allocation2 + $0x27]]
        %v2540 = vstv %s2539
        %v2541 = vmul.f32 %v2540, %v1709
        %v2542 = vmul.f32 %v2540, %v1710
        %v2545 = vrot.slane %v2541, 2
        %v2546 = vrot.slane %v2542, 2
        %v2547 = vsel %vm739, %v2545, %v2546
        %2548 = vrot.lane.b32.xlu0 %v2547, 124
        %v2549 = vpop.permute.xlu0 %2548
        %2550 = vrot.lane.b32.xlu0 %v2546, 124
        %v2551 = vpop.permute.xlu0 %2550
        %v2554 = vadd.f32 %v2486, %v2549
        %v2555 = vadd.f32 %v2487, %v2551
        %s2556 = sld [smem:[#allocation2 + $0x8b]]
        %v2557 = vstv %s2556
        %v2558 = vmul.f32 %v2557, %v1709
        %v2559 = vmul.f32 %v2557, %v1710
        %v2562 = vrot.slane %v2558, 2
        %v2563 = vrot.slane %v2559, 2
        %v2564 = vsel %vm739, %v2562, %v2563
        %2565 = vrot.lane.b32.xlu0 %v2564, 124
        %v2566 = vpop.permute.xlu0 %2565
        %2567 = vrot.lane.b32.xlu0 %v2563, 124
        %v2568 = vpop.permute.xlu0 %2567
        %v2571 = vadd.f32 %v2503, %v2566
        %v2572 = vadd.f32 %v2504, %v2568
        %s2573 = sld [smem:[#allocation2 + $0xef]]
        %v2574 = vstv %s2573
        %v2575 = vmul.f32 %v2574, %v1709
        %v2576 = vmul.f32 %v2574, %v1710
        %v2579 = vrot.slane %v2575, 2
        %v2580 = vrot.slane %v2576, 2
        %v2581 = vsel %vm739, %v2579, %v2580
        %2582 = vrot.lane.b32.xlu0 %v2581, 124
        %v2583 = vpop.permute.xlu0 %2582
        %2584 = vrot.lane.b32.xlu0 %v2580, 124
        %v2585 = vpop.permute.xlu0 %2584
        %v2588 = vadd.f32 %v2520, %v2583
        %v2589 = vadd.f32 %v2521, %v2585
        %s2590 = sld [smem:[#allocation2 + $0x153]]
        %v2591 = vstv %s2590
        %v2592 = vmul.f32 %v2591, %v1709
        %v2593 = vmul.f32 %v2591, %v1710
        %v2596 = vrot.slane %v2592, 2
        %v2597 = vrot.slane %v2593, 2
        %v2598 = vsel %vm739, %v2596, %v2597
        %2599 = vrot.lane.b32.xlu0 %v2598, 124
        %v2600 = vpop.permute.xlu0 %2599
        %2601 = vrot.lane.b32.xlu0 %v2597, 124
        %v2602 = vpop.permute.xlu0 %2601
        %v2605 = vadd.f32 %v2537, %v2600
        %v2606 = vadd.f32 %v2538, %v2602
        %s2607 = sld [smem:[#allocation2 + $0x28]]
        %v2608 = vstv %s2607
        %v2609 = vmul.f32 %v2608, %v1709
        %v2610 = vmul.f32 %v2608, %v1710
        %v2613 = vrot.slane %v2609, 3
        %v2614 = vrot.slane %v2610, 3
        %v2615 = vsel %vm1064, %v2613, %v2614
        %v2618 = vadd.f32 %v2554, %v2615
        %v2619 = vadd.f32 %v2555, %v2614
        %s2620 = sld [smem:[#allocation2 + $0x8c]]
        %v2621 = vstv %s2620
        %v2622 = vmul.f32 %v2621, %v1709
        %v2623 = vmul.f32 %v2621, %v1710
        %v2626 = vrot.slane %v2622, 3
        %v2627 = vrot.slane %v2623, 3
        %v2628 = vsel %vm1064, %v2626, %v2627
        %v2631 = vadd.f32 %v2571, %v2628
        %v2632 = vadd.f32 %v2572, %v2627
        %s2633 = sld [smem:[#allocation2 + $0xf0]]
        %v2634 = vstv %s2633
        %v2635 = vmul.f32 %v2634, %v1709
        %v2636 = vmul.f32 %v2634, %v1710
        %v2639 = vrot.slane %v2635, 3
        %v2640 = vrot.slane %v2636, 3
        %v2641 = vsel %vm1064, %v2639, %v2640
        %v2644 = vadd.f32 %v2588, %v2641
        %v2645 = vadd.f32 %v2589, %v2640
        %s2646 = sld [smem:[#allocation2 + $0x154]]
        %v2647 = vstv %s2646
        %v2648 = vmul.f32 %v2647, %v1709
        %v2649 = vmul.f32 %v2647, %v1710
        %v2652 = vrot.slane %v2648, 3
        %v2653 = vrot.slane %v2649, 3
        %v2654 = vsel %vm1064, %v2652, %v2653
        %v2657 = vadd.f32 %v2605, %v2654
        %v2658 = vadd.f32 %v2606, %v2653
        %s2659 = sld [smem:[#allocation2 + $0x29]]
        %v2660 = vstv %s2659
        %v2661 = vmul.f32 %v2660, %v1709
        %v2662 = vmul.f32 %v2660, %v1710
        %v2665 = vrot.slane %v2661, 3
        %v2666 = vrot.slane %v2662, 3
        %v2667 = vsel %vm1064, %v2665, %v2666
        %2668 = vrot.lane.b32.xlu0 %v2667, 127
        %v2669 = vpop.permute.xlu0 %2668
        %2670 = vrot.lane.b32.xlu0 %v2666, 127
        %v2671 = vpop.permute.xlu0 %2670
        %v2674 = vadd.f32 %v2618, %v2669
        %v2675 = vadd.f32 %v2619, %v2671
        %s2676 = sld [smem:[#allocation2 + $0x8d]]
        %v2677 = vstv %s2676
        %v2678 = vmul.f32 %v2677, %v1709
        %v2679 = vmul.f32 %v2677, %v1710
        %v2682 = vrot.slane %v2678, 3
        %v2683 = vrot.slane %v2679, 3
        %v2684 = vsel %vm1064, %v2682, %v2683
        %2685 = vrot.lane.b32.xlu0 %v2684, 127
        %v2686 = vpop.permute.xlu0 %2685
        %2687 = vrot.lane.b32.xlu0 %v2683, 127
        %v2688 = vpop.permute.xlu0 %2687
        %v2691 = vadd.f32 %v2631, %v2686
        %v2692 = vadd.f32 %v2632, %v2688
        %s2693 = sld [smem:[#allocation2 + $0xf1]]
        %v2694 = vstv %s2693
        %v2695 = vmul.f32 %v2694, %v1709
        %v2696 = vmul.f32 %v2694, %v1710
        %v2699 = vrot.slane %v2695, 3
        %v2700 = vrot.slane %v2696, 3
        %v2701 = vsel %vm1064, %v2699, %v2700
        %2702 = vrot.lane.b32.xlu0 %v2701, 127
        %v2703 = vpop.permute.xlu0 %2702
        %2704 = vrot.lane.b32.xlu0 %v2700, 127
        %v2705 = vpop.permute.xlu0 %2704
        %v2708 = vadd.f32 %v2644, %v2703
        %v2709 = vadd.f32 %v2645, %v2705
        %s2710 = sld [smem:[#allocation2 + $0x155]]
        %v2711 = vstv %s2710
        %v2712 = vmul.f32 %v2711, %v1709
        %v2713 = vmul.f32 %v2711, %v1710
        %v2716 = vrot.slane %v2712, 3
        %v2717 = vrot.slane %v2713, 3
        %v2718 = vsel %vm1064, %v2716, %v2717
        %2719 = vrot.lane.b32.xlu0 %v2718, 127
        %v2720 = vpop.permute.xlu0 %2719
        %2721 = vrot.lane.b32.xlu0 %v2717, 127
        %v2722 = vpop.permute.xlu0 %2721
        %v2725 = vadd.f32 %v2657, %v2720
        %v2726 = vadd.f32 %v2658, %v2722
        %s2727 = sld [smem:[#allocation2 + $0x2a]]
        %v2728 = vstv %s2727
        %v2729 = vmul.f32 %v2728, %v1709
        %v2730 = vmul.f32 %v2728, %v1710
        %v2733 = vrot.slane %v2729, 3
        %v2734 = vrot.slane %v2730, 3
        %v2735 = vsel %vm1064, %v2733, %v2734
        %2736 = vrot.lane.b32.xlu0 %v2735, 126
        %v2737 = vpop.permute.xlu0 %2736
        %2738 = vrot.lane.b32.xlu0 %v2734, 126
        %v2739 = vpop.permute.xlu0 %2738
        %v2742 = vadd.f32 %v2674, %v2737
        %v2743 = vadd.f32 %v2675, %v2739
        %s2744 = sld [smem:[#allocation2 + $0x8e]]
        %v2745 = vstv %s2744
        %v2746 = vmul.f32 %v2745, %v1709
        %v2747 = vmul.f32 %v2745, %v1710
        %v2750 = vrot.slane %v2746, 3
        %v2751 = vrot.slane %v2747, 3
        %v2752 = vsel %vm1064, %v2750, %v2751
        %2753 = vrot.lane.b32.xlu0 %v2752, 126
        %v2754 = vpop.permute.xlu0 %2753
        %2755 = vrot.lane.b32.xlu0 %v2751, 126
        %v2756 = vpop.permute.xlu0 %2755
        %v2759 = vadd.f32 %v2691, %v2754
        %v2760 = vadd.f32 %v2692, %v2756
        %s2761 = sld [smem:[#allocation2 + $0xf2]]
        %v2762 = vstv %s2761
        %v2763 = vmul.f32 %v2762, %v1709
        %v2764 = vmul.f32 %v2762, %v1710
        %v2767 = vrot.slane %v2763, 3
        %v2768 = vrot.slane %v2764, 3
        %v2769 = vsel %vm1064, %v2767, %v2768
        %2770 = vrot.lane.b32.xlu0 %v2769, 126
        %v2771 = vpop.permute.xlu0 %2770
        %2772 = vrot.lane.b32.xlu0 %v2768, 126
        %v2773 = vpop.permute.xlu0 %2772
        %v2776 = vadd.f32 %v2708, %v2771
        %v2777 = vadd.f32 %v2709, %v2773
        %s2778 = sld [smem:[#allocation2 + $0x156]]
        %v2779 = vstv %s2778
        %v2780 = vmul.f32 %v2779, %v1709
        %v2781 = vmul.f32 %v2779, %v1710
        %v2784 = vrot.slane %v2780, 3
        %v2785 = vrot.slane %v2781, 3
        %v2786 = vsel %vm1064, %v2784, %v2785
        %2787 = vrot.lane.b32.xlu0 %v2786, 126
        %v2788 = vpop.permute.xlu0 %2787
        %2789 = vrot.lane.b32.xlu0 %v2785, 126
        %v2790 = vpop.permute.xlu0 %2789
        %v2793 = vadd.f32 %v2725, %v2788
        %v2794 = vadd.f32 %v2726, %v2790
        %s2795 = sld [smem:[#allocation2 + $0x2b]]
        %v2796 = vstv %s2795
        %v2797 = vmul.f32 %v2796, %v1709
        %v2798 = vmul.f32 %v2796, %v1710
        %v2801 = vrot.slane %v2797, 3
        %v2802 = vrot.slane %v2798, 3
        %v2803 = vsel %vm1064, %v2801, %v2802
        %2804 = vrot.lane.b32.xlu0 %v2803, 125
        %v2805 = vpop.permute.xlu0 %2804
        %2806 = vrot.lane.b32.xlu0 %v2802, 125
        %v2807 = vpop.permute.xlu0 %2806
        %v2810 = vadd.f32 %v2742, %v2805
        %v2811 = vadd.f32 %v2743, %v2807
        %s2812 = sld [smem:[#allocation2 + $0x8f]]
        %v2813 = vstv %s2812
        %v2814 = vmul.f32 %v2813, %v1709
        %v2815 = vmul.f32 %v2813, %v1710
        %v2818 = vrot.slane %v2814, 3
        %v2819 = vrot.slane %v2815, 3
        %v2820 = vsel %vm1064, %v2818, %v2819
        %2821 = vrot.lane.b32.xlu0 %v2820, 125
        %v2822 = vpop.permute.xlu0 %2821
        %2823 = vrot.lane.b32.xlu0 %v2819, 125
        %v2824 = vpop.permute.xlu0 %2823
        %v2827 = vadd.f32 %v2759, %v2822
        %v2828 = vadd.f32 %v2760, %v2824
        %s2829 = sld [smem:[#allocation2 + $0xf3]]
        %v2830 = vstv %s2829
        %v2831 = vmul.f32 %v2830, %v1709
        %v2832 = vmul.f32 %v2830, %v1710
        %v2835 = vrot.slane %v2831, 3
        %v2836 = vrot.slane %v2832, 3
        %v2837 = vsel %vm1064, %v2835, %v2836
        %2838 = vrot.lane.b32.xlu0 %v2837, 125
        %v2839 = vpop.permute.xlu0 %2838
        %2840 = vrot.lane.b32.xlu0 %v2836, 125
        %v2841 = vpop.permute.xlu0 %2840
        %v2844 = vadd.f32 %v2776, %v2839
        %v2845 = vadd.f32 %v2777, %v2841
        %s2846 = sld [smem:[#allocation2 + $0x157]]
        %v2847 = vstv %s2846
        %v2848 = vmul.f32 %v2847, %v1709
        %v2849 = vmul.f32 %v2847, %v1710
        %v2852 = vrot.slane %v2848, 3
        %v2853 = vrot.slane %v2849, 3
        %v2854 = vsel %vm1064, %v2852, %v2853
        %2855 = vrot.lane.b32.xlu0 %v2854, 125
        %v2856 = vpop.permute.xlu0 %2855
        %2857 = vrot.lane.b32.xlu0 %v2853, 125
        %v2858 = vpop.permute.xlu0 %2857
        %v2861 = vadd.f32 %v2793, %v2856
        %v2862 = vadd.f32 %v2794, %v2858
        %s2863 = sld [smem:[#allocation2 + $0x2c]]
        %v2864 = vstv %s2863
        %v2865 = vmul.f32 %v2864, %v1709
        %v2866 = vmul.f32 %v2864, %v1710
        %v2869 = vrot.slane %v2865, 3
        %v2870 = vrot.slane %v2866, 3
        %v2871 = vsel %vm1064, %v2869, %v2870
        %2872 = vrot.lane.b32.xlu0 %v2871, 124
        %v2873 = vpop.permute.xlu0 %2872
        %2874 = vrot.lane.b32.xlu0 %v2870, 124
        %v2875 = vpop.permute.xlu0 %2874
        %v2878 = vadd.f32 %v2810, %v2873
        %v2879 = vadd.f32 %v2811, %v2875
        %s2880 = sld [smem:[#allocation2 + $0x90]]
        %v2881 = vstv %s2880
        %v2882 = vmul.f32 %v2881, %v1709
        %v2883 = vmul.f32 %v2881, %v1710
        %v2886 = vrot.slane %v2882, 3
        %v2887 = vrot.slane %v2883, 3
        %v2888 = vsel %vm1064, %v2886, %v2887
        %2889 = vrot.lane.b32.xlu0 %v2888, 124
        %v2890 = vpop.permute.xlu0 %2889
        %2891 = vrot.lane.b32.xlu0 %v2887, 124
        %v2892 = vpop.permute.xlu0 %2891
        %v2895 = vadd.f32 %v2827, %v2890
        %v2896 = vadd.f32 %v2828, %v2892
        %s2897 = sld [smem:[#allocation2 + $0xf4]]
        %v2898 = vstv %s2897
        %v2899 = vmul.f32 %v2898, %v1709
        %v2900 = vmul.f32 %v2898, %v1710
        %v2903 = vrot.slane %v2899, 3
        %v2904 = vrot.slane %v2900, 3
        %v2905 = vsel %vm1064, %v2903, %v2904
        %2906 = vrot.lane.b32.xlu0 %v2905, 124
        %v2907 = vpop.permute.xlu0 %2906
        %2908 = vrot.lane.b32.xlu0 %v2904, 124
        %v2909 = vpop.permute.xlu0 %2908
        %v2912 = vadd.f32 %v2844, %v2907
        %v2913 = vadd.f32 %v2845, %v2909
        %s2914 = sld [smem:[#allocation2 + $0x158]]
        %v2915 = vstv %s2914
        %v2916 = vmul.f32 %v2915, %v1709
        %v2917 = vmul.f32 %v2915, %v1710
        %v2920 = vrot.slane %v2916, 3
        %v2921 = vrot.slane %v2917, 3
        %v2922 = vsel %vm1064, %v2920, %v2921
        %2923 = vrot.lane.b32.xlu0 %v2922, 124
        %v2924 = vpop.permute.xlu0 %2923
        %2925 = vrot.lane.b32.xlu0 %v2921, 124
        %v2926 = vpop.permute.xlu0 %2925
        %v2929 = vadd.f32 %v2861, %v2924
        %v2930 = vadd.f32 %v2862, %v2926
        %s2931 = sld [smem:[#allocation2 + $0x2d]]
        %v2932 = vstv %s2931
        %v2933 = vmul.f32 %v2932, %v1709
        %v2934 = vmul.f32 %v2932, %v1710
        %v2937 = vrot.slane %v2933, 4
        %v2938 = vrot.slane %v2934, 4
        %v2939 = vsel %vm1389, %v2937, %v2938
        %v2942 = vadd.f32 %v2878, %v2939
        %v2943 = vadd.f32 %v2879, %v2938
        %s2944 = sld [smem:[#allocation2 + $0x91]]
        %v2945 = vstv %s2944
        %v2946 = vmul.f32 %v2945, %v1709
        %v2947 = vmul.f32 %v2945, %v1710
        %v2950 = vrot.slane %v2946, 4
        %v2951 = vrot.slane %v2947, 4
        %v2952 = vsel %vm1389, %v2950, %v2951
        %v2955 = vadd.f32 %v2895, %v2952
        %v2956 = vadd.f32 %v2896, %v2951
        %s2957 = sld [smem:[#allocation2 + $0xf5]]
        %v2958 = vstv %s2957
        %v2959 = vmul.f32 %v2958, %v1709
        %v2960 = vmul.f32 %v2958, %v1710
        %v2963 = vrot.slane %v2959, 4
        %v2964 = vrot.slane %v2960, 4
        %v2965 = vsel %vm1389, %v2963, %v2964
        %v2968 = vadd.f32 %v2912, %v2965
        %v2969 = vadd.f32 %v2913, %v2964
        %s2970 = sld [smem:[#allocation2 + $0x159]]
        %v2971 = vstv %s2970
        %v2972 = vmul.f32 %v2971, %v1709
        %v2973 = vmul.f32 %v2971, %v1710
        %v2976 = vrot.slane %v2972, 4
        %v2977 = vrot.slane %v2973, 4
        %v2978 = vsel %vm1389, %v2976, %v2977
        %v2981 = vadd.f32 %v2929, %v2978
        %v2982 = vadd.f32 %v2930, %v2977
        %s2983 = sld [smem:[#allocation2 + $0x2e]]
        %v2984 = vstv %s2983
        %v2985 = vmul.f32 %v2984, %v1709
        %v2986 = vmul.f32 %v2984, %v1710
        %v2989 = vrot.slane %v2985, 4
        %v2990 = vrot.slane %v2986, 4
        %v2991 = vsel %vm1389, %v2989, %v2990
        %2992 = vrot.lane.b32.xlu0 %v2991, 127
        %v2993 = vpop.permute.xlu0 %2992
        %2994 = vrot.lane.b32.xlu0 %v2990, 127
        %v2995 = vpop.permute.xlu0 %2994
        %v2998 = vadd.f32 %v2942, %v2993
        %v2999 = vadd.f32 %v2943, %v2995
        %s3000 = sld [smem:[#allocation2 + $0x92]]
        %v3001 = vstv %s3000
        %v3002 = vmul.f32 %v3001, %v1709
        %v3003 = vmul.f32 %v3001, %v1710
        %v3006 = vrot.slane %v3002, 4
        %v3007 = vrot.slane %v3003, 4
        %v3008 = vsel %vm1389, %v3006, %v3007
        %3009 = vrot.lane.b32.xlu0 %v3008, 127
        %v3010 = vpop.permute.xlu0 %3009
        %3011 = vrot.lane.b32.xlu0 %v3007, 127
        %v3012 = vpop.permute.xlu0 %3011
        %v3015 = vadd.f32 %v2955, %v3010
        %v3016 = vadd.f32 %v2956, %v3012
        %s3017 = sld [smem:[#allocation2 + $0xf6]]
        %v3018 = vstv %s3017
        %v3019 = vmul.f32 %v3018, %v1709
        %v3020 = vmul.f32 %v3018, %v1710
        %v3023 = vrot.slane %v3019, 4
        %v3024 = vrot.slane %v3020, 4
        %v3025 = vsel %vm1389, %v3023, %v3024
        %3026 = vrot.lane.b32.xlu0 %v3025, 127
        %v3027 = vpop.permute.xlu0 %3026
        %3028 = vrot.lane.b32.xlu0 %v3024, 127
        %v3029 = vpop.permute.xlu0 %3028
        %v3032 = vadd.f32 %v2968, %v3027
        %v3033 = vadd.f32 %v2969, %v3029
        %s3034 = sld [smem:[#allocation2 + $0x15a]]
        %v3035 = vstv %s3034
        %v3036 = vmul.f32 %v3035, %v1709
        %v3037 = vmul.f32 %v3035, %v1710
        %v3040 = vrot.slane %v3036, 4
        %v3041 = vrot.slane %v3037, 4
        %v3042 = vsel %vm1389, %v3040, %v3041
        %3043 = vrot.lane.b32.xlu0 %v3042, 127
        %v3044 = vpop.permute.xlu0 %3043
        %3045 = vrot.lane.b32.xlu0 %v3041, 127
        %v3046 = vpop.permute.xlu0 %3045
        %v3049 = vadd.f32 %v2981, %v3044
        %v3050 = vadd.f32 %v2982, %v3046
        %s3051 = sld [smem:[#allocation2 + $0x2f]]
        %v3052 = vstv %s3051
        %v3053 = vmul.f32 %v3052, %v1709
        %v3054 = vmul.f32 %v3052, %v1710
        %v3057 = vrot.slane %v3053, 4
        %v3058 = vrot.slane %v3054, 4
        %v3059 = vsel %vm1389, %v3057, %v3058
        %3060 = vrot.lane.b32.xlu0 %v3059, 126
        %v3061 = vpop.permute.xlu0 %3060
        %3062 = vrot.lane.b32.xlu0 %v3058, 126
        %v3063 = vpop.permute.xlu0 %3062
        %v3066 = vadd.f32 %v2998, %v3061
        %v3067 = vadd.f32 %v2999, %v3063
        %s3068 = sld [smem:[#allocation2 + $0x93]]
        %v3069 = vstv %s3068
        %v3070 = vmul.f32 %v3069, %v1709
        %v3071 = vmul.f32 %v3069, %v1710
        %v3074 = vrot.slane %v3070, 4
        %v3075 = vrot.slane %v3071, 4
        %v3076 = vsel %vm1389, %v3074, %v3075
        %3077 = vrot.lane.b32.xlu0 %v3076, 126
        %v3078 = vpop.permute.xlu0 %3077
        %3079 = vrot.lane.b32.xlu0 %v3075, 126
        %v3080 = vpop.permute.xlu0 %3079
        %v3083 = vadd.f32 %v3015, %v3078
        %v3084 = vadd.f32 %v3016, %v3080
        %s3085 = sld [smem:[#allocation2 + $0xf7]]
        %v3086 = vstv %s3085
        %v3087 = vmul.f32 %v3086, %v1709
        %v3088 = vmul.f32 %v3086, %v1710
        %v3091 = vrot.slane %v3087, 4
        %v3092 = vrot.slane %v3088, 4
        %v3093 = vsel %vm1389, %v3091, %v3092
        %3094 = vrot.lane.b32.xlu0 %v3093, 126
        %v3095 = vpop.permute.xlu0 %3094
        %3096 = vrot.lane.b32.xlu0 %v3092, 126
        %v3097 = vpop.permute.xlu0 %3096
        %v3100 = vadd.f32 %v3032, %v3095
        %v3101 = vadd.f32 %v3033, %v3097
        %s3102 = sld [smem:[#allocation2 + $0x15b]]
        %v3103 = vstv %s3102
        %v3104 = vmul.f32 %v3103, %v1709
        %v3105 = vmul.f32 %v3103, %v1710
        %v3108 = vrot.slane %v3104, 4
        %v3109 = vrot.slane %v3105, 4
        %v3110 = vsel %vm1389, %v3108, %v3109
        %3111 = vrot.lane.b32.xlu0 %v3110, 126
        %v3112 = vpop.permute.xlu0 %3111
        %3113 = vrot.lane.b32.xlu0 %v3109, 126
        %v3114 = vpop.permute.xlu0 %3113
        %v3117 = vadd.f32 %v3049, %v3112
        %v3118 = vadd.f32 %v3050, %v3114
        %s3119 = sld [smem:[#allocation2 + $0x30]]
        %v3120 = vstv %s3119
        %v3121 = vmul.f32 %v3120, %v1709
        %v3122 = vmul.f32 %v3120, %v1710
        %v3125 = vrot.slane %v3121, 4
        %v3126 = vrot.slane %v3122, 4
        %v3127 = vsel %vm1389, %v3125, %v3126
        %3128 = vrot.lane.b32.xlu0 %v3127, 125
        %v3129 = vpop.permute.xlu0 %3128
        %3130 = vrot.lane.b32.xlu0 %v3126, 125
        %v3131 = vpop.permute.xlu0 %3130
        %v3134 = vadd.f32 %v3066, %v3129
        %v3135 = vadd.f32 %v3067, %v3131
        %s3136 = sld [smem:[#allocation2 + $0x94]]
        %v3137 = vstv %s3136
        %v3138 = vmul.f32 %v3137, %v1709
        %v3139 = vmul.f32 %v3137, %v1710
        %v3142 = vrot.slane %v3138, 4
        %v3143 = vrot.slane %v3139, 4
        %v3144 = vsel %vm1389, %v3142, %v3143
        %3145 = vrot.lane.b32.xlu0 %v3144, 125
        %v3146 = vpop.permute.xlu0 %3145
        %3147 = vrot.lane.b32.xlu0 %v3143, 125
        %v3148 = vpop.permute.xlu0 %3147
        %v3151 = vadd.f32 %v3083, %v3146
        %v3152 = vadd.f32 %v3084, %v3148
        %s3153 = sld [smem:[#allocation2 + $0xf8]]
        %v3154 = vstv %s3153
        %v3155 = vmul.f32 %v3154, %v1709
        %v3156 = vmul.f32 %v3154, %v1710
        %v3159 = vrot.slane %v3155, 4
        %v3160 = vrot.slane %v3156, 4
        %v3161 = vsel %vm1389, %v3159, %v3160
        %3162 = vrot.lane.b32.xlu0 %v3161, 125
        %v3163 = vpop.permute.xlu0 %3162
        %3164 = vrot.lane.b32.xlu0 %v3160, 125
        %v3165 = vpop.permute.xlu0 %3164
        %v3168 = vadd.f32 %v3100, %v3163
        %v3169 = vadd.f32 %v3101, %v3165
        %s3170 = sld [smem:[#allocation2 + $0x15c]]
        %v3171 = vstv %s3170
        %v3172 = vmul.f32 %v3171, %v1709
        %v3173 = vmul.f32 %v3171, %v1710
        %v3176 = vrot.slane %v3172, 4
        %v3177 = vrot.slane %v3173, 4
        %v3178 = vsel %vm1389, %v3176, %v3177
        %3179 = vrot.lane.b32.xlu0 %v3178, 125
        %v3180 = vpop.permute.xlu0 %3179
        %3181 = vrot.lane.b32.xlu0 %v3177, 125
        %v3182 = vpop.permute.xlu0 %3181
        %v3185 = vadd.f32 %v3117, %v3180
        %v3186 = vadd.f32 %v3118, %v3182
        %s3187 = sld [smem:[#allocation2 + $0x31]]
        %v3188 = vstv %s3187
        %v3189 = vmul.f32 %v3188, %v1709
        %v3190 = vmul.f32 %v3188, %v1710
        %v3193 = vrot.slane %v3189, 4
        %v3194 = vrot.slane %v3190, 4
        %v3195 = vsel %vm1389, %v3193, %v3194
        %3196 = vrot.lane.b32.xlu0 %v3195, 124
        %v3197 = vpop.permute.xlu0 %3196
        %3198 = vrot.lane.b32.xlu0 %v3194, 124
        %v3199 = vpop.permute.xlu0 %3198
        %v3202 = vadd.f32 %v3134, %v3197
        %v3203 = vadd.f32 %v3135, %v3199
        %s3204 = sld [smem:[#allocation2 + $0x95]]
        %v3205 = vstv %s3204
        %v3206 = vmul.f32 %v3205, %v1709
        %v3207 = vmul.f32 %v3205, %v1710
        %v3210 = vrot.slane %v3206, 4
        %v3211 = vrot.slane %v3207, 4
        %v3212 = vsel %vm1389, %v3210, %v3211
        %3213 = vrot.lane.b32.xlu0 %v3212, 124
        %v3214 = vpop.permute.xlu0 %3213
        %3215 = vrot.lane.b32.xlu0 %v3211, 124
        %v3216 = vpop.permute.xlu0 %3215
        %v3219 = vadd.f32 %v3151, %v3214
        %v3220 = vadd.f32 %v3152, %v3216
        %s3221 = sld [smem:[#allocation2 + $0xf9]]
        %v3222 = vstv %s3221
        %v3223 = vmul.f32 %v3222, %v1709
        %v3224 = vmul.f32 %v3222, %v1710
        %v3227 = vrot.slane %v3223, 4
        %v3228 = vrot.slane %v3224, 4
        %v3229 = vsel %vm1389, %v3227, %v3228
        %3230 = vrot.lane.b32.xlu0 %v3229, 124
        %v3231 = vpop.permute.xlu0 %3230
        %3232 = vrot.lane.b32.xlu0 %v3228, 124
        %v3233 = vpop.permute.xlu0 %3232
        %v3236 = vadd.f32 %v3168, %v3231
        %v3237 = vadd.f32 %v3169, %v3233
        %s3238 = sld [smem:[#allocation2 + $0x15d]]
        %v3239 = vstv %s3238
        %v3240 = vmul.f32 %v3239, %v1709
        %v3241 = vmul.f32 %v3239, %v1710
        %v3244 = vrot.slane %v3240, 4
        %v3245 = vrot.slane %v3241, 4
        %v3246 = vsel %vm1389, %v3244, %v3245
        %3247 = vrot.lane.b32.xlu0 %v3246, 124
        %v3248 = vpop.permute.xlu0 %3247
        %3249 = vrot.lane.b32.xlu0 %v3245, 124
        %v3250 = vpop.permute.xlu0 %3249
        %v3253 = vadd.f32 %v3185, %v3248
        %v3254 = vadd.f32 %v3186, %v3250
        %s3255 = scalar_lea.vmem %s152, 32
        %v3256 = vld [vmem:[%s3255] sm:$0xff]
        %v3257 = vld [vmem:[%s3255 + $0x8] sm:$0xff]
        %s3258 = sld [smem:[#allocation2 + $0x32]]
        %v3259 = vstv %s3258
        %v3260 = vmul.f32 %v3259, %v3256
        %v3261 = vmul.f32 %v3259, %v3257
        %v3262 = vadd.f32 %v3202, %v3260
        %v3263 = vadd.f32 %v3203, %v3261
        %s3264 = sld [smem:[#allocation2 + $0x96]]
        %v3265 = vstv %s3264
        %v3266 = vmul.f32 %v3265, %v3256
        %v3267 = vmul.f32 %v3265, %v3257
        %v3268 = vadd.f32 %v3219, %v3266
        %v3269 = vadd.f32 %v3220, %v3267
        %s3270 = sld [smem:[#allocation2 + $0xfa]]
        %v3271 = vstv %s3270
        %v3272 = vmul.f32 %v3271, %v3256
        %v3273 = vmul.f32 %v3271, %v3257
        %v3274 = vadd.f32 %v3236, %v3272
        %v3275 = vadd.f32 %v3237, %v3273
        %s3276 = sld [smem:[#allocation2 + $0x15e]]
        %v3277 = vstv %s3276
        %v3278 = vmul.f32 %v3277, %v3256
        %v3279 = vmul.f32 %v3277, %v3257
        %v3280 = vadd.f32 %v3253, %v3278
        %v3281 = vadd.f32 %v3254, %v3279
        %s3282 = sld [smem:[#allocation2 + $0x33]]
        %v3283 = vstv %s3282
        %v3284 = vmul.f32 %v3283, %v3256
        %v3285 = vmul.f32 %v3283, %v3257
        %3288 = vrot.lane.b32.xlu0 %v3284, 127
        %v3289 = vpop.permute.xlu0 %3288
        %3290 = vrot.lane.b32.xlu0 %v3285, 127
        %v3291 = vpop.permute.xlu0 %3290
        %v3294 = vadd.f32 %v3262, %v3289
        %v3295 = vadd.f32 %v3263, %v3291
        %s3296 = sld [smem:[#allocation2 + $0x97]]
        %v3297 = vstv %s3296
        %v3298 = vmul.f32 %v3297, %v3256
        %v3299 = vmul.f32 %v3297, %v3257
        %3302 = vrot.lane.b32.xlu0 %v3298, 127
        %v3303 = vpop.permute.xlu0 %3302
        %3304 = vrot.lane.b32.xlu0 %v3299, 127
        %v3305 = vpop.permute.xlu0 %3304
        %v3308 = vadd.f32 %v3268, %v3303
        %v3309 = vadd.f32 %v3269, %v3305
        %s3310 = sld [smem:[#allocation2 + $0xfb]]
        %v3311 = vstv %s3310
        %v3312 = vmul.f32 %v3311, %v3256
        %v3313 = vmul.f32 %v3311, %v3257
        %3316 = vrot.lane.b32.xlu0 %v3312, 127
        %v3317 = vpop.permute.xlu0 %3316
        %3318 = vrot.lane.b32.xlu0 %v3313, 127
        %v3319 = vpop.permute.xlu0 %3318
        %v3322 = vadd.f32 %v3274, %v3317
        %v3323 = vadd.f32 %v3275, %v3319
        %s3324 = sld [smem:[#allocation2 + $0x15f]]
        %v3325 = vstv %s3324
        %v3326 = vmul.f32 %v3325, %v3256
        %v3327 = vmul.f32 %v3325, %v3257
        %3330 = vrot.lane.b32.xlu0 %v3326, 127
        %v3331 = vpop.permute.xlu0 %3330
        %3332 = vrot.lane.b32.xlu0 %v3327, 127
        %v3333 = vpop.permute.xlu0 %3332
        %v3336 = vadd.f32 %v3280, %v3331
        %v3337 = vadd.f32 %v3281, %v3333
        %s3338 = sld [smem:[#allocation2 + $0x34]]
        %v3339 = vstv %s3338
        %v3340 = vmul.f32 %v3339, %v3256
        %v3341 = vmul.f32 %v3339, %v3257
        %3344 = vrot.lane.b32.xlu0 %v3340, 126
        %v3345 = vpop.permute.xlu0 %3344
        %3346 = vrot.lane.b32.xlu0 %v3341, 126
        %v3347 = vpop.permute.xlu0 %3346
        %v3350 = vadd.f32 %v3294, %v3345
        %v3351 = vadd.f32 %v3295, %v3347
        %s3352 = sld [smem:[#allocation2 + $0x98]]
        %v3353 = vstv %s3352
        %v3354 = vmul.f32 %v3353, %v3256
        %v3355 = vmul.f32 %v3353, %v3257
        %3358 = vrot.lane.b32.xlu0 %v3354, 126
        %v3359 = vpop.permute.xlu0 %3358
        %3360 = vrot.lane.b32.xlu0 %v3355, 126
        %v3361 = vpop.permute.xlu0 %3360
        %v3364 = vadd.f32 %v3308, %v3359
        %v3365 = vadd.f32 %v3309, %v3361
        %s3366 = sld [smem:[#allocation2 + $0xfc]]
        %v3367 = vstv %s3366
        %v3368 = vmul.f32 %v3367, %v3256
        %v3369 = vmul.f32 %v3367, %v3257
        %3372 = vrot.lane.b32.xlu0 %v3368, 126
        %v3373 = vpop.permute.xlu0 %3372
        %3374 = vrot.lane.b32.xlu0 %v3369, 126
        %v3375 = vpop.permute.xlu0 %3374
        %v3378 = vadd.f32 %v3322, %v3373
        %v3379 = vadd.f32 %v3323, %v3375
        %s3380 = sld [smem:[#allocation2 + $0x160]]
        %v3381 = vstv %s3380
        %v3382 = vmul.f32 %v3381, %v3256
        %v3383 = vmul.f32 %v3381, %v3257
        %3386 = vrot.lane.b32.xlu0 %v3382, 126
        %v3387 = vpop.permute.xlu0 %3386
        %3388 = vrot.lane.b32.xlu0 %v3383, 126
        %v3389 = vpop.permute.xlu0 %3388
        %v3392 = vadd.f32 %v3336, %v3387
        %v3393 = vadd.f32 %v3337, %v3389
        %s3394 = sld [smem:[#allocation2 + $0x35]]
        %v3395 = vstv %s3394
        %v3396 = vmul.f32 %v3395, %v3256
        %v3397 = vmul.f32 %v3395, %v3257
        %3400 = vrot.lane.b32.xlu0 %v3396, 125
        %v3401 = vpop.permute.xlu0 %3400
        %3402 = vrot.lane.b32.xlu0 %v3397, 125
        %v3403 = vpop.permute.xlu0 %3402
        %v3406 = vadd.f32 %v3350, %v3401
        %v3407 = vadd.f32 %v3351, %v3403
        %s3408 = sld [smem:[#allocation2 + $0x99]]
        %v3409 = vstv %s3408
        %v3410 = vmul.f32 %v3409, %v3256
        %v3411 = vmul.f32 %v3409, %v3257
        %3414 = vrot.lane.b32.xlu0 %v3410, 125
        %v3415 = vpop.permute.xlu0 %3414
        %3416 = vrot.lane.b32.xlu0 %v3411, 125
        %v3417 = vpop.permute.xlu0 %3416
        %v3420 = vadd.f32 %v3364, %v3415
        %v3421 = vadd.f32 %v3365, %v3417
        %s3422 = sld [smem:[#allocation2 + $0xfd]]
        %v3423 = vstv %s3422
        %v3424 = vmul.f32 %v3423, %v3256
        %v3425 = vmul.f32 %v3423, %v3257
        %3428 = vrot.lane.b32.xlu0 %v3424, 125
        %v3429 = vpop.permute.xlu0 %3428
        %3430 = vrot.lane.b32.xlu0 %v3425, 125
        %v3431 = vpop.permute.xlu0 %3430
        %v3434 = vadd.f32 %v3378, %v3429
        %v3435 = vadd.f32 %v3379, %v3431
        %s3436 = sld [smem:[#allocation2 + $0x161]]
        %v3437 = vstv %s3436
        %v3438 = vmul.f32 %v3437, %v3256
        %v3439 = vmul.f32 %v3437, %v3257
        %3442 = vrot.lane.b32.xlu0 %v3438, 125
        %v3443 = vpop.permute.xlu0 %3442
        %3444 = vrot.lane.b32.xlu0 %v3439, 125
        %v3445 = vpop.permute.xlu0 %3444
        %v3448 = vadd.f32 %v3392, %v3443
        %v3449 = vadd.f32 %v3393, %v3445
        %s3450 = sld [smem:[#allocation2 + $0x36]]
        %v3451 = vstv %s3450
        %v3452 = vmul.f32 %v3451, %v3256
        %v3453 = vmul.f32 %v3451, %v3257
        %3456 = vrot.lane.b32.xlu0 %v3452, 124
        %v3457 = vpop.permute.xlu0 %3456
        %3458 = vrot.lane.b32.xlu0 %v3453, 124
        %v3459 = vpop.permute.xlu0 %3458
        %v3462 = vadd.f32 %v3406, %v3457
        %v3463 = vadd.f32 %v3407, %v3459
        %s3464 = sld [smem:[#allocation2 + $0x9a]]
        %v3465 = vstv %s3464
        %v3466 = vmul.f32 %v3465, %v3256
        %v3467 = vmul.f32 %v3465, %v3257
        %3470 = vrot.lane.b32.xlu0 %v3466, 124
        %v3471 = vpop.permute.xlu0 %3470
        %3472 = vrot.lane.b32.xlu0 %v3467, 124
        %v3473 = vpop.permute.xlu0 %3472
        %v3476 = vadd.f32 %v3420, %v3471
        %v3477 = vadd.f32 %v3421, %v3473
        %s3478 = sld [smem:[#allocation2 + $0xfe]]
        %v3479 = vstv %s3478
        %v3480 = vmul.f32 %v3479, %v3256
        %v3481 = vmul.f32 %v3479, %v3257
        %3484 = vrot.lane.b32.xlu0 %v3480, 124
        %v3485 = vpop.permute.xlu0 %3484
        %3486 = vrot.lane.b32.xlu0 %v3481, 124
        %v3487 = vpop.permute.xlu0 %3486
        %v3490 = vadd.f32 %v3434, %v3485
        %v3491 = vadd.f32 %v3435, %v3487
        %s3492 = sld [smem:[#allocation2 + $0x162]]
        %v3493 = vstv %s3492
        %v3494 = vmul.f32 %v3493, %v3256
        %v3495 = vmul.f32 %v3493, %v3257
        %3498 = vrot.lane.b32.xlu0 %v3494, 124
        %v3499 = vpop.permute.xlu0 %3498
        %3500 = vrot.lane.b32.xlu0 %v3495, 124
        %v3501 = vpop.permute.xlu0 %3500
        %v3504 = vadd.f32 %v3448, %v3499
        %v3505 = vadd.f32 %v3449, %v3501
        %s3506 = sld [smem:[#allocation2 + $0x37]]
        %v3507 = vstv %s3506
        %v3508 = vmul.f32 %v3507, %v3256
        %v3509 = vmul.f32 %v3507, %v3257
        %v3512 = vrot.slane %v3508, 1
        %v3513 = vrot.slane %v3509, 1
        %v3514 = vsel %vm414, %v3512, %v3513
        %v3517 = vadd.f32 %v3462, %v3514
        %v3518 = vadd.f32 %v3463, %v3513
        %s3519 = sld [smem:[#allocation2 + $0x9b]]
        %v3520 = vstv %s3519
        %v3521 = vmul.f32 %v3520, %v3256
        %v3522 = vmul.f32 %v3520, %v3257
        %v3525 = vrot.slane %v3521, 1
        %v3526 = vrot.slane %v3522, 1
        %v3527 = vsel %vm414, %v3525, %v3526
        %v3530 = vadd.f32 %v3476, %v3527
        %v3531 = vadd.f32 %v3477, %v3526
        %s3532 = sld [smem:[#allocation2 + $0xff]]
        %v3533 = vstv %s3532
        %v3534 = vmul.f32 %v3533, %v3256
        %v3535 = vmul.f32 %v3533, %v3257
        %v3538 = vrot.slane %v3534, 1
        %v3539 = vrot.slane %v3535, 1
        %v3540 = vsel %vm414, %v3538, %v3539
        %v3543 = vadd.f32 %v3490, %v3540
        %v3544 = vadd.f32 %v3491, %v3539
        %s3545 = sld [smem:[#allocation2 + $0x163]]
        %v3546 = vstv %s3545
        %v3547 = vmul.f32 %v3546, %v3256
        %v3548 = vmul.f32 %v3546, %v3257
        %v3551 = vrot.slane %v3547, 1
        %v3552 = vrot.slane %v3548, 1
        %v3553 = vsel %vm414, %v3551, %v3552
        %v3556 = vadd.f32 %v3504, %v3553
        %v3557 = vadd.f32 %v3505, %v3552
        %s3558 = sld [smem:[#allocation2 + $0x38]]
        %v3559 = vstv %s3558
        %v3560 = vmul.f32 %v3559, %v3256
        %v3561 = vmul.f32 %v3559, %v3257
        %v3564 = vrot.slane %v3560, 1
        %v3565 = vrot.slane %v3561, 1
        %v3566 = vsel %vm414, %v3564, %v3565
        %3567 = vrot.lane.b32.xlu0 %v3566, 127
        %v3568 = vpop.permute.xlu0 %3567
        %3569 = vrot.lane.b32.xlu0 %v3565, 127
        %v3570 = vpop.permute.xlu0 %3569
        %v3573 = vadd.f32 %v3517, %v3568
        %v3574 = vadd.f32 %v3518, %v3570
        %s3575 = sld [smem:[#allocation2 + $0x9c]]
        %v3576 = vstv %s3575
        %v3577 = vmul.f32 %v3576, %v3256
        %v3578 = vmul.f32 %v3576, %v3257
        %v3581 = vrot.slane %v3577, 1
        %v3582 = vrot.slane %v3578, 1
        %v3583 = vsel %vm414, %v3581, %v3582
        %3584 = vrot.lane.b32.xlu0 %v3583, 127
        %v3585 = vpop.permute.xlu0 %3584
        %3586 = vrot.lane.b32.xlu0 %v3582, 127
        %v3587 = vpop.permute.xlu0 %3586
        %v3590 = vadd.f32 %v3530, %v3585
        %v3591 = vadd.f32 %v3531, %v3587
        %s3592 = sld [smem:[#allocation2 + $0x100]]
        %v3593 = vstv %s3592
        %v3594 = vmul.f32 %v3593, %v3256
        %v3595 = vmul.f32 %v3593, %v3257
        %v3598 = vrot.slane %v3594, 1
        %v3599 = vrot.slane %v3595, 1
        %v3600 = vsel %vm414, %v3598, %v3599
        %3601 = vrot.lane.b32.xlu0 %v3600, 127
        %v3602 = vpop.permute.xlu0 %3601
        %3603 = vrot.lane.b32.xlu0 %v3599, 127
        %v3604 = vpop.permute.xlu0 %3603
        %v3607 = vadd.f32 %v3543, %v3602
        %v3608 = vadd.f32 %v3544, %v3604
        %s3609 = sld [smem:[#allocation2 + $0x164]]
        %v3610 = vstv %s3609
        %v3611 = vmul.f32 %v3610, %v3256
        %v3612 = vmul.f32 %v3610, %v3257
        %v3615 = vrot.slane %v3611, 1
        %v3616 = vrot.slane %v3612, 1
        %v3617 = vsel %vm414, %v3615, %v3616
        %3618 = vrot.lane.b32.xlu0 %v3617, 127
        %v3619 = vpop.permute.xlu0 %3618
        %3620 = vrot.lane.b32.xlu0 %v3616, 127
        %v3621 = vpop.permute.xlu0 %3620
        %v3624 = vadd.f32 %v3556, %v3619
        %v3625 = vadd.f32 %v3557, %v3621
        %s3626 = sld [smem:[#allocation2 + $0x39]]
        %v3627 = vstv %s3626
        %v3628 = vmul.f32 %v3627, %v3256
        %v3629 = vmul.f32 %v3627, %v3257
        %v3632 = vrot.slane %v3628, 1
        %v3633 = vrot.slane %v3629, 1
        %v3634 = vsel %vm414, %v3632, %v3633
        %3635 = vrot.lane.b32.xlu0 %v3634, 126
        %v3636 = vpop.permute.xlu0 %3635
        %3637 = vrot.lane.b32.xlu0 %v3633, 126
        %v3638 = vpop.permute.xlu0 %3637
        %v3641 = vadd.f32 %v3573, %v3636
        %v3642 = vadd.f32 %v3574, %v3638
        %s3643 = sld [smem:[#allocation2 + $0x9d]]
        %v3644 = vstv %s3643
        %v3645 = vmul.f32 %v3644, %v3256
        %v3646 = vmul.f32 %v3644, %v3257
        %v3649 = vrot.slane %v3645, 1
        %v3650 = vrot.slane %v3646, 1
        %v3651 = vsel %vm414, %v3649, %v3650
        %3652 = vrot.lane.b32.xlu0 %v3651, 126
        %v3653 = vpop.permute.xlu0 %3652
        %3654 = vrot.lane.b32.xlu0 %v3650, 126
        %v3655 = vpop.permute.xlu0 %3654
        %v3658 = vadd.f32 %v3590, %v3653
        %v3659 = vadd.f32 %v3591, %v3655
        %s3660 = sld [smem:[#allocation2 + $0x101]]
        %v3661 = vstv %s3660
        %v3662 = vmul.f32 %v3661, %v3256
        %v3663 = vmul.f32 %v3661, %v3257
        %v3666 = vrot.slane %v3662, 1
        %v3667 = vrot.slane %v3663, 1
        %v3668 = vsel %vm414, %v3666, %v3667
        %3669 = vrot.lane.b32.xlu0 %v3668, 126
        %v3670 = vpop.permute.xlu0 %3669
        %3671 = vrot.lane.b32.xlu0 %v3667, 126
        %v3672 = vpop.permute.xlu0 %3671
        %v3675 = vadd.f32 %v3607, %v3670
        %v3676 = vadd.f32 %v3608, %v3672
        %s3677 = sld [smem:[#allocation2 + $0x165]]
        %v3678 = vstv %s3677
        %v3679 = vmul.f32 %v3678, %v3256
        %v3680 = vmul.f32 %v3678, %v3257
        %v3683 = vrot.slane %v3679, 1
        %v3684 = vrot.slane %v3680, 1
        %v3685 = vsel %vm414, %v3683, %v3684
        %3686 = vrot.lane.b32.xlu0 %v3685, 126
        %v3687 = vpop.permute.xlu0 %3686
        %3688 = vrot.lane.b32.xlu0 %v3684, 126
        %v3689 = vpop.permute.xlu0 %3688
        %v3692 = vadd.f32 %v3624, %v3687
        %v3693 = vadd.f32 %v3625, %v3689
        %s3694 = sld [smem:[#allocation2 + $0x3a]]
        %v3695 = vstv %s3694
        %v3696 = vmul.f32 %v3695, %v3256
        %v3697 = vmul.f32 %v3695, %v3257
        %v3700 = vrot.slane %v3696, 1
        %v3701 = vrot.slane %v3697, 1
        %v3702 = vsel %vm414, %v3700, %v3701
        %3703 = vrot.lane.b32.xlu0 %v3702, 125
        %v3704 = vpop.permute.xlu0 %3703
        %3705 = vrot.lane.b32.xlu0 %v3701, 125
        %v3706 = vpop.permute.xlu0 %3705
        %v3709 = vadd.f32 %v3641, %v3704
        %v3710 = vadd.f32 %v3642, %v3706
        %s3711 = sld [smem:[#allocation2 + $0x9e]]
        %v3712 = vstv %s3711
        %v3713 = vmul.f32 %v3712, %v3256
        %v3714 = vmul.f32 %v3712, %v3257
        %v3717 = vrot.slane %v3713, 1
        %v3718 = vrot.slane %v3714, 1
        %v3719 = vsel %vm414, %v3717, %v3718
        %3720 = vrot.lane.b32.xlu0 %v3719, 125
        %v3721 = vpop.permute.xlu0 %3720
        %3722 = vrot.lane.b32.xlu0 %v3718, 125
        %v3723 = vpop.permute.xlu0 %3722
        %v3726 = vadd.f32 %v3658, %v3721
        %v3727 = vadd.f32 %v3659, %v3723
        %s3728 = sld [smem:[#allocation2 + $0x102]]
        %v3729 = vstv %s3728
        %v3730 = vmul.f32 %v3729, %v3256
        %v3731 = vmul.f32 %v3729, %v3257
        %v3734 = vrot.slane %v3730, 1
        %v3735 = vrot.slane %v3731, 1
        %v3736 = vsel %vm414, %v3734, %v3735
        %3737 = vrot.lane.b32.xlu0 %v3736, 125
        %v3738 = vpop.permute.xlu0 %3737
        %3739 = vrot.lane.b32.xlu0 %v3735, 125
        %v3740 = vpop.permute.xlu0 %3739
        %v3743 = vadd.f32 %v3675, %v3738
        %v3744 = vadd.f32 %v3676, %v3740
        %s3745 = sld [smem:[#allocation2 + $0x166]]
        %v3746 = vstv %s3745
        %v3747 = vmul.f32 %v3746, %v3256
        %v3748 = vmul.f32 %v3746, %v3257
        %v3751 = vrot.slane %v3747, 1
        %v3752 = vrot.slane %v3748, 1
        %v3753 = vsel %vm414, %v3751, %v3752
        %3754 = vrot.lane.b32.xlu0 %v3753, 125
        %v3755 = vpop.permute.xlu0 %3754
        %3756 = vrot.lane.b32.xlu0 %v3752, 125
        %v3757 = vpop.permute.xlu0 %3756
        %v3760 = vadd.f32 %v3692, %v3755
        %v3761 = vadd.f32 %v3693, %v3757
        %s3762 = sld [smem:[#allocation2 + $0x3b]]
        %v3763 = vstv %s3762
        %v3764 = vmul.f32 %v3763, %v3256
        %v3765 = vmul.f32 %v3763, %v3257
        %v3768 = vrot.slane %v3764, 1
        %v3769 = vrot.slane %v3765, 1
        %v3770 = vsel %vm414, %v3768, %v3769
        %3771 = vrot.lane.b32.xlu0 %v3770, 124
        %v3772 = vpop.permute.xlu0 %3771
        %3773 = vrot.lane.b32.xlu0 %v3769, 124
        %v3774 = vpop.permute.xlu0 %3773
        %v3777 = vadd.f32 %v3709, %v3772
        %v3778 = vadd.f32 %v3710, %v3774
        %s3779 = sld [smem:[#allocation2 + $0x9f]]
        %v3780 = vstv %s3779
        %v3781 = vmul.f32 %v3780, %v3256
        %v3782 = vmul.f32 %v3780, %v3257
        %v3785 = vrot.slane %v3781, 1
        %v3786 = vrot.slane %v3782, 1
        %v3787 = vsel %vm414, %v3785, %v3786
        %3788 = vrot.lane.b32.xlu0 %v3787, 124
        %v3789 = vpop.permute.xlu0 %3788
        %3790 = vrot.lane.b32.xlu0 %v3786, 124
        %v3791 = vpop.permute.xlu0 %3790
        %v3794 = vadd.f32 %v3726, %v3789
        %v3795 = vadd.f32 %v3727, %v3791
        %s3796 = sld [smem:[#allocation2 + $0x103]]
        %v3797 = vstv %s3796
        %v3798 = vmul.f32 %v3797, %v3256
        %v3799 = vmul.f32 %v3797, %v3257
        %v3802 = vrot.slane %v3798, 1
        %v3803 = vrot.slane %v3799, 1
        %v3804 = vsel %vm414, %v3802, %v3803
        %3805 = vrot.lane.b32.xlu0 %v3804, 124
        %v3806 = vpop.permute.xlu0 %3805
        %3807 = vrot.lane.b32.xlu0 %v3803, 124
        %v3808 = vpop.permute.xlu0 %3807
        %v3811 = vadd.f32 %v3743, %v3806
        %v3812 = vadd.f32 %v3744, %v3808
        %s3813 = sld [smem:[#allocation2 + $0x167]]
        %v3814 = vstv %s3813
        %v3815 = vmul.f32 %v3814, %v3256
        %v3816 = vmul.f32 %v3814, %v3257
        %v3819 = vrot.slane %v3815, 1
        %v3820 = vrot.slane %v3816, 1
        %v3821 = vsel %vm414, %v3819, %v3820
        %3822 = vrot.lane.b32.xlu0 %v3821, 124
        %v3823 = vpop.permute.xlu0 %3822
        %3824 = vrot.lane.b32.xlu0 %v3820, 124
        %v3825 = vpop.permute.xlu0 %3824
        %v3828 = vadd.f32 %v3760, %v3823
        %v3829 = vadd.f32 %v3761, %v3825
        %s3830 = sld [smem:[#allocation2 + $0x3c]]
        %v3831 = vstv %s3830
        %v3832 = vmul.f32 %v3831, %v3256
        %v3833 = vmul.f32 %v3831, %v3257
        %v3836 = vrot.slane %v3832, 2
        %v3837 = vrot.slane %v3833, 2
        %v3838 = vsel %vm739, %v3836, %v3837
        %v3841 = vadd.f32 %v3777, %v3838
        %v3842 = vadd.f32 %v3778, %v3837
        %s3843 = sld [smem:[#allocation2 + $0xa0]]
        %v3844 = vstv %s3843
        %v3845 = vmul.f32 %v3844, %v3256
        %v3846 = vmul.f32 %v3844, %v3257
        %v3849 = vrot.slane %v3845, 2
        %v3850 = vrot.slane %v3846, 2
        %v3851 = vsel %vm739, %v3849, %v3850
        %v3854 = vadd.f32 %v3794, %v3851
        %v3855 = vadd.f32 %v3795, %v3850
        %s3856 = sld [smem:[#allocation2 + $0x104]]
        %v3857 = vstv %s3856
        %v3858 = vmul.f32 %v3857, %v3256
        %v3859 = vmul.f32 %v3857, %v3257
        %v3862 = vrot.slane %v3858, 2
        %v3863 = vrot.slane %v3859, 2
        %v3864 = vsel %vm739, %v3862, %v3863
        %v3867 = vadd.f32 %v3811, %v3864
        %v3868 = vadd.f32 %v3812, %v3863
        %s3869 = sld [smem:[#allocation2 + $0x168]]
        %v3870 = vstv %s3869
        %v3871 = vmul.f32 %v3870, %v3256
        %v3872 = vmul.f32 %v3870, %v3257
        %v3875 = vrot.slane %v3871, 2
        %v3876 = vrot.slane %v3872, 2
        %v3877 = vsel %vm739, %v3875, %v3876
        %v3880 = vadd.f32 %v3828, %v3877
        %v3881 = vadd.f32 %v3829, %v3876
        %s3882 = sld [smem:[#allocation2 + $0x3d]]
        %v3883 = vstv %s3882
        %v3884 = vmul.f32 %v3883, %v3256
        %v3885 = vmul.f32 %v3883, %v3257
        %v3888 = vrot.slane %v3884, 2
        %v3889 = vrot.slane %v3885, 2
        %v3890 = vsel %vm739, %v3888, %v3889
        %3891 = vrot.lane.b32.xlu0 %v3890, 127
        %v3892 = vpop.permute.xlu0 %3891
        %3893 = vrot.lane.b32.xlu0 %v3889, 127
        %v3894 = vpop.permute.xlu0 %3893
        %v3897 = vadd.f32 %v3841, %v3892
        %v3898 = vadd.f32 %v3842, %v3894
        %s3899 = sld [smem:[#allocation2 + $0xa1]]
        %v3900 = vstv %s3899
        %v3901 = vmul.f32 %v3900, %v3256
        %v3902 = vmul.f32 %v3900, %v3257
        %v3905 = vrot.slane %v3901, 2
        %v3906 = vrot.slane %v3902, 2
        %v3907 = vsel %vm739, %v3905, %v3906
        %3908 = vrot.lane.b32.xlu0 %v3907, 127
        %v3909 = vpop.permute.xlu0 %3908
        %3910 = vrot.lane.b32.xlu0 %v3906, 127
        %v3911 = vpop.permute.xlu0 %3910
        %v3914 = vadd.f32 %v3854, %v3909
        %v3915 = vadd.f32 %v3855, %v3911
        %s3916 = sld [smem:[#allocation2 + $0x105]]
        %v3917 = vstv %s3916
        %v3918 = vmul.f32 %v3917, %v3256
        %v3919 = vmul.f32 %v3917, %v3257
        %v3922 = vrot.slane %v3918, 2
        %v3923 = vrot.slane %v3919, 2
        %v3924 = vsel %vm739, %v3922, %v3923
        %3925 = vrot.lane.b32.xlu0 %v3924, 127
        %v3926 = vpop.permute.xlu0 %3925
        %3927 = vrot.lane.b32.xlu0 %v3923, 127
        %v3928 = vpop.permute.xlu0 %3927
        %v3931 = vadd.f32 %v3867, %v3926
        %v3932 = vadd.f32 %v3868, %v3928
        %s3933 = sld [smem:[#allocation2 + $0x169]]
        %v3934 = vstv %s3933
        %v3935 = vmul.f32 %v3934, %v3256
        %v3936 = vmul.f32 %v3934, %v3257
        %v3939 = vrot.slane %v3935, 2
        %v3940 = vrot.slane %v3936, 2
        %v3941 = vsel %vm739, %v3939, %v3940
        %3942 = vrot.lane.b32.xlu0 %v3941, 127
        %v3943 = vpop.permute.xlu0 %3942
        %3944 = vrot.lane.b32.xlu0 %v3940, 127
        %v3945 = vpop.permute.xlu0 %3944
        %v3948 = vadd.f32 %v3880, %v3943
        %v3949 = vadd.f32 %v3881, %v3945
        %s3950 = sld [smem:[#allocation2 + $0x3e]]
        %v3951 = vstv %s3950
        %v3952 = vmul.f32 %v3951, %v3256
        %v3953 = vmul.f32 %v3951, %v3257
        %v3956 = vrot.slane %v3952, 2
        %v3957 = vrot.slane %v3953, 2
        %v3958 = vsel %vm739, %v3956, %v3957
        %3959 = vrot.lane.b32.xlu0 %v3958, 126
        %v3960 = vpop.permute.xlu0 %3959
        %3961 = vrot.lane.b32.xlu0 %v3957, 126
        %v3962 = vpop.permute.xlu0 %3961
        %v3965 = vadd.f32 %v3897, %v3960
        %v3966 = vadd.f32 %v3898, %v3962
        %s3967 = sld [smem:[#allocation2 + $0xa2]]
        %v3968 = vstv %s3967
        %v3969 = vmul.f32 %v3968, %v3256
        %v3970 = vmul.f32 %v3968, %v3257
        %v3973 = vrot.slane %v3969, 2
        %v3974 = vrot.slane %v3970, 2
        %v3975 = vsel %vm739, %v3973, %v3974
        %3976 = vrot.lane.b32.xlu0 %v3975, 126
        %v3977 = vpop.permute.xlu0 %3976
        %3978 = vrot.lane.b32.xlu0 %v3974, 126
        %v3979 = vpop.permute.xlu0 %3978
        %v3982 = vadd.f32 %v3914, %v3977
        %v3983 = vadd.f32 %v3915, %v3979
        %s3984 = sld [smem:[#allocation2 + $0x106]]
        %v3985 = vstv %s3984
        %v3986 = vmul.f32 %v3985, %v3256
        %v3987 = vmul.f32 %v3985, %v3257
        %v3990 = vrot.slane %v3986, 2
        %v3991 = vrot.slane %v3987, 2
        %v3992 = vsel %vm739, %v3990, %v3991
        %3993 = vrot.lane.b32.xlu0 %v3992, 126
        %v3994 = vpop.permute.xlu0 %3993
        %3995 = vrot.lane.b32.xlu0 %v3991, 126
        %v3996 = vpop.permute.xlu0 %3995
        %v3999 = vadd.f32 %v3931, %v3994
        %v4000 = vadd.f32 %v3932, %v3996
        %s4001 = sld [smem:[#allocation2 + $0x16a]]
        %v4002 = vstv %s4001
        %v4003 = vmul.f32 %v4002, %v3256
        %v4004 = vmul.f32 %v4002, %v3257
        %v4007 = vrot.slane %v4003, 2
        %v4008 = vrot.slane %v4004, 2
        %v4009 = vsel %vm739, %v4007, %v4008
        %4010 = vrot.lane.b32.xlu0 %v4009, 126
        %v4011 = vpop.permute.xlu0 %4010
        %4012 = vrot.lane.b32.xlu0 %v4008, 126
        %v4013 = vpop.permute.xlu0 %4012
        %v4016 = vadd.f32 %v3948, %v4011
        %v4017 = vadd.f32 %v3949, %v4013
        %s4018 = sld [smem:[#allocation2 + $0x3f]]
        %v4019 = vstv %s4018
        %v4020 = vmul.f32 %v4019, %v3256
        %v4021 = vmul.f32 %v4019, %v3257
        %v4024 = vrot.slane %v4020, 2
        %v4025 = vrot.slane %v4021, 2
        %v4026 = vsel %vm739, %v4024, %v4025
        %4027 = vrot.lane.b32.xlu0 %v4026, 125
        %v4028 = vpop.permute.xlu0 %4027
        %4029 = vrot.lane.b32.xlu0 %v4025, 125
        %v4030 = vpop.permute.xlu0 %4029
        %v4033 = vadd.f32 %v3965, %v4028
        %v4034 = vadd.f32 %v3966, %v4030
        %s4035 = sld [smem:[#allocation2 + $0xa3]]
        %v4036 = vstv %s4035
        %v4037 = vmul.f32 %v4036, %v3256
        %v4038 = vmul.f32 %v4036, %v3257
        %v4041 = vrot.slane %v4037, 2
        %v4042 = vrot.slane %v4038, 2
        %v4043 = vsel %vm739, %v4041, %v4042
        %4044 = vrot.lane.b32.xlu0 %v4043, 125
        %v4045 = vpop.permute.xlu0 %4044
        %4046 = vrot.lane.b32.xlu0 %v4042, 125
        %v4047 = vpop.permute.xlu0 %4046
        %v4050 = vadd.f32 %v3982, %v4045
        %v4051 = vadd.f32 %v3983, %v4047
        %s4052 = sld [smem:[#allocation2 + $0x107]]
        %v4053 = vstv %s4052
        %v4054 = vmul.f32 %v4053, %v3256
        %v4055 = vmul.f32 %v4053, %v3257
        %v4058 = vrot.slane %v4054, 2
        %v4059 = vrot.slane %v4055, 2
        %v4060 = vsel %vm739, %v4058, %v4059
        %4061 = vrot.lane.b32.xlu0 %v4060, 125
        %v4062 = vpop.permute.xlu0 %4061
        %4063 = vrot.lane.b32.xlu0 %v4059, 125
        %v4064 = vpop.permute.xlu0 %4063
        %v4067 = vadd.f32 %v3999, %v4062
        %v4068 = vadd.f32 %v4000, %v4064
        %s4069 = sld [smem:[#allocation2 + $0x16b]]
        %v4070 = vstv %s4069
        %v4071 = vmul.f32 %v4070, %v3256
        %v4072 = vmul.f32 %v4070, %v3257
        %v4075 = vrot.slane %v4071, 2
        %v4076 = vrot.slane %v4072, 2
        %v4077 = vsel %vm739, %v4075, %v4076
        %4078 = vrot.lane.b32.xlu0 %v4077, 125
        %v4079 = vpop.permute.xlu0 %4078
        %4080 = vrot.lane.b32.xlu0 %v4076, 125
        %v4081 = vpop.permute.xlu0 %4080
        %v4084 = vadd.f32 %v4016, %v4079
        %v4085 = vadd.f32 %v4017, %v4081
        %s4086 = sld [smem:[#allocation2 + $0x40]]
        %v4087 = vstv %s4086
        %v4088 = vmul.f32 %v4087, %v3256
        %v4089 = vmul.f32 %v4087, %v3257
        %v4092 = vrot.slane %v4088, 2
        %v4093 = vrot.slane %v4089, 2
        %v4094 = vsel %vm739, %v4092, %v4093
        %4095 = vrot.lane.b32.xlu0 %v4094, 124
        %v4096 = vpop.permute.xlu0 %4095
        %4097 = vrot.lane.b32.xlu0 %v4093, 124
        %v4098 = vpop.permute.xlu0 %4097
        %v4101 = vadd.f32 %v4033, %v4096
        %v4102 = vadd.f32 %v4034, %v4098
        %s4103 = sld [smem:[#allocation2 + $0xa4]]
        %v4104 = vstv %s4103
        %v4105 = vmul.f32 %v4104, %v3256
        %v4106 = vmul.f32 %v4104, %v3257
        %v4109 = vrot.slane %v4105, 2
        %v4110 = vrot.slane %v4106, 2
        %v4111 = vsel %vm739, %v4109, %v4110
        %4112 = vrot.lane.b32.xlu0 %v4111, 124
        %v4113 = vpop.permute.xlu0 %4112
        %4114 = vrot.lane.b32.xlu0 %v4110, 124
        %v4115 = vpop.permute.xlu0 %4114
        %v4118 = vadd.f32 %v4050, %v4113
        %v4119 = vadd.f32 %v4051, %v4115
        %s4120 = sld [smem:[#allocation2 + $0x108]]
        %v4121 = vstv %s4120
        %v4122 = vmul.f32 %v4121, %v3256
        %v4123 = vmul.f32 %v4121, %v3257
        %v4126 = vrot.slane %v4122, 2
        %v4127 = vrot.slane %v4123, 2
        %v4128 = vsel %vm739, %v4126, %v4127
        %4129 = vrot.lane.b32.xlu0 %v4128, 124
        %v4130 = vpop.permute.xlu0 %4129
        %4131 = vrot.lane.b32.xlu0 %v4127, 124
        %v4132 = vpop.permute.xlu0 %4131
        %v4135 = vadd.f32 %v4067, %v4130
        %v4136 = vadd.f32 %v4068, %v4132
        %s4137 = sld [smem:[#allocation2 + $0x16c]]
        %v4138 = vstv %s4137
        %v4139 = vmul.f32 %v4138, %v3256
        %v4140 = vmul.f32 %v4138, %v3257
        %v4143 = vrot.slane %v4139, 2
        %v4144 = vrot.slane %v4140, 2
        %v4145 = vsel %vm739, %v4143, %v4144
        %4146 = vrot.lane.b32.xlu0 %v4145, 124
        %v4147 = vpop.permute.xlu0 %4146
        %4148 = vrot.lane.b32.xlu0 %v4144, 124
        %v4149 = vpop.permute.xlu0 %4148
        %v4152 = vadd.f32 %v4084, %v4147
        %v4153 = vadd.f32 %v4085, %v4149
        %s4154 = sld [smem:[#allocation2 + $0x41]]
        %v4155 = vstv %s4154
        %v4156 = vmul.f32 %v4155, %v3256
        %v4157 = vmul.f32 %v4155, %v3257
        %v4160 = vrot.slane %v4156, 3
        %v4161 = vrot.slane %v4157, 3
        %v4162 = vsel %vm1064, %v4160, %v4161
        %v4165 = vadd.f32 %v4101, %v4162
        %v4166 = vadd.f32 %v4102, %v4161
        %s4167 = sld [smem:[#allocation2 + $0xa5]]
        %v4168 = vstv %s4167
        %v4169 = vmul.f32 %v4168, %v3256
        %v4170 = vmul.f32 %v4168, %v3257
        %v4173 = vrot.slane %v4169, 3
        %v4174 = vrot.slane %v4170, 3
        %v4175 = vsel %vm1064, %v4173, %v4174
        %v4178 = vadd.f32 %v4118, %v4175
        %v4179 = vadd.f32 %v4119, %v4174
        %s4180 = sld [smem:[#allocation2 + $0x109]]
        %v4181 = vstv %s4180
        %v4182 = vmul.f32 %v4181, %v3256
        %v4183 = vmul.f32 %v4181, %v3257
        %v4186 = vrot.slane %v4182, 3
        %v4187 = vrot.slane %v4183, 3
        %v4188 = vsel %vm1064, %v4186, %v4187
        %v4191 = vadd.f32 %v4135, %v4188
        %v4192 = vadd.f32 %v4136, %v4187
        %s4193 = sld [smem:[#allocation2 + $0x16d]]
        %v4194 = vstv %s4193
        %v4195 = vmul.f32 %v4194, %v3256
        %v4196 = vmul.f32 %v4194, %v3257
        %v4199 = vrot.slane %v4195, 3
        %v4200 = vrot.slane %v4196, 3
        %v4201 = vsel %vm1064, %v4199, %v4200
        %v4204 = vadd.f32 %v4152, %v4201
        %v4205 = vadd.f32 %v4153, %v4200
        %s4206 = sld [smem:[#allocation2 + $0x42]]
        %v4207 = vstv %s4206
        %v4208 = vmul.f32 %v4207, %v3256
        %v4209 = vmul.f32 %v4207, %v3257
        %v4212 = vrot.slane %v4208, 3
        %v4213 = vrot.slane %v4209, 3
        %v4214 = vsel %vm1064, %v4212, %v4213
        %4215 = vrot.lane.b32.xlu0 %v4214, 127
        %v4216 = vpop.permute.xlu0 %4215
        %4217 = vrot.lane.b32.xlu0 %v4213, 127
        %v4218 = vpop.permute.xlu0 %4217
        %v4221 = vadd.f32 %v4165, %v4216
        %v4222 = vadd.f32 %v4166, %v4218
        %s4223 = sld [smem:[#allocation2 + $0xa6]]
        %v4224 = vstv %s4223
        %v4225 = vmul.f32 %v4224, %v3256
        %v4226 = vmul.f32 %v4224, %v3257
        %v4229 = vrot.slane %v4225, 3
        %v4230 = vrot.slane %v4226, 3
        %v4231 = vsel %vm1064, %v4229, %v4230
        %4232 = vrot.lane.b32.xlu0 %v4231, 127
        %v4233 = vpop.permute.xlu0 %4232
        %4234 = vrot.lane.b32.xlu0 %v4230, 127
        %v4235 = vpop.permute.xlu0 %4234
        %v4238 = vadd.f32 %v4178, %v4233
        %v4239 = vadd.f32 %v4179, %v4235
        %s4240 = sld [smem:[#allocation2 + $0x10a]]
        %v4241 = vstv %s4240
        %v4242 = vmul.f32 %v4241, %v3256
        %v4243 = vmul.f32 %v4241, %v3257
        %v4246 = vrot.slane %v4242, 3
        %v4247 = vrot.slane %v4243, 3
        %v4248 = vsel %vm1064, %v4246, %v4247
        %4249 = vrot.lane.b32.xlu0 %v4248, 127
        %v4250 = vpop.permute.xlu0 %4249
        %4251 = vrot.lane.b32.xlu0 %v4247, 127
        %v4252 = vpop.permute.xlu0 %4251
        %v4255 = vadd.f32 %v4191, %v4250
        %v4256 = vadd.f32 %v4192, %v4252
        %s4257 = sld [smem:[#allocation2 + $0x16e]]
        %v4258 = vstv %s4257
        %v4259 = vmul.f32 %v4258, %v3256
        %v4260 = vmul.f32 %v4258, %v3257
        %v4263 = vrot.slane %v4259, 3
        %v4264 = vrot.slane %v4260, 3
        %v4265 = vsel %vm1064, %v4263, %v4264
        %4266 = vrot.lane.b32.xlu0 %v4265, 127
        %v4267 = vpop.permute.xlu0 %4266
        %4268 = vrot.lane.b32.xlu0 %v4264, 127
        %v4269 = vpop.permute.xlu0 %4268
        %v4272 = vadd.f32 %v4204, %v4267
        %v4273 = vadd.f32 %v4205, %v4269
        %s4274 = sld [smem:[#allocation2 + $0x43]]
        %v4275 = vstv %s4274
        %v4276 = vmul.f32 %v4275, %v3256
        %v4277 = vmul.f32 %v4275, %v3257
        %v4280 = vrot.slane %v4276, 3
        %v4281 = vrot.slane %v4277, 3
        %v4282 = vsel %vm1064, %v4280, %v4281
        %4283 = vrot.lane.b32.xlu0 %v4282, 126
        %v4284 = vpop.permute.xlu0 %4283
        %4285 = vrot.lane.b32.xlu0 %v4281, 126
        %v4286 = vpop.permute.xlu0 %4285
        %v4289 = vadd.f32 %v4221, %v4284
        %v4290 = vadd.f32 %v4222, %v4286
        %s4291 = sld [smem:[#allocation2 + $0xa7]]
        %v4292 = vstv %s4291
        %v4293 = vmul.f32 %v4292, %v3256
        %v4294 = vmul.f32 %v4292, %v3257
        %v4297 = vrot.slane %v4293, 3
        %v4298 = vrot.slane %v4294, 3
        %v4299 = vsel %vm1064, %v4297, %v4298
        %4300 = vrot.lane.b32.xlu0 %v4299, 126
        %v4301 = vpop.permute.xlu0 %4300
        %4302 = vrot.lane.b32.xlu0 %v4298, 126
        %v4303 = vpop.permute.xlu0 %4302
        %v4306 = vadd.f32 %v4238, %v4301
        %v4307 = vadd.f32 %v4239, %v4303
        %s4308 = sld [smem:[#allocation2 + $0x10b]]
        %v4309 = vstv %s4308
        %v4310 = vmul.f32 %v4309, %v3256
        %v4311 = vmul.f32 %v4309, %v3257
        %v4314 = vrot.slane %v4310, 3
        %v4315 = vrot.slane %v4311, 3
        %v4316 = vsel %vm1064, %v4314, %v4315
        %4317 = vrot.lane.b32.xlu0 %v4316, 126
        %v4318 = vpop.permute.xlu0 %4317
        %4319 = vrot.lane.b32.xlu0 %v4315, 126
        %v4320 = vpop.permute.xlu0 %4319
        %v4323 = vadd.f32 %v4255, %v4318
        %v4324 = vadd.f32 %v4256, %v4320
        %s4325 = sld [smem:[#allocation2 + $0x16f]]
        %v4326 = vstv %s4325
        %v4327 = vmul.f32 %v4326, %v3256
        %v4328 = vmul.f32 %v4326, %v3257
        %v4331 = vrot.slane %v4327, 3
        %v4332 = vrot.slane %v4328, 3
        %v4333 = vsel %vm1064, %v4331, %v4332
        %4334 = vrot.lane.b32.xlu0 %v4333, 126
        %v4335 = vpop.permute.xlu0 %4334
        %4336 = vrot.lane.b32.xlu0 %v4332, 126
        %v4337 = vpop.permute.xlu0 %4336
        %v4340 = vadd.f32 %v4272, %v4335
        %v4341 = vadd.f32 %v4273, %v4337
        %s4342 = sld [smem:[#allocation2 + $0x44]]
        %v4343 = vstv %s4342
        %v4344 = vmul.f32 %v4343, %v3256
        %v4345 = vmul.f32 %v4343, %v3257
        %v4348 = vrot.slane %v4344, 3
        %v4349 = vrot.slane %v4345, 3
        %v4350 = vsel %vm1064, %v4348, %v4349
        %4351 = vrot.lane.b32.xlu0 %v4350, 125
        %v4352 = vpop.permute.xlu0 %4351
        %4353 = vrot.lane.b32.xlu0 %v4349, 125
        %v4354 = vpop.permute.xlu0 %4353
        %v4357 = vadd.f32 %v4289, %v4352
        %v4358 = vadd.f32 %v4290, %v4354
        %s4359 = sld [smem:[#allocation2 + $0xa8]]
        %v4360 = vstv %s4359
        %v4361 = vmul.f32 %v4360, %v3256
        %v4362 = vmul.f32 %v4360, %v3257
        %v4365 = vrot.slane %v4361, 3
        %v4366 = vrot.slane %v4362, 3
        %v4367 = vsel %vm1064, %v4365, %v4366
        %4368 = vrot.lane.b32.xlu0 %v4367, 125
        %v4369 = vpop.permute.xlu0 %4368
        %4370 = vrot.lane.b32.xlu0 %v4366, 125
        %v4371 = vpop.permute.xlu0 %4370
        %v4374 = vadd.f32 %v4306, %v4369
        %v4375 = vadd.f32 %v4307, %v4371
        %s4376 = sld [smem:[#allocation2 + $0x10c]]
        %v4377 = vstv %s4376
        %v4378 = vmul.f32 %v4377, %v3256
        %v4379 = vmul.f32 %v4377, %v3257
        %v4382 = vrot.slane %v4378, 3
        %v4383 = vrot.slane %v4379, 3
        %v4384 = vsel %vm1064, %v4382, %v4383
        %4385 = vrot.lane.b32.xlu0 %v4384, 125
        %v4386 = vpop.permute.xlu0 %4385
        %4387 = vrot.lane.b32.xlu0 %v4383, 125
        %v4388 = vpop.permute.xlu0 %4387
        %v4391 = vadd.f32 %v4323, %v4386
        %v4392 = vadd.f32 %v4324, %v4388
        %s4393 = sld [smem:[#allocation2 + $0x170]]
        %v4394 = vstv %s4393
        %v4395 = vmul.f32 %v4394, %v3256
        %v4396 = vmul.f32 %v4394, %v3257
        %v4399 = vrot.slane %v4395, 3
        %v4400 = vrot.slane %v4396, 3
        %v4401 = vsel %vm1064, %v4399, %v4400
        %4402 = vrot.lane.b32.xlu0 %v4401, 125
        %v4403 = vpop.permute.xlu0 %4402
        %4404 = vrot.lane.b32.xlu0 %v4400, 125
        %v4405 = vpop.permute.xlu0 %4404
        %v4408 = vadd.f32 %v4340, %v4403
        %v4409 = vadd.f32 %v4341, %v4405
        %s4410 = sld [smem:[#allocation2 + $0x45]]
        %v4411 = vstv %s4410
        %v4412 = vmul.f32 %v4411, %v3256
        %v4413 = vmul.f32 %v4411, %v3257
        %v4416 = vrot.slane %v4412, 3
        %v4417 = vrot.slane %v4413, 3
        %v4418 = vsel %vm1064, %v4416, %v4417
        %4419 = vrot.lane.b32.xlu0 %v4418, 124
        %v4420 = vpop.permute.xlu0 %4419
        %4421 = vrot.lane.b32.xlu0 %v4417, 124
        %v4422 = vpop.permute.xlu0 %4421
        %v4425 = vadd.f32 %v4357, %v4420
        %v4426 = vadd.f32 %v4358, %v4422
        %s4427 = sld [smem:[#allocation2 + $0xa9]]
        %v4428 = vstv %s4427
        %v4429 = vmul.f32 %v4428, %v3256
        %v4430 = vmul.f32 %v4428, %v3257
        %v4433 = vrot.slane %v4429, 3
        %v4434 = vrot.slane %v4430, 3
        %v4435 = vsel %vm1064, %v4433, %v4434
        %4436 = vrot.lane.b32.xlu0 %v4435, 124
        %v4437 = vpop.permute.xlu0 %4436
        %4438 = vrot.lane.b32.xlu0 %v4434, 124
        %v4439 = vpop.permute.xlu0 %4438
        %v4442 = vadd.f32 %v4374, %v4437
        %v4443 = vadd.f32 %v4375, %v4439
        %s4444 = sld [smem:[#allocation2 + $0x10d]]
        %v4445 = vstv %s4444
        %v4446 = vmul.f32 %v4445, %v3256
        %v4447 = vmul.f32 %v4445, %v3257
        %v4450 = vrot.slane %v4446, 3
        %v4451 = vrot.slane %v4447, 3
        %v4452 = vsel %vm1064, %v4450, %v4451
        %4453 = vrot.lane.b32.xlu0 %v4452, 124
        %v4454 = vpop.permute.xlu0 %4453
        %4455 = vrot.lane.b32.xlu0 %v4451, 124
        %v4456 = vpop.permute.xlu0 %4455
        %v4459 = vadd.f32 %v4391, %v4454
        %v4460 = vadd.f32 %v4392, %v4456
        %s4461 = sld [smem:[#allocation2 + $0x171]]
        %v4462 = vstv %s4461
        %v4463 = vmul.f32 %v4462, %v3256
        %v4464 = vmul.f32 %v4462, %v3257
        %v4467 = vrot.slane %v4463, 3
        %v4468 = vrot.slane %v4464, 3
        %v4469 = vsel %vm1064, %v4467, %v4468
        %4470 = vrot.lane.b32.xlu0 %v4469, 124
        %v4471 = vpop.permute.xlu0 %4470
        %4472 = vrot.lane.b32.xlu0 %v4468, 124
        %v4473 = vpop.permute.xlu0 %4472
        %v4476 = vadd.f32 %v4408, %v4471
        %v4477 = vadd.f32 %v4409, %v4473
        %s4478 = sld [smem:[#allocation2 + $0x46]]
        %v4479 = vstv %s4478
        %v4480 = vmul.f32 %v4479, %v3256
        %v4481 = vmul.f32 %v4479, %v3257
        %v4484 = vrot.slane %v4480, 4
        %v4485 = vrot.slane %v4481, 4
        %v4486 = vsel %vm1389, %v4484, %v4485
        %v4489 = vadd.f32 %v4425, %v4486
        %v4490 = vadd.f32 %v4426, %v4485
        %s4491 = sld [smem:[#allocation2 + $0xaa]]
        %v4492 = vstv %s4491
        %v4493 = vmul.f32 %v4492, %v3256
        %v4494 = vmul.f32 %v4492, %v3257
        %v4497 = vrot.slane %v4493, 4
        %v4498 = vrot.slane %v4494, 4
        %v4499 = vsel %vm1389, %v4497, %v4498
        %v4502 = vadd.f32 %v4442, %v4499
        %v4503 = vadd.f32 %v4443, %v4498
        %s4504 = sld [smem:[#allocation2 + $0x10e]]
        %v4505 = vstv %s4504
        %v4506 = vmul.f32 %v4505, %v3256
        %v4507 = vmul.f32 %v4505, %v3257
        %v4510 = vrot.slane %v4506, 4
        %v4511 = vrot.slane %v4507, 4
        %v4512 = vsel %vm1389, %v4510, %v4511
        %v4515 = vadd.f32 %v4459, %v4512
        %v4516 = vadd.f32 %v4460, %v4511
        %s4517 = sld [smem:[#allocation2 + $0x172]]
        %v4518 = vstv %s4517
        %v4519 = vmul.f32 %v4518, %v3256
        %v4520 = vmul.f32 %v4518, %v3257
        %v4523 = vrot.slane %v4519, 4
        %v4524 = vrot.slane %v4520, 4
        %v4525 = vsel %vm1389, %v4523, %v4524
        %v4528 = vadd.f32 %v4476, %v4525
        %v4529 = vadd.f32 %v4477, %v4524
        %s4530 = sld [smem:[#allocation2 + $0x47]]
        %v4531 = vstv %s4530
        %v4532 = vmul.f32 %v4531, %v3256
        %v4533 = vmul.f32 %v4531, %v3257
        %v4536 = vrot.slane %v4532, 4
        %v4537 = vrot.slane %v4533, 4
        %v4538 = vsel %vm1389, %v4536, %v4537
        %4539 = vrot.lane.b32.xlu0 %v4538, 127
        %v4540 = vpop.permute.xlu0 %4539
        %4541 = vrot.lane.b32.xlu0 %v4537, 127
        %v4542 = vpop.permute.xlu0 %4541
        %v4545 = vadd.f32 %v4489, %v4540
        %v4546 = vadd.f32 %v4490, %v4542
        %s4547 = sld [smem:[#allocation2 + $0xab]]
        %v4548 = vstv %s4547
        %v4549 = vmul.f32 %v4548, %v3256
        %v4550 = vmul.f32 %v4548, %v3257
        %v4553 = vrot.slane %v4549, 4
        %v4554 = vrot.slane %v4550, 4
        %v4555 = vsel %vm1389, %v4553, %v4554
        %4556 = vrot.lane.b32.xlu0 %v4555, 127
        %v4557 = vpop.permute.xlu0 %4556
        %4558 = vrot.lane.b32.xlu0 %v4554, 127
        %v4559 = vpop.permute.xlu0 %4558
        %v4562 = vadd.f32 %v4502, %v4557
        %v4563 = vadd.f32 %v4503, %v4559
        %s4564 = sld [smem:[#allocation2 + $0x10f]]
        %v4565 = vstv %s4564
        %v4566 = vmul.f32 %v4565, %v3256
        %v4567 = vmul.f32 %v4565, %v3257
        %v4570 = vrot.slane %v4566, 4
        %v4571 = vrot.slane %v4567, 4
        %v4572 = vsel %vm1389, %v4570, %v4571
        %4573 = vrot.lane.b32.xlu0 %v4572, 127
        %v4574 = vpop.permute.xlu0 %4573
        %4575 = vrot.lane.b32.xlu0 %v4571, 127
        %v4576 = vpop.permute.xlu0 %4575
        %v4579 = vadd.f32 %v4515, %v4574
        %v4580 = vadd.f32 %v4516, %v4576
        %s4581 = sld [smem:[#allocation2 + $0x173]]
        %v4582 = vstv %s4581
        %v4583 = vmul.f32 %v4582, %v3256
        %v4584 = vmul.f32 %v4582, %v3257
        %v4587 = vrot.slane %v4583, 4
        %v4588 = vrot.slane %v4584, 4
        %v4589 = vsel %vm1389, %v4587, %v4588
        %4590 = vrot.lane.b32.xlu0 %v4589, 127
        %v4591 = vpop.permute.xlu0 %4590
        %4592 = vrot.lane.b32.xlu0 %v4588, 127
        %v4593 = vpop.permute.xlu0 %4592
        %v4596 = vadd.f32 %v4528, %v4591
        %v4597 = vadd.f32 %v4529, %v4593
        %s4598 = sld [smem:[#allocation2 + $0x48]]
        %v4599 = vstv %s4598
        %v4600 = vmul.f32 %v4599, %v3256
        %v4601 = vmul.f32 %v4599, %v3257
        %v4604 = vrot.slane %v4600, 4
        %v4605 = vrot.slane %v4601, 4
        %v4606 = vsel %vm1389, %v4604, %v4605
        %4607 = vrot.lane.b32.xlu0 %v4606, 126
        %v4608 = vpop.permute.xlu0 %4607
        %4609 = vrot.lane.b32.xlu0 %v4605, 126
        %v4610 = vpop.permute.xlu0 %4609
        %v4613 = vadd.f32 %v4545, %v4608
        %v4614 = vadd.f32 %v4546, %v4610
        %s4615 = sld [smem:[#allocation2 + $0xac]]
        %v4616 = vstv %s4615
        %v4617 = vmul.f32 %v4616, %v3256
        %v4618 = vmul.f32 %v4616, %v3257
        %v4621 = vrot.slane %v4617, 4
        %v4622 = vrot.slane %v4618, 4
        %v4623 = vsel %vm1389, %v4621, %v4622
        %4624 = vrot.lane.b32.xlu0 %v4623, 126
        %v4625 = vpop.permute.xlu0 %4624
        %4626 = vrot.lane.b32.xlu0 %v4622, 126
        %v4627 = vpop.permute.xlu0 %4626
        %v4630 = vadd.f32 %v4562, %v4625
        %v4631 = vadd.f32 %v4563, %v4627
        %s4632 = sld [smem:[#allocation2 + $0x110]]
        %v4633 = vstv %s4632
        %v4634 = vmul.f32 %v4633, %v3256
        %v4635 = vmul.f32 %v4633, %v3257
        %v4638 = vrot.slane %v4634, 4
        %v4639 = vrot.slane %v4635, 4
        %v4640 = vsel %vm1389, %v4638, %v4639
        %4641 = vrot.lane.b32.xlu0 %v4640, 126
        %v4642 = vpop.permute.xlu0 %4641
        %4643 = vrot.lane.b32.xlu0 %v4639, 126
        %v4644 = vpop.permute.xlu0 %4643
        %v4647 = vadd.f32 %v4579, %v4642
        %v4648 = vadd.f32 %v4580, %v4644
        %s4649 = sld [smem:[#allocation2 + $0x174]]
        %v4650 = vstv %s4649
        %v4651 = vmul.f32 %v4650, %v3256
        %v4652 = vmul.f32 %v4650, %v3257
        %v4655 = vrot.slane %v4651, 4
        %v4656 = vrot.slane %v4652, 4
        %v4657 = vsel %vm1389, %v4655, %v4656
        %4658 = vrot.lane.b32.xlu0 %v4657, 126
        %v4659 = vpop.permute.xlu0 %4658
        %4660 = vrot.lane.b32.xlu0 %v4656, 126
        %v4661 = vpop.permute.xlu0 %4660
        %v4664 = vadd.f32 %v4596, %v4659
        %v4665 = vadd.f32 %v4597, %v4661
        %s4666 = sld [smem:[#allocation2 + $0x49]]
        %v4667 = vstv %s4666
        %v4668 = vmul.f32 %v4667, %v3256
        %v4669 = vmul.f32 %v4667, %v3257
        %v4672 = vrot.slane %v4668, 4
        %v4673 = vrot.slane %v4669, 4
        %v4674 = vsel %vm1389, %v4672, %v4673
        %4675 = vrot.lane.b32.xlu0 %v4674, 125
        %v4676 = vpop.permute.xlu0 %4675
        %4677 = vrot.lane.b32.xlu0 %v4673, 125
        %v4678 = vpop.permute.xlu0 %4677
        %v4681 = vadd.f32 %v4613, %v4676
        %v4682 = vadd.f32 %v4614, %v4678
        %s4683 = sld [smem:[#allocation2 + $0xad]]
        %v4684 = vstv %s4683
        %v4685 = vmul.f32 %v4684, %v3256
        %v4686 = vmul.f32 %v4684, %v3257
        %v4689 = vrot.slane %v4685, 4
        %v4690 = vrot.slane %v4686, 4
        %v4691 = vsel %vm1389, %v4689, %v4690
        %4692 = vrot.lane.b32.xlu0 %v4691, 125
        %v4693 = vpop.permute.xlu0 %4692
        %4694 = vrot.lane.b32.xlu0 %v4690, 125
        %v4695 = vpop.permute.xlu0 %4694
        %v4698 = vadd.f32 %v4630, %v4693
        %v4699 = vadd.f32 %v4631, %v4695
        %s4700 = sld [smem:[#allocation2 + $0x111]]
        %v4701 = vstv %s4700
        %v4702 = vmul.f32 %v4701, %v3256
        %v4703 = vmul.f32 %v4701, %v3257
        %v4706 = vrot.slane %v4702, 4
        %v4707 = vrot.slane %v4703, 4
        %v4708 = vsel %vm1389, %v4706, %v4707
        %4709 = vrot.lane.b32.xlu0 %v4708, 125
        %v4710 = vpop.permute.xlu0 %4709
        %4711 = vrot.lane.b32.xlu0 %v4707, 125
        %v4712 = vpop.permute.xlu0 %4711
        %v4715 = vadd.f32 %v4647, %v4710
        %v4716 = vadd.f32 %v4648, %v4712
        %s4717 = sld [smem:[#allocation2 + $0x175]]
        %v4718 = vstv %s4717
        %v4719 = vmul.f32 %v4718, %v3256
        %v4720 = vmul.f32 %v4718, %v3257
        %v4723 = vrot.slane %v4719, 4
        %v4724 = vrot.slane %v4720, 4
        %v4725 = vsel %vm1389, %v4723, %v4724
        %4726 = vrot.lane.b32.xlu0 %v4725, 125
        %v4727 = vpop.permute.xlu0 %4726
        %4728 = vrot.lane.b32.xlu0 %v4724, 125
        %v4729 = vpop.permute.xlu0 %4728
        %v4732 = vadd.f32 %v4664, %v4727
        %v4733 = vadd.f32 %v4665, %v4729
        %s4734 = sld [smem:[#allocation2 + $0x4a]]
        %v4735 = vstv %s4734
        %v4736 = vmul.f32 %v4735, %v3256
        %v4737 = vmul.f32 %v4735, %v3257
        %v4740 = vrot.slane %v4736, 4
        %v4741 = vrot.slane %v4737, 4
        %v4742 = vsel %vm1389, %v4740, %v4741
        %4743 = vrot.lane.b32.xlu0 %v4742, 124
        %v4744 = vpop.permute.xlu0 %4743
        %4745 = vrot.lane.b32.xlu0 %v4741, 124
        %v4746 = vpop.permute.xlu0 %4745
        %v4749 = vadd.f32 %v4681, %v4744
        %v4750 = vadd.f32 %v4682, %v4746
        %s4751 = sld [smem:[#allocation2 + $0xae]]
        %v4752 = vstv %s4751
        %v4753 = vmul.f32 %v4752, %v3256
        %v4754 = vmul.f32 %v4752, %v3257
        %v4757 = vrot.slane %v4753, 4
        %v4758 = vrot.slane %v4754, 4
        %v4759 = vsel %vm1389, %v4757, %v4758
        %4760 = vrot.lane.b32.xlu0 %v4759, 124
        %v4761 = vpop.permute.xlu0 %4760
        %4762 = vrot.lane.b32.xlu0 %v4758, 124
        %v4763 = vpop.permute.xlu0 %4762
        %v4766 = vadd.f32 %v4698, %v4761
        %v4767 = vadd.f32 %v4699, %v4763
        %s4768 = sld [smem:[#allocation2 + $0x112]]
        %v4769 = vstv %s4768
        %v4770 = vmul.f32 %v4769, %v3256
        %v4771 = vmul.f32 %v4769, %v3257
        %v4774 = vrot.slane %v4770, 4
        %v4775 = vrot.slane %v4771, 4
        %v4776 = vsel %vm1389, %v4774, %v4775
        %4777 = vrot.lane.b32.xlu0 %v4776, 124
        %v4778 = vpop.permute.xlu0 %4777
        %4779 = vrot.lane.b32.xlu0 %v4775, 124
        %v4780 = vpop.permute.xlu0 %4779
        %v4783 = vadd.f32 %v4715, %v4778
        %v4784 = vadd.f32 %v4716, %v4780
        %s4785 = sld [smem:[#allocation2 + $0x176]]
        %v4786 = vstv %s4785
        %v4787 = vmul.f32 %v4786, %v3256
        %v4788 = vmul.f32 %v4786, %v3257
        %v4791 = vrot.slane %v4787, 4
        %v4792 = vrot.slane %v4788, 4
        %v4793 = vsel %vm1389, %v4791, %v4792
        %4794 = vrot.lane.b32.xlu0 %v4793, 124
        %v4795 = vpop.permute.xlu0 %4794
        %4796 = vrot.lane.b32.xlu0 %v4792, 124
        %v4797 = vpop.permute.xlu0 %4796
        %v4800 = vadd.f32 %v4732, %v4795
        %v4801 = vadd.f32 %v4733, %v4797
        %s4802 = scalar_lea.vmem %s152, 48
        %v4803 = vld [vmem:[%s4802] sm:$0xff]
        %v4804 = vld [vmem:[%s4802 + $0x8] sm:$0xff]
        %s4805 = sld [smem:[#allocation2 + $0x4b]]
        %v4806 = vstv %s4805
        %v4807 = vmul.f32 %v4806, %v4803
        %v4808 = vmul.f32 %v4806, %v4804
        %v4809 = vadd.f32 %v4749, %v4807
        %v4810 = vadd.f32 %v4750, %v4808
        %s4811 = sld [smem:[#allocation2 + $0xaf]]
        %v4812 = vstv %s4811
        %v4813 = vmul.f32 %v4812, %v4803
        %v4814 = vmul.f32 %v4812, %v4804
        %v4815 = vadd.f32 %v4766, %v4813
        %v4816 = vadd.f32 %v4767, %v4814
        %s4817 = sld [smem:[#allocation2 + $0x113]]
        %v4818 = vstv %s4817
        %v4819 = vmul.f32 %v4818, %v4803
        %v4820 = vmul.f32 %v4818, %v4804
        %v4821 = vadd.f32 %v4783, %v4819
        %v4822 = vadd.f32 %v4784, %v4820
        %s4823 = sld [smem:[#allocation2 + $0x177]]
        %v4824 = vstv %s4823
        %v4825 = vmul.f32 %v4824, %v4803
        %v4826 = vmul.f32 %v4824, %v4804
        %v4827 = vadd.f32 %v4800, %v4825
        %v4828 = vadd.f32 %v4801, %v4826
        %s4829 = sld [smem:[#allocation2 + $0x4c]]
        %v4830 = vstv %s4829
        %v4831 = vmul.f32 %v4830, %v4803
        %v4832 = vmul.f32 %v4830, %v4804
        %4835 = vrot.lane.b32.xlu0 %v4831, 127
        %v4836 = vpop.permute.xlu0 %4835
        %4837 = vrot.lane.b32.xlu0 %v4832, 127
        %v4838 = vpop.permute.xlu0 %4837
        %v4841 = vadd.f32 %v4809, %v4836
        %v4842 = vadd.f32 %v4810, %v4838
        %s4843 = sld [smem:[#allocation2 + $0xb0]]
        %v4844 = vstv %s4843
        %v4845 = vmul.f32 %v4844, %v4803
        %v4846 = vmul.f32 %v4844, %v4804
        %4849 = vrot.lane.b32.xlu0 %v4845, 127
        %v4850 = vpop.permute.xlu0 %4849
        %4851 = vrot.lane.b32.xlu0 %v4846, 127
        %v4852 = vpop.permute.xlu0 %4851
        %v4855 = vadd.f32 %v4815, %v4850
        %v4856 = vadd.f32 %v4816, %v4852
        %s4857 = sld [smem:[#allocation2 + $0x114]]
        %v4858 = vstv %s4857
        %v4859 = vmul.f32 %v4858, %v4803
        %v4860 = vmul.f32 %v4858, %v4804
        %4863 = vrot.lane.b32.xlu0 %v4859, 127
        %v4864 = vpop.permute.xlu0 %4863
        %4865 = vrot.lane.b32.xlu0 %v4860, 127
        %v4866 = vpop.permute.xlu0 %4865
        %v4869 = vadd.f32 %v4821, %v4864
        %v4870 = vadd.f32 %v4822, %v4866
        %s4871 = sld [smem:[#allocation2 + $0x178]]
        %v4872 = vstv %s4871
        %v4873 = vmul.f32 %v4872, %v4803
        %v4874 = vmul.f32 %v4872, %v4804
        %4877 = vrot.lane.b32.xlu0 %v4873, 127
        %v4878 = vpop.permute.xlu0 %4877
        %4879 = vrot.lane.b32.xlu0 %v4874, 127
        %v4880 = vpop.permute.xlu0 %4879
        %v4883 = vadd.f32 %v4827, %v4878
        %v4884 = vadd.f32 %v4828, %v4880
        %s4885 = sld [smem:[#allocation2 + $0x4d]]
        %v4886 = vstv %s4885
        %v4887 = vmul.f32 %v4886, %v4803
        %v4888 = vmul.f32 %v4886, %v4804
        %4891 = vrot.lane.b32.xlu0 %v4887, 126
        %v4892 = vpop.permute.xlu0 %4891
        %4893 = vrot.lane.b32.xlu0 %v4888, 126
        %v4894 = vpop.permute.xlu0 %4893
        %v4897 = vadd.f32 %v4841, %v4892
        %v4898 = vadd.f32 %v4842, %v4894
        %s4899 = sld [smem:[#allocation2 + $0xb1]]
        %v4900 = vstv %s4899
        %v4901 = vmul.f32 %v4900, %v4803
        %v4902 = vmul.f32 %v4900, %v4804
        %4905 = vrot.lane.b32.xlu0 %v4901, 126
        %v4906 = vpop.permute.xlu0 %4905
        %4907 = vrot.lane.b32.xlu0 %v4902, 126
        %v4908 = vpop.permute.xlu0 %4907
        %v4911 = vadd.f32 %v4855, %v4906
        %v4912 = vadd.f32 %v4856, %v4908
        %s4913 = sld [smem:[#allocation2 + $0x115]]
        %v4914 = vstv %s4913
        %v4915 = vmul.f32 %v4914, %v4803
        %v4916 = vmul.f32 %v4914, %v4804
        %4919 = vrot.lane.b32.xlu0 %v4915, 126
        %v4920 = vpop.permute.xlu0 %4919
        %4921 = vrot.lane.b32.xlu0 %v4916, 126
        %v4922 = vpop.permute.xlu0 %4921
        %v4925 = vadd.f32 %v4869, %v4920
        %v4926 = vadd.f32 %v4870, %v4922
        %s4927 = sld [smem:[#allocation2 + $0x179]]
        %v4928 = vstv %s4927
        %v4929 = vmul.f32 %v4928, %v4803
        %v4930 = vmul.f32 %v4928, %v4804
        %4933 = vrot.lane.b32.xlu0 %v4929, 126
        %v4934 = vpop.permute.xlu0 %4933
        %4935 = vrot.lane.b32.xlu0 %v4930, 126
        %v4936 = vpop.permute.xlu0 %4935
        %v4939 = vadd.f32 %v4883, %v4934
        %v4940 = vadd.f32 %v4884, %v4936
        %s4941 = sld [smem:[#allocation2 + $0x4e]]
        %v4942 = vstv %s4941
        %v4943 = vmul.f32 %v4942, %v4803
        %v4944 = vmul.f32 %v4942, %v4804
        %4947 = vrot.lane.b32.xlu0 %v4943, 125
        %v4948 = vpop.permute.xlu0 %4947
        %4949 = vrot.lane.b32.xlu0 %v4944, 125
        %v4950 = vpop.permute.xlu0 %4949
        %v4953 = vadd.f32 %v4897, %v4948
        %v4954 = vadd.f32 %v4898, %v4950
        %s4955 = sld [smem:[#allocation2 + $0xb2]]
        %v4956 = vstv %s4955
        %v4957 = vmul.f32 %v4956, %v4803
        %v4958 = vmul.f32 %v4956, %v4804
        %4961 = vrot.lane.b32.xlu0 %v4957, 125
        %v4962 = vpop.permute.xlu0 %4961
        %4963 = vrot.lane.b32.xlu0 %v4958, 125
        %v4964 = vpop.permute.xlu0 %4963
        %v4967 = vadd.f32 %v4911, %v4962
        %v4968 = vadd.f32 %v4912, %v4964
        %s4969 = sld [smem:[#allocation2 + $0x116]]
        %v4970 = vstv %s4969
        %v4971 = vmul.f32 %v4970, %v4803
        %v4972 = vmul.f32 %v4970, %v4804
        %4975 = vrot.lane.b32.xlu0 %v4971, 125
        %v4976 = vpop.permute.xlu0 %4975
        %4977 = vrot.lane.b32.xlu0 %v4972, 125
        %v4978 = vpop.permute.xlu0 %4977
        %v4981 = vadd.f32 %v4925, %v4976
        %v4982 = vadd.f32 %v4926, %v4978
        %s4983 = sld [smem:[#allocation2 + $0x17a]]
        %v4984 = vstv %s4983
        %v4985 = vmul.f32 %v4984, %v4803
        %v4986 = vmul.f32 %v4984, %v4804
        %4989 = vrot.lane.b32.xlu0 %v4985, 125
        %v4990 = vpop.permute.xlu0 %4989
        %4991 = vrot.lane.b32.xlu0 %v4986, 125
        %v4992 = vpop.permute.xlu0 %4991
        %v4995 = vadd.f32 %v4939, %v4990
        %v4996 = vadd.f32 %v4940, %v4992
        %s4997 = sld [smem:[#allocation2 + $0x4f]]
        %v4998 = vstv %s4997
        %v4999 = vmul.f32 %v4998, %v4803
        %v5000 = vmul.f32 %v4998, %v4804
        %5003 = vrot.lane.b32.xlu0 %v4999, 124
        %v5004 = vpop.permute.xlu0 %5003
        %5005 = vrot.lane.b32.xlu0 %v5000, 124
        %v5006 = vpop.permute.xlu0 %5005
        %v5009 = vadd.f32 %v4953, %v5004
        %v5010 = vadd.f32 %v4954, %v5006
        %s5011 = sld [smem:[#allocation2 + $0xb3]]
        %v5012 = vstv %s5011
        %v5013 = vmul.f32 %v5012, %v4803
        %v5014 = vmul.f32 %v5012, %v4804
        %5017 = vrot.lane.b32.xlu0 %v5013, 124
        %v5018 = vpop.permute.xlu0 %5017
        %5019 = vrot.lane.b32.xlu0 %v5014, 124
        %v5020 = vpop.permute.xlu0 %5019
        %v5023 = vadd.f32 %v4967, %v5018
        %v5024 = vadd.f32 %v4968, %v5020
        %s5025 = sld [smem:[#allocation2 + $0x117]]
        %v5026 = vstv %s5025
        %v5027 = vmul.f32 %v5026, %v4803
        %v5028 = vmul.f32 %v5026, %v4804
        %5031 = vrot.lane.b32.xlu0 %v5027, 124
        %v5032 = vpop.permute.xlu0 %5031
        %5033 = vrot.lane.b32.xlu0 %v5028, 124
        %v5034 = vpop.permute.xlu0 %5033
        %v5037 = vadd.f32 %v4981, %v5032
        %v5038 = vadd.f32 %v4982, %v5034
        %s5039 = sld [smem:[#allocation2 + $0x17b]]
        %v5040 = vstv %s5039
        %v5041 = vmul.f32 %v5040, %v4803
        %v5042 = vmul.f32 %v5040, %v4804
        %5045 = vrot.lane.b32.xlu0 %v5041, 124
        %v5046 = vpop.permute.xlu0 %5045
        %5047 = vrot.lane.b32.xlu0 %v5042, 124
        %v5048 = vpop.permute.xlu0 %5047
        %v5051 = vadd.f32 %v4995, %v5046
        %v5052 = vadd.f32 %v4996, %v5048
        %s5053 = sld [smem:[#allocation2 + $0x50]]
        %v5054 = vstv %s5053
        %v5055 = vmul.f32 %v5054, %v4803
        %v5056 = vmul.f32 %v5054, %v4804
        %v5059 = vrot.slane %v5055, 1
        %v5060 = vrot.slane %v5056, 1
        %v5061 = vsel %vm414, %v5059, %v5060
        %v5064 = vadd.f32 %v5009, %v5061
        %v5065 = vadd.f32 %v5010, %v5060
        %s5066 = sld [smem:[#allocation2 + $0xb4]]
        %v5067 = vstv %s5066
        %v5068 = vmul.f32 %v5067, %v4803
        %v5069 = vmul.f32 %v5067, %v4804
        %v5072 = vrot.slane %v5068, 1
        %v5073 = vrot.slane %v5069, 1
        %v5074 = vsel %vm414, %v5072, %v5073
        %v5077 = vadd.f32 %v5023, %v5074
        %v5078 = vadd.f32 %v5024, %v5073
        %s5079 = sld [smem:[#allocation2 + $0x118]]
        %v5080 = vstv %s5079
        %v5081 = vmul.f32 %v5080, %v4803
        %v5082 = vmul.f32 %v5080, %v4804
        %v5085 = vrot.slane %v5081, 1
        %v5086 = vrot.slane %v5082, 1
        %v5087 = vsel %vm414, %v5085, %v5086
        %v5090 = vadd.f32 %v5037, %v5087
        %v5091 = vadd.f32 %v5038, %v5086
        %s5092 = sld [smem:[#allocation2 + $0x17c]]
        %v5093 = vstv %s5092
        %v5094 = vmul.f32 %v5093, %v4803
        %v5095 = vmul.f32 %v5093, %v4804
        %v5098 = vrot.slane %v5094, 1
        %v5099 = vrot.slane %v5095, 1
        %v5100 = vsel %vm414, %v5098, %v5099
        %v5103 = vadd.f32 %v5051, %v5100
        %v5104 = vadd.f32 %v5052, %v5099
        %s5105 = sld [smem:[#allocation2 + $0x51]]
        %v5106 = vstv %s5105
        %v5107 = vmul.f32 %v5106, %v4803
        %v5108 = vmul.f32 %v5106, %v4804
        %v5111 = vrot.slane %v5107, 1
        %v5112 = vrot.slane %v5108, 1
        %v5113 = vsel %vm414, %v5111, %v5112
        %5114 = vrot.lane.b32.xlu0 %v5113, 127
        %v5115 = vpop.permute.xlu0 %5114
        %5116 = vrot.lane.b32.xlu0 %v5112, 127
        %v5117 = vpop.permute.xlu0 %5116
        %v5120 = vadd.f32 %v5064, %v5115
        %v5121 = vadd.f32 %v5065, %v5117
        %s5122 = sld [smem:[#allocation2 + $0xb5]]
        %v5123 = vstv %s5122
        %v5124 = vmul.f32 %v5123, %v4803
        %v5125 = vmul.f32 %v5123, %v4804
        %v5128 = vrot.slane %v5124, 1
        %v5129 = vrot.slane %v5125, 1
        %v5130 = vsel %vm414, %v5128, %v5129
        %5131 = vrot.lane.b32.xlu0 %v5130, 127
        %v5132 = vpop.permute.xlu0 %5131
        %5133 = vrot.lane.b32.xlu0 %v5129, 127
        %v5134 = vpop.permute.xlu0 %5133
        %v5137 = vadd.f32 %v5077, %v5132
        %v5138 = vadd.f32 %v5078, %v5134
        %s5139 = sld [smem:[#allocation2 + $0x119]]
        %v5140 = vstv %s5139
        %v5141 = vmul.f32 %v5140, %v4803
        %v5142 = vmul.f32 %v5140, %v4804
        %v5145 = vrot.slane %v5141, 1
        %v5146 = vrot.slane %v5142, 1
        %v5147 = vsel %vm414, %v5145, %v5146
        %5148 = vrot.lane.b32.xlu0 %v5147, 127
        %v5149 = vpop.permute.xlu0 %5148
        %5150 = vrot.lane.b32.xlu0 %v5146, 127
        %v5151 = vpop.permute.xlu0 %5150
        %v5154 = vadd.f32 %v5090, %v5149
        %v5155 = vadd.f32 %v5091, %v5151
        %s5156 = sld [smem:[#allocation2 + $0x17d]]
        %v5157 = vstv %s5156
        %v5158 = vmul.f32 %v5157, %v4803
        %v5159 = vmul.f32 %v5157, %v4804
        %v5162 = vrot.slane %v5158, 1
        %v5163 = vrot.slane %v5159, 1
        %v5164 = vsel %vm414, %v5162, %v5163
        %5165 = vrot.lane.b32.xlu0 %v5164, 127
        %v5166 = vpop.permute.xlu0 %5165
        %5167 = vrot.lane.b32.xlu0 %v5163, 127
        %v5168 = vpop.permute.xlu0 %5167
        %v5171 = vadd.f32 %v5103, %v5166
        %v5172 = vadd.f32 %v5104, %v5168
        %s5173 = sld [smem:[#allocation2 + $0x52]]
        %v5174 = vstv %s5173
        %v5175 = vmul.f32 %v5174, %v4803
        %v5176 = vmul.f32 %v5174, %v4804
        %v5179 = vrot.slane %v5175, 1
        %v5180 = vrot.slane %v5176, 1
        %v5181 = vsel %vm414, %v5179, %v5180
        %5182 = vrot.lane.b32.xlu0 %v5181, 126
        %v5183 = vpop.permute.xlu0 %5182
        %5184 = vrot.lane.b32.xlu0 %v5180, 126
        %v5185 = vpop.permute.xlu0 %5184
        %v5188 = vadd.f32 %v5120, %v5183
        %v5189 = vadd.f32 %v5121, %v5185
        %s5190 = sld [smem:[#allocation2 + $0xb6]]
        %v5191 = vstv %s5190
        %v5192 = vmul.f32 %v5191, %v4803
        %v5193 = vmul.f32 %v5191, %v4804
        %v5196 = vrot.slane %v5192, 1
        %v5197 = vrot.slane %v5193, 1
        %v5198 = vsel %vm414, %v5196, %v5197
        %5199 = vrot.lane.b32.xlu0 %v5198, 126
        %v5200 = vpop.permute.xlu0 %5199
        %5201 = vrot.lane.b32.xlu0 %v5197, 126
        %v5202 = vpop.permute.xlu0 %5201
        %v5205 = vadd.f32 %v5137, %v5200
        %v5206 = vadd.f32 %v5138, %v5202
        %s5207 = sld [smem:[#allocation2 + $0x11a]]
        %v5208 = vstv %s5207
        %v5209 = vmul.f32 %v5208, %v4803
        %v5210 = vmul.f32 %v5208, %v4804
        %v5213 = vrot.slane %v5209, 1
        %v5214 = vrot.slane %v5210, 1
        %v5215 = vsel %vm414, %v5213, %v5214
        %5216 = vrot.lane.b32.xlu0 %v5215, 126
        %v5217 = vpop.permute.xlu0 %5216
        %5218 = vrot.lane.b32.xlu0 %v5214, 126
        %v5219 = vpop.permute.xlu0 %5218
        %v5222 = vadd.f32 %v5154, %v5217
        %v5223 = vadd.f32 %v5155, %v5219
        %s5224 = sld [smem:[#allocation2 + $0x17e]]
        %v5225 = vstv %s5224
        %v5226 = vmul.f32 %v5225, %v4803
        %v5227 = vmul.f32 %v5225, %v4804
        %v5230 = vrot.slane %v5226, 1
        %v5231 = vrot.slane %v5227, 1
        %v5232 = vsel %vm414, %v5230, %v5231
        %5233 = vrot.lane.b32.xlu0 %v5232, 126
        %v5234 = vpop.permute.xlu0 %5233
        %5235 = vrot.lane.b32.xlu0 %v5231, 126
        %v5236 = vpop.permute.xlu0 %5235
        %v5239 = vadd.f32 %v5171, %v5234
        %v5240 = vadd.f32 %v5172, %v5236
        %s5241 = sld [smem:[#allocation2 + $0x53]]
        %v5242 = vstv %s5241
        %v5243 = vmul.f32 %v5242, %v4803
        %v5244 = vmul.f32 %v5242, %v4804
        %v5247 = vrot.slane %v5243, 1
        %v5248 = vrot.slane %v5244, 1
        %v5249 = vsel %vm414, %v5247, %v5248
        %5250 = vrot.lane.b32.xlu0 %v5249, 125
        %v5251 = vpop.permute.xlu0 %5250
        %5252 = vrot.lane.b32.xlu0 %v5248, 125
        %v5253 = vpop.permute.xlu0 %5252
        %v5256 = vadd.f32 %v5188, %v5251
        %v5257 = vadd.f32 %v5189, %v5253
        %s5258 = sld [smem:[#allocation2 + $0xb7]]
        %v5259 = vstv %s5258
        %v5260 = vmul.f32 %v5259, %v4803
        %v5261 = vmul.f32 %v5259, %v4804
        %v5264 = vrot.slane %v5260, 1
        %v5265 = vrot.slane %v5261, 1
        %v5266 = vsel %vm414, %v5264, %v5265
        %5267 = vrot.lane.b32.xlu0 %v5266, 125
        %v5268 = vpop.permute.xlu0 %5267
        %5269 = vrot.lane.b32.xlu0 %v5265, 125
        %v5270 = vpop.permute.xlu0 %5269
        %v5273 = vadd.f32 %v5205, %v5268
        %v5274 = vadd.f32 %v5206, %v5270
        %s5275 = sld [smem:[#allocation2 + $0x11b]]
        %v5276 = vstv %s5275
        %v5277 = vmul.f32 %v5276, %v4803
        %v5278 = vmul.f32 %v5276, %v4804
        %v5281 = vrot.slane %v5277, 1
        %v5282 = vrot.slane %v5278, 1
        %v5283 = vsel %vm414, %v5281, %v5282
        %5284 = vrot.lane.b32.xlu0 %v5283, 125
        %v5285 = vpop.permute.xlu0 %5284
        %5286 = vrot.lane.b32.xlu0 %v5282, 125
        %v5287 = vpop.permute.xlu0 %5286
        %v5290 = vadd.f32 %v5222, %v5285
        %v5291 = vadd.f32 %v5223, %v5287
        %s5292 = sld [smem:[#allocation2 + $0x17f]]
        %v5293 = vstv %s5292
        %v5294 = vmul.f32 %v5293, %v4803
        %v5295 = vmul.f32 %v5293, %v4804
        %v5298 = vrot.slane %v5294, 1
        %v5299 = vrot.slane %v5295, 1
        %v5300 = vsel %vm414, %v5298, %v5299
        %5301 = vrot.lane.b32.xlu0 %v5300, 125
        %v5302 = vpop.permute.xlu0 %5301
        %5303 = vrot.lane.b32.xlu0 %v5299, 125
        %v5304 = vpop.permute.xlu0 %5303
        %v5307 = vadd.f32 %v5239, %v5302
        %v5308 = vadd.f32 %v5240, %v5304
        %s5309 = sld [smem:[#allocation2 + $0x54]]
        %v5310 = vstv %s5309
        %v5311 = vmul.f32 %v5310, %v4803
        %v5312 = vmul.f32 %v5310, %v4804
        %v5315 = vrot.slane %v5311, 1
        %v5316 = vrot.slane %v5312, 1
        %v5317 = vsel %vm414, %v5315, %v5316
        %5318 = vrot.lane.b32.xlu0 %v5317, 124
        %v5319 = vpop.permute.xlu0 %5318
        %5320 = vrot.lane.b32.xlu0 %v5316, 124
        %v5321 = vpop.permute.xlu0 %5320
        %v5324 = vadd.f32 %v5256, %v5319
        %v5325 = vadd.f32 %v5257, %v5321
        %s5326 = sld [smem:[#allocation2 + $0xb8]]
        %v5327 = vstv %s5326
        %v5328 = vmul.f32 %v5327, %v4803
        %v5329 = vmul.f32 %v5327, %v4804
        %v5332 = vrot.slane %v5328, 1
        %v5333 = vrot.slane %v5329, 1
        %v5334 = vsel %vm414, %v5332, %v5333
        %5335 = vrot.lane.b32.xlu0 %v5334, 124
        %v5336 = vpop.permute.xlu0 %5335
        %5337 = vrot.lane.b32.xlu0 %v5333, 124
        %v5338 = vpop.permute.xlu0 %5337
        %v5341 = vadd.f32 %v5273, %v5336
        %v5342 = vadd.f32 %v5274, %v5338
        %s5343 = sld [smem:[#allocation2 + $0x11c]]
        %v5344 = vstv %s5343
        %v5345 = vmul.f32 %v5344, %v4803
        %v5346 = vmul.f32 %v5344, %v4804
        %v5349 = vrot.slane %v5345, 1
        %v5350 = vrot.slane %v5346, 1
        %v5351 = vsel %vm414, %v5349, %v5350
        %5352 = vrot.lane.b32.xlu0 %v5351, 124
        %v5353 = vpop.permute.xlu0 %5352
        %5354 = vrot.lane.b32.xlu0 %v5350, 124
        %v5355 = vpop.permute.xlu0 %5354
        %v5358 = vadd.f32 %v5290, %v5353
        %v5359 = vadd.f32 %v5291, %v5355
        %s5360 = sld [smem:[#allocation2 + $0x180]]
        %v5361 = vstv %s5360
        %v5362 = vmul.f32 %v5361, %v4803
        %v5363 = vmul.f32 %v5361, %v4804
        %v5366 = vrot.slane %v5362, 1
        %v5367 = vrot.slane %v5363, 1
        %v5368 = vsel %vm414, %v5366, %v5367
        %5369 = vrot.lane.b32.xlu0 %v5368, 124
        %v5370 = vpop.permute.xlu0 %5369
        %5371 = vrot.lane.b32.xlu0 %v5367, 124
        %v5372 = vpop.permute.xlu0 %5371
        %v5375 = vadd.f32 %v5307, %v5370
        %v5376 = vadd.f32 %v5308, %v5372
        %s5377 = sld [smem:[#allocation2 + $0x55]]
        %v5378 = vstv %s5377
        %v5379 = vmul.f32 %v5378, %v4803
        %v5380 = vmul.f32 %v5378, %v4804
        %v5383 = vrot.slane %v5379, 2
        %v5384 = vrot.slane %v5380, 2
        %v5385 = vsel %vm739, %v5383, %v5384
        %v5388 = vadd.f32 %v5324, %v5385
        %v5389 = vadd.f32 %v5325, %v5384
        %s5390 = sld [smem:[#allocation2 + $0xb9]]
        %v5391 = vstv %s5390
        %v5392 = vmul.f32 %v5391, %v4803
        %v5393 = vmul.f32 %v5391, %v4804
        %v5396 = vrot.slane %v5392, 2
        %v5397 = vrot.slane %v5393, 2
        %v5398 = vsel %vm739, %v5396, %v5397
        %v5401 = vadd.f32 %v5341, %v5398
        %v5402 = vadd.f32 %v5342, %v5397
        %s5403 = sld [smem:[#allocation2 + $0x11d]]
        %v5404 = vstv %s5403
        %v5405 = vmul.f32 %v5404, %v4803
        %v5406 = vmul.f32 %v5404, %v4804
        %v5409 = vrot.slane %v5405, 2
        %v5410 = vrot.slane %v5406, 2
        %v5411 = vsel %vm739, %v5409, %v5410
        %v5414 = vadd.f32 %v5358, %v5411
        %v5415 = vadd.f32 %v5359, %v5410
        %s5416 = sld [smem:[#allocation2 + $0x181]]
        %v5417 = vstv %s5416
        %v5418 = vmul.f32 %v5417, %v4803
        %v5419 = vmul.f32 %v5417, %v4804
        %v5422 = vrot.slane %v5418, 2
        %v5423 = vrot.slane %v5419, 2
        %v5424 = vsel %vm739, %v5422, %v5423
        %v5427 = vadd.f32 %v5375, %v5424
        %v5428 = vadd.f32 %v5376, %v5423
        %s5429 = sld [smem:[#allocation2 + $0x56]]
        %v5430 = vstv %s5429
        %v5431 = vmul.f32 %v5430, %v4803
        %v5432 = vmul.f32 %v5430, %v4804
        %v5435 = vrot.slane %v5431, 2
        %v5436 = vrot.slane %v5432, 2
        %v5437 = vsel %vm739, %v5435, %v5436
        %5438 = vrot.lane.b32.xlu0 %v5437, 127
        %v5439 = vpop.permute.xlu0 %5438
        %5440 = vrot.lane.b32.xlu0 %v5436, 127
        %v5441 = vpop.permute.xlu0 %5440
        %v5444 = vadd.f32 %v5388, %v5439
        %v5445 = vadd.f32 %v5389, %v5441
        %s5446 = sld [smem:[#allocation2 + $0xba]]
        %v5447 = vstv %s5446
        %v5448 = vmul.f32 %v5447, %v4803
        %v5449 = vmul.f32 %v5447, %v4804
        %v5452 = vrot.slane %v5448, 2
        %v5453 = vrot.slane %v5449, 2
        %v5454 = vsel %vm739, %v5452, %v5453
        %5455 = vrot.lane.b32.xlu0 %v5454, 127
        %v5456 = vpop.permute.xlu0 %5455
        %5457 = vrot.lane.b32.xlu0 %v5453, 127
        %v5458 = vpop.permute.xlu0 %5457
        %v5461 = vadd.f32 %v5401, %v5456
        %v5462 = vadd.f32 %v5402, %v5458
        %s5463 = sld [smem:[#allocation2 + $0x11e]]
        %v5464 = vstv %s5463
        %v5465 = vmul.f32 %v5464, %v4803
        %v5466 = vmul.f32 %v5464, %v4804
        %v5469 = vrot.slane %v5465, 2
        %v5470 = vrot.slane %v5466, 2
        %v5471 = vsel %vm739, %v5469, %v5470
        %5472 = vrot.lane.b32.xlu0 %v5471, 127
        %v5473 = vpop.permute.xlu0 %5472
        %5474 = vrot.lane.b32.xlu0 %v5470, 127
        %v5475 = vpop.permute.xlu0 %5474
        %v5478 = vadd.f32 %v5414, %v5473
        %v5479 = vadd.f32 %v5415, %v5475
        %s5480 = sld [smem:[#allocation2 + $0x182]]
        %v5481 = vstv %s5480
        %v5482 = vmul.f32 %v5481, %v4803
        %v5483 = vmul.f32 %v5481, %v4804
        %v5486 = vrot.slane %v5482, 2
        %v5487 = vrot.slane %v5483, 2
        %v5488 = vsel %vm739, %v5486, %v5487
        %5489 = vrot.lane.b32.xlu0 %v5488, 127
        %v5490 = vpop.permute.xlu0 %5489
        %5491 = vrot.lane.b32.xlu0 %v5487, 127
        %v5492 = vpop.permute.xlu0 %5491
        %v5495 = vadd.f32 %v5427, %v5490
        %v5496 = vadd.f32 %v5428, %v5492
        %s5497 = sld [smem:[#allocation2 + $0x57]]
        %v5498 = vstv %s5497
        %v5499 = vmul.f32 %v5498, %v4803
        %v5500 = vmul.f32 %v5498, %v4804
        %v5503 = vrot.slane %v5499, 2
        %v5504 = vrot.slane %v5500, 2
        %v5505 = vsel %vm739, %v5503, %v5504
        %5506 = vrot.lane.b32.xlu0 %v5505, 126
        %v5507 = vpop.permute.xlu0 %5506
        %5508 = vrot.lane.b32.xlu0 %v5504, 126
        %v5509 = vpop.permute.xlu0 %5508
        %v5512 = vadd.f32 %v5444, %v5507
        %v5513 = vadd.f32 %v5445, %v5509
        %s5514 = sld [smem:[#allocation2 + $0xbb]]
        %v5515 = vstv %s5514
        %v5516 = vmul.f32 %v5515, %v4803
        %v5517 = vmul.f32 %v5515, %v4804
        %v5520 = vrot.slane %v5516, 2
        %v5521 = vrot.slane %v5517, 2
        %v5522 = vsel %vm739, %v5520, %v5521
        %5523 = vrot.lane.b32.xlu0 %v5522, 126
        %v5524 = vpop.permute.xlu0 %5523
        %5525 = vrot.lane.b32.xlu0 %v5521, 126
        %v5526 = vpop.permute.xlu0 %5525
        %v5529 = vadd.f32 %v5461, %v5524
        %v5530 = vadd.f32 %v5462, %v5526
        %s5531 = sld [smem:[#allocation2 + $0x11f]]
        %v5532 = vstv %s5531
        %v5533 = vmul.f32 %v5532, %v4803
        %v5534 = vmul.f32 %v5532, %v4804
        %v5537 = vrot.slane %v5533, 2
        %v5538 = vrot.slane %v5534, 2
        %v5539 = vsel %vm739, %v5537, %v5538
        %5540 = vrot.lane.b32.xlu0 %v5539, 126
        %v5541 = vpop.permute.xlu0 %5540
        %5542 = vrot.lane.b32.xlu0 %v5538, 126
        %v5543 = vpop.permute.xlu0 %5542
        %v5546 = vadd.f32 %v5478, %v5541
        %v5547 = vadd.f32 %v5479, %v5543
        %s5548 = sld [smem:[#allocation2 + $0x183]]
        %v5549 = vstv %s5548
        %v5550 = vmul.f32 %v5549, %v4803
        %v5551 = vmul.f32 %v5549, %v4804
        %v5554 = vrot.slane %v5550, 2
        %v5555 = vrot.slane %v5551, 2
        %v5556 = vsel %vm739, %v5554, %v5555
        %5557 = vrot.lane.b32.xlu0 %v5556, 126
        %v5558 = vpop.permute.xlu0 %5557
        %5559 = vrot.lane.b32.xlu0 %v5555, 126
        %v5560 = vpop.permute.xlu0 %5559
        %v5563 = vadd.f32 %v5495, %v5558
        %v5564 = vadd.f32 %v5496, %v5560
        %s5565 = sld [smem:[#allocation2 + $0x58]]
        %v5566 = vstv %s5565
        %v5567 = vmul.f32 %v5566, %v4803
        %v5568 = vmul.f32 %v5566, %v4804
        %v5571 = vrot.slane %v5567, 2
        %v5572 = vrot.slane %v5568, 2
        %v5573 = vsel %vm739, %v5571, %v5572
        %5574 = vrot.lane.b32.xlu0 %v5573, 125
        %v5575 = vpop.permute.xlu0 %5574
        %5576 = vrot.lane.b32.xlu0 %v5572, 125
        %v5577 = vpop.permute.xlu0 %5576
        %v5580 = vadd.f32 %v5512, %v5575
        %v5581 = vadd.f32 %v5513, %v5577
        %s5582 = sld [smem:[#allocation2 + $0xbc]]
        %v5583 = vstv %s5582
        %v5584 = vmul.f32 %v5583, %v4803
        %v5585 = vmul.f32 %v5583, %v4804
        %v5588 = vrot.slane %v5584, 2
        %v5589 = vrot.slane %v5585, 2
        %v5590 = vsel %vm739, %v5588, %v5589
        %5591 = vrot.lane.b32.xlu0 %v5590, 125
        %v5592 = vpop.permute.xlu0 %5591
        %5593 = vrot.lane.b32.xlu0 %v5589, 125
        %v5594 = vpop.permute.xlu0 %5593
        %v5597 = vadd.f32 %v5529, %v5592
        %v5598 = vadd.f32 %v5530, %v5594
        %s5599 = sld [smem:[#allocation2 + $0x120]]
        %v5600 = vstv %s5599
        %v5601 = vmul.f32 %v5600, %v4803
        %v5602 = vmul.f32 %v5600, %v4804
        %v5605 = vrot.slane %v5601, 2
        %v5606 = vrot.slane %v5602, 2
        %v5607 = vsel %vm739, %v5605, %v5606
        %5608 = vrot.lane.b32.xlu0 %v5607, 125
        %v5609 = vpop.permute.xlu0 %5608
        %5610 = vrot.lane.b32.xlu0 %v5606, 125
        %v5611 = vpop.permute.xlu0 %5610
        %v5614 = vadd.f32 %v5546, %v5609
        %v5615 = vadd.f32 %v5547, %v5611
        %s5616 = sld [smem:[#allocation2 + $0x184]]
        %v5617 = vstv %s5616
        %v5618 = vmul.f32 %v5617, %v4803
        %v5619 = vmul.f32 %v5617, %v4804
        %v5622 = vrot.slane %v5618, 2
        %v5623 = vrot.slane %v5619, 2
        %v5624 = vsel %vm739, %v5622, %v5623
        %5625 = vrot.lane.b32.xlu0 %v5624, 125
        %v5626 = vpop.permute.xlu0 %5625
        %5627 = vrot.lane.b32.xlu0 %v5623, 125
        %v5628 = vpop.permute.xlu0 %5627
        %v5631 = vadd.f32 %v5563, %v5626
        %v5632 = vadd.f32 %v5564, %v5628
        %s5633 = sld [smem:[#allocation2 + $0x59]]
        %v5634 = vstv %s5633
        %v5635 = vmul.f32 %v5634, %v4803
        %v5636 = vmul.f32 %v5634, %v4804
        %v5639 = vrot.slane %v5635, 2
        %v5640 = vrot.slane %v5636, 2
        %v5641 = vsel %vm739, %v5639, %v5640
        %5642 = vrot.lane.b32.xlu0 %v5641, 124
        %v5643 = vpop.permute.xlu0 %5642
        %5644 = vrot.lane.b32.xlu0 %v5640, 124
        %v5645 = vpop.permute.xlu0 %5644
        %v5648 = vadd.f32 %v5580, %v5643
        %v5649 = vadd.f32 %v5581, %v5645
        %s5650 = sld [smem:[#allocation2 + $0xbd]]
        %v5651 = vstv %s5650
        %v5652 = vmul.f32 %v5651, %v4803
        %v5653 = vmul.f32 %v5651, %v4804
        %v5656 = vrot.slane %v5652, 2
        %v5657 = vrot.slane %v5653, 2
        %v5658 = vsel %vm739, %v5656, %v5657
        %5659 = vrot.lane.b32.xlu0 %v5658, 124
        %v5660 = vpop.permute.xlu0 %5659
        %5661 = vrot.lane.b32.xlu0 %v5657, 124
        %v5662 = vpop.permute.xlu0 %5661
        %v5665 = vadd.f32 %v5597, %v5660
        %v5666 = vadd.f32 %v5598, %v5662
        %s5667 = sld [smem:[#allocation2 + $0x121]]
        %v5668 = vstv %s5667
        %v5669 = vmul.f32 %v5668, %v4803
        %v5670 = vmul.f32 %v5668, %v4804
        %v5673 = vrot.slane %v5669, 2
        %v5674 = vrot.slane %v5670, 2
        %v5675 = vsel %vm739, %v5673, %v5674
        %5676 = vrot.lane.b32.xlu0 %v5675, 124
        %v5677 = vpop.permute.xlu0 %5676
        %5678 = vrot.lane.b32.xlu0 %v5674, 124
        %v5679 = vpop.permute.xlu0 %5678
        %v5682 = vadd.f32 %v5614, %v5677
        %v5683 = vadd.f32 %v5615, %v5679
        %s5684 = sld [smem:[#allocation2 + $0x185]]
        %v5685 = vstv %s5684
        %v5686 = vmul.f32 %v5685, %v4803
        %v5687 = vmul.f32 %v5685, %v4804
        %v5690 = vrot.slane %v5686, 2
        %v5691 = vrot.slane %v5687, 2
        %v5692 = vsel %vm739, %v5690, %v5691
        %5693 = vrot.lane.b32.xlu0 %v5692, 124
        %v5694 = vpop.permute.xlu0 %5693
        %5695 = vrot.lane.b32.xlu0 %v5691, 124
        %v5696 = vpop.permute.xlu0 %5695
        %v5699 = vadd.f32 %v5631, %v5694
        %v5700 = vadd.f32 %v5632, %v5696
        %s5701 = sld [smem:[#allocation2 + $0x5a]]
        %v5702 = vstv %s5701
        %v5703 = vmul.f32 %v5702, %v4803
        %v5704 = vmul.f32 %v5702, %v4804
        %v5707 = vrot.slane %v5703, 3
        %v5708 = vrot.slane %v5704, 3
        %v5709 = vsel %vm1064, %v5707, %v5708
        %v5712 = vadd.f32 %v5648, %v5709
        %v5713 = vadd.f32 %v5649, %v5708
        %s5714 = sld [smem:[#allocation2 + $0xbe]]
        %v5715 = vstv %s5714
        %v5716 = vmul.f32 %v5715, %v4803
        %v5717 = vmul.f32 %v5715, %v4804
        %v5720 = vrot.slane %v5716, 3
        %v5721 = vrot.slane %v5717, 3
        %v5722 = vsel %vm1064, %v5720, %v5721
        %v5725 = vadd.f32 %v5665, %v5722
        %v5726 = vadd.f32 %v5666, %v5721
        %s5727 = sld [smem:[#allocation2 + $0x122]]
        %v5728 = vstv %s5727
        %v5729 = vmul.f32 %v5728, %v4803
        %v5730 = vmul.f32 %v5728, %v4804
        %v5733 = vrot.slane %v5729, 3
        %v5734 = vrot.slane %v5730, 3
        %v5735 = vsel %vm1064, %v5733, %v5734
        %v5738 = vadd.f32 %v5682, %v5735
        %v5739 = vadd.f32 %v5683, %v5734
        %s5740 = sld [smem:[#allocation2 + $0x186]]
        %v5741 = vstv %s5740
        %v5742 = vmul.f32 %v5741, %v4803
        %v5743 = vmul.f32 %v5741, %v4804
        %v5746 = vrot.slane %v5742, 3
        %v5747 = vrot.slane %v5743, 3
        %v5748 = vsel %vm1064, %v5746, %v5747
        %v5751 = vadd.f32 %v5699, %v5748
        %v5752 = vadd.f32 %v5700, %v5747
        %s5753 = sld [smem:[#allocation2 + $0x5b]]
        %v5754 = vstv %s5753
        %v5755 = vmul.f32 %v5754, %v4803
        %v5756 = vmul.f32 %v5754, %v4804
        %v5759 = vrot.slane %v5755, 3
        %v5760 = vrot.slane %v5756, 3
        %v5761 = vsel %vm1064, %v5759, %v5760
        %5762 = vrot.lane.b32.xlu0 %v5761, 127
        %v5763 = vpop.permute.xlu0 %5762
        %5764 = vrot.lane.b32.xlu0 %v5760, 127
        %v5765 = vpop.permute.xlu0 %5764
        %v5768 = vadd.f32 %v5712, %v5763
        %v5769 = vadd.f32 %v5713, %v5765
        %s5770 = sld [smem:[#allocation2 + $0xbf]]
        %v5771 = vstv %s5770
        %v5772 = vmul.f32 %v5771, %v4803
        %v5773 = vmul.f32 %v5771, %v4804
        %v5776 = vrot.slane %v5772, 3
        %v5777 = vrot.slane %v5773, 3
        %v5778 = vsel %vm1064, %v5776, %v5777
        %5779 = vrot.lane.b32.xlu0 %v5778, 127
        %v5780 = vpop.permute.xlu0 %5779
        %5781 = vrot.lane.b32.xlu0 %v5777, 127
        %v5782 = vpop.permute.xlu0 %5781
        %v5785 = vadd.f32 %v5725, %v5780
        %v5786 = vadd.f32 %v5726, %v5782
        %s5787 = sld [smem:[#allocation2 + $0x123]]
        %v5788 = vstv %s5787
        %v5789 = vmul.f32 %v5788, %v4803
        %v5790 = vmul.f32 %v5788, %v4804
        %v5793 = vrot.slane %v5789, 3
        %v5794 = vrot.slane %v5790, 3
        %v5795 = vsel %vm1064, %v5793, %v5794
        %5796 = vrot.lane.b32.xlu0 %v5795, 127
        %v5797 = vpop.permute.xlu0 %5796
        %5798 = vrot.lane.b32.xlu0 %v5794, 127
        %v5799 = vpop.permute.xlu0 %5798
        %v5802 = vadd.f32 %v5738, %v5797
        %v5803 = vadd.f32 %v5739, %v5799
        %s5804 = sld [smem:[#allocation2 + $0x187]]
        %v5805 = vstv %s5804
        %v5806 = vmul.f32 %v5805, %v4803
        %v5807 = vmul.f32 %v5805, %v4804
        %v5810 = vrot.slane %v5806, 3
        %v5811 = vrot.slane %v5807, 3
        %v5812 = vsel %vm1064, %v5810, %v5811
        %5813 = vrot.lane.b32.xlu0 %v5812, 127
        %v5814 = vpop.permute.xlu0 %5813
        %5815 = vrot.lane.b32.xlu0 %v5811, 127
        %v5816 = vpop.permute.xlu0 %5815
        %v5819 = vadd.f32 %v5751, %v5814
        %v5820 = vadd.f32 %v5752, %v5816
        %s5821 = sld [smem:[#allocation2 + $0x5c]]
        %v5822 = vstv %s5821
        %v5823 = vmul.f32 %v5822, %v4803
        %v5824 = vmul.f32 %v5822, %v4804
        %v5827 = vrot.slane %v5823, 3
        %v5828 = vrot.slane %v5824, 3
        %v5829 = vsel %vm1064, %v5827, %v5828
        %5830 = vrot.lane.b32.xlu0 %v5829, 126
        %v5831 = vpop.permute.xlu0 %5830
        %5832 = vrot.lane.b32.xlu0 %v5828, 126
        %v5833 = vpop.permute.xlu0 %5832
        %v5836 = vadd.f32 %v5768, %v5831
        %v5837 = vadd.f32 %v5769, %v5833
        %s5838 = sld [smem:[#allocation2 + $0xc0]]
        %v5839 = vstv %s5838
        %v5840 = vmul.f32 %v5839, %v4803
        %v5841 = vmul.f32 %v5839, %v4804
        %v5844 = vrot.slane %v5840, 3
        %v5845 = vrot.slane %v5841, 3
        %v5846 = vsel %vm1064, %v5844, %v5845
        %5847 = vrot.lane.b32.xlu0 %v5846, 126
        %v5848 = vpop.permute.xlu0 %5847
        %5849 = vrot.lane.b32.xlu0 %v5845, 126
        %v5850 = vpop.permute.xlu0 %5849
        %v5853 = vadd.f32 %v5785, %v5848
        %v5854 = vadd.f32 %v5786, %v5850
        %s5855 = sld [smem:[#allocation2 + $0x124]]
        %v5856 = vstv %s5855
        %v5857 = vmul.f32 %v5856, %v4803
        %v5858 = vmul.f32 %v5856, %v4804
        %v5861 = vrot.slane %v5857, 3
        %v5862 = vrot.slane %v5858, 3
        %v5863 = vsel %vm1064, %v5861, %v5862
        %5864 = vrot.lane.b32.xlu0 %v5863, 126
        %v5865 = vpop.permute.xlu0 %5864
        %5866 = vrot.lane.b32.xlu0 %v5862, 126
        %v5867 = vpop.permute.xlu0 %5866
        %v5870 = vadd.f32 %v5802, %v5865
        %v5871 = vadd.f32 %v5803, %v5867
        %s5872 = sld [smem:[#allocation2 + $0x188]]
        %v5873 = vstv %s5872
        %v5874 = vmul.f32 %v5873, %v4803
        %v5875 = vmul.f32 %v5873, %v4804
        %v5878 = vrot.slane %v5874, 3
        %v5879 = vrot.slane %v5875, 3
        %v5880 = vsel %vm1064, %v5878, %v5879
        %5881 = vrot.lane.b32.xlu0 %v5880, 126
        %v5882 = vpop.permute.xlu0 %5881
        %5883 = vrot.lane.b32.xlu0 %v5879, 126
        %v5884 = vpop.permute.xlu0 %5883
        %v5887 = vadd.f32 %v5819, %v5882
        %v5888 = vadd.f32 %v5820, %v5884
        %s5889 = sld [smem:[#allocation2 + $0x5d]]
        %v5890 = vstv %s5889
        %v5891 = vmul.f32 %v5890, %v4803
        %v5892 = vmul.f32 %v5890, %v4804
        %v5895 = vrot.slane %v5891, 3
        %v5896 = vrot.slane %v5892, 3
        %v5897 = vsel %vm1064, %v5895, %v5896
        %5898 = vrot.lane.b32.xlu0 %v5897, 125
        %v5899 = vpop.permute.xlu0 %5898
        %5900 = vrot.lane.b32.xlu0 %v5896, 125
        %v5901 = vpop.permute.xlu0 %5900
        %v5904 = vadd.f32 %v5836, %v5899
        %v5905 = vadd.f32 %v5837, %v5901
        %s5906 = sld [smem:[#allocation2 + $0xc1]]
        %v5907 = vstv %s5906
        %v5908 = vmul.f32 %v5907, %v4803
        %v5909 = vmul.f32 %v5907, %v4804
        %v5912 = vrot.slane %v5908, 3
        %v5913 = vrot.slane %v5909, 3
        %v5914 = vsel %vm1064, %v5912, %v5913
        %5915 = vrot.lane.b32.xlu0 %v5914, 125
        %v5916 = vpop.permute.xlu0 %5915
        %5917 = vrot.lane.b32.xlu0 %v5913, 125
        %v5918 = vpop.permute.xlu0 %5917
        %v5921 = vadd.f32 %v5853, %v5916
        %v5922 = vadd.f32 %v5854, %v5918
        %s5923 = sld [smem:[#allocation2 + $0x125]]
        %v5924 = vstv %s5923
        %v5925 = vmul.f32 %v5924, %v4803
        %v5926 = vmul.f32 %v5924, %v4804
        %v5929 = vrot.slane %v5925, 3
        %v5930 = vrot.slane %v5926, 3
        %v5931 = vsel %vm1064, %v5929, %v5930
        %5932 = vrot.lane.b32.xlu0 %v5931, 125
        %v5933 = vpop.permute.xlu0 %5932
        %5934 = vrot.lane.b32.xlu0 %v5930, 125
        %v5935 = vpop.permute.xlu0 %5934
        %v5938 = vadd.f32 %v5870, %v5933
        %v5939 = vadd.f32 %v5871, %v5935
        %s5940 = sld [smem:[#allocation2 + $0x189]]
        %v5941 = vstv %s5940
        %v5942 = vmul.f32 %v5941, %v4803
        %v5943 = vmul.f32 %v5941, %v4804
        %v5946 = vrot.slane %v5942, 3
        %v5947 = vrot.slane %v5943, 3
        %v5948 = vsel %vm1064, %v5946, %v5947
        %5949 = vrot.lane.b32.xlu0 %v5948, 125
        %v5950 = vpop.permute.xlu0 %5949
        %5951 = vrot.lane.b32.xlu0 %v5947, 125
        %v5952 = vpop.permute.xlu0 %5951
        %v5955 = vadd.f32 %v5887, %v5950
        %v5956 = vadd.f32 %v5888, %v5952
        %s5957 = sld [smem:[#allocation2 + $0x5e]]
        %v5958 = vstv %s5957
        %v5959 = vmul.f32 %v5958, %v4803
        %v5960 = vmul.f32 %v5958, %v4804
        %v5963 = vrot.slane %v5959, 3
        %v5964 = vrot.slane %v5960, 3
        %v5965 = vsel %vm1064, %v5963, %v5964
        %5966 = vrot.lane.b32.xlu0 %v5965, 124
        %v5967 = vpop.permute.xlu0 %5966
        %5968 = vrot.lane.b32.xlu0 %v5964, 124
        %v5969 = vpop.permute.xlu0 %5968
        %v5972 = vadd.f32 %v5904, %v5967
        %v5973 = vadd.f32 %v5905, %v5969
        %s5974 = sld [smem:[#allocation2 + $0xc2]]
        %v5975 = vstv %s5974
        %v5976 = vmul.f32 %v5975, %v4803
        %v5977 = vmul.f32 %v5975, %v4804
        %v5980 = vrot.slane %v5976, 3
        %v5981 = vrot.slane %v5977, 3
        %v5982 = vsel %vm1064, %v5980, %v5981
        %5983 = vrot.lane.b32.xlu0 %v5982, 124
        %v5984 = vpop.permute.xlu0 %5983
        %5985 = vrot.lane.b32.xlu0 %v5981, 124
        %v5986 = vpop.permute.xlu0 %5985
        %v5989 = vadd.f32 %v5921, %v5984
        %v5990 = vadd.f32 %v5922, %v5986
        %s5991 = sld [smem:[#allocation2 + $0x126]]
        %v5992 = vstv %s5991
        %v5993 = vmul.f32 %v5992, %v4803
        %v5994 = vmul.f32 %v5992, %v4804
        %v5997 = vrot.slane %v5993, 3
        %v5998 = vrot.slane %v5994, 3
        %v5999 = vsel %vm1064, %v5997, %v5998
        %6000 = vrot.lane.b32.xlu0 %v5999, 124
        %v6001 = vpop.permute.xlu0 %6000
        %6002 = vrot.lane.b32.xlu0 %v5998, 124
        %v6003 = vpop.permute.xlu0 %6002
        %v6006 = vadd.f32 %v5938, %v6001
        %v6007 = vadd.f32 %v5939, %v6003
        %s6008 = sld [smem:[#allocation2 + $0x18a]]
        %v6009 = vstv %s6008
        %v6010 = vmul.f32 %v6009, %v4803
        %v6011 = vmul.f32 %v6009, %v4804
        %v6014 = vrot.slane %v6010, 3
        %v6015 = vrot.slane %v6011, 3
        %v6016 = vsel %vm1064, %v6014, %v6015
        %6017 = vrot.lane.b32.xlu0 %v6016, 124
        %v6018 = vpop.permute.xlu0 %6017
        %6019 = vrot.lane.b32.xlu0 %v6015, 124
        %v6020 = vpop.permute.xlu0 %6019
        %v6023 = vadd.f32 %v5955, %v6018
        %v6024 = vadd.f32 %v5956, %v6020
        %s6025 = sld [smem:[#allocation2 + $0x5f]]
        %v6026 = vstv %s6025
        %v6027 = vmul.f32 %v6026, %v4803
        %v6028 = vmul.f32 %v6026, %v4804
        %v6031 = vrot.slane %v6027, 4
        %v6032 = vrot.slane %v6028, 4
        %v6033 = vsel %vm1389, %v6031, %v6032
        %v6036 = vadd.f32 %v5972, %v6033
        %v6037 = vadd.f32 %v5973, %v6032
        %s6038 = sld [smem:[#allocation2 + $0xc3]]
        %v6039 = vstv %s6038
        %v6040 = vmul.f32 %v6039, %v4803
        %v6041 = vmul.f32 %v6039, %v4804
        %v6044 = vrot.slane %v6040, 4
        %v6045 = vrot.slane %v6041, 4
        %v6046 = vsel %vm1389, %v6044, %v6045
        %v6049 = vadd.f32 %v5989, %v6046
        %v6050 = vadd.f32 %v5990, %v6045
        %s6051 = sld [smem:[#allocation2 + $0x127]]
        %v6052 = vstv %s6051
        %v6053 = vmul.f32 %v6052, %v4803
        %v6054 = vmul.f32 %v6052, %v4804
        %v6057 = vrot.slane %v6053, 4
        %v6058 = vrot.slane %v6054, 4
        %v6059 = vsel %vm1389, %v6057, %v6058
        %v6062 = vadd.f32 %v6006, %v6059
        %v6063 = vadd.f32 %v6007, %v6058
        %s6064 = sld [smem:[#allocation2 + $0x18b]]
        %v6065 = vstv %s6064
        %v6066 = vmul.f32 %v6065, %v4803
        %v6067 = vmul.f32 %v6065, %v4804
        %v6070 = vrot.slane %v6066, 4
        %v6071 = vrot.slane %v6067, 4
        %v6072 = vsel %vm1389, %v6070, %v6071
        %v6075 = vadd.f32 %v6023, %v6072
        %v6076 = vadd.f32 %v6024, %v6071
        %s6077 = sld [smem:[#allocation2 + $0x60]]
        %v6078 = vstv %s6077
        %v6079 = vmul.f32 %v6078, %v4803
        %v6080 = vmul.f32 %v6078, %v4804
        %v6083 = vrot.slane %v6079, 4
        %v6084 = vrot.slane %v6080, 4
        %v6085 = vsel %vm1389, %v6083, %v6084
        %6086 = vrot.lane.b32.xlu0 %v6085, 127
        %v6087 = vpop.permute.xlu0 %6086
        %6088 = vrot.lane.b32.xlu0 %v6084, 127
        %v6089 = vpop.permute.xlu0 %6088
        %v6092 = vadd.f32 %v6036, %v6087
        %v6093 = vadd.f32 %v6037, %v6089
        %s6094 = sld [smem:[#allocation2 + $0xc4]]
        %v6095 = vstv %s6094
        %v6096 = vmul.f32 %v6095, %v4803
        %v6097 = vmul.f32 %v6095, %v4804
        %v6100 = vrot.slane %v6096, 4
        %v6101 = vrot.slane %v6097, 4
        %v6102 = vsel %vm1389, %v6100, %v6101
        %6103 = vrot.lane.b32.xlu0 %v6102, 127
        %v6104 = vpop.permute.xlu0 %6103
        %6105 = vrot.lane.b32.xlu0 %v6101, 127
        %v6106 = vpop.permute.xlu0 %6105
        %v6109 = vadd.f32 %v6049, %v6104
        %v6110 = vadd.f32 %v6050, %v6106
        %s6111 = sld [smem:[#allocation2 + $0x128]]
        %v6112 = vstv %s6111
        %v6113 = vmul.f32 %v6112, %v4803
        %v6114 = vmul.f32 %v6112, %v4804
        %v6117 = vrot.slane %v6113, 4
        %v6118 = vrot.slane %v6114, 4
        %v6119 = vsel %vm1389, %v6117, %v6118
        %6120 = vrot.lane.b32.xlu0 %v6119, 127
        %v6121 = vpop.permute.xlu0 %6120
        %6122 = vrot.lane.b32.xlu0 %v6118, 127
        %v6123 = vpop.permute.xlu0 %6122
        %v6126 = vadd.f32 %v6062, %v6121
        %v6127 = vadd.f32 %v6063, %v6123
        %s6128 = sld [smem:[#allocation2 + $0x18c]]
        %v6129 = vstv %s6128
        %v6130 = vmul.f32 %v6129, %v4803
        %v6131 = vmul.f32 %v6129, %v4804
        %v6134 = vrot.slane %v6130, 4
        %v6135 = vrot.slane %v6131, 4
        %v6136 = vsel %vm1389, %v6134, %v6135
        %6137 = vrot.lane.b32.xlu0 %v6136, 127
        %v6138 = vpop.permute.xlu0 %6137
        %6139 = vrot.lane.b32.xlu0 %v6135, 127
        %v6140 = vpop.permute.xlu0 %6139
        %v6143 = vadd.f32 %v6075, %v6138
        %v6144 = vadd.f32 %v6076, %v6140
        %s6145 = sld [smem:[#allocation2 + $0x61]]
        %v6146 = vstv %s6145
        %v6147 = vmul.f32 %v6146, %v4803
        %v6148 = vmul.f32 %v6146, %v4804
        %v6151 = vrot.slane %v6147, 4
        %v6152 = vrot.slane %v6148, 4
        %v6153 = vsel %vm1389, %v6151, %v6152
        %6154 = vrot.lane.b32.xlu0 %v6153, 126
        %v6155 = vpop.permute.xlu0 %6154
        %6156 = vrot.lane.b32.xlu0 %v6152, 126
        %v6157 = vpop.permute.xlu0 %6156
        %v6160 = vadd.f32 %v6092, %v6155
        %v6161 = vadd.f32 %v6093, %v6157
        %s6162 = sld [smem:[#allocation2 + $0xc5]]
        %v6163 = vstv %s6162
        %v6164 = vmul.f32 %v6163, %v4803
        %v6165 = vmul.f32 %v6163, %v4804
        %v6168 = vrot.slane %v6164, 4
        %v6169 = vrot.slane %v6165, 4
        %v6170 = vsel %vm1389, %v6168, %v6169
        %6171 = vrot.lane.b32.xlu0 %v6170, 126
        %v6172 = vpop.permute.xlu0 %6171
        %6173 = vrot.lane.b32.xlu0 %v6169, 126
        %v6174 = vpop.permute.xlu0 %6173
        %v6177 = vadd.f32 %v6109, %v6172
        %v6178 = vadd.f32 %v6110, %v6174
        %s6179 = sld [smem:[#allocation2 + $0x129]]
        %v6180 = vstv %s6179
        %v6181 = vmul.f32 %v6180, %v4803
        %v6182 = vmul.f32 %v6180, %v4804
        %v6185 = vrot.slane %v6181, 4
        %v6186 = vrot.slane %v6182, 4
        %v6187 = vsel %vm1389, %v6185, %v6186
        %6188 = vrot.lane.b32.xlu0 %v6187, 126
        %v6189 = vpop.permute.xlu0 %6188
        %6190 = vrot.lane.b32.xlu0 %v6186, 126
        %v6191 = vpop.permute.xlu0 %6190
        %v6194 = vadd.f32 %v6126, %v6189
        %v6195 = vadd.f32 %v6127, %v6191
        %s6196 = sld [smem:[#allocation2 + $0x18d]]
        %v6197 = vstv %s6196
        %v6198 = vmul.f32 %v6197, %v4803
        %v6199 = vmul.f32 %v6197, %v4804
        %v6202 = vrot.slane %v6198, 4
        %v6203 = vrot.slane %v6199, 4
        %v6204 = vsel %vm1389, %v6202, %v6203
        %6205 = vrot.lane.b32.xlu0 %v6204, 126
        %v6206 = vpop.permute.xlu0 %6205
        %6207 = vrot.lane.b32.xlu0 %v6203, 126
        %v6208 = vpop.permute.xlu0 %6207
        %v6211 = vadd.f32 %v6143, %v6206
        %v6212 = vadd.f32 %v6144, %v6208
        %s6213 = sld [smem:[#allocation2 + $0x62]]
        %v6214 = vstv %s6213
        %v6215 = vmul.f32 %v6214, %v4803
        %v6216 = vmul.f32 %v6214, %v4804
        %v6219 = vrot.slane %v6215, 4
        %v6220 = vrot.slane %v6216, 4
        %v6221 = vsel %vm1389, %v6219, %v6220
        %6222 = vrot.lane.b32.xlu0 %v6221, 125
        %v6223 = vpop.permute.xlu0 %6222
        %6224 = vrot.lane.b32.xlu0 %v6220, 125
        %v6225 = vpop.permute.xlu0 %6224
        %v6228 = vadd.f32 %v6160, %v6223
        %v6229 = vadd.f32 %v6161, %v6225
        %s6230 = sld [smem:[#allocation2 + $0xc6]]
        %v6231 = vstv %s6230
        %v6232 = vmul.f32 %v6231, %v4803
        %v6233 = vmul.f32 %v6231, %v4804
        %v6236 = vrot.slane %v6232, 4
        %v6237 = vrot.slane %v6233, 4
        %v6238 = vsel %vm1389, %v6236, %v6237
        %6239 = vrot.lane.b32.xlu0 %v6238, 125
        %v6240 = vpop.permute.xlu0 %6239
        %6241 = vrot.lane.b32.xlu0 %v6237, 125
        %v6242 = vpop.permute.xlu0 %6241
        %v6245 = vadd.f32 %v6177, %v6240
        %v6246 = vadd.f32 %v6178, %v6242
        %s6247 = sld [smem:[#allocation2 + $0x12a]]
        %v6248 = vstv %s6247
        %v6249 = vmul.f32 %v6248, %v4803
        %v6250 = vmul.f32 %v6248, %v4804
        %v6253 = vrot.slane %v6249, 4
        %v6254 = vrot.slane %v6250, 4
        %v6255 = vsel %vm1389, %v6253, %v6254
        %6256 = vrot.lane.b32.xlu0 %v6255, 125
        %v6257 = vpop.permute.xlu0 %6256
        %6258 = vrot.lane.b32.xlu0 %v6254, 125
        %v6259 = vpop.permute.xlu0 %6258
        %v6262 = vadd.f32 %v6194, %v6257
        %v6263 = vadd.f32 %v6195, %v6259
        %s6264 = sld [smem:[#allocation2 + $0x18e]]
        %v6265 = vstv %s6264
        %v6266 = vmul.f32 %v6265, %v4803
        %v6267 = vmul.f32 %v6265, %v4804
        %v6270 = vrot.slane %v6266, 4
        %v6271 = vrot.slane %v6267, 4
        %v6272 = vsel %vm1389, %v6270, %v6271
        %6273 = vrot.lane.b32.xlu0 %v6272, 125
        %v6274 = vpop.permute.xlu0 %6273
        %6275 = vrot.lane.b32.xlu0 %v6271, 125
        %v6276 = vpop.permute.xlu0 %6275
        %v6279 = vadd.f32 %v6211, %v6274
        %v6280 = vadd.f32 %v6212, %v6276
        %s6281 = sld [smem:[#allocation2 + $0x63]]
        %v6282 = vstv %s6281
        %v6283 = vmul.f32 %v6282, %v4803
        %v6284 = vmul.f32 %v6282, %v4804
        %v6287 = vrot.slane %v6283, 4
        %v6288 = vrot.slane %v6284, 4
        %v6289 = vsel %vm1389, %v6287, %v6288
        %6290 = vrot.lane.b32.xlu0 %v6289, 124
        %v6291 = vpop.permute.xlu0 %6290
        %6292 = vrot.lane.b32.xlu0 %v6288, 124
        %v6293 = vpop.permute.xlu0 %6292
        %v6296 = vadd.f32 %v6228, %v6291
        %v6297 = vadd.f32 %v6229, %v6293
        %s6298 = sld [smem:[#allocation2 + $0xc7]]
        %v6299 = vstv %s6298
        %v6300 = vmul.f32 %v6299, %v4803
        %v6301 = vmul.f32 %v6299, %v4804
        %v6304 = vrot.slane %v6300, 4
        %v6305 = vrot.slane %v6301, 4
        %v6306 = vsel %vm1389, %v6304, %v6305
        %6307 = vrot.lane.b32.xlu0 %v6306, 124
        %v6308 = vpop.permute.xlu0 %6307
        %6309 = vrot.lane.b32.xlu0 %v6305, 124
        %v6310 = vpop.permute.xlu0 %6309
        %v6313 = vadd.f32 %v6245, %v6308
        %v6314 = vadd.f32 %v6246, %v6310
        %s6315 = sld [smem:[#allocation2 + $0x12b]]
        %v6316 = vstv %s6315
        %v6317 = vmul.f32 %v6316, %v4803
        %v6318 = vmul.f32 %v6316, %v4804
        %v6321 = vrot.slane %v6317, 4
        %v6322 = vrot.slane %v6318, 4
        %v6323 = vsel %vm1389, %v6321, %v6322
        %6324 = vrot.lane.b32.xlu0 %v6323, 124
        %v6325 = vpop.permute.xlu0 %6324
        %6326 = vrot.lane.b32.xlu0 %v6322, 124
        %v6327 = vpop.permute.xlu0 %6326
        %v6330 = vadd.f32 %v6262, %v6325
        %v6331 = vadd.f32 %v6263, %v6327
        %s6332 = sld [smem:[#allocation2 + $0x18f]]
        %v6333 = vstv %s6332
        %v6334 = vmul.f32 %v6333, %v4803
        %v6335 = vmul.f32 %v6333, %v4804
        %v6338 = vrot.slane %v6334, 4
        %v6339 = vrot.slane %v6335, 4
        %v6340 = vsel %vm1389, %v6338, %v6339
        %6341 = vrot.lane.b32.xlu0 %v6340, 124
        %v6342 = vpop.permute.xlu0 %6341
        %6343 = vrot.lane.b32.xlu0 %v6339, 124
        %v6344 = vpop.permute.xlu0 %6343
        %v6347 = vadd.f32 %v6279, %v6342
        %v6348 = vadd.f32 %v6280, %v6344
        %vm6349 = vcmask 97280
        %6350 = vst.msk [vmem:[%s157] sm:$0xff] %vm6349, %v6296
        %vm6351 = vcmask 93184
        %6352 = vst.msk [vmem:[%s157 + $0x8] sm:$0xf] %vm6351, %v6297
        %s6353 = scalar_lea.vmem %s157, 16
        %6354 = vst.msk [vmem:[%s6353] sm:$0xff] %vm6349, %v6313
        %6355 = vst.msk [vmem:[%s6353 + $0x8] sm:$0xf] %vm6351, %v6314
        %s6356 = scalar_lea.vmem %s157, 32
        %6357 = vst.msk [vmem:[%s6356] sm:$0xff] %vm6349, %v6330
        %6358 = vst.msk [vmem:[%s6356 + $0x8] sm:$0xf] %vm6351, %v6331
        %s6359 = scalar_lea.vmem %s157, 48
        %6360 = vst.msk [vmem:[%s6359] sm:$0xff] %vm6349, %v6347
        %6361 = vst.msk [vmem:[%s6359 + $0x8] sm:$0xf] %vm6351, %v6348
        %p6362 = scmp.lt.s32.totalorder %s14, 1
        %s6363 = scalar_select %p6362, %s14, 1
        %s6364 = smul.addr %s6363, 8
        %s6365 = smul.addr %s6364, 8
        %s6366 = scalar_lea.vmem %s2, %s6365
        // Predicated region
        $region33: #{bayar_conv2d.1} parent=27 // pred_check
          %p6367 = pneg %p79
        $region34: #{bayar_conv2d.1} parent=27 // pred_check_branch
          %6369 = sbr.rel (%p6367) target = $region36
        $region35: #{bayar_conv2d.1} parent=27 // pred_region
          _
        $region36: #{bayar_conv2d.1} parent=27 // pred_fallthru
          _
      $region28: #{bayar_conv2d.1} parent=5 // pred_fallthru
        _
      %p6370 = scmp.le.s32.totalorder 2, %s9
      // Predicated region
      $region37: #{bayar_conv2d.1} parent=5 // pred_check
        %p6371 = pneg %p6370
      $region38: #{bayar_conv2d.1} parent=5 // pred_check_branch
        %6373 = sbr.rel (%p6371) target = $region40
      $region39: #{bayar_conv2d.1} parent=5 // pred_region
        %s6374 = ssub.s32 %s9, 2
        // Predicated region
        $region41: #{bayar_conv2d.1} parent=39 // pred_check
          %p6375 = pneg %p85
        $region42: #{bayar_conv2d.1} parent=39 // pred_check_branch
          %6377 = sbr.rel (%p6375) target = $region44
        $region43: #{bayar_conv2d.1} parent=39 // pred_region
          %p6378 = scmp.lt.s32.totalorder %s15, 1
          %s6379 = scalar_select %p6378, %s15, 1
          %s6380 = smul.addr %s6379, 8
          %s6381 = smul.addr %s6380, 8
          %s6382 = scalar_lea.vmem %s2, %s6381
        $region44: #{bayar_conv2d.1} parent=39 // pred_fallthru
          _
      $region40: #{bayar_conv2d.1} parent=5 // pred_fallthru
        _
    $region6: #{bayar_conv2d.1} parent=1 // loop_footer
      %s13 = sadd.s32 1, %s9
    $region7: #{bayar_conv2d.1} parent=1 // loop_footer_branch
      %8 = sbr.rel target = $region3
    $region8: #{bayar_conv2d.1} parent=1 // loop_exit
      _
    %6383 = vsyncpa [#allocation3], 1
    %s6384 = scalar_lea.sflag [#allocation3], 1
    %6385 = vsyncpa %s6384, 1

</llo_original>
